<compile_context>
chip_gen: v5e
topology: v5e:2x2
jax: 0.10.0
libtpu: 0.0.40
codegen_flags: <defaults>
</compile_context>

<pallas_src>
import functools

import jax
import jax.numpy as jnp
from jax.experimental import pallas as pl
from jax.experimental.pallas import tpu as pltpu

BN_EPS = 1e-5
KSIZE = 3
PAD = 1


def _round_up(x, m):
    return (x + m - 1) // m * m


# ----------------------------------------------------------------------------
# Pallas kernel bodies
# ----------------------------------------------------------------------------
def _conv_bn_silu(phases_ref, w_ref, gamma_ref, beta_ref, mask_ref,
                  plan, m_flat, n_valid):
    """Fused 3x3 conv (9 shifted-window matmuls) + train-mode BN + SiLU.

    phases_ref: (P, R, Cin) bf16 flattened pitch-matched input windows.
                Output row m (padded output-grid flattening) reads
                phases[p, m + delta, :] for each static tap (p, delta).
    w_ref:      (9, Cin, Cout) f32 per-tap weights.
    gamma_ref / beta_ref: (1, Cout) f32.
    mask_ref:   (m_flat, 1) f32; 1.0 on valid output rows, 0.0 on pad rows.
    Returns the masked f32 activation of shape (m_flat, Cout).
    """
    nph = phases_ref.shape[0]
    xs = [phases_ref[p].astype(jnp.float32) for p in range(nph)]

    acc = None
    for t, (p, delta) in enumerate(plan):
        x = xs[p][delta:delta + m_flat, :]                       # (m_flat, Cin)
        part = jnp.dot(x, w_ref[t], preferred_element_type=jnp.float32)
        acc = part if acc is None else acc + part

    mask = mask_ref[...]                                          # (m_flat, 1)
    inv_n = 1.0 / n_valid
    mean = jnp.sum(acc * mask, axis=0, keepdims=True) * inv_n     # (1, Cout)
    cent = (acc - mean) * mask
    var = jnp.sum(cent * cent, axis=0, keepdims=True) * inv_n     # biased var
    inv_std = jax.lax.rsqrt(var + BN_EPS)
    scale = gamma_ref[...] * inv_std
    shift = beta_ref[...] - mean * scale
    y = acc * scale + shift
    y = y * jax.nn.sigmoid(y)                                     # SiLU (f32)
    return y * mask                                               # zero pad rows


def _layer_kernel(phases_ref, w_ref, gamma_ref, beta_ref, mask_ref, out_ref,
                  *, plan, m_flat, n_valid):
    y = _conv_bn_silu(phases_ref, w_ref, gamma_ref, beta_ref, mask_ref,
                      plan, m_flat, n_valid)
    out_ref[...] = y.astype(out_ref.dtype)


def _layer_head_kernel(phases_ref, w_ref, gamma_ref, beta_ref, mask_ref,
                       poolm_ref, hw_ref, hb_ref, feat_ref, logits_ref,
                       *, plan, m_flat, n_valid):
    y = _conv_bn_silu(phases_ref, w_ref, gamma_ref, beta_ref, mask_ref,
                      plan, m_flat, n_valid)
    feat_ref[...] = y.astype(feat_ref.dtype)
    # Global-average-pool while the activation is still in VMEM, then the
    # tiny linear head -- no HBM re-read of the feature map.
    pooled = jnp.dot(poolm_ref[...], y, preferred_element_type=jnp.float32)
    logits_ref[...] = (jnp.dot(pooled, hw_ref[...],
                               preferred_element_type=jnp.float32)
                       + hb_ref[...]).astype(logits_ref.dtype)


# ----------------------------------------------------------------------------
# Plain-JAX glue: spatial pad, stride-phase split, masks (no 9x blow-up)
# ----------------------------------------------------------------------------
def _prep_conv_inputs(x_nhwc, stride):
    """Flattened, pitch-matched conv inputs for the fused kernel.

    Returns (phases, plan, mask, (N, gh, gw, Ho, Wo), m_flat).  `phases` is
    (P, m_flat + max_shift, Cin) bf16; the valid output lives in the top-left
    (Ho, Wo) corner of each image's padded (gh, gw) output grid.
    """
    N, H, W, C = x_nhwc.shape
    Ho = (H + 2 * PAD - KSIZE) // stride + 1
    Wo = (W + 2 * PAD - KSIZE) // stride + 1
    xp = jnp.pad(x_nhwc, ((0, 0), (PAD, PAD), (PAD, PAD), (0, 0)))
    if stride == 1:
        gh, gw = H + 2 * PAD, W + 2 * PAD
        phases = xp.reshape(1, N * gh * gw, C)
        plan = tuple((0, kh * gw + kw)
                     for kh in range(KSIZE) for kw in range(KSIZE))
    elif stride == 2:
        gh, gw = Ho + 1, Wo + 1
        xp = jnp.pad(xp, ((0, 0), (0, 2 * gh - xp.shape[1]),
                          (0, 2 * gw - xp.shape[2]), (0, 0)))
        ph = [xp[:, i::2, j::2, :] for i in range(2) for j in range(2)]
        phases = jnp.stack(ph, axis=0).reshape(4, N * gh * gw, C)
        plan = tuple((2 * (kh % 2) + (kw % 2), (kh // 2) * gw + (kw // 2))
                     for kh in range(KSIZE) for kw in range(KSIZE))
    else:
        raise ValueError(f"unsupported stride {stride}")
    m_flat = N * gh * gw
    max_d = max(d for _, d in plan)
    phases = jnp.pad(phases, ((0, 0), (0, max_d), (0, 0)))
    phases = phases.astype(jnp.bfloat16)
    valid = (jnp.arange(gh)[:, None] < Ho) & (jnp.arange(gw)[None, :] < Wo)
    mask = jnp.broadcast_to(valid[None], (N, gh, gw))
    mask = mask.reshape(m_flat, 1).astype(jnp.float32)
    return phases, plan, mask, (N, gh, gw, Ho, Wo), m_flat


def _pad_cin(x_nhwc, w_hwio):
    """Round the contraction (input-channel) dim up to a multiple of 8."""
    cin = x_nhwc.shape[-1]
    cin_pad = _round_up(cin, 8)
    if cin_pad != cin:
        x_nhwc = jnp.pad(x_nhwc, ((0, 0), (0, 0), (0, 0), (0, cin_pad - cin)))
        w_hwio = jnp.pad(w_hwio, ((0, 0), (0, 0), (0, cin_pad - cin), (0, 0)))
    return x_nhwc, w_hwio


# ----------------------------------------------------------------------------
# Layer wrappers
# ----------------------------------------------------------------------------
def conv_bn_silu_layer(x_nhwc, w_hwio, gamma, beta, stride, out_dtype):
    x_nhwc, w_hwio = _pad_cin(x_nhwc, w_hwio)
    cin = x_nhwc.shape[-1]
    cout = w_hwio.shape[-1]
    phases, plan, mask, dims, m_flat = _prep_conv_inputs(x_nhwc, stride)
    N, gh, gw, Ho, Wo = dims
    w9 = w_hwio.reshape(KSIZE * KSIZE, cin, cout).astype(jnp.float32)
    gamma2 = gamma.reshape(1, cout).astype(jnp.float32)
    beta2 = beta.reshape(1, cout).astype(jnp.float32)

    y = pl.pallas_call(
        functools.partial(_layer_kernel, plan=plan, m_flat=m_flat,
                          n_valid=float(N * Ho * Wo)),
        out_shape=jax.ShapeDtypeStruct((m_flat, cout), out_dtype),
        grid=(1,),
        in_specs=[
            pl.BlockSpec(phases.shape, lambda i: (0, 0, 0)),
            pl.BlockSpec(w9.shape, lambda i: (0, 0, 0)),
            pl.BlockSpec((1, cout), lambda i: (0, 0)),
            pl.BlockSpec((1, cout), lambda i: (0, 0)),
            pl.BlockSpec((m_flat, 1), lambda i: (0, 0)),
        ],
        out_specs=pl.BlockSpec((m_flat, cout), lambda i: (0, 0)),
        compiler_params=pltpu.CompilerParams(
            dimension_semantics=("arbitrary",)),
    )(phases, w9, gamma2, beta2, mask)

    return y.reshape(N, gh, gw, cout)[:, :Ho, :Wo, :]


def conv_bn_silu_head_layer(x_nhwc, w_hwio, gamma, beta, head_w, head_b):
    x_nhwc, w_hwio = _pad_cin(x_nhwc, w_hwio)
    cin = x_nhwc.shape[-1]
    cout = w_hwio.shape[-1]
    out_dim = head_w.shape[-1]
    phases, plan, mask, dims, m_flat = _prep_conv_inputs(x_nhwc, 1)
    N, gh, gw, Ho, Wo = dims
    w9 = w_hwio.reshape(KSIZE * KSIZE, cin, cout).astype(jnp.float32)
    gamma2 = gamma.reshape(1, cout).astype(jnp.float32)
    beta2 = beta.reshape(1, cout).astype(jnp.float32)

    # Row -> image pooling matrix (contains the valid-row mask and the
    # 1/(Ho*Wo) GAP factor), so GAP happens inside the kernel.
    img_id = jnp.repeat(jnp.arange(N), gh * gw)                   # (m_flat,)
    sel = (img_id[None, :] == jnp.arange(N)[:, None]).astype(jnp.float32)
    pool_mat = sel * mask[:, 0][None, :] / float(Ho * Wo)         # (N, m_flat)

    hw = head_w.astype(jnp.float32)
    hb = head_b.reshape(1, out_dim).astype(jnp.float32)

    feat_flat, logits = pl.pallas_call(
        functools.partial(_layer_head_kernel, plan=plan, m_flat=m_flat,
                          n_valid=float(N * Ho * Wo)),
        out_shape=(jax.ShapeDtypeStruct((m_flat, cout), jnp.float32),
                   jax.ShapeDtypeStruct((N, out_dim), jnp.float32)),
        grid=(1,),
        in_specs=[
            pl.BlockSpec(phases.shape, lambda i: (0, 0, 0)),
            pl.BlockSpec(w9.shape, lambda i: (0, 0, 0)),
            pl.BlockSpec((1, cout), lambda i: (0, 0)),
            pl.BlockSpec((1, cout), lambda i: (0, 0)),
            pl.BlockSpec((m_flat, 1), lambda i: (0, 0)),
            pl.BlockSpec((N, m_flat), lambda i: (0, 0)),
            pl.BlockSpec((cout, out_dim), lambda i: (0, 0)),
            pl.BlockSpec((1, out_dim), lambda i: (0, 0)),
        ],
        out_specs=(pl.BlockSpec((m_flat, cout), lambda i: (0, 0)),
                   pl.BlockSpec((N, out_dim), lambda i: (0, 0))),
        compiler_params=pltpu.CompilerParams(
            dimension_semantics=("arbitrary",)),
    )(phases, w9, gamma2, beta2, mask, pool_mat, hw, hb)

    features = feat_flat.reshape(N, gh, gw, cout)[:, :Ho, :Wo, :]
    return features, logits


# ----------------------------------------------------------------------------
# Parameters + forward
# ----------------------------------------------------------------------------
def init_params(key, in_ch, output_dim):
    layer_dims = [(in_ch, 32), (32, 64), (64, 128), (128, 256)]
    params = {}
    keys = jax.random.split(key, len(layer_dims) + 1)
    for idx, (cin, cout) in enumerate(layer_dims):
        fan_in = 9 * cin
        params[f"w{idx}"] = (jax.random.normal(keys[idx], (3, 3, cin, cout),
                                               jnp.float32)
                             * (2.0 / fan_in) ** 0.5)            # HWIO
        params[f"gamma{idx}"] = jnp.ones((cout,), jnp.float32)   # BN defaults
        params[f"beta{idx}"] = jnp.zeros((cout,), jnp.float32)
    params["head_w"] = (jax.random.normal(keys[-1], (256, output_dim),
                                          jnp.float32) * (1.0 / 256.0) ** 0.5)
    params["head_b"] = jnp.zeros((output_dim,), jnp.float32)
    return params


@jax.jit
def conv4_forward(x_nchw, params):
    # NCHW -> NHWC once; intermediate activations carried in bf16.
    x = jnp.transpose(x_nchw, (0, 2, 3, 1)).astype(jnp.bfloat16)
    x = conv_bn_silu_layer(x, params["w0"], params["gamma0"],
                           params["beta0"], stride=2, out_dtype=jnp.bfloat16)
    x = conv_bn_silu_layer(x, params["w1"], params["gamma1"],
                           params["beta1"], stride=2, out_dtype=jnp.bfloat16)
    x = conv_bn_silu_layer(x, params["w2"], params["gamma2"],
                           params["beta2"], stride=1, out_dtype=jnp.bfloat16)
    features_nhwc, logits = conv_bn_silu_head_layer(
        x, params["w3"], params["gamma3"], params["beta3"],
        params["head_w"], params["head_b"])
    features_nchw = jnp.transpose(features_nhwc, (0, 3, 1, 2))   # match PyTorch
    return features_nchw, logits


if __name__ == "__main__":
    key = jax.random.PRNGKey(0)
    k_param, k_x = jax.random.split(key)

    batch, in_ch, H, W = 2, 4, 16, 16
    output_dim = 10

    params = init_params(k_param, in_ch, output_dim)
    x = jax.random.normal(k_x, (batch, in_ch, H, W), jnp.float32)

    features, head_out = conv4_forward(x, params)
    features = jax.block_until_ready(features)
    head_out = jax.block_until_ready(head_out)

    assert features.shape == (batch, 256, 4, 4), features.shape
    assert head_out.shape == (batch, output_dim), head_out.shape
    assert bool(jnp.all(jnp.isfinite(features)))
    assert bool(jnp.all(jnp.isfinite(head_out)))
    print("KERNEL_OK")
</pallas_src>

<mosaic_0001>
module attributes {stable_mosaic.version = 11 : i64} {
  func.func @_layer_kernel(%arg0: i32, %arg1: memref<4x172x8xbf16, #tpu.memory_space<vmem>>, %arg2: memref<9x8x32xf32, #tpu.memory_space<vmem>>, %arg3: memref<1x32xf32, #tpu.memory_space<vmem>>, %arg4: memref<1x32xf32, #tpu.memory_space<vmem>>, %arg5: memref<162x1xf32, #tpu.memory_space<vmem>>, %arg6: memref<162x32xbf16, #tpu.memory_space<vmem>>) attributes {dimension_semantics = [#tpu.dimension_semantics<arbitrary>], iteration_bounds = array<i64: 1>, scalar_prefetch = 0 : i64, scratch_operands = 0 : i64, tpu.core_type = #tpu.core_type<tc>, window_params = [{pipeline_mode = #tpu.pipeline_mode<synchronous>, transform_indices = @transform_0, window_bounds = array<i64: 4, 172, 8>}, {pipeline_mode = #tpu.pipeline_mode<synchronous>, transform_indices = @transform_1, window_bounds = array<i64: 9, 8, 32>}, {pipeline_mode = #tpu.pipeline_mode<synchronous>, transform_indices = @transform_2, window_bounds = array<i64: 1, 32>}, {pipeline_mode = #tpu.pipeline_mode<synchronous>, transform_indices = @transform_3, window_bounds = array<i64: 1, 32>}, {pipeline_mode = #tpu.pipeline_mode<synchronous>, transform_indices = @transform_4, window_bounds = array<i64: 162, 1>}, {pipeline_mode = #tpu.pipeline_mode<synchronous>, transform_indices = @transform_5, window_bounds = array<i64: 162, 32>}]} {
    %c0 = arith.constant 0 : index
    %c0_0 = arith.constant 0 : index
    %c0_1 = arith.constant 0 : index
    %0 = vector.load %arg1[%c0, %c0_0, %c0_1] : memref<4x172x8xbf16, #tpu.memory_space<vmem>>, vector<1x172x8xbf16>
    %1 = vector.shape_cast %0 : vector<1x172x8xbf16> to vector<172x8xbf16>
    %2 = arith.extf %1 : vector<172x8xbf16> to vector<172x8xf32>
    %c1 = arith.constant 1 : index
    %c0_2 = arith.constant 0 : index
    %c0_3 = arith.constant 0 : index
    %3 = vector.load %arg1[%c1, %c0_2, %c0_3] : memref<4x172x8xbf16, #tpu.memory_space<vmem>>, vector<1x172x8xbf16>
    %4 = vector.shape_cast %3 : vector<1x172x8xbf16> to vector<172x8xbf16>
    %5 = arith.extf %4 : vector<172x8xbf16> to vector<172x8xf32>
    %c2 = arith.constant 2 : index
    %c0_4 = arith.constant 0 : index
    %c0_5 = arith.constant 0 : index
    %6 = vector.load %arg1[%c2, %c0_4, %c0_5] : memref<4x172x8xbf16, #tpu.memory_space<vmem>>, vector<1x172x8xbf16>
    %7 = vector.shape_cast %6 : vector<1x172x8xbf16> to vector<172x8xbf16>
    %8 = arith.extf %7 : vector<172x8xbf16> to vector<172x8xf32>
    %c3 = arith.constant 3 : index
    %c0_6 = arith.constant 0 : index
    %c0_7 = arith.constant 0 : index
    %9 = vector.load %arg1[%c3, %c0_6, %c0_7] : memref<4x172x8xbf16, #tpu.memory_space<vmem>>, vector<1x172x8xbf16>
    %10 = vector.shape_cast %9 : vector<1x172x8xbf16> to vector<172x8xbf16>
    %11 = arith.extf %10 : vector<172x8xbf16> to vector<172x8xf32>
    %12 = vector.extract_strided_slice %2 {offsets = [0, 0], sizes = [162, 8], strides = [1, 1]} : vector<172x8xf32> to vector<162x8xf32>
    %c0_8 = arith.constant 0 : index
    %c0_9 = arith.constant 0 : index
    %c0_10 = arith.constant 0 : index
    %13 = vector.load %arg2[%c0_8, %c0_9, %c0_10] : memref<9x8x32xf32, #tpu.memory_space<vmem>>, vector<1x8x32xf32>
    %14 = vector.shape_cast %13 : vector<1x8x32xf32> to vector<8x32xf32>
    %cst = arith.constant dense<0.000000e+00> : vector<162x32xf32>
    %15 = tpu.matmul %12, %14, %cst {dimension_numbers = #tpu.dot_dimension_numbers<[1], [0], [0], [1], [0, 0, 1, 1], [], []>} : vector<162x8xf32>, vector<8x32xf32>, vector<162x32xf32> -> vector<162x32xf32>
    %16 = vector.extract_strided_slice %5 {offsets = [0, 0], sizes = [162, 8], strides = [1, 1]} : vector<172x8xf32> to vector<162x8xf32>
    %c1_11 = arith.constant 1 : index
    %c0_12 = arith.constant 0 : index
    %c0_13 = arith.constant 0 : index
    %17 = vector.load %arg2[%c1_11, %c0_12, %c0_13] : memref<9x8x32xf32, #tpu.memory_space<vmem>>, vector<1x8x32xf32>
    %18 = vector.shape_cast %17 : vector<1x8x32xf32> to vector<8x32xf32>
    %cst_14 = arith.constant dense<0.000000e+00> : vector<162x32xf32>
    %19 = tpu.matmul %16, %18, %cst_14 {dimension_numbers = #tpu.dot_dimension_numbers<[1], [0], [0], [1], [0, 0, 1, 1], [], []>} : vector<162x8xf32>, vector<8x32xf32>, vector<162x32xf32> -> vector<162x32xf32>
    %20 = arith.addf %15, %19 : vector<162x32xf32>
    %21 = vector.extract_strided_slice %2 {offsets = [1, 0], sizes = [162, 8], strides = [1, 1]} : vector<172x8xf32> to vector<162x8xf32>
    %c2_15 = arith.constant 2 : index
    %c0_16 = arith.constant 0 : index
    %c0_17 = arith.constant 0 : index
    %22 = vector.load %arg2[%c2_15, %c0_16, %c0_17] : memref<9x8x32xf32, #tpu.memory_space<vmem>>, vector<1x8x32xf32>
    %23 = vector.shape_cast %22 : vector<1x8x32xf32> to vector<8x32xf32>
    %cst_18 = arith.constant dense<0.000000e+00> : vector<162x32xf32>
    %24 = tpu.matmul %21, %23, %cst_18 {dimension_numbers = #tpu.dot_dimension_numbers<[1], [0], [0], [1], [0, 0, 1, 1], [], []>} : vector<162x8xf32>, vector<8x32xf32>, vector<162x32xf32> -> vector<162x32xf32>
    %25 = arith.addf %20, %24 : vector<162x32xf32>
    %26 = vector.extract_strided_slice %8 {offsets = [0, 0], sizes = [162, 8], strides = [1, 1]} : vector<172x8xf32> to vector<162x8xf32>
    %c3_19 = arith.constant 3 : index
    %c0_20 = arith.constant 0 : index
    %c0_21 = arith.constant 0 : index
    %27 = vector.load %arg2[%c3_19, %c0_20, %c0_21] : memref<9x8x32xf32, #tpu.memory_space<vmem>>, vector<1x8x32xf32>
    %28 = vector.shape_cast %27 : vector<1x8x32xf32> to vector<8x32xf32>
    %cst_22 = arith.constant dense<0.000000e+00> : vector<162x32xf32>
    %29 = tpu.matmul %26, %28, %cst_22 {dimension_numbers = #tpu.dot_dimension_numbers<[1], [0], [0], [1], [0, 0, 1, 1], [], []>} : vector<162x8xf32>, vector<8x32xf32>, vector<162x32xf32> -> vector<162x32xf32>
    %30 = arith.addf %25, %29 : vector<162x32xf32>
    %31 = vector.extract_strided_slice %11 {offsets = [0, 0], sizes = [162, 8], strides = [1, 1]} : vector<172x8xf32> to vector<162x8xf32>
    %c4 = arith.constant 4 : index
    %c0_23 = arith.constant 0 : index
    %c0_24 = arith.constant 0 : index
    %32 = vector.load %arg2[%c4, %c0_23, %c0_24] : memref<9x8x32xf32, #tpu.memory_space<vmem>>, vector<1x8x32xf32>
    %33 = vector.shape_cast %32 : vector<1x8x32xf32> to vector<8x32xf32>
    %cst_25 = arith.constant dense<0.000000e+00> : vector<162x32xf32>
    %34 = tpu.matmul %31, %33, %cst_25 {dimension_numbers = #tpu.dot_dimension_numbers<[1], [0], [0], [1], [0, 0, 1, 1], [], []>} : vector<162x8xf32>, vector<8x32xf32>, vector<162x32xf32> -> vector<162x32xf32>
    %35 = arith.addf %30, %34 : vector<162x32xf32>
    %36 = vector.extract_strided_slice %8 {offsets = [1, 0], sizes = [162, 8], strides = [1, 1]} : vector<172x8xf32> to vector<162x8xf32>
    %c5 = arith.constant 5 : index
    %c0_26 = arith.constant 0 : index
    %c0_27 = arith.constant 0 : index
    %37 = vector.load %arg2[%c5, %c0_26, %c0_27] : memref<9x8x32xf32, #tpu.memory_space<vmem>>, vector<1x8x32xf32>
    %38 = vector.shape_cast %37 : vector<1x8x32xf32> to vector<8x32xf32>
    %cst_28 = arith.constant dense<0.000000e+00> : vector<162x32xf32>
    %39 = tpu.matmul %36, %38, %cst_28 {dimension_numbers = #tpu.dot_dimension_numbers<[1], [0], [0], [1], [0, 0, 1, 1], [], []>} : vector<162x8xf32>, vector<8x32xf32>, vector<162x32xf32> -> vector<162x32xf32>
    %40 = arith.addf %35, %39 : vector<162x32xf32>
    %41 = vector.extract_strided_slice %2 {offsets = [9, 0], sizes = [162, 8], strides = [1, 1]} : vector<172x8xf32> to vector<162x8xf32>
    %c6 = arith.constant 6 : index
    %c0_29 = arith.constant 0 : index
    %c0_30 = arith.constant 0 : index
    %42 = vector.load %arg2[%c6, %c0_29, %c0_30] : memref<9x8x32xf32, #tpu.memory_space<vmem>>, vector<1x8x32xf32>
    %43 = vector.shape_cast %42 : vector<1x8x32xf32> to vector<8x32xf32>
    %cst_31 = arith.constant dense<0.000000e+00> : vector<162x32xf32>
    %44 = tpu.matmul %41, %43, %cst_31 {dimension_numbers = #tpu.dot_dimension_numbers<[1], [0], [0], [1], [0, 0, 1, 1], [], []>} : vector<162x8xf32>, vector<8x32xf32>, vector<162x32xf32> -> vector<162x32xf32>
    %45 = arith.addf %40, %44 : vector<162x32xf32>
    %46 = vector.extract_strided_slice %5 {offsets = [9, 0], sizes = [162, 8], strides = [1, 1]} : vector<172x8xf32> to vector<162x8xf32>
    %c7 = arith.constant 7 : index
    %c0_32 = arith.constant 0 : index
    %c0_33 = arith.constant 0 : index
    %47 = vector.load %arg2[%c7, %c0_32, %c0_33] : memref<9x8x32xf32, #tpu.memory_space<vmem>>, vector<1x8x32xf32>
    %48 = vector.shape_cast %47 : vector<1x8x32xf32> to vector<8x32xf32>
    %cst_34 = arith.constant dense<0.000000e+00> : vector<162x32xf32>
    %49 = tpu.matmul %46, %48, %cst_34 {dimension_numbers = #tpu.dot_dimension_numbers<[1], [0], [0], [1], [0, 0, 1, 1], [], []>} : vector<162x8xf32>, vector<8x32xf32>, vector<162x32xf32> -> vector<162x32xf32>
    %50 = arith.addf %45, %49 : vector<162x32xf32>
    %51 = vector.extract_strided_slice %2 {offsets = [10, 0], sizes = [162, 8], strides = [1, 1]} : vector<172x8xf32> to vector<162x8xf32>
    %c8 = arith.constant 8 : index
    %c0_35 = arith.constant 0 : index
    %c0_36 = arith.constant 0 : index
    %52 = vector.load %arg2[%c8, %c0_35, %c0_36] : memref<9x8x32xf32, #tpu.memory_space<vmem>>, vector<1x8x32xf32>
    %53 = vector.shape_cast %52 : vector<1x8x32xf32> to vector<8x32xf32>
    %cst_37 = arith.constant dense<0.000000e+00> : vector<162x32xf32>
    %54 = tpu.matmul %51, %53, %cst_37 {dimension_numbers = #tpu.dot_dimension_numbers<[1], [0], [0], [1], [0, 0, 1, 1], [], []>} : vector<162x8xf32>, vector<8x32xf32>, vector<162x32xf32> -> vector<162x32xf32>
    %55 = arith.addf %50, %54 : vector<162x32xf32>
    %c0_38 = arith.constant 0 : index
    %c0_39 = arith.constant 0 : index
    %56 = vector.load %arg5[%c0_38, %c0_39] : memref<162x1xf32, #tpu.memory_space<vmem>>, vector<162x1xf32>
    %57 = vector.broadcast %56 : vector<162x1xf32> to vector<162x32xf32>
    %58 = arith.mulf %55, %57 : vector<162x32xf32>
    %cst_40 = arith.constant dense<0.000000e+00> : vector<32xf32>
    %59 = vector.multi_reduction <add>, %58, %cst_40 [0] : vector<162x32xf32> to vector<32xf32>
    %60 = vector.shape_cast %59 : vector<32xf32> to vector<1x32xf32>
    %cst_41 = arith.constant 7.812500e-03 : f32
    %61 = vector.broadcast %cst_41 : f32 to vector<1x32xf32>
    %62 = arith.mulf %60, %61 : vector<1x32xf32>
    %63 = vector.broadcast %62 : vector<1x32xf32> to vector<162x32xf32>
    %64 = arith.subf %55, %63 : vector<162x32xf32>
    %65 = vector.broadcast %56 : vector<162x1xf32> to vector<162x32xf32>
    %66 = arith.mulf %64, %65 : vector<162x32xf32>
    %67 = arith.mulf %66, %66 : vector<162x32xf32>
    %cst_42 = arith.constant dense<0.000000e+00> : vector<32xf32>
    %68 = vector.multi_reduction <add>, %67, %cst_42 [0] : vector<162x32xf32> to vector<32xf32>
    %69 = vector.shape_cast %68 : vector<32xf32> to vector<1x32xf32>
    %cst_43 = arith.constant 7.812500e-03 : f32
    %70 = vector.broadcast %cst_43 : f32 to vector<1x32xf32>
    %71 = arith.mulf %69, %70 : vector<1x32xf32>
    %cst_44 = arith.constant 9.99999974E-6 : f32
    %72 = vector.broadcast %cst_44 : f32 to vector<1x32xf32>
    %73 = arith.addf %71, %72 : vector<1x32xf32>
    %74 = math.rsqrt %73 : vector<1x32xf32>
    %c0_45 = arith.constant 0 : index
    %c0_46 = arith.constant 0 : index
    %75 = vector.load %arg3[%c0_45, %c0_46] : memref<1x32xf32, #tpu.memory_space<vmem>>, vector<1x32xf32>
    %76 = arith.mulf %75, %74 : vector<1x32xf32>
    %c0_47 = arith.constant 0 : index
    %c0_48 = arith.constant 0 : index
    %77 = vector.load %arg4[%c0_47, %c0_48] : memref<1x32xf32, #tpu.memory_space<vmem>>, vector<1x32xf32>
    %78 = arith.mulf %62, %76 : vector<1x32xf32>
    %79 = arith.subf %77, %78 : vector<1x32xf32>
    %80 = vector.broadcast %76 : vector<1x32xf32> to vector<162x32xf32>
    %81 = arith.mulf %55, %80 : vector<162x32xf32>
    %82 = vector.broadcast %79 : vector<1x32xf32> to vector<162x32xf32>
    %83 = arith.addf %81, %82 : vector<162x32xf32>
    %84 = arith.negf %83 : vector<162x32xf32>
    %85 = math.exp %84 : vector<162x32xf32>
    %cst_49 = arith.constant 1.000000e+00 : f32
    %86 = vector.broadcast %cst_49 : f32 to vector<162x32xf32>
    %87 = arith.addf %86, %85 : vector<162x32xf32>
    %88 = arith.divf %86, %87 : vector<162x32xf32>
    %89 = arith.mulf %83, %88 : vector<162x32xf32>
    %90 = vector.broadcast %56 : vector<162x1xf32> to vector<162x32xf32>
    %91 = arith.mulf %89, %90 : vector<162x32xf32>
    %92 = arith.truncf %91 : vector<162x32xf32> to vector<162x32xbf16>
    %c0_50 = arith.constant 0 : index
    %c0_51 = arith.constant 0 : index
    %93 = vector.load %arg6[%c0_50, %c0_51] : memref<162x32xbf16, #tpu.memory_space<vmem>>, vector<162x32xbf16>
    tpu.vector_store %arg6[%c0_50, %c0_51], %92 {strides = array<i32>} : memref<162x32xbf16, #tpu.memory_space<vmem>>, vector<162x32xbf16>,
    return
  }
  func.func @transform_0(%arg0: i32) -> (i32, i32, i32) {
    %c0_i32 = arith.constant 0 : i32
    %c0_i32_0 = arith.constant 0 : i32
    %c0_i32_1 = arith.constant 0 : i32
    %c0_i32_2 = arith.constant 0 : i32
    return %c0_i32, %c0_i32_0, %c0_i32_1 : i32, i32, i32
  }
  func.func @transform_1(%arg0: i32) -> (i32, i32, i32) {
    %c0_i32 = arith.constant 0 : i32
    %c0_i32_0 = arith.constant 0 : i32
    %c0_i32_1 = arith.constant 0 : i32
    %c0_i32_2 = arith.constant 0 : i32
    return %c0_i32, %c0_i32_0, %c0_i32_1 : i32, i32, i32
  }
  func.func @transform_2(%arg0: i32) -> (i32, i32) {
    %c0_i32 = arith.constant 0 : i32
    %c0_i32_0 = arith.constant 0 : i32
    %c0_i32_1 = arith.constant 0 : i32
    return %c0_i32, %c0_i32_0 : i32, i32
  }
  func.func @transform_3(%arg0: i32) -> (i32, i32) {
    %c0_i32 = arith.constant 0 : i32
    %c0_i32_0 = arith.constant 0 : i32
    %c0_i32_1 = arith.constant 0 : i32
    return %c0_i32, %c0_i32_0 : i32, i32
  }
  func.func @transform_4(%arg0: i32) -> (i32, i32) {
    %c0_i32 = arith.constant 0 : i32
    %c0_i32_0 = arith.constant 0 : i32
    %c0_i32_1 = arith.constant 0 : i32
    return %c0_i32, %c0_i32_0 : i32, i32
  }
  func.func @transform_5(%arg0: i32) -> (i32, i32) {
    %c0_i32 = arith.constant 0 : i32
    %c0_i32_0 = arith.constant 0 : i32
    %c0_i32_1 = arith.constant 0 : i32
    return %c0_i32, %c0_i32_0 : i32, i32
  }
}

module attributes {stable_mosaic.version = 11 : i64} {
  func.func @_layer_kernel(%arg0: i32, %arg1: memref<4x56x32xbf16, #tpu.memory_space<vmem>>, %arg2: memref<9x32x64xf32, #tpu.memory_space<vmem>>, %arg3: memref<1x64xf32, #tpu.memory_space<vmem>>, %arg4: memref<1x64xf32, #tpu.memory_space<vmem>>, %arg5: memref<50x1xf32, #tpu.memory_space<vmem>>, %arg6: memref<50x64xbf16, #tpu.memory_space<vmem>>) attributes {dimension_semantics = [#tpu.dimension_semantics<arbitrary>], iteration_bounds = array<i64: 1>, scalar_prefetch = 0 : i64, scratch_operands = 0 : i64, tpu.core_type = #tpu.core_type<tc>, window_params = [{pipeline_mode = #tpu.pipeline_mode<synchronous>, transform_indices = @transform_0, window_bounds = array<i64: 4, 56, 32>}, {pipeline_mode = #tpu.pipeline_mode<synchronous>, transform_indices = @transform_1, window_bounds = array<i64: 9, 32, 64>}, {pipeline_mode = #tpu.pipeline_mode<synchronous>, transform_indices = @transform_2, window_bounds = array<i64: 1, 64>}, {pipeline_mode = #tpu.pipeline_mode<synchronous>, transform_indices = @transform_3, window_bounds = array<i64: 1, 64>}, {pipeline_mode = #tpu.pipeline_mode<synchronous>, transform_indices = @transform_4, window_bounds = array<i64: 50, 1>}, {pipeline_mode = #tpu.pipeline_mode<synchronous>, transform_indices = @transform_5, window_bounds = array<i64: 50, 64>}]} {
    %c0 = arith.constant 0 : index
    %c0_0 = arith.constant 0 : index
    %c0_1 = arith.constant 0 : index
    %0 = vector.load %arg1[%c0, %c0_0, %c0_1] : memref<4x56x32xbf16, #tpu.memory_space<vmem>>, vector<1x56x32xbf16>
    %1 = vector.shape_cast %0 : vector<1x56x32xbf16> to vector<56x32xbf16>
    %2 = arith.extf %1 : vector<56x32xbf16> to vector<56x32xf32>
    %c1 = arith.constant 1 : index
    %c0_2 = arith.constant 0 : index
    %c0_3 = arith.constant 0 : index
    %3 = vector.load %arg1[%c1, %c0_2, %c0_3] : memref<4x56x32xbf16, #tpu.memory_space<vmem>>, vector<1x56x32xbf16>
    %4 = vector.shape_cast %3 : vector<1x56x32xbf16> to vector<56x32xbf16>
    %5 = arith.extf %4 : vector<56x32xbf16> to vector<56x32xf32>
    %c2 = arith.constant 2 : index
    %c0_4 = arith.constant 0 : index
    %c0_5 = arith.constant 0 : index
    %6 = vector.load %arg1[%c2, %c0_4, %c0_5] : memref<4x56x32xbf16, #tpu.memory_space<vmem>>, vector<1x56x32xbf16>
    %7 = vector.shape_cast %6 : vector<1x56x32xbf16> to vector<56x32xbf16>
    %8 = arith.extf %7 : vector<56x32xbf16> to vector<56x32xf32>
    %c3 = arith.constant 3 : index
    %c0_6 = arith.constant 0 : index
    %c0_7 = arith.constant 0 : index
    %9 = vector.load %arg1[%c3, %c0_6, %c0_7] : memref<4x56x32xbf16, #tpu.memory_space<vmem>>, vector<1x56x32xbf16>
    %10 = vector.shape_cast %9 : vector<1x56x32xbf16> to vector<56x32xbf16>
    %11 = arith.extf %10 : vector<56x32xbf16> to vector<56x32xf32>
    %12 = vector.extract_strided_slice %2 {offsets = [0, 0], sizes = [50, 32], strides = [1, 1]} : vector<56x32xf32> to vector<50x32xf32>
    %c0_8 = arith.constant 0 : index
    %c0_9 = arith.constant 0 : index
    %c0_10 = arith.constant 0 : index
    %13 = vector.load %arg2[%c0_8, %c0_9, %c0_10] : memref<9x32x64xf32, #tpu.memory_space<vmem>>, vector<1x32x64xf32>
    %14 = vector.shape_cast %13 : vector<1x32x64xf32> to vector<32x64xf32>
    %cst = arith.constant dense<0.000000e+00> : vector<50x64xf32>
    %15 = tpu.matmul %12, %14, %cst {dimension_numbers = #tpu.dot_dimension_numbers<[1], [0], [0], [1], [0, 0, 1, 1], [], []>} : vector<50x32xf32>, vector<32x64xf32>, vector<50x64xf32> -> vector<50x64xf32>
    %16 = vector.extract_strided_slice %5 {offsets = [0, 0], sizes = [50, 32], strides = [1, 1]} : vector<56x32xf32> to vector<50x32xf32>
    %c1_11 = arith.constant 1 : index
    %c0_12 = arith.constant 0 : index
    %c0_13 = arith.constant 0 : index
    %17 = vector.load %arg2[%c1_11, %c0_12, %c0_13] : memref<9x32x64xf32, #tpu.memory_space<vmem>>, vector<1x32x64xf32>
    %18 = vector.shape_cast %17 : vector<1x32x64xf32> to vector<32x64xf32>
    %cst_14 = arith.constant dense<0.000000e+00> : vector<50x64xf32>
    %19 = tpu.matmul %16, %18, %cst_14 {dimension_numbers = #tpu.dot_dimension_numbers<[1], [0], [0], [1], [0, 0, 1, 1], [], []>} : vector<50x32xf32>, vector<32x64xf32>, vector<50x64xf32> -> vector<50x64xf32>
    %20 = arith.addf %15, %19 : vector<50x64xf32>
    %21 = vector.extract_strided_slice %2 {offsets = [1, 0], sizes = [50, 32], strides = [1, 1]} : vector<56x32xf32> to vector<50x32xf32>
    %c2_15 = arith.constant 2 : index
    %c0_16 = arith.constant 0 : index
    %c0_17 = arith.constant 0 : index
    %22 = vector.load %arg2[%c2_15, %c0_16, %c0_17] : memref<9x32x64xf32, #tpu.memory_space<vmem>>, vector<1x32x64xf32>
    %23 = vector.shape_cast %22 : vector<1x32x64xf32> to vector<32x64xf32>
    %cst_18 = arith.constant dense<0.000000e+00> : vector<50x64xf32>
    %24 = tpu.matmul %21, %23, %cst_18 {dimension_numbers = #tpu.dot_dimension_numbers<[1], [0], [0], [1], [0, 0, 1, 1], [], []>} : vector<50x32xf32>, vector<32x64xf32>, vector<50x64xf32> -> vector<50x64xf32>
    %25 = arith.addf %20, %24 : vector<50x64xf32>
    %26 = vector.extract_strided_slice %8 {offsets = [0, 0], sizes = [50, 32], strides = [1, 1]} : vector<56x32xf32> to vector<50x32xf32>
    %c3_19 = arith.constant 3 : index
    %c0_20 = arith.constant 0 : index
    %c0_21 = arith.constant 0 : index
    %27 = vector.load %arg2[%c3_19, %c0_20, %c0_21] : memref<9x32x64xf32, #tpu.memory_space<vmem>>, vector<1x32x64xf32>
    %28 = vector.shape_cast %27 : vector<1x32x64xf32> to vector<32x64xf32>
    %cst_22 = arith.constant dense<0.000000e+00> : vector<50x64xf32>
    %29 = tpu.matmul %26, %28, %cst_22 {dimension_numbers = #tpu.dot_dimension_numbers<[1], [0], [0], [1], [0, 0, 1, 1], [], []>} : vector<50x32xf32>, vector<32x64xf32>, vector<50x64xf32> -> vector<50x64xf32>
    %30 = arith.addf %25, %29 : vector<50x64xf32>
    %31 = vector.extract_strided_slice %11 {offsets = [0, 0], sizes = [50, 32], strides = [1, 1]} : vector<56x32xf32> to vector<50x32xf32>
    %c4 = arith.constant 4 : index
    %c0_23 = arith.constant 0 : index
    %c0_24 = arith.constant 0 : index
    %32 = vector.load %arg2[%c4, %c0_23, %c0_24] : memref<9x32x64xf32, #tpu.memory_space<vmem>>, vector<1x32x64xf32>
    %33 = vector.shape_cast %32 : vector<1x32x64xf32> to vector<32x64xf32>
    %cst_25 = arith.constant dense<0.000000e+00> : vector<50x64xf32>
    %34 = tpu.matmul %31, %33, %cst_25 {dimension_numbers = #tpu.dot_dimension_numbers<[1], [0], [0], [1], [0, 0, 1, 1], [], []>} : vector<50x32xf32>, vector<32x64xf32>, vector<50x64xf32> -> vector<50x64xf32>
    %35 = arith.addf %30, %34 : vector<50x64xf32>
    %36 = vector.extract_strided_slice %8 {offsets = [1, 0], sizes = [50, 32], strides = [1, 1]} : vector<56x32xf32> to vector<50x32xf32>
    %c5 = arith.constant 5 : index
    %c0_26 = arith.constant 0 : index
    %c0_27 = arith.constant 0 : index
    %37 = vector.load %arg2[%c5, %c0_26, %c0_27] : memref<9x32x64xf32, #tpu.memory_space<vmem>>, vector<1x32x64xf32>
    %38 = vector.shape_cast %37 : vector<1x32x64xf32> to vector<32x64xf32>
    %cst_28 = arith.constant dense<0.000000e+00> : vector<50x64xf32>
    %39 = tpu.matmul %36, %38, %cst_28 {dimension_numbers = #tpu.dot_dimension_numbers<[1], [0], [0], [1], [0, 0, 1, 1], [], []>} : vector<50x32xf32>, vector<32x64xf32>, vector<50x64xf32> -> vector<50x64xf32>
    %40 = arith.addf %35, %39 : vector<50x64xf32>
    %41 = vector.extract_strided_slice %2 {offsets = [5, 0], sizes = [50, 32], strides = [1, 1]} : vector<56x32xf32> to vector<50x32xf32>
    %c6 = arith.constant 6 : index
    %c0_29 = arith.constant 0 : index
    %c0_30 = arith.constant 0 : index
    %42 = vector.load %arg2[%c6, %c0_29, %c0_30] : memref<9x32x64xf32, #tpu.memory_space<vmem>>, vector<1x32x64xf32>
    %43 = vector.shape_cast %42 : vector<1x32x64xf32> to vector<32x64xf32>
    %cst_31 = arith.constant dense<0.000000e+00> : vector<50x64xf32>
    %44 = tpu.matmul %41, %43, %cst_31 {dimension_numbers = #tpu.dot_dimension_numbers<[1], [0], [0], [1], [0, 0, 1, 1], [], []>} : vector<50x32xf32>, vector<32x64xf32>, vector<50x64xf32> -> vector<50x64xf32>
    %45 = arith.addf %40, %44 : vector<50x64xf32>
    %46 = vector.extract_strided_slice %5 {offsets = [5, 0], sizes = [50, 32], strides = [1, 1]} : vector<56x32xf32> to vector<50x32xf32>
    %c7 = arith.constant 7 : index
    %c0_32 = arith.constant 0 : index
    %c0_33 = arith.constant 0 : index
    %47 = vector.load %arg2[%c7, %c0_32, %c0_33] : memref<9x32x64xf32, #tpu.memory_space<vmem>>, vector<1x32x64xf32>
    %48 = vector.shape_cast %47 : vector<1x32x64xf32> to vector<32x64xf32>
    %cst_34 = arith.constant dense<0.000000e+00> : vector<50x64xf32>
    %49 = tpu.matmul %46, %48, %cst_34 {dimension_numbers = #tpu.dot_dimension_numbers<[1], [0], [0], [1], [0, 0, 1, 1], [], []>} : vector<50x32xf32>, vector<32x64xf32>, vector<50x64xf32> -> vector<50x64xf32>
    %50 = arith.addf %45, %49 : vector<50x64xf32>
    %51 = vector.extract_strided_slice %2 {offsets = [6, 0], sizes = [50, 32], strides = [1, 1]} : vector<56x32xf32> to vector<50x32xf32>
    %c8 = arith.constant 8 : index
    %c0_35 = arith.constant 0 : index
    %c0_36 = arith.constant 0 : index
    %52 = vector.load %arg2[%c8, %c0_35, %c0_36] : memref<9x32x64xf32, #tpu.memory_space<vmem>>, vector<1x32x64xf32>
    %53 = vector.shape_cast %52 : vector<1x32x64xf32> to vector<32x64xf32>
    %cst_37 = arith.constant dense<0.000000e+00> : vector<50x64xf32>
    %54 = tpu.matmul %51, %53, %cst_37 {dimension_numbers = #tpu.dot_dimension_numbers<[1], [0], [0], [1], [0, 0, 1, 1], [], []>} : vector<50x32xf32>, vector<32x64xf32>, vector<50x64xf32> -> vector<50x64xf32>
    %55 = arith.addf %50, %54 : vector<50x64xf32>
    %c0_38 = arith.constant 0 : index
    %c0_39 = arith.constant 0 : index
    %56 = vector.load %arg5[%c0_38, %c0_39] : memref<50x1xf32, #tpu.memory_space<vmem>>, vector<50x1xf32>
    %57 = vector.broadcast %56 : vector<50x1xf32> to vector<50x64xf32>
    %58 = arith.mulf %55, %57 : vector<50x64xf32>
    %cst_40 = arith.constant dense<0.000000e+00> : vector<64xf32>
    %59 = vector.multi_reduction <add>, %58, %cst_40 [0] : vector<50x64xf32> to vector<64xf32>
    %60 = vector.shape_cast %59 : vector<64xf32> to vector<1x64xf32>
    %cst_41 = arith.constant 3.125000e-02 : f32
    %61 = vector.broadcast %cst_41 : f32 to vector<1x64xf32>
    %62 = arith.mulf %60, %61 : vector<1x64xf32>
    %63 = vector.broadcast %62 : vector<1x64xf32> to vector<50x64xf32>
    %64 = arith.subf %55, %63 : vector<50x64xf32>
    %65 = vector.broadcast %56 : vector<50x1xf32> to vector<50x64xf32>
    %66 = arith.mulf %64, %65 : vector<50x64xf32>
    %67 = arith.mulf %66, %66 : vector<50x64xf32>
    %cst_42 = arith.constant dense<0.000000e+00> : vector<64xf32>
    %68 = vector.multi_reduction <add>, %67, %cst_42 [0] : vector<50x64xf32> to vector<64xf32>
    %69 = vector.shape_cast %68 : vector<64xf32> to vector<1x64xf32>
    %cst_43 = arith.constant 3.125000e-02 : f32
    %70 = vector.broadcast %cst_43 : f32 to vector<1x64xf32>
    %71 = arith.mulf %69, %70 : vector<1x64xf32>
    %cst_44 = arith.constant 9.99999974E-6 : f32
    %72 = vector.broadcast %cst_44 : f32 to vector<1x64xf32>
    %73 = arith.addf %71, %72 : vector<1x64xf32>
    %74 = math.rsqrt %73 : vector<1x64xf32>
    %c0_45 = arith.constant 0 : index
    %c0_46 = arith.constant 0 : index
    %75 = vector.load %arg3[%c0_45, %c0_46] : memref<1x64xf32, #tpu.memory_space<vmem>>, vector<1x64xf32>
    %76 = arith.mulf %75, %74 : vector<1x64xf32>
    %c0_47 = arith.constant 0 : index
    %c0_48 = arith.constant 0 : index
    %77 = vector.load %arg4[%c0_47, %c0_48] : memref<1x64xf32, #tpu.memory_space<vmem>>, vector<1x64xf32>
    %78 = arith.mulf %62, %76 : vector<1x64xf32>
    %79 = arith.subf %77, %78 : vector<1x64xf32>
    %80 = vector.broadcast %76 : vector<1x64xf32> to vector<50x64xf32>
    %81 = arith.mulf %55, %80 : vector<50x64xf32>
    %82 = vector.broadcast %79 : vector<1x64xf32> to vector<50x64xf32>
    %83 = arith.addf %81, %82 : vector<50x64xf32>
    %84 = arith.negf %83 : vector<50x64xf32>
    %85 = math.exp %84 : vector<50x64xf32>
    %cst_49 = arith.constant 1.000000e+00 : f32
    %86 = vector.broadcast %cst_49 : f32 to vector<50x64xf32>
    %87 = arith.addf %86, %85 : vector<50x64xf32>
    %88 = arith.divf %86, %87 : vector<50x64xf32>
    %89 = arith.mulf %83, %88 : vector<50x64xf32>
    %90 = vector.broadcast %56 : vector<50x1xf32> to vector<50x64xf32>
    %91 = arith.mulf %89, %90 : vector<50x64xf32>
    %92 = arith.truncf %91 : vector<50x64xf32> to vector<50x64xbf16>
    %c0_50 = arith.constant 0 : index
    %c0_51 = arith.constant 0 : index
    %93 = vector.load %arg6[%c0_50, %c0_51] : memref<50x64xbf16, #tpu.memory_space<vmem>>, vector<50x64xbf16>
    tpu.vector_store %arg6[%c0_50, %c0_51], %92 {strides = array<i32>} : memref<50x64xbf16, #tpu.memory_space<vmem>>, vector<50x64xbf16>,
    return
  }
  func.func @transform_0(%arg0: i32) -> (i32, i32, i32) {
    %c0_i32 = arith.constant 0 : i32
    %c0_i32_0 = arith.constant 0 : i32
    %c0_i32_1 = arith.constant 0 : i32
    %c0_i32_2 = arith.constant 0 : i32
    return %c0_i32, %c0_i32_0, %c0_i32_1 : i32, i32, i32
  }
  func.func @transform_1(%arg0: i32) -> (i32, i32, i32) {
    %c0_i32 = arith.constant 0 : i32
    %c0_i32_0 = arith.constant 0 : i32
    %c0_i32_1 = arith.constant 0 : i32
    %c0_i32_2 = arith.constant 0 : i32
    return %c0_i32, %c0_i32_0, %c0_i32_1 : i32, i32, i32
  }
  func.func @transform_2(%arg0: i32) -> (i32, i32) {
    %c0_i32 = arith.constant 0 : i32
    %c0_i32_0 = arith.constant 0 : i32
    %c0_i32_1 = arith.constant 0 : i32
    return %c0_i32, %c0_i32_0 : i32, i32
  }
  func.func @transform_3(%arg0: i32) -> (i32, i32) {
    %c0_i32 = arith.constant 0 : i32
    %c0_i32_0 = arith.constant 0 : i32
    %c0_i32_1 = arith.constant 0 : i32
    return %c0_i32, %c0_i32_0 : i32, i32
  }
  func.func @transform_4(%arg0: i32) -> (i32, i32) {
    %c0_i32 = arith.constant 0 : i32
    %c0_i32_0 = arith.constant 0 : i32
    %c0_i32_1 = arith.constant 0 : i32
    return %c0_i32, %c0_i32_0 : i32, i32
  }
  func.func @transform_5(%arg0: i32) -> (i32, i32) {
    %c0_i32 = arith.constant 0 : i32
    %c0_i32_0 = arith.constant 0 : i32
    %c0_i32_1 = arith.constant 0 : i32
    return %c0_i32, %c0_i32_0 : i32, i32
  }
}

module attributes {stable_mosaic.version = 11 : i64} {
  func.func @_layer_kernel(%arg0: i32, %arg1: memref<1x86x64xbf16, #tpu.memory_space<vmem>>, %arg2: memref<9x64x128xf32, #tpu.memory_space<vmem>>, %arg3: memref<1x128xf32, #tpu.memory_space<vmem>>, %arg4: memref<1x128xf32, #tpu.memory_space<vmem>>, %arg5: memref<72x1xf32, #tpu.memory_space<vmem>>, %arg6: memref<72x128xbf16, #tpu.memory_space<vmem>>) attributes {dimension_semantics = [#tpu.dimension_semantics<arbitrary>], iteration_bounds = array<i64: 1>, scalar_prefetch = 0 : i64, scratch_operands = 0 : i64, tpu.core_type = #tpu.core_type<tc>, window_params = [{pipeline_mode = #tpu.pipeline_mode<synchronous>, transform_indices = @transform_0, window_bounds = array<i64: 1, 86, 64>}, {pipeline_mode = #tpu.pipeline_mode<synchronous>, transform_indices = @transform_1, window_bounds = array<i64: 9, 64, 128>}, {pipeline_mode = #tpu.pipeline_mode<synchronous>, transform_indices = @transform_2, window_bounds = array<i64: 1, 128>}, {pipeline_mode = #tpu.pipeline_mode<synchronous>, transform_indices = @transform_3, window_bounds = array<i64: 1, 128>}, {pipeline_mode = #tpu.pipeline_mode<synchronous>, transform_indices = @transform_4, window_bounds = array<i64: 72, 1>}, {pipeline_mode = #tpu.pipeline_mode<synchronous>, transform_indices = @transform_5, window_bounds = array<i64: 72, 128>}]} {
    %c0 = arith.constant 0 : index
    %c0_0 = arith.constant 0 : index
    %c0_1 = arith.constant 0 : index
    %0 = vector.load %arg1[%c0, %c0_0, %c0_1] : memref<1x86x64xbf16, #tpu.memory_space<vmem>>, vector<1x86x64xbf16>
    %1 = vector.shape_cast %0 : vector<1x86x64xbf16> to vector<86x64xbf16>
    %2 = arith.extf %1 : vector<86x64xbf16> to vector<86x64xf32>
    %3 = vector.extract_strided_slice %2 {offsets = [0, 0], sizes = [72, 64], strides = [1, 1]} : vector<86x64xf32> to vector<72x64xf32>
    %c0_2 = arith.constant 0 : index
    %c0_3 = arith.constant 0 : index
    %c0_4 = arith.constant 0 : index
    %4 = vector.load %arg2[%c0_2, %c0_3, %c0_4] : memref<9x64x128xf32, #tpu.memory_space<vmem>>, vector<1x64x128xf32>
    %5 = vector.shape_cast %4 : vector<1x64x128xf32> to vector<64x128xf32>
    %cst = arith.constant dense<0.000000e+00> : vector<72x128xf32>
    %6 = tpu.matmul %3, %5, %cst {dimension_numbers = #tpu.dot_dimension_numbers<[1], [0], [0], [1], [0, 0, 1, 1], [], []>} : vector<72x64xf32>, vector<64x128xf32>, vector<72x128xf32> -> vector<72x128xf32>
    %7 = vector.extract_strided_slice %2 {offsets = [1, 0], sizes = [72, 64], strides = [1, 1]} : vector<86x64xf32> to vector<72x64xf32>
    %c1 = arith.constant 1 : index
    %c0_5 = arith.constant 0 : index
    %c0_6 = arith.constant 0 : index
    %8 = vector.load %arg2[%c1, %c0_5, %c0_6] : memref<9x64x128xf32, #tpu.memory_space<vmem>>, vector<1x64x128xf32>
    %9 = vector.shape_cast %8 : vector<1x64x128xf32> to vector<64x128xf32>
    %cst_7 = arith.constant dense<0.000000e+00> : vector<72x128xf32>
    %10 = tpu.matmul %7, %9, %cst_7 {dimension_numbers = #tpu.dot_dimension_numbers<[1], [0], [0], [1], [0, 0, 1, 1], [], []>} : vector<72x64xf32>, vector<64x128xf32>, vector<72x128xf32> -> vector<72x128xf32>
    %11 = arith.addf %6, %10 : vector<72x128xf32>
    %12 = vector.extract_strided_slice %2 {offsets = [2, 0], sizes = [72, 64], strides = [1, 1]} : vector<86x64xf32> to vector<72x64xf32>
    %c2 = arith.constant 2 : index
    %c0_8 = arith.constant 0 : index
    %c0_9 = arith.constant 0 : index
    %13 = vector.load %arg2[%c2, %c0_8, %c0_9] : memref<9x64x128xf32, #tpu.memory_space<vmem>>, vector<1x64x128xf32>
    %14 = vector.shape_cast %13 : vector<1x64x128xf32> to vector<64x128xf32>
    %cst_10 = arith.constant dense<0.000000e+00> : vector<72x128xf32>
    %15 = tpu.matmul %12, %14, %cst_10 {dimension_numbers = #tpu.dot_dimension_numbers<[1], [0], [0], [1], [0, 0, 1, 1], [], []>} : vector<72x64xf32>, vector<64x128xf32>, vector<72x128xf32> -> vector<72x128xf32>
    %16 = arith.addf %11, %15 : vector<72x128xf32>
    %17 = vector.extract_strided_slice %2 {offsets = [6, 0], sizes = [72, 64], strides = [1, 1]} : vector<86x64xf32> to vector<72x64xf32>
    %c3 = arith.constant 3 : index
    %c0_11 = arith.constant 0 : index
    %c0_12 = arith.constant 0 : index
    %18 = vector.load %arg2[%c3, %c0_11, %c0_12] : memref<9x64x128xf32, #tpu.memory_space<vmem>>, vector<1x64x128xf32>
    %19 = vector.shape_cast %18 : vector<1x64x128xf32> to vector<64x128xf32>
    %cst_13 = arith.constant dense<0.000000e+00> : vector<72x128xf32>
    %20 = tpu.matmul %17, %19, %cst_13 {dimension_numbers = #tpu.dot_dimension_numbers<[1], [0], [0], [1], [0, 0, 1, 1], [], []>} : vector<72x64xf32>, vector<64x128xf32>, vector<72x128xf32> -> vector<72x128xf32>
    %21 = arith.addf %16, %20 : vector<72x128xf32>
    %22 = vector.extract_strided_slice %2 {offsets = [7, 0], sizes = [72, 64], strides = [1, 1]} : vector<86x64xf32> to vector<72x64xf32>
    %c4 = arith.constant 4 : index
    %c0_14 = arith.constant 0 : index
    %c0_15 = arith.constant 0 : index
    %23 = vector.load %arg2[%c4, %c0_14, %c0_15] : memref<9x64x128xf32, #tpu.memory_space<vmem>>, vector<1x64x128xf32>
    %24 = vector.shape_cast %23 : vector<1x64x128xf32> to vector<64x128xf32>
    %cst_16 = arith.constant dense<0.000000e+00> : vector<72x128xf32>
    %25 = tpu.matmul %22, %24, %cst_16 {dimension_numbers = #tpu.dot_dimension_numbers<[1], [0], [0], [1], [0, 0, 1, 1], [], []>} : vector<72x64xf32>, vector<64x128xf32>, vector<72x128xf32> -> vector<72x128xf32>
    %26 = arith.addf %21, %25 : vector<72x128xf32>
    %27 = vector.extract_strided_slice %2 {offsets = [8, 0], sizes = [72, 64], strides = [1, 1]} : vector<86x64xf32> to vector<72x64xf32>
    %c5 = arith.constant 5 : index
    %c0_17 = arith.constant 0 : index
    %c0_18 = arith.constant 0 : index
    %28 = vector.load %arg2[%c5, %c0_17, %c0_18] : memref<9x64x128xf32, #tpu.memory_space<vmem>>, vector<1x64x128xf32>
    %29 = vector.shape_cast %28 : vector<1x64x128xf32> to vector<64x128xf32>
    %cst_19 = arith.constant dense<0.000000e+00> : vector<72x128xf32>
    %30 = tpu.matmul %27, %29, %cst_19 {dimension_numbers = #tpu.dot_dimension_numbers<[1], [0], [0], [1], [0, 0, 1, 1], [], []>} : vector<72x64xf32>, vector<64x128xf32>, vector<72x128xf32> -> vector<72x128xf32>
    %31 = arith.addf %26, %30 : vector<72x128xf32>
    %32 = vector.extract_strided_slice %2 {offsets = [12, 0], sizes = [72, 64], strides = [1, 1]} : vector<86x64xf32> to vector<72x64xf32>
    %c6 = arith.constant 6 : index
    %c0_20 = arith.constant 0 : index
    %c0_21 = arith.constant 0 : index
    %33 = vector.load %arg2[%c6, %c0_20, %c0_21] : memref<9x64x128xf32, #tpu.memory_space<vmem>>, vector<1x64x128xf32>
    %34 = vector.shape_cast %33 : vector<1x64x128xf32> to vector<64x128xf32>
    %cst_22 = arith.constant dense<0.000000e+00> : vector<72x128xf32>
    %35 = tpu.matmul %32, %34, %cst_22 {dimension_numbers = #tpu.dot_dimension_numbers<[1], [0], [0], [1], [0, 0, 1, 1], [], []>} : vector<72x64xf32>, vector<64x128xf32>, vector<72x128xf32> -> vector<72x128xf32>
    %36 = arith.addf %31, %35 : vector<72x128xf32>
    %37 = vector.extract_strided_slice %2 {offsets = [13, 0], sizes = [72, 64], strides = [1, 1]} : vector<86x64xf32> to vector<72x64xf32>
    %c7 = arith.constant 7 : index
    %c0_23 = arith.constant 0 : index
    %c0_24 = arith.constant 0 : index
    %38 = vector.load %arg2[%c7, %c0_23, %c0_24] : memref<9x64x128xf32, #tpu.memory_space<vmem>>, vector<1x64x128xf32>
    %39 = vector.shape_cast %38 : vector<1x64x128xf32> to vector<64x128xf32>
    %cst_25 = arith.constant dense<0.000000e+00> : vector<72x128xf32>
    %40 = tpu.matmul %37, %39, %cst_25 {dimension_numbers = #tpu.dot_dimension_numbers<[1], [0], [0], [1], [0, 0, 1, 1], [], []>} : vector<72x64xf32>, vector<64x128xf32>, vector<72x128xf32> -> vector<72x128xf32>
    %41 = arith.addf %36, %40 : vector<72x128xf32>
    %42 = vector.extract_strided_slice %2 {offsets = [14, 0], sizes = [72, 64], strides = [1, 1]} : vector<86x64xf32> to vector<72x64xf32>
    %c8 = arith.constant 8 : index
    %c0_26 = arith.constant 0 : index
    %c0_27 = arith.constant 0 : index
    %43 = vector.load %arg2[%c8, %c0_26, %c0_27] : memref<9x64x128xf32, #tpu.memory_space<vmem>>, vector<1x64x128xf32>
    %44 = vector.shape_cast %43 : vector<1x64x128xf32> to vector<64x128xf32>
    %cst_28 = arith.constant dense<0.000000e+00> : vector<72x128xf32>
    %45 = tpu.matmul %42, %44, %cst_28 {dimension_numbers = #tpu.dot_dimension_numbers<[1], [0], [0], [1], [0, 0, 1, 1], [], []>} : vector<72x64xf32>, vector<64x128xf32>, vector<72x128xf32> -> vector<72x128xf32>
    %46 = arith.addf %41, %45 : vector<72x128xf32>
    %c0_29 = arith.constant 0 : index
    %c0_30 = arith.constant 0 : index
    %47 = vector.load %arg5[%c0_29, %c0_30] : memref<72x1xf32, #tpu.memory_space<vmem>>, vector<72x1xf32>
    %48 = vector.broadcast %47 : vector<72x1xf32> to vector<72x128xf32>
    %49 = arith.mulf %46, %48 : vector<72x128xf32>
    %cst_31 = arith.constant dense<0.000000e+00> : vector<128xf32>
    %50 = vector.multi_reduction <add>, %49, %cst_31 [0] : vector<72x128xf32> to vector<128xf32>
    %51 = vector.shape_cast %50 : vector<128xf32> to vector<1x128xf32>
    %cst_32 = arith.constant 3.125000e-02 : f32
    %52 = vector.broadcast %cst_32 : f32 to vector<1x128xf32>
    %53 = arith.mulf %51, %52 : vector<1x128xf32>
    %54 = vector.broadcast %53 : vector<1x128xf32> to vector<72x128xf32>
    %55 = arith.subf %46, %54 : vector<72x128xf32>
    %56 = vector.broadcast %47 : vector<72x1xf32> to vector<72x128xf32>
    %57 = arith.mulf %55, %56 : vector<72x128xf32>
    %58 = arith.mulf %57, %57 : vector<72x128xf32>
    %cst_33 = arith.constant dense<0.000000e+00> : vector<128xf32>
    %59 = vector.multi_reduction <add>, %58, %cst_33 [0] : vector<72x128xf32> to vector<128xf32>
    %60 = vector.shape_cast %59 : vector<128xf32> to vector<1x128xf32>
    %cst_34 = arith.constant 3.125000e-02 : f32
    %61 = vector.broadcast %cst_34 : f32 to vector<1x128xf32>
    %62 = arith.mulf %60, %61 : vector<1x128xf32>
    %cst_35 = arith.constant 9.99999974E-6 : f32
    %63 = vector.broadcast %cst_35 : f32 to vector<1x128xf32>
    %64 = arith.addf %62, %63 : vector<1x128xf32>
    %65 = math.rsqrt %64 : vector<1x128xf32>
    %c0_36 = arith.constant 0 : index
    %c0_37 = arith.constant 0 : index
    %66 = vector.load %arg3[%c0_36, %c0_37] : memref<1x128xf32, #tpu.memory_space<vmem>>, vector<1x128xf32>
    %67 = arith.mulf %66, %65 : vector<1x128xf32>
    %c0_38 = arith.constant 0 : index
    %c0_39 = arith.constant 0 : index
    %68 = vector.load %arg4[%c0_38, %c0_39] : memref<1x128xf32, #tpu.memory_space<vmem>>, vector<1x128xf32>
    %69 = arith.mulf %53, %67 : vector<1x128xf32>
    %70 = arith.subf %68, %69 : vector<1x128xf32>
    %71 = vector.broadcast %67 : vector<1x128xf32> to vector<72x128xf32>
    %72 = arith.mulf %46, %71 : vector<72x128xf32>
    %73 = vector.broadcast %70 : vector<1x128xf32> to vector<72x128xf32>
    %74 = arith.addf %72, %73 : vector<72x128xf32>
    %75 = arith.negf %74 : vector<72x128xf32>
    %76 = math.exp %75 : vector<72x128xf32>
    %cst_40 = arith.constant 1.000000e+00 : f32
    %77 = vector.broadcast %cst_40 : f32 to vector<72x128xf32>
    %78 = arith.addf %77, %76 : vector<72x128xf32>
    %79 = arith.divf %77, %78 : vector<72x128xf32>
    %80 = arith.mulf %74, %79 : vector<72x128xf32>
    %81 = vector.broadcast %47 : vector<72x1xf32> to vector<72x128xf32>
    %82 = arith.mulf %80, %81 : vector<72x128xf32>
    %83 = arith.truncf %82 : vector<72x128xf32> to vector<72x128xbf16>
    %c0_41 = arith.constant 0 : index
    %c0_42 = arith.constant 0 : index
    %84 = vector.load %arg6[%c0_41, %c0_42] : memref<72x128xbf16, #tpu.memory_space<vmem>>, vector<72x128xbf16>
    tpu.vector_store %arg6[%c0_41, %c0_42], %83 {strides = array<i32>} : memref<72x128xbf16, #tpu.memory_space<vmem>>, vector<72x128xbf16>,
    return
  }
  func.func @transform_0(%arg0: i32) -> (i32, i32, i32) {
    %c0_i32 = arith.constant 0 : i32
    %c0_i32_0 = arith.constant 0 : i32
    %c0_i32_1 = arith.constant 0 : i32
    %c0_i32_2 = arith.constant 0 : i32
    return %c0_i32, %c0_i32_0, %c0_i32_1 : i32, i32, i32
  }
  func.func @transform_1(%arg0: i32) -> (i32, i32, i32) {
    %c0_i32 = arith.constant 0 : i32
    %c0_i32_0 = arith.constant 0 : i32
    %c0_i32_1 = arith.constant 0 : i32
    %c0_i32_2 = arith.constant 0 : i32
    return %c0_i32, %c0_i32_0, %c0_i32_1 : i32, i32, i32
  }
  func.func @transform_2(%arg0: i32) -> (i32, i32) {
    %c0_i32 = arith.constant 0 : i32
    %c0_i32_0 = arith.constant 0 : i32
    %c0_i32_1 = arith.constant 0 : i32
    return %c0_i32, %c0_i32_0 : i32, i32
  }
  func.func @transform_3(%arg0: i32) -> (i32, i32) {
    %c0_i32 = arith.constant 0 : i32
    %c0_i32_0 = arith.constant 0 : i32
    %c0_i32_1 = arith.constant 0 : i32
    return %c0_i32, %c0_i32_0 : i32, i32
  }
  func.func @transform_4(%arg0: i32) -> (i32, i32) {
    %c0_i32 = arith.constant 0 : i32
    %c0_i32_0 = arith.constant 0 : i32
    %c0_i32_1 = arith.constant 0 : i32
    return %c0_i32, %c0_i32_0 : i32, i32
  }
  func.func @transform_5(%arg0: i32) -> (i32, i32) {
    %c0_i32 = arith.constant 0 : i32
    %c0_i32_0 = arith.constant 0 : i32
    %c0_i32_1 = arith.constant 0 : i32
    return %c0_i32, %c0_i32_0 : i32, i32
  }
}

module attributes {stable_mosaic.version = 11 : i64} {
  func.func @_layer_head_kernel(%arg0: i32, %arg1: memref<1x86x128xbf16, #tpu.memory_space<vmem>>, %arg2: memref<9x128x256xf32, #tpu.memory_space<vmem>>, %arg3: memref<1x256xf32, #tpu.memory_space<vmem>>, %arg4: memref<1x256xf32, #tpu.memory_space<vmem>>, %arg5: memref<72x1xf32, #tpu.memory_space<vmem>>, %arg6: memref<2x72xf32, #tpu.memory_space<vmem>>, %arg7: memref<256x10xf32, #tpu.memory_space<vmem>>, %arg8: memref<1x10xf32, #tpu.memory_space<vmem>>, %arg9: memref<72x256xf32, #tpu.memory_space<vmem>>, %arg10: memref<2x10xf32, #tpu.memory_space<vmem>>) attributes {dimension_semantics = [#tpu.dimension_semantics<arbitrary>], iteration_bounds = array<i64: 1>, scalar_prefetch = 0 : i64, scratch_operands = 0 : i64, tpu.core_type = #tpu.core_type<tc>, window_params = [{pipeline_mode = #tpu.pipeline_mode<synchronous>, transform_indices = @transform_0, window_bounds = array<i64: 1, 86, 128>}, {pipeline_mode = #tpu.pipeline_mode<synchronous>, transform_indices = @transform_1, window_bounds = array<i64: 9, 128, 256>}, {pipeline_mode = #tpu.pipeline_mode<synchronous>, transform_indices = @transform_2, window_bounds = array<i64: 1, 256>}, {pipeline_mode = #tpu.pipeline_mode<synchronous>, transform_indices = @transform_3, window_bounds = array<i64: 1, 256>}, {pipeline_mode = #tpu.pipeline_mode<synchronous>, transform_indices = @transform_4, window_bounds = array<i64: 72, 1>}, {pipeline_mode = #tpu.pipeline_mode<synchronous>, transform_indices = @transform_5, window_bounds = array<i64: 2, 72>}, {pipeline_mode = #tpu.pipeline_mode<synchronous>, transform_indices = @transform_6, window_bounds = array<i64: 256, 10>}, {pipeline_mode = #tpu.pipeline_mode<synchronous>, transform_indices = @transform_7, window_bounds = array<i64: 1, 10>}, {pipeline_mode = #tpu.pipeline_mode<synchronous>, transform_indices = @transform_8, window_bounds = array<i64: 72, 256>}, {pipeline_mode = #tpu.pipeline_mode<synchronous>, transform_indices = @transform_9, window_bounds = array<i64: 2, 10>}]} {
    %c0 = arith.constant 0 : index
    %c0_0 = arith.constant 0 : index
    %c0_1 = arith.constant 0 : index
    %0 = vector.load %arg1[%c0, %c0_0, %c0_1] : memref<1x86x128xbf16, #tpu.memory_space<vmem>>, vector<1x86x128xbf16>
    %1 = vector.shape_cast %0 : vector<1x86x128xbf16> to vector<86x128xbf16>
    %2 = arith.extf %1 : vector<86x128xbf16> to vector<86x128xf32>
    %3 = vector.extract_strided_slice %2 {offsets = [0, 0], sizes = [72, 128], strides = [1, 1]} : vector<86x128xf32> to vector<72x128xf32>
    %c0_2 = arith.constant 0 : index
    %c0_3 = arith.constant 0 : index
    %c0_4 = arith.constant 0 : index
    %4 = vector.load %arg2[%c0_2, %c0_3, %c0_4] : memref<9x128x256xf32, #tpu.memory_space<vmem>>, vector<1x128x256xf32>
    %5 = vector.shape_cast %4 : vector<1x128x256xf32> to vector<128x256xf32>
    %cst = arith.constant dense<0.000000e+00> : vector<72x256xf32>
    %6 = tpu.matmul %3, %5, %cst {dimension_numbers = #tpu.dot_dimension_numbers<[1], [0], [0], [1], [0, 0, 1, 1], [], []>} : vector<72x128xf32>, vector<128x256xf32>, vector<72x256xf32> -> vector<72x256xf32>
    %7 = vector.extract_strided_slice %2 {offsets = [1, 0], sizes = [72, 128], strides = [1, 1]} : vector<86x128xf32> to vector<72x128xf32>
    %c1 = arith.constant 1 : index
    %c0_5 = arith.constant 0 : index
    %c0_6 = arith.constant 0 : index
    %8 = vector.load %arg2[%c1, %c0_5, %c0_6] : memref<9x128x256xf32, #tpu.memory_space<vmem>>, vector<1x128x256xf32>
    %9 = vector.shape_cast %8 : vector<1x128x256xf32> to vector<128x256xf32>
    %cst_7 = arith.constant dense<0.000000e+00> : vector<72x256xf32>
    %10 = tpu.matmul %7, %9, %cst_7 {dimension_numbers = #tpu.dot_dimension_numbers<[1], [0], [0], [1], [0, 0, 1, 1], [], []>} : vector<72x128xf32>, vector<128x256xf32>, vector<72x256xf32> -> vector<72x256xf32>
    %11 = arith.addf %6, %10 : vector<72x256xf32>
    %12 = vector.extract_strided_slice %2 {offsets = [2, 0], sizes = [72, 128], strides = [1, 1]} : vector<86x128xf32> to vector<72x128xf32>
    %c2 = arith.constant 2 : index
    %c0_8 = arith.constant 0 : index
    %c0_9 = arith.constant 0 : index
    %13 = vector.load %arg2[%c2, %c0_8, %c0_9] : memref<9x128x256xf32, #tpu.memory_space<vmem>>, vector<1x128x256xf32>
    %14 = vector.shape_cast %13 : vector<1x128x256xf32> to vector<128x256xf32>
    %cst_10 = arith.constant dense<0.000000e+00> : vector<72x256xf32>
    %15 = tpu.matmul %12, %14, %cst_10 {dimension_numbers = #tpu.dot_dimension_numbers<[1], [0], [0], [1], [0, 0, 1, 1], [], []>} : vector<72x128xf32>, vector<128x256xf32>, vector<72x256xf32> -> vector<72x256xf32>
    %16 = arith.addf %11, %15 : vector<72x256xf32>
    %17 = vector.extract_strided_slice %2 {offsets = [6, 0], sizes = [72, 128], strides = [1, 1]} : vector<86x128xf32> to vector<72x128xf32>
    %c3 = arith.constant 3 : index
    %c0_11 = arith.constant 0 : index
    %c0_12 = arith.constant 0 : index
    %18 = vector.load %arg2[%c3, %c0_11, %c0_12] : memref<9x128x256xf32, #tpu.memory_space<vmem>>, vector<1x128x256xf32>
    %19 = vector.shape_cast %18 : vector<1x128x256xf32> to vector<128x256xf32>
    %cst_13 = arith.constant dense<0.000000e+00> : vector<72x256xf32>
    %20 = tpu.matmul %17, %19, %cst_13 {dimension_numbers = #tpu.dot_dimension_numbers<[1], [0], [0], [1], [0, 0, 1, 1], [], []>} : vector<72x128xf32>, vector<128x256xf32>, vector<72x256xf32> -> vector<72x256xf32>
    %21 = arith.addf %16, %20 : vector<72x256xf32>
    %22 = vector.extract_strided_slice %2 {offsets = [7, 0], sizes = [72, 128], strides = [1, 1]} : vector<86x128xf32> to vector<72x128xf32>
    %c4 = arith.constant 4 : index
    %c0_14 = arith.constant 0 : index
    %c0_15 = arith.constant 0 : index
    %23 = vector.load %arg2[%c4, %c0_14, %c0_15] : memref<9x128x256xf32, #tpu.memory_space<vmem>>, vector<1x128x256xf32>
    %24 = vector.shape_cast %23 : vector<1x128x256xf32> to vector<128x256xf32>
    %cst_16 = arith.constant dense<0.000000e+00> : vector<72x256xf32>
    %25 = tpu.matmul %22, %24, %cst_16 {dimension_numbers = #tpu.dot_dimension_numbers<[1], [0], [0], [1], [0, 0, 1, 1], [], []>} : vector<72x128xf32>, vector<128x256xf32>, vector<72x256xf32> -> vector<72x256xf32>
    %26 = arith.addf %21, %25 : vector<72x256xf32>
    %27 = vector.extract_strided_slice %2 {offsets = [8, 0], sizes = [72, 128], strides = [1, 1]} : vector<86x128xf32> to vector<72x128xf32>
    %c5 = arith.constant 5 : index
    %c0_17 = arith.constant 0 : index
    %c0_18 = arith.constant 0 : index
    %28 = vector.load %arg2[%c5, %c0_17, %c0_18] : memref<9x128x256xf32, #tpu.memory_space<vmem>>, vector<1x128x256xf32>
    %29 = vector.shape_cast %28 : vector<1x128x256xf32> to vector<128x256xf32>
    %cst_19 = arith.constant dense<0.000000e+00> : vector<72x256xf32>
    %30 = tpu.matmul %27, %29, %cst_19 {dimension_numbers = #tpu.dot_dimension_numbers<[1], [0], [0], [1], [0, 0, 1, 1], [], []>} : vector<72x128xf32>, vector<128x256xf32>, vector<72x256xf32> -> vector<72x256xf32>
    %31 = arith.addf %26, %30 : vector<72x256xf32>
    %32 = vector.extract_strided_slice %2 {offsets = [12, 0], sizes = [72, 128], strides = [1, 1]} : vector<86x128xf32> to vector<72x128xf32>
    %c6 = arith.constant 6 : index
    %c0_20 = arith.constant 0 : index
    %c0_21 = arith.constant 0 : index
    %33 = vector.load %arg2[%c6, %c0_20, %c0_21] : memref<9x128x256xf32, #tpu.memory_space<vmem>>, vector<1x128x256xf32>
    %34 = vector.shape_cast %33 : vector<1x128x256xf32> to vector<128x256xf32>
    %cst_22 = arith.constant dense<0.000000e+00> : vector<72x256xf32>
    %35 = tpu.matmul %32, %34, %cst_22 {dimension_numbers = #tpu.dot_dimension_numbers<[1], [0], [0], [1], [0, 0, 1, 1], [], []>} : vector<72x128xf32>, vector<128x256xf32>, vector<72x256xf32> -> vector<72x256xf32>
    %36 = arith.addf %31, %35 : vector<72x256xf32>
    %37 = vector.extract_strided_slice %2 {offsets = [13, 0], sizes = [72, 128], strides = [1, 1]} : vector<86x128xf32> to vector<72x128xf32>
    %c7 = arith.constant 7 : index
    %c0_23 = arith.constant 0 : index
    %c0_24 = arith.constant 0 : index
    %38 = vector.load %arg2[%c7, %c0_23, %c0_24] : memref<9x128x256xf32, #tpu.memory_space<vmem>>, vector<1x128x256xf32>
    %39 = vector.shape_cast %38 : vector<1x128x256xf32> to vector<128x256xf32>
    %cst_25 = arith.constant dense<0.000000e+00> : vector<72x256xf32>
    %40 = tpu.matmul %37, %39, %cst_25 {dimension_numbers = #tpu.dot_dimension_numbers<[1], [0], [0], [1], [0, 0, 1, 1], [], []>} : vector<72x128xf32>, vector<128x256xf32>, vector<72x256xf32> -> vector<72x256xf32>
    %41 = arith.addf %36, %40 : vector<72x256xf32>
    %42 = vector.extract_strided_slice %2 {offsets = [14, 0], sizes = [72, 128], strides = [1, 1]} : vector<86x128xf32> to vector<72x128xf32>
    %c8 = arith.constant 8 : index
    %c0_26 = arith.constant 0 : index
    %c0_27 = arith.constant 0 : index
    %43 = vector.load %arg2[%c8, %c0_26, %c0_27] : memref<9x128x256xf32, #tpu.memory_space<vmem>>, vector<1x128x256xf32>
    %44 = vector.shape_cast %43 : vector<1x128x256xf32> to vector<128x256xf32>
    %cst_28 = arith.constant dense<0.000000e+00> : vector<72x256xf32>
    %45 = tpu.matmul %42, %44, %cst_28 {dimension_numbers = #tpu.dot_dimension_numbers<[1], [0], [0], [1], [0, 0, 1, 1], [], []>} : vector<72x128xf32>, vector<128x256xf32>, vector<72x256xf32> -> vector<72x256xf32>
    %46 = arith.addf %41, %45 : vector<72x256xf32>
    %c0_29 = arith.constant 0 : index
    %c0_30 = arith.constant 0 : index
    %47 = vector.load %arg5[%c0_29, %c0_30] : memref<72x1xf32, #tpu.memory_space<vmem>>, vector<72x1xf32>
    %48 = vector.broadcast %47 : vector<72x1xf32> to vector<72x256xf32>
    %49 = arith.mulf %46, %48 : vector<72x256xf32>
    %cst_31 = arith.constant dense<0.000000e+00> : vector<256xf32>
    %50 = vector.multi_reduction <add>, %49, %cst_31 [0] : vector<72x256xf32> to vector<256xf32>
    %51 = vector.shape_cast %50 : vector<256xf32> to vector<1x256xf32>
    %cst_32 = arith.constant 3.125000e-02 : f32
    %52 = vector.broadcast %cst_32 : f32 to vector<1x256xf32>
    %53 = arith.mulf %51, %52 : vector<1x256xf32>
    %54 = vector.broadcast %53 : vector<1x256xf32> to vector<72x256xf32>
    %55 = arith.subf %46, %54 : vector<72x256xf32>
    %56 = vector.broadcast %47 : vector<72x1xf32> to vector<72x256xf32>
    %57 = arith.mulf %55, %56 : vector<72x256xf32>
    %58 = arith.mulf %57, %57 : vector<72x256xf32>
    %cst_33 = arith.constant dense<0.000000e+00> : vector<256xf32>
    %59 = vector.multi_reduction <add>, %58, %cst_33 [0] : vector<72x256xf32> to vector<256xf32>
    %60 = vector.shape_cast %59 : vector<256xf32> to vector<1x256xf32>
    %cst_34 = arith.constant 3.125000e-02 : f32
    %61 = vector.broadcast %cst_34 : f32 to vector<1x256xf32>
    %62 = arith.mulf %60, %61 : vector<1x256xf32>
    %cst_35 = arith.constant 9.99999974E-6 : f32
    %63 = vector.broadcast %cst_35 : f32 to vector<1x256xf32>
    %64 = arith.addf %62, %63 : vector<1x256xf32>
    %65 = math.rsqrt %64 : vector<1x256xf32>
    %c0_36 = arith.constant 0 : index
    %c0_37 = arith.constant 0 : index
    %66 = vector.load %arg3[%c0_36, %c0_37] : memref<1x256xf32, #tpu.memory_space<vmem>>, vector<1x256xf32>
    %67 = arith.mulf %66, %65 : vector<1x256xf32>
    %c0_38 = arith.constant 0 : index
    %c0_39 = arith.constant 0 : index
    %68 = vector.load %arg4[%c0_38, %c0_39] : memref<1x256xf32, #tpu.memory_space<vmem>>, vector<1x256xf32>
    %69 = arith.mulf %53, %67 : vector<1x256xf32>
    %70 = arith.subf %68, %69 : vector<1x256xf32>
    %71 = vector.broadcast %67 : vector<1x256xf32> to vector<72x256xf32>
    %72 = arith.mulf %46, %71 : vector<72x256xf32>
    %73 = vector.broadcast %70 : vector<1x256xf32> to vector<72x256xf32>
    %74 = arith.addf %72, %73 : vector<72x256xf32>
    %75 = arith.negf %74 : vector<72x256xf32>
    %76 = math.exp %75 : vector<72x256xf32>
    %cst_40 = arith.constant 1.000000e+00 : f32
    %77 = vector.broadcast %cst_40 : f32 to vector<72x256xf32>
    %78 = arith.addf %77, %76 : vector<72x256xf32>
    %79 = arith.divf %77, %78 : vector<72x256xf32>
    %80 = arith.mulf %74, %79 : vector<72x256xf32>
    %81 = vector.broadcast %47 : vector<72x1xf32> to vector<72x256xf32>
    %82 = arith.mulf %80, %81 : vector<72x256xf32>
    %c0_41 = arith.constant 0 : index
    %c0_42 = arith.constant 0 : index
    %83 = vector.load %arg9[%c0_41, %c0_42] : memref<72x256xf32, #tpu.memory_space<vmem>>, vector<72x256xf32>
    tpu.vector_store %arg9[%c0_41, %c0_42], %82 {strides = array<i32>} : memref<72x256xf32, #tpu.memory_space<vmem>>, vector<72x256xf32>,
    %c0_43 = arith.constant 0 : index
    %c0_44 = arith.constant 0 : index
    %84 = vector.load %arg6[%c0_43, %c0_44] : memref<2x72xf32, #tpu.memory_space<vmem>>, vector<2x72xf32>
    %cst_45 = arith.constant dense<0.000000e+00> : vector<2x256xf32>
    %85 = tpu.matmul %84, %82, %cst_45 {dimension_numbers = #tpu.dot_dimension_numbers<[1], [0], [0], [1], [0, 0, 1, 1], [], []>} : vector<2x72xf32>, vector<72x256xf32>, vector<2x256xf32> -> vector<2x256xf32>
    %c0_46 = arith.constant 0 : index
    %c0_47 = arith.constant 0 : index
    %86 = vector.load %arg7[%c0_46, %c0_47] : memref<256x10xf32, #tpu.memory_space<vmem>>, vector<256x10xf32>
    %cst_48 = arith.constant dense<0.000000e+00> : vector<2x10xf32>
    %87 = tpu.matmul %85, %86, %cst_48 {dimension_numbers = #tpu.dot_dimension_numbers<[1], [0], [0], [1], [0, 0, 1, 1], [], []>} : vector<2x256xf32>, vector<256x10xf32>, vector<2x10xf32> -> vector<2x10xf32>
    %c0_49 = arith.constant 0 : index
    %c0_50 = arith.constant 0 : index
    %88 = vector.load %arg8[%c0_49, %c0_50] : memref<1x10xf32, #tpu.memory_space<vmem>>, vector<1x10xf32>
    %89 = vector.broadcast %88 : vector<1x10xf32> to vector<2x10xf32>
    %90 = arith.addf %87, %89 : vector<2x10xf32>
    %c0_51 = arith.constant 0 : index
    %c0_52 = arith.constant 0 : index
    %91 = vector.load %arg10[%c0_51, %c0_52] : memref<2x10xf32, #tpu.memory_space<vmem>>, vector<2x10xf32>
    tpu.vector_store %arg10[%c0_51, %c0_52], %90 {strides = array<i32>} : memref<2x10xf32, #tpu.memory_space<vmem>>, vector<2x10xf32>,
    return
  }
  func.func @transform_0(%arg0: i32) -> (i32, i32, i32) {
    %c0_i32 = arith.constant 0 : i32
    %c0_i32_0 = arith.constant 0 : i32
    %c0_i32_1 = arith.constant 0 : i32
    %c0_i32_2 = arith.constant 0 : i32
    return %c0_i32, %c0_i32_0, %c0_i32_1 : i32, i32, i32
  }
  func.func @transform_1(%arg0: i32) -> (i32, i32, i32) {
    %c0_i32 = arith.constant 0 : i32
    %c0_i32_0 = arith.constant 0 : i32
    %c0_i32_1 = arith.constant 0 : i32
    %c0_i32_2 = arith.constant 0 : i32
    return %c0_i32, %c0_i32_0, %c0_i32_1 : i32, i32, i32
  }
  func.func @transform_2(%arg0: i32) -> (i32, i32) {
    %c0_i32 = arith.constant 0 : i32
    %c0_i32_0 = arith.constant 0 : i32
    %c0_i32_1 = arith.constant 0 : i32
    return %c0_i32, %c0_i32_0 : i32, i32
  }
  func.func @transform_3(%arg0: i32) -> (i32, i32) {
    %c0_i32 = arith.constant 0 : i32
    %c0_i32_0 = arith.constant 0 : i32
    %c0_i32_1 = arith.constant 0 : i32
    return %c0_i32, %c0_i32_0 : i32, i32
  }
  func.func @transform_4(%arg0: i32) -> (i32, i32) {
    %c0_i32 = arith.constant 0 : i32
    %c0_i32_0 = arith.constant 0 : i32
    %c0_i32_1 = arith.constant 0 : i32
    return %c0_i32, %c0_i32_0 : i32, i32
  }
  func.func @transform_5(%arg0: i32) -> (i32, i32) {
    %c0_i32 = arith.constant 0 : i32
    %c0_i32_0 = arith.constant 0 : i32
    %c0_i32_1 = arith.constant 0 : i32
    return %c0_i32, %c0_i32_0 : i32, i32
  }
  func.func @transform_6(%arg0: i32) -> (i32, i32) {
    %c0_i32 = arith.constant 0 : i32
    %c0_i32_0 = arith.constant 0 : i32
    %c0_i32_1 = arith.constant 0 : i32
    return %c0_i32, %c0_i32_0 : i32, i32
  }
  func.func @transform_7(%arg0: i32) -> (i32, i32) {
    %c0_i32 = arith.constant 0 : i32
    %c0_i32_0 = arith.constant 0 : i32
    %c0_i32_1 = arith.constant 0 : i32
    return %c0_i32, %c0_i32_0 : i32, i32
  }
  func.func @transform_8(%arg0: i32) -> (i32, i32) {
    %c0_i32 = arith.constant 0 : i32
    %c0_i32_0 = arith.constant 0 : i32
    %c0_i32_1 = arith.constant 0 : i32
    return %c0_i32, %c0_i32_0 : i32, i32
  }
  func.func @transform_9(%arg0: i32) -> (i32, i32) {
    %c0_i32 = arith.constant 0 : i32
    %c0_i32_0 = arith.constant 0 : i32
    %c0_i32_1 = arith.constant 0 : i32
    return %c0_i32, %c0_i32_0 : i32, i32
  }
}

</mosaic_0001>

<llo_original>
// kernel: eq.8
$region0: #{eq.8}
  %s0 = inlined_call_operand.vmem [shape: s32[2,36], index: 0, kind: input, shape index: {}]
  %s1 = inlined_call_operand.vmem [shape: s32[72], index: 1, kind: output, shape index: {}]
  $region1: #{eq.8} parent=0
    #allocation0 [shape = 'u8[4096]{0}', space=vmem, size = 0x1000, scoped, tag = 'scoped mem for output reshape']
    #allocation1 [shape = 'u8[4096]{0}', space=vmem, size = 0x1000, scoped, tag = 'scoped mem for input reshape']
    %s3 = ssub.s32 4, 1
    %v4 = vld [vmem:[%s0] sm:%s3]
    %5 = vst [vmem:[#allocation1] sm:%s3] %v4
    %v6 = vld [vmem:[#allocation1] sm:$0x1]
    %vm7 = vcmask 293888
    %8 = vst.msk [vmem:[#allocation0] sm:$0x1] %vm7, %v6
    %s9 = scalar_lea.vmem [#allocation1], 1
    %v10 = vld [vmem:[%s9] sm:$0x1]
    %11 = vrot.lane.b32.xlu0 %v10, 36
    %v12 = vpop.permute.xlu0 %11
    %vm13 = vcmask 589088
    %14 = vst.msk [vmem:[#allocation0] sm:$0x1] %vm13, %v12
    %s16 = ssub.s32 2, 1
    %v17 = vld [vmem:[#allocation0] sm:%s16]
    %s19 = ssub.s32 2, 1
    %20 = vst [vmem:[%s1] sm:%s19] %v17

// kernel: conv4_forward.5
$region0: #{conv4_forward.5}
  #allocation0 [shape = 'u32[]', space=smem, size = 0x4, offset = 0x4, fixed_abs, tag = 'smem constant byte address 0x4 - core index']
  #allocation1 [shape = 'u32[72,128]{1,0:T(1,128)}', space=vmem, size = 0x9000, scoped, tag = 'internal scratch']
  %s0 = inlined_call_operand.vmem [shape: bf16[4,56,32], index: 0, kind: input, shape index: {}]
  %s1 = inlined_call_operand.vmem [shape: f32[9,32,64], index: 1, kind: input, shape index: {}]
  %s2 = inlined_call_operand.vmem [shape: f32[1,64], index: 2, kind: input, shape index: {}]
  %s3 = inlined_call_operand.vmem [shape: f32[1,64], index: 3, kind: input, shape index: {}]
  %s4 = inlined_call_operand.vmem [shape: f32[50,1], index: 4, kind: input, shape index: {}]
  %s5 = inlined_call_operand.vmem [shape: bf16[50,64], index: 5, kind: output, shape index: {}]
  %s6 = sld [smem:[#allocation0]]
  $region30: #{conv4_forward.5} parent=0
    _
  %s8 = ssub.s32 1, %s6
  %s9 = scalar_select 0, %s8, %s6
  // Predicated region
  $region2: #{conv4_forward.5} parent=0 // pred_check
    _
  $region3: #{conv4_forward.5} parent=0 // pred_check_branch
    %11 = sbr.rel (0) target = $region5
  $region4: #{conv4_forward.5} parent=0 // pred_region
    _
  $region5: #{conv4_forward.5} parent=0 // pred_fallthru
    _
  // Predicated region
  $region6: #{conv4_forward.5} parent=0 // pred_check
    _
  $region7: #{conv4_forward.5} parent=0 // pred_check_branch
    %13 = sbr.rel (0) target = $region9
  $region8: #{conv4_forward.5} parent=0 // pred_region
    _
  $region9: #{conv4_forward.5} parent=0 // pred_fallthru
    _
  // Predicated region
  $region10: #{conv4_forward.5} parent=0 // pred_check
    _
  $region11: #{conv4_forward.5} parent=0 // pred_check_branch
    %15 = sbr.rel (0) target = $region13
  $region12: #{conv4_forward.5} parent=0 // pred_region
    _
  $region13: #{conv4_forward.5} parent=0 // pred_fallthru
    _
  // Predicated region
  $region14: #{conv4_forward.5} parent=0 // pred_check
    _
  $region15: #{conv4_forward.5} parent=0 // pred_check_branch
    %17 = sbr.rel (0) target = $region17
  $region16: #{conv4_forward.5} parent=0 // pred_region
    _
  $region17: #{conv4_forward.5} parent=0 // pred_fallthru
    _
  // Predicated region
  $region18: #{conv4_forward.5} parent=0 // pred_check
    _
  $region19: #{conv4_forward.5} parent=0 // pred_check_branch
    %19 = sbr.rel (0) target = $region21
  $region20: #{conv4_forward.5} parent=0 // pred_region
    _
  $region21: #{conv4_forward.5} parent=0 // pred_fallthru
    _
  %v20 = vld [vmem:[%s0] sm:$0xf]
  %v21 = vld [vmem:[%s0 + $0x4] sm:$0xf]
  %v22 = vld [vmem:[%s0 + $0x8] sm:$0xf]
  %v23 = vld [vmem:[%s0 + $0xc] sm:$0xf]
  %v24 = vld [vmem:[%s0 + $0x10] sm:$0xf]
  %v25 = vld [vmem:[%s0 + $0x14] sm:$0xf]
  %v26 = vld [vmem:[%s0 + $0x18] sm:$0xf]
  %v27 = vunpack.c.l.bf16 %v20
  %v28 = vunpack.c.l.bf16 %v21
  %v29 = vunpack.c.l.bf16 %v22
  %v30 = vunpack.c.l.bf16 %v23
  %v31 = vunpack.c.l.bf16 %v24
  %v32 = vunpack.c.l.bf16 %v25
  %v33 = vunpack.c.l.bf16 %v26
  %s34 = scalar_lea.vmem %s0, 28
  %v35 = vld [vmem:[%s34] sm:$0xf]
  %v36 = vld [vmem:[%s34 + $0x4] sm:$0xf]
  %v37 = vld [vmem:[%s34 + $0x8] sm:$0xf]
  %v38 = vld [vmem:[%s34 + $0xc] sm:$0xf]
  %v39 = vld [vmem:[%s34 + $0x10] sm:$0xf]
  %v40 = vld [vmem:[%s34 + $0x14] sm:$0xf]
  %v41 = vld [vmem:[%s34 + $0x18] sm:$0xf]
  %v42 = vunpack.c.l.bf16 %v35
  %v43 = vunpack.c.l.bf16 %v36
  %v44 = vunpack.c.l.bf16 %v37
  %v45 = vunpack.c.l.bf16 %v38
  %v46 = vunpack.c.l.bf16 %v39
  %v47 = vunpack.c.l.bf16 %v40
  %v48 = vunpack.c.l.bf16 %v41
  %s49 = scalar_lea.vmem %s0, 56
  %v50 = vld [vmem:[%s49] sm:$0xf]
  %v51 = vld [vmem:[%s49 + $0x4] sm:$0xf]
  %v52 = vld [vmem:[%s49 + $0x8] sm:$0xf]
  %v53 = vld [vmem:[%s49 + $0xc] sm:$0xf]
  %v54 = vld [vmem:[%s49 + $0x10] sm:$0xf]
  %v55 = vld [vmem:[%s49 + $0x14] sm:$0xf]
  %v56 = vld [vmem:[%s49 + $0x18] sm:$0xf]
  %v57 = vunpack.c.l.bf16 %v50
  %v58 = vunpack.c.l.bf16 %v51
  %v59 = vunpack.c.l.bf16 %v52
  %v60 = vunpack.c.l.bf16 %v53
  %v61 = vunpack.c.l.bf16 %v54
  %v62 = vunpack.c.l.bf16 %v55
  %v63 = vunpack.c.l.bf16 %v56
  %s64 = scalar_lea.vmem %s0, 84
  %v65 = vld [vmem:[%s64] sm:$0xf]
  %v66 = vld [vmem:[%s64 + $0x4] sm:$0xf]
  %v67 = vld [vmem:[%s64 + $0x8] sm:$0xf]
  %v68 = vld [vmem:[%s64 + $0xc] sm:$0xf]
  %v69 = vld [vmem:[%s64 + $0x10] sm:$0xf]
  %v70 = vld [vmem:[%s64 + $0x14] sm:$0xf]
  %v71 = vld [vmem:[%s64 + $0x18] sm:$0xf]
  %v72 = vunpack.c.l.bf16 %v65
  %v73 = vunpack.c.l.bf16 %v66
  %v74 = vunpack.c.l.bf16 %v67
  %v75 = vunpack.c.l.bf16 %v68
  %v76 = vunpack.c.l.bf16 %v69
  %v77 = vunpack.c.l.bf16 %v70
  %v78 = vunpack.c.l.bf16 %v71
  %v79 = vld [vmem:[%s1] sm:$0xff]
  %v80 = vld [vmem:[%s1 + $0x8] sm:$0xff]
  %v81 = vld [vmem:[%s1 + $0x10] sm:$0xff]
  %v82 = vld [vmem:[%s1 + $0x18] sm:$0xff]
  %s83 = scalar_lea.vmem %s1, 32
  %v84 = vld [vmem:[%s83] sm:$0xff]
  %v85 = vld [vmem:[%s83 + $0x8] sm:$0xff]
  %v86 = vld [vmem:[%s83 + $0x10] sm:$0xff]
  %v87 = vld [vmem:[%s83 + $0x18] sm:$0xff]
  %vm88 = vcmask 261120
  %v90 = vsel %vm88, %v42, 0
  %v93 = vsel %vm88, %v43, 0
  %v96 = vsel %vm88, %v44, 0
  %v99 = vsel %vm88, %v45, 0
  %v102 = vsel %vm88, %v46, 0
  %v105 = vsel %vm88, %v47, 0
  %v108 = vsel %vm88, %v48, 0
  %110 = vmatpush.msra.mxu0 0.0
  %111 = vmatpush.msra.mxu0 0.0
  %112 = vmatpush.msra.mxu0 0.0
  %113 = vmatpush.msra.mxu0 0.0
  %114 = vmatpush.msra.mxu0 0.0
  %115 = vmatpush.msra.mxu0 0.0
  %116 = vmatpush.msra.mxu0 0.0
  %117 = vmatpush.msra.mxu0 0.0
  %118 = vmatpush.msra.mxu0 0.0
  %119 = vmatpush.msra.mxu0 0.0
  %120 = vmatpush.msra.mxu0 0.0
  %121 = vmatpush.msra.mxu0 0.0
  %122 = vmatpush.msra.mxu0 %v87
  %123 = vmatpush.msra.mxu0 %v86
  %124 = vmatpush.msra.mxu0 %v85
  %125 = vmatpush.msra.mxu0 %v84
  %126 = vmatmul.f32.gmra.mxu0 %v90
  %v127 = vpop.f32.mrf.mxu0
  %v128 = vadd.f32 0.0, %v127
  %129 = vmatmul.f32.gmra.mxu0 %v93
  %v130 = vpop.f32.mrf.mxu0
  %v131 = vadd.f32 0.0, %v130
  %132 = vmatmul.f32.gmra.mxu0 %v96
  %v133 = vpop.f32.mrf.mxu0
  %v134 = vadd.f32 0.0, %v133
  %135 = vmatmul.f32.gmra.mxu0 %v99
  %v136 = vpop.f32.mrf.mxu0
  %v137 = vadd.f32 0.0, %v136
  %138 = vmatmul.f32.gmra.mxu0 %v102
  %v139 = vpop.f32.mrf.mxu0
  %v140 = vadd.f32 0.0, %v139
  %141 = vmatmul.f32.gmra.mxu0 %v105
  %v142 = vpop.f32.mrf.mxu0
  %v143 = vadd.f32 0.0, %v142
  %144 = vmatmul.f32.gmra.mxu0 %v108
  %v145 = vpop.f32.mrf.mxu0
  %v146 = vadd.f32 0.0, %v145
  %147 = vdwg.mxu0
  %v149 = vsel %vm88, %v27, 0
  %v152 = vsel %vm88, %v28, 0
  %v155 = vsel %vm88, %v29, 0
  %v158 = vsel %vm88, %v30, 0
  %v161 = vsel %vm88, %v31, 0
  %v164 = vsel %vm88, %v32, 0
  %v167 = vsel %vm88, %v33, 0
  %169 = vmatpush.msra.mxu0 0.0
  %170 = vmatpush.msra.mxu0 0.0
  %171 = vmatpush.msra.mxu0 0.0
  %172 = vmatpush.msra.mxu0 0.0
  %173 = vmatpush.msra.mxu0 0.0
  %174 = vmatpush.msra.mxu0 0.0
  %175 = vmatpush.msra.mxu0 0.0
  %176 = vmatpush.msra.mxu0 0.0
  %177 = vmatpush.msra.mxu0 0.0
  %178 = vmatpush.msra.mxu0 0.0
  %179 = vmatpush.msra.mxu0 0.0
  %180 = vmatpush.msra.mxu0 0.0
  %181 = vmatpush.msra.mxu0 %v82
  %182 = vmatpush.msra.mxu0 %v81
  %183 = vmatpush.msra.mxu0 %v80
  %184 = vmatpush.msra.mxu0 %v79
  %185 = vmatmul.f32.gmra.mxu0 %v149
  %v186 = vpop.f32.mrf.mxu0
  %v187 = vadd.f32 %v128, %v186
  %188 = vmatmul.f32.gmra.mxu0 %v152
  %v189 = vpop.f32.mrf.mxu0
  %v190 = vadd.f32 %v131, %v189
  %191 = vmatmul.f32.gmra.mxu0 %v155
  %v192 = vpop.f32.mrf.mxu0
  %v193 = vadd.f32 %v134, %v192
  %194 = vmatmul.f32.gmra.mxu0 %v158
  %v195 = vpop.f32.mrf.mxu0
  %v196 = vadd.f32 %v137, %v195
  %197 = vmatmul.f32.gmra.mxu0 %v161
  %v198 = vpop.f32.mrf.mxu0
  %v199 = vadd.f32 %v140, %v198
  %200 = vmatmul.f32.gmra.mxu0 %v164
  %v201 = vpop.f32.mrf.mxu0
  %v202 = vadd.f32 %v143, %v201
  %203 = vmatmul.f32.gmra.mxu0 %v167
  %v204 = vpop.f32.mrf.mxu0
  %v205 = vadd.f32 %v146, %v204
  %206 = vdwg.mxu0
  %s207 = scalar_lea.vmem %s1, 64
  %v208 = vld [vmem:[%s207] sm:$0xff]
  %v209 = vld [vmem:[%s207 + $0x8] sm:$0xff]
  %v210 = vld [vmem:[%s207 + $0x10] sm:$0xff]
  %v211 = vld [vmem:[%s207 + $0x18] sm:$0xff]
  %vm212 = vcmask 1046528
  %v213 = vrot.slane %v27, 1
  %v214 = vrot.slane %v28, 1
  %v215 = vsel %vm212, %v213, %v214
  %v216 = vrot.slane %v29, 1
  %v217 = vsel %vm212, %v214, %v216
  %v218 = vrot.slane %v30, 1
  %v219 = vsel %vm212, %v216, %v218
  %v220 = vrot.slane %v31, 1
  %v221 = vsel %vm212, %v218, %v220
  %v222 = vrot.slane %v32, 1
  %v223 = vsel %vm212, %v220, %v222
  %v224 = vrot.slane %v33, 1
  %v225 = vsel %vm212, %v222, %v224
  %v226 = vsel %vm88, %v215, 0
  %v228 = vsel %vm88, %v217, 0
  %v230 = vsel %vm88, %v219, 0
  %v232 = vsel %vm88, %v221, 0
  %v234 = vsel %vm88, %v223, 0
  %v236 = vsel %vm88, %v225, 0
  %v238 = vsel %vm88, %v224, 0
  %240 = vmatpush.msra.mxu0 0.0
  %241 = vmatpush.msra.mxu0 0.0
  %242 = vmatpush.msra.mxu0 0.0
  %243 = vmatpush.msra.mxu0 0.0
  %244 = vmatpush.msra.mxu0 0.0
  %245 = vmatpush.msra.mxu0 0.0
  %246 = vmatpush.msra.mxu0 0.0
  %247 = vmatpush.msra.mxu0 0.0
  %248 = vmatpush.msra.mxu0 0.0
  %249 = vmatpush.msra.mxu0 0.0
  %250 = vmatpush.msra.mxu0 0.0
  %251 = vmatpush.msra.mxu0 0.0
  %252 = vmatpush.msra.mxu0 %v211
  %253 = vmatpush.msra.mxu0 %v210
  %254 = vmatpush.msra.mxu0 %v209
  %255 = vmatpush.msra.mxu0 %v208
  %256 = vmatmul.f32.gmra.mxu0 %v226
  %v257 = vpop.f32.mrf.mxu0
  %v258 = vadd.f32 0.0, %v257
  %259 = vmatmul.f32.gmra.mxu0 %v228
  %v260 = vpop.f32.mrf.mxu0
  %v261 = vadd.f32 0.0, %v260
  %262 = vmatmul.f32.gmra.mxu0 %v230
  %v263 = vpop.f32.mrf.mxu0
  %v264 = vadd.f32 0.0, %v263
  %265 = vmatmul.f32.gmra.mxu0 %v232
  %v266 = vpop.f32.mrf.mxu0
  %v267 = vadd.f32 0.0, %v266
  %268 = vmatmul.f32.gmra.mxu0 %v234
  %v269 = vpop.f32.mrf.mxu0
  %v270 = vadd.f32 0.0, %v269
  %271 = vmatmul.f32.gmra.mxu0 %v236
  %v272 = vpop.f32.mrf.mxu0
  %v273 = vadd.f32 0.0, %v272
  %274 = vmatmul.f32.gmra.mxu0 %v238
  %v275 = vpop.f32.mrf.mxu0
  %v276 = vadd.f32 0.0, %v275
  %277 = vdwg.mxu0
  %v278 = vadd.f32 %v187, %v258
  %v279 = vadd.f32 %v190, %v261
  %v280 = vadd.f32 %v193, %v264
  %v281 = vadd.f32 %v196, %v267
  %v282 = vadd.f32 %v199, %v270
  %v283 = vadd.f32 %v202, %v273
  %v284 = vadd.f32 %v205, %v276
  %s285 = scalar_lea.vmem %s1, 96
  %v286 = vld [vmem:[%s285] sm:$0xff]
  %v287 = vld [vmem:[%s285 + $0x8] sm:$0xff]
  %v288 = vld [vmem:[%s285 + $0x10] sm:$0xff]
  %v289 = vld [vmem:[%s285 + $0x18] sm:$0xff]
  %v291 = vsel %vm88, %v57, 0
  %v294 = vsel %vm88, %v58, 0
  %v297 = vsel %vm88, %v59, 0
  %v300 = vsel %vm88, %v60, 0
  %v303 = vsel %vm88, %v61, 0
  %v306 = vsel %vm88, %v62, 0
  %v309 = vsel %vm88, %v63, 0
  %311 = vmatpush.msra.mxu0 0.0
  %312 = vmatpush.msra.mxu0 0.0
  %313 = vmatpush.msra.mxu0 0.0
  %314 = vmatpush.msra.mxu0 0.0
  %315 = vmatpush.msra.mxu0 0.0
  %316 = vmatpush.msra.mxu0 0.0
  %317 = vmatpush.msra.mxu0 0.0
  %318 = vmatpush.msra.mxu0 0.0
  %319 = vmatpush.msra.mxu0 0.0
  %320 = vmatpush.msra.mxu0 0.0
  %321 = vmatpush.msra.mxu0 0.0
  %322 = vmatpush.msra.mxu0 0.0
  %323 = vmatpush.msra.mxu0 %v289
  %324 = vmatpush.msra.mxu0 %v288
  %325 = vmatpush.msra.mxu0 %v287
  %326 = vmatpush.msra.mxu0 %v286
  %327 = vmatmul.f32.gmra.mxu0 %v291
  %v328 = vpop.f32.mrf.mxu0
  %v329 = vadd.f32 0.0, %v328
  %330 = vmatmul.f32.gmra.mxu0 %v294
  %v331 = vpop.f32.mrf.mxu0
  %v332 = vadd.f32 0.0, %v331
  %333 = vmatmul.f32.gmra.mxu0 %v297
  %v334 = vpop.f32.mrf.mxu0
  %v335 = vadd.f32 0.0, %v334
  %336 = vmatmul.f32.gmra.mxu0 %v300
  %v337 = vpop.f32.mrf.mxu0
  %v338 = vadd.f32 0.0, %v337
  %339 = vmatmul.f32.gmra.mxu0 %v303
  %v340 = vpop.f32.mrf.mxu0
  %v341 = vadd.f32 0.0, %v340
  %342 = vmatmul.f32.gmra.mxu0 %v306
  %v343 = vpop.f32.mrf.mxu0
  %v344 = vadd.f32 0.0, %v343
  %345 = vmatmul.f32.gmra.mxu0 %v309
  %v346 = vpop.f32.mrf.mxu0
  %v347 = vadd.f32 0.0, %v346
  %348 = vdwg.mxu0
  %v349 = vadd.f32 %v278, %v329
  %v350 = vadd.f32 %v279, %v332
  %v351 = vadd.f32 %v280, %v335
  %v352 = vadd.f32 %v281, %v338
  %v353 = vadd.f32 %v282, %v341
  %v354 = vadd.f32 %v283, %v344
  %v355 = vadd.f32 %v284, %v347
  %s356 = scalar_lea.vmem %s1, 128
  %v357 = vld [vmem:[%s356] sm:$0xff]
  %v358 = vld [vmem:[%s356 + $0x8] sm:$0xff]
  %v359 = vld [vmem:[%s356 + $0x10] sm:$0xff]
  %v360 = vld [vmem:[%s356 + $0x18] sm:$0xff]
  %v362 = vsel %vm88, %v72, 0
  %v365 = vsel %vm88, %v73, 0
  %v368 = vsel %vm88, %v74, 0
  %v371 = vsel %vm88, %v75, 0
  %v374 = vsel %vm88, %v76, 0
  %v377 = vsel %vm88, %v77, 0
  %v380 = vsel %vm88, %v78, 0
  %382 = vmatpush.msra.mxu0 0.0
  %383 = vmatpush.msra.mxu0 0.0
  %384 = vmatpush.msra.mxu0 0.0
  %385 = vmatpush.msra.mxu0 0.0
  %386 = vmatpush.msra.mxu0 0.0
  %387 = vmatpush.msra.mxu0 0.0
  %388 = vmatpush.msra.mxu0 0.0
  %389 = vmatpush.msra.mxu0 0.0
  %390 = vmatpush.msra.mxu0 0.0
  %391 = vmatpush.msra.mxu0 0.0
  %392 = vmatpush.msra.mxu0 0.0
  %393 = vmatpush.msra.mxu0 0.0
  %394 = vmatpush.msra.mxu0 %v360
  %395 = vmatpush.msra.mxu0 %v359
  %396 = vmatpush.msra.mxu0 %v358
  %397 = vmatpush.msra.mxu0 %v357
  %398 = vmatmul.f32.gmra.mxu0 %v362
  %v399 = vpop.f32.mrf.mxu0
  %v400 = vadd.f32 0.0, %v399
  %401 = vmatmul.f32.gmra.mxu0 %v365
  %v402 = vpop.f32.mrf.mxu0
  %v403 = vadd.f32 0.0, %v402
  %404 = vmatmul.f32.gmra.mxu0 %v368
  %v405 = vpop.f32.mrf.mxu0
  %v406 = vadd.f32 0.0, %v405
  %407 = vmatmul.f32.gmra.mxu0 %v371
  %v408 = vpop.f32.mrf.mxu0
  %v409 = vadd.f32 0.0, %v408
  %410 = vmatmul.f32.gmra.mxu0 %v374
  %v411 = vpop.f32.mrf.mxu0
  %v412 = vadd.f32 0.0, %v411
  %413 = vmatmul.f32.gmra.mxu0 %v377
  %v414 = vpop.f32.mrf.mxu0
  %v415 = vadd.f32 0.0, %v414
  %416 = vmatmul.f32.gmra.mxu0 %v380
  %v417 = vpop.f32.mrf.mxu0
  %v418 = vadd.f32 0.0, %v417
  %419 = vdwg.mxu0
  %v420 = vadd.f32 %v349, %v400
  %v421 = vadd.f32 %v350, %v403
  %v422 = vadd.f32 %v351, %v406
  %v423 = vadd.f32 %v352, %v409
  %v424 = vadd.f32 %v353, %v412
  %v425 = vadd.f32 %v354, %v415
  %v426 = vadd.f32 %v355, %v418
  %s427 = scalar_lea.vmem %s1, 160
  %v428 = vld [vmem:[%s427] sm:$0xff]
  %v429 = vld [vmem:[%s427 + $0x8] sm:$0xff]
  %v430 = vld [vmem:[%s427 + $0x10] sm:$0xff]
  %v431 = vld [vmem:[%s427 + $0x18] sm:$0xff]
  %v432 = vrot.slane %v57, 1
  %v433 = vrot.slane %v58, 1
  %v434 = vsel %vm212, %v432, %v433
  %v435 = vrot.slane %v59, 1
  %v436 = vsel %vm212, %v433, %v435
  %v437 = vrot.slane %v60, 1
  %v438 = vsel %vm212, %v435, %v437
  %v439 = vrot.slane %v61, 1
  %v440 = vsel %vm212, %v437, %v439
  %v441 = vrot.slane %v62, 1
  %v442 = vsel %vm212, %v439, %v441
  %v443 = vrot.slane %v63, 1
  %v444 = vsel %vm212, %v441, %v443
  %v445 = vsel %vm88, %v434, 0
  %v447 = vsel %vm88, %v436, 0
  %v449 = vsel %vm88, %v438, 0
  %v451 = vsel %vm88, %v440, 0
  %v453 = vsel %vm88, %v442, 0
  %v455 = vsel %vm88, %v444, 0
  %v457 = vsel %vm88, %v443, 0
  %459 = vmatpush.msra.mxu0 0.0
  %460 = vmatpush.msra.mxu0 0.0
  %461 = vmatpush.msra.mxu0 0.0
  %462 = vmatpush.msra.mxu0 0.0
  %463 = vmatpush.msra.mxu0 0.0
  %464 = vmatpush.msra.mxu0 0.0
  %465 = vmatpush.msra.mxu0 0.0
  %466 = vmatpush.msra.mxu0 0.0
  %467 = vmatpush.msra.mxu0 0.0
  %468 = vmatpush.msra.mxu0 0.0
  %469 = vmatpush.msra.mxu0 0.0
  %470 = vmatpush.msra.mxu0 0.0
  %471 = vmatpush.msra.mxu0 %v431
  %472 = vmatpush.msra.mxu0 %v430
  %473 = vmatpush.msra.mxu0 %v429
  %474 = vmatpush.msra.mxu0 %v428
  %475 = vmatmul.f32.gmra.mxu0 %v445
  %v476 = vpop.f32.mrf.mxu0
  %v477 = vadd.f32 0.0, %v476
  %478 = vmatmul.f32.gmra.mxu0 %v447
  %v479 = vpop.f32.mrf.mxu0
  %v480 = vadd.f32 0.0, %v479
  %481 = vmatmul.f32.gmra.mxu0 %v449
  %v482 = vpop.f32.mrf.mxu0
  %v483 = vadd.f32 0.0, %v482
  %484 = vmatmul.f32.gmra.mxu0 %v451
  %v485 = vpop.f32.mrf.mxu0
  %v486 = vadd.f32 0.0, %v485
  %487 = vmatmul.f32.gmra.mxu0 %v453
  %v488 = vpop.f32.mrf.mxu0
  %v489 = vadd.f32 0.0, %v488
  %490 = vmatmul.f32.gmra.mxu0 %v455
  %v491 = vpop.f32.mrf.mxu0
  %v492 = vadd.f32 0.0, %v491
  %493 = vmatmul.f32.gmra.mxu0 %v457
  %v494 = vpop.f32.mrf.mxu0
  %v495 = vadd.f32 0.0, %v494
  %496 = vdwg.mxu0
  %v497 = vadd.f32 %v420, %v477
  %v498 = vadd.f32 %v421, %v480
  %v499 = vadd.f32 %v422, %v483
  %v500 = vadd.f32 %v423, %v486
  %v501 = vadd.f32 %v424, %v489
  %v502 = vadd.f32 %v425, %v492
  %v503 = vadd.f32 %v426, %v495
  %s504 = scalar_lea.vmem %s1, 192
  %v505 = vld [vmem:[%s504] sm:$0xff]
  %v506 = vld [vmem:[%s504 + $0x8] sm:$0xff]
  %v507 = vld [vmem:[%s504 + $0x10] sm:$0xff]
  %v508 = vld [vmem:[%s504 + $0x18] sm:$0xff]
  %vm509 = vcmask 1042432
  %v510 = vrot.slane %v27, 5
  %v511 = vrot.slane %v28, 5
  %v512 = vsel %vm509, %v510, %v511
  %v513 = vrot.slane %v29, 5
  %v514 = vsel %vm509, %v511, %v513
  %v515 = vrot.slane %v30, 5
  %v516 = vsel %vm509, %v513, %v515
  %v517 = vrot.slane %v31, 5
  %v518 = vsel %vm509, %v515, %v517
  %v519 = vrot.slane %v32, 5
  %v520 = vsel %vm509, %v517, %v519
  %v521 = vrot.slane %v33, 5
  %v522 = vsel %vm509, %v519, %v521
  %v523 = vsel %vm88, %v512, 0
  %v525 = vsel %vm88, %v514, 0
  %v527 = vsel %vm88, %v516, 0
  %v529 = vsel %vm88, %v518, 0
  %v531 = vsel %vm88, %v520, 0
  %v533 = vsel %vm88, %v522, 0
  %v535 = vsel %vm88, %v521, 0
  %537 = vmatpush.msra.mxu0 0.0
  %538 = vmatpush.msra.mxu0 0.0
  %539 = vmatpush.msra.mxu0 0.0
  %540 = vmatpush.msra.mxu0 0.0
  %541 = vmatpush.msra.mxu0 0.0
  %542 = vmatpush.msra.mxu0 0.0
  %543 = vmatpush.msra.mxu0 0.0
  %544 = vmatpush.msra.mxu0 0.0
  %545 = vmatpush.msra.mxu0 0.0
  %546 = vmatpush.msra.mxu0 0.0
  %547 = vmatpush.msra.mxu0 0.0
  %548 = vmatpush.msra.mxu0 0.0
  %549 = vmatpush.msra.mxu0 %v508
  %550 = vmatpush.msra.mxu0 %v507
  %551 = vmatpush.msra.mxu0 %v506
  %552 = vmatpush.msra.mxu0 %v505
  %553 = vmatmul.f32.gmra.mxu0 %v523
  %v554 = vpop.f32.mrf.mxu0
  %v555 = vadd.f32 0.0, %v554
  %556 = vmatmul.f32.gmra.mxu0 %v525
  %v557 = vpop.f32.mrf.mxu0
  %v558 = vadd.f32 0.0, %v557
  %559 = vmatmul.f32.gmra.mxu0 %v527
  %v560 = vpop.f32.mrf.mxu0
  %v561 = vadd.f32 0.0, %v560
  %562 = vmatmul.f32.gmra.mxu0 %v529
  %v563 = vpop.f32.mrf.mxu0
  %v564 = vadd.f32 0.0, %v563
  %565 = vmatmul.f32.gmra.mxu0 %v531
  %v566 = vpop.f32.mrf.mxu0
  %v567 = vadd.f32 0.0, %v566
  %568 = vmatmul.f32.gmra.mxu0 %v533
  %v569 = vpop.f32.mrf.mxu0
  %v570 = vadd.f32 0.0, %v569
  %571 = vmatmul.f32.gmra.mxu0 %v535
  %v572 = vpop.f32.mrf.mxu0
  %v573 = vadd.f32 0.0, %v572
  %574 = vdwg.mxu0
  %v575 = vadd.f32 %v497, %v555
  %v576 = vadd.f32 %v498, %v558
  %v577 = vadd.f32 %v499, %v561
  %v578 = vadd.f32 %v500, %v564
  %v579 = vadd.f32 %v501, %v567
  %v580 = vadd.f32 %v502, %v570
  %v581 = vadd.f32 %v503, %v573
  %s582 = scalar_lea.vmem %s1, 224
  %v583 = vld [vmem:[%s582] sm:$0xff]
  %v584 = vld [vmem:[%s582 + $0x8] sm:$0xff]
  %v585 = vld [vmem:[%s582 + $0x10] sm:$0xff]
  %v586 = vld [vmem:[%s582 + $0x18] sm:$0xff]
  %v587 = vrot.slane %v42, 5
  %v588 = vrot.slane %v43, 5
  %v589 = vsel %vm509, %v587, %v588
  %v590 = vrot.slane %v44, 5
  %v591 = vsel %vm509, %v588, %v590
  %v592 = vrot.slane %v45, 5
  %v593 = vsel %vm509, %v590, %v592
  %v594 = vrot.slane %v46, 5
  %v595 = vsel %vm509, %v592, %v594
  %v596 = vrot.slane %v47, 5
  %v597 = vsel %vm509, %v594, %v596
  %v598 = vrot.slane %v48, 5
  %v599 = vsel %vm509, %v596, %v598
  %v600 = vsel %vm88, %v589, 0
  %v602 = vsel %vm88, %v591, 0
  %v604 = vsel %vm88, %v593, 0
  %v606 = vsel %vm88, %v595, 0
  %v608 = vsel %vm88, %v597, 0
  %v610 = vsel %vm88, %v599, 0
  %v612 = vsel %vm88, %v598, 0
  %614 = vmatpush.msra.mxu0 0.0
  %615 = vmatpush.msra.mxu0 0.0
  %616 = vmatpush.msra.mxu0 0.0
  %617 = vmatpush.msra.mxu0 0.0
  %618 = vmatpush.msra.mxu0 0.0
  %619 = vmatpush.msra.mxu0 0.0
  %620 = vmatpush.msra.mxu0 0.0
  %621 = vmatpush.msra.mxu0 0.0
  %622 = vmatpush.msra.mxu0 0.0
  %623 = vmatpush.msra.mxu0 0.0
  %624 = vmatpush.msra.mxu0 0.0
  %625 = vmatpush.msra.mxu0 0.0
  %626 = vmatpush.msra.mxu0 %v586
  %627 = vmatpush.msra.mxu0 %v585
  %628 = vmatpush.msra.mxu0 %v584
  %629 = vmatpush.msra.mxu0 %v583
  %630 = vmatmul.f32.gmra.mxu0 %v600
  %v631 = vpop.f32.mrf.mxu0
  %v632 = vadd.f32 0.0, %v631
  %633 = vmatmul.f32.gmra.mxu0 %v602
  %v634 = vpop.f32.mrf.mxu0
  %v635 = vadd.f32 0.0, %v634
  %636 = vmatmul.f32.gmra.mxu0 %v604
  %v637 = vpop.f32.mrf.mxu0
  %v638 = vadd.f32 0.0, %v637
  %639 = vmatmul.f32.gmra.mxu0 %v606
  %v640 = vpop.f32.mrf.mxu0
  %v641 = vadd.f32 0.0, %v640
  %642 = vmatmul.f32.gmra.mxu0 %v608
  %v643 = vpop.f32.mrf.mxu0
  %v644 = vadd.f32 0.0, %v643
  %645 = vmatmul.f32.gmra.mxu0 %v610
  %v646 = vpop.f32.mrf.mxu0
  %v647 = vadd.f32 0.0, %v646
  %648 = vmatmul.f32.gmra.mxu0 %v612
  %v649 = vpop.f32.mrf.mxu0
  %v650 = vadd.f32 0.0, %v649
  %651 = vdwg.mxu0
  %v652 = vadd.f32 %v575, %v632
  %v653 = vadd.f32 %v576, %v635
  %v654 = vadd.f32 %v577, %v638
  %v655 = vadd.f32 %v578, %v641
  %v656 = vadd.f32 %v579, %v644
  %v657 = vadd.f32 %v580, %v647
  %v658 = vadd.f32 %v581, %v650
  %s659 = scalar_lea.vmem %s1, 256
  %v660 = vld [vmem:[%s659] sm:$0xff]
  %v661 = vld [vmem:[%s659 + $0x8] sm:$0xff]
  %v662 = vld [vmem:[%s659 + $0x10] sm:$0xff]
  %v663 = vld [vmem:[%s659 + $0x18] sm:$0xff]
  %vm664 = vcmask 1041408
  %v665 = vrot.slane %v27, 6
  %v666 = vrot.slane %v28, 6
  %v667 = vsel %vm664, %v665, %v666
  %v668 = vrot.slane %v29, 6
  %v669 = vsel %vm664, %v666, %v668
  %v670 = vrot.slane %v30, 6
  %v671 = vsel %vm664, %v668, %v670
  %v672 = vrot.slane %v31, 6
  %v673 = vsel %vm664, %v670, %v672
  %v674 = vrot.slane %v32, 6
  %v675 = vsel %vm664, %v672, %v674
  %v676 = vrot.slane %v33, 6
  %v677 = vsel %vm664, %v674, %v676
  %v678 = vsel %vm88, %v667, 0
  %v680 = vsel %vm88, %v669, 0
  %v682 = vsel %vm88, %v671, 0
  %v684 = vsel %vm88, %v673, 0
  %v686 = vsel %vm88, %v675, 0
  %v688 = vsel %vm88, %v677, 0
  %v690 = vsel %vm88, %v676, 0
  %692 = vmatpush.msra.mxu0 0.0
  %693 = vmatpush.msra.mxu0 0.0
  %694 = vmatpush.msra.mxu0 0.0
  %695 = vmatpush.msra.mxu0 0.0
  %696 = vmatpush.msra.mxu0 0.0
  %697 = vmatpush.msra.mxu0 0.0
  %698 = vmatpush.msra.mxu0 0.0
  %699 = vmatpush.msra.mxu0 0.0
  %700 = vmatpush.msra.mxu0 0.0
  %701 = vmatpush.msra.mxu0 0.0
  %702 = vmatpush.msra.mxu0 0.0
  %703 = vmatpush.msra.mxu0 0.0
  %704 = vmatpush.msra.mxu0 %v663
  %705 = vmatpush.msra.mxu0 %v662
  %706 = vmatpush.msra.mxu0 %v661
  %707 = vmatpush.msra.mxu0 %v660
  %708 = vmatmul.f32.gmra.mxu0 %v678
  %v709 = vpop.f32.mrf.mxu0
  %v710 = vadd.f32 0.0, %v709
  %711 = vmatmul.f32.gmra.mxu0 %v680
  %v712 = vpop.f32.mrf.mxu0
  %v713 = vadd.f32 0.0, %v712
  %714 = vmatmul.f32.gmra.mxu0 %v682
  %v715 = vpop.f32.mrf.mxu0
  %v716 = vadd.f32 0.0, %v715
  %717 = vmatmul.f32.gmra.mxu0 %v684
  %v718 = vpop.f32.mrf.mxu0
  %v719 = vadd.f32 0.0, %v718
  %720 = vmatmul.f32.gmra.mxu0 %v686
  %v721 = vpop.f32.mrf.mxu0
  %v722 = vadd.f32 0.0, %v721
  %723 = vmatmul.f32.gmra.mxu0 %v688
  %v724 = vpop.f32.mrf.mxu0
  %v725 = vadd.f32 0.0, %v724
  %726 = vmatmul.f32.gmra.mxu0 %v690
  %v727 = vpop.f32.mrf.mxu0
  %v728 = vadd.f32 0.0, %v727
  %729 = vdwg.mxu0
  %v730 = vadd.f32 %v652, %v710
  %v731 = vadd.f32 %v653, %v713
  %v732 = vadd.f32 %v654, %v716
  %v733 = vadd.f32 %v655, %v719
  %v734 = vadd.f32 %v656, %v722
  %v735 = vadd.f32 %v657, %v725
  %v736 = vadd.f32 %v658, %v728
  %v737 = vld [vmem:[%s4] sm:$0xff]
  %v738 = vld [vmem:[%s4 + $0x8] sm:$0xff]
  %v739 = vld [vmem:[%s4 + $0x10] sm:$0xff]
  %v740 = vld [vmem:[%s4 + $0x18] sm:$0xff]
  %v741 = vld [vmem:[%s4 + $0x20] sm:$0xff]
  %v742 = vld [vmem:[%s4 + $0x28] sm:$0xff]
  %v743 = vld [vmem:[%s4 + $0x30] sm:$0x3]
  %745 = vset.pattern.permute.xlu0 0
  %746 = vperm.xlu0 %745, %v737
  %v747 = vpop.permute.xlu0 %746
  %750 = vset.pattern.permute.xlu0 0
  %751 = vperm.xlu0 %750, %v738
  %v752 = vpop.permute.xlu0 %751
  %755 = vset.pattern.permute.xlu0 0
  %756 = vperm.xlu0 %755, %v739
  %v757 = vpop.permute.xlu0 %756
  %760 = vset.pattern.permute.xlu0 0
  %761 = vperm.xlu0 %760, %v740
  %v762 = vpop.permute.xlu0 %761
  %765 = vset.pattern.permute.xlu0 0
  %766 = vperm.xlu0 %765, %v741
  %v767 = vpop.permute.xlu0 %766
  %770 = vset.pattern.permute.xlu0 0
  %771 = vperm.xlu0 %770, %v742
  %v772 = vpop.permute.xlu0 %771
  %775 = vset.pattern.permute.xlu0 0
  %776 = vperm.xlu0 %775, %v743
  %v777 = vpop.permute.xlu0 %776
  %v779 = vmul.f32 %v730, %v747
  %v780 = vmul.f32 %v731, %v752
  %v781 = vmul.f32 %v732, %v757
  %v782 = vmul.f32 %v733, %v762
  %v783 = vmul.f32 %v734, %v767
  %v784 = vmul.f32 %v735, %v772
  %v785 = vmul.f32 %v736, %v777
  %vm786 = vcmask 523264
  %v787 = vsel %vm786, %v779, 0.0
  %v788 = vsel %vm786, %v780, 0.0
  %v789 = vadd.f32 %v787, %v788
  %v790 = vsel %vm786, %v781, 0.0
  %v791 = vadd.f32 %v789, %v790
  %v792 = vsel %vm786, %v782, 0.0
  %v793 = vadd.f32 %v791, %v792
  %v794 = vsel %vm786, %v783, 0.0
  %v795 = vadd.f32 %v793, %v794
  %v796 = vsel %vm786, %v784, 0.0
  %v797 = vadd.f32 %v795, %v796
  %vm798 = vcmask 517120
  %v799 = vsel %vm798, %v785, 0.0
  %v800 = vadd.f32 %v797, %v799
  %v801 = vrot.slane %v800, 4
  %v802 = vadd.f32 %v800, %v801
  %v803 = vrot.slane %v802, 2
  %v804 = vadd.f32 %v802, %v803
  %v805 = vrot.slane %v804, 1
  %v806 = vadd.f32 %v804, %v805
  %v807 = vmul.f32 %v806, 0.03125
  %v808 = vsub.f32 %v730, %v807
  %v809 = vsub.f32 %v731, %v807
  %v810 = vsub.f32 %v732, %v807
  %v811 = vsub.f32 %v733, %v807
  %v812 = vsub.f32 %v734, %v807
  %v813 = vsub.f32 %v735, %v807
  %v814 = vsub.f32 %v736, %v807
  %v815 = vmul.f32 %v808, %v747
  %v816 = vmul.f32 %v809, %v752
  %v817 = vmul.f32 %v810, %v757
  %v818 = vmul.f32 %v811, %v762
  %v819 = vmul.f32 %v812, %v767
  %v820 = vmul.f32 %v813, %v772
  %v821 = vmul.f32 %v814, %v777
  %v822 = vmul.f32 %v815, %v815
  %v823 = vmul.f32 %v816, %v816
  %v824 = vmul.f32 %v817, %v817
  %v825 = vmul.f32 %v818, %v818
  %v826 = vmul.f32 %v819, %v819
  %v827 = vmul.f32 %v820, %v820
  %v828 = vmul.f32 %v821, %v821
  %v829 = vsel %vm786, %v822, 0.0
  %v830 = vsel %vm786, %v823, 0.0
  %v831 = vadd.f32 %v829, %v830
  %v832 = vsel %vm786, %v824, 0.0
  %v833 = vadd.f32 %v831, %v832
  %v834 = vsel %vm786, %v825, 0.0
  %v835 = vadd.f32 %v833, %v834
  %v836 = vsel %vm786, %v826, 0.0
  %v837 = vadd.f32 %v835, %v836
  %v838 = vsel %vm786, %v827, 0.0
  %v839 = vadd.f32 %v837, %v838
  %v840 = vsel %vm798, %v828, 0.0
  %v841 = vadd.f32 %v839, %v840
  %v842 = vrot.slane %v841, 4
  %v843 = vadd.f32 %v841, %v842
  %v844 = vrot.slane %v843, 2
  %v845 = vadd.f32 %v843, %v844
  %v846 = vrot.slane %v845, 1
  %v847 = vadd.f32 %v845, %v846
  %v848 = vmul.f32 %v847, 0.03125
  %v849 = vadd.f32 %v848, 1e-05
  %v850 = vrsqrt.pop %v849
  %v851 = vmul.f32 %v850, %v849
  %v852 = vmul.f32 %v851, %v850
  %v853 = vmul.f32 0.5, %v852
  %v854 = vsub.f32 1.5, %v853
  %v855 = vmul.f32 %v850, %v854
  %vm856 = vweird.f32 %v849
  %vm857 = vweird.f32 %v850
  %vm858 = vmor %vm856, %vm857
  %v859 = vsel %vm858, %v850, %v855
  %v860 = vld [vmem:[%s2] sm:$0x1]
  %v861 = vmul.f32 %v860, %v859
  %v862 = vld [vmem:[%s3] sm:$0x1]
  %v863 = vmul.f32 %v807, %v861
  %v864 = vsub.f32 %v862, %v863
  %v866 = vperm.slane %v861, 0
  %v868 = vmul.f32 %v730, %v866
  %v869 = vmul.f32 %v731, %v866
  %v870 = vmul.f32 %v732, %v866
  %v871 = vmul.f32 %v733, %v866
  %v872 = vmul.f32 %v734, %v866
  %v873 = vmul.f32 %v735, %v866
  %v874 = vmul.f32 %v736, %v866
  %v876 = vperm.slane %v864, 0
  %v878 = vadd.f32 %v868, %v876
  %v879 = vadd.f32 %v869, %v876
  %v880 = vadd.f32 %v870, %v876
  %v881 = vadd.f32 %v871, %v876
  %v882 = vadd.f32 %v872, %v876
  %v883 = vadd.f32 %v873, %v876
  %v884 = vadd.f32 %v874, %v876
  %v885 = vxor.u32 %v878, 2147483648
  %v886 = vxor.u32 %v879, 2147483648
  %v887 = vxor.u32 %v880, 2147483648
  %v888 = vxor.u32 %v881, 2147483648
  %v889 = vxor.u32 %v882, 2147483648
  %v890 = vxor.u32 %v883, 2147483648
  %v891 = vxor.u32 %v884, 2147483648
  %v892 = vmul.f32 %v885, 1.442695
  %v893 = vpow.pop %v892
  %v894 = vmul.f32 %v886, 1.442695
  %v895 = vpow.pop %v894
  %v896 = vmul.f32 %v887, 1.442695
  %v897 = vpow.pop %v896
  %v898 = vmul.f32 %v888, 1.442695
  %v899 = vpow.pop %v898
  %v900 = vmul.f32 %v889, 1.442695
  %v901 = vpow.pop %v900
  %v902 = vmul.f32 %v890, 1.442695
  %v903 = vpow.pop %v902
  %v904 = vmul.f32 %v891, 1.442695
  %v905 = vpow.pop %v904
  %v906 = vadd.f32 %v893, 1.0
  %v907 = vadd.f32 %v895, 1.0
  %v908 = vadd.f32 %v897, 1.0
  %v909 = vadd.f32 %v899, 1.0
  %v910 = vadd.f32 %v901, 1.0
  %v911 = vadd.f32 %v903, 1.0
  %v912 = vadd.f32 %v905, 1.0
  %v913 = vrcp.pop %v906
  %v914 = vmul.f32 %v906, %v913
  %v915 = vsub.f32 1.0, %v914
  %v916 = vmul.f32 %v913, %v915
  %v917 = vadd.f32 %v913, %v916
  %vm918 = vweird.f32 %v906
  %vm919 = vweird.f32 %v913
  %vm920 = vmor %vm918, %vm919
  %v921 = vsel %vm920, %v913, %v917
  %v922 = vand.u32 2147483647, %v906
  %vm923 = vcmp.eq.f32.partialorder %v922, 8.507059e+37
  %v924 = vand.u32 %v906, 2147483648
  %v925 = vor.u32 1.1754944e-38, %v924
  %v926 = vsel %vm923, %v925, %v921
  %v927 = vmul.f32 1.0, %v926
  %v928 = vrcp.pop %v907
  %v929 = vmul.f32 %v907, %v928
  %v930 = vsub.f32 1.0, %v929
  %v931 = vmul.f32 %v928, %v930
  %v932 = vadd.f32 %v928, %v931
  %vm933 = vweird.f32 %v907
  %vm934 = vweird.f32 %v928
  %vm935 = vmor %vm933, %vm934
  %v936 = vsel %vm935, %v928, %v932
  %v937 = vand.u32 2147483647, %v907
  %vm938 = vcmp.eq.f32.partialorder %v937, 8.507059e+37
  %v939 = vand.u32 %v907, 2147483648
  %v940 = vor.u32 1.1754944e-38, %v939
  %v941 = vsel %vm938, %v940, %v936
  %v942 = vmul.f32 1.0, %v941
  %v943 = vrcp.pop %v908
  %v944 = vmul.f32 %v908, %v943
  %v945 = vsub.f32 1.0, %v944
  %v946 = vmul.f32 %v943, %v945
  %v947 = vadd.f32 %v943, %v946
  %vm948 = vweird.f32 %v908
  %vm949 = vweird.f32 %v943
  %vm950 = vmor %vm948, %vm949
  %v951 = vsel %vm950, %v943, %v947
  %v952 = vand.u32 2147483647, %v908
  %vm953 = vcmp.eq.f32.partialorder %v952, 8.507059e+37
  %v954 = vand.u32 %v908, 2147483648
  %v955 = vor.u32 1.1754944e-38, %v954
  %v956 = vsel %vm953, %v955, %v951
  %v957 = vmul.f32 1.0, %v956
  %v958 = vrcp.pop %v909
  %v959 = vmul.f32 %v909, %v958
  %v960 = vsub.f32 1.0, %v959
  %v961 = vmul.f32 %v958, %v960
  %v962 = vadd.f32 %v958, %v961
  %vm963 = vweird.f32 %v909
  %vm964 = vweird.f32 %v958
  %vm965 = vmor %vm963, %vm964
  %v966 = vsel %vm965, %v958, %v962
  %v967 = vand.u32 2147483647, %v909
  %vm968 = vcmp.eq.f32.partialorder %v967, 8.507059e+37
  %v969 = vand.u32 %v909, 2147483648
  %v970 = vor.u32 1.1754944e-38, %v969
  %v971 = vsel %vm968, %v970, %v966
  %v972 = vmul.f32 1.0, %v971
  %v973 = vrcp.pop %v910
  %v974 = vmul.f32 %v910, %v973
  %v975 = vsub.f32 1.0, %v974
  %v976 = vmul.f32 %v973, %v975
  %v977 = vadd.f32 %v973, %v976
  %vm978 = vweird.f32 %v910
  %vm979 = vweird.f32 %v973
  %vm980 = vmor %vm978, %vm979
  %v981 = vsel %vm980, %v973, %v977
  %v982 = vand.u32 2147483647, %v910
  %vm983 = vcmp.eq.f32.partialorder %v982, 8.507059e+37
  %v984 = vand.u32 %v910, 2147483648
  %v985 = vor.u32 1.1754944e-38, %v984
  %v986 = vsel %vm983, %v985, %v981
  %v987 = vmul.f32 1.0, %v986
  %v988 = vrcp.pop %v911
  %v989 = vmul.f32 %v911, %v988
  %v990 = vsub.f32 1.0, %v989
  %v991 = vmul.f32 %v988, %v990
  %v992 = vadd.f32 %v988, %v991
  %vm993 = vweird.f32 %v911
  %vm994 = vweird.f32 %v988
  %vm995 = vmor %vm993, %vm994
  %v996 = vsel %vm995, %v988, %v992
  %v997 = vand.u32 2147483647, %v911
  %vm998 = vcmp.eq.f32.partialorder %v997, 8.507059e+37
  %v999 = vand.u32 %v911, 2147483648
  %v1000 = vor.u32 1.1754944e-38, %v999
  %v1001 = vsel %vm998, %v1000, %v996
  %v1002 = vmul.f32 1.0, %v1001
  %v1003 = vrcp.pop %v912
  %v1004 = vmul.f32 %v912, %v1003
  %v1005 = vsub.f32 1.0, %v1004
  %v1006 = vmul.f32 %v1003, %v1005
  %v1007 = vadd.f32 %v1003, %v1006
  %vm1008 = vweird.f32 %v912
  %vm1009 = vweird.f32 %v1003
  %vm1010 = vmor %vm1008, %vm1009
  %v1011 = vsel %vm1010, %v1003, %v1007
  %v1012 = vand.u32 2147483647, %v912
  %vm1013 = vcmp.eq.f32.partialorder %v1012, 8.507059e+37
  %v1014 = vand.u32 %v912, 2147483648
  %v1015 = vor.u32 1.1754944e-38, %v1014
  %v1016 = vsel %vm1013, %v1015, %v1011
  %v1017 = vmul.f32 1.0, %v1016
  %v1018 = vmul.f32 %v878, %v927
  %v1019 = vmul.f32 %v879, %v942
  %v1020 = vmul.f32 %v880, %v957
  %v1021 = vmul.f32 %v881, %v972
  %v1022 = vmul.f32 %v882, %v987
  %v1023 = vmul.f32 %v883, %v1002
  %v1024 = vmul.f32 %v884, %v1017
  %v1025 = vmul.f32 %v1018, %v747
  %v1026 = vmul.f32 %v1019, %v752
  %v1027 = vmul.f32 %v1020, %v757
  %v1028 = vmul.f32 %v1021, %v762
  %v1029 = vmul.f32 %v1022, %v767
  %v1030 = vmul.f32 %v1023, %v772
  %v1031 = vmul.f32 %v1024, %v777
  %v1032 = vpack.c.bf16 %v1025, %v1025
  %v1033 = vpack.c.bf16 %v1026, %v1026
  %v1034 = vpack.c.bf16 %v1027, %v1027
  %v1035 = vpack.c.bf16 %v1028, %v1028
  %v1036 = vpack.c.bf16 %v1029, %v1029
  %v1037 = vpack.c.bf16 %v1030, %v1030
  %v1038 = vpack.c.bf16 %v1031, %v1031
  %vm1039 = vcmask 519168
  %1040 = vst.msk [vmem:[%s5] sm:$0xf] %vm1039, %v1032
  %1041 = vst.msk [vmem:[%s5 + $0x4] sm:$0xf] %vm1039, %v1033
  %1042 = vst.msk [vmem:[%s5 + $0x8] sm:$0xf] %vm1039, %v1034
  %1043 = vst.msk [vmem:[%s5 + $0xc] sm:$0xf] %vm1039, %v1035
  %1044 = vst.msk [vmem:[%s5 + $0x10] sm:$0xf] %vm1039, %v1036
  %1045 = vst.msk [vmem:[%s5 + $0x14] sm:$0xf] %vm1039, %v1037
  %vm1046 = vcmask 516096
  %1047 = vst.msk [vmem:[%s5 + $0x18] sm:$0x1] %vm1046, %v1038
  // Predicated region
  $region22: #{conv4_forward.5} parent=0 // pred_check
    _
  $region23: #{conv4_forward.5} parent=0 // pred_check_branch
    %1049 = sbr.rel (0) target = $region25
  $region24: #{conv4_forward.5} parent=0 // pred_region
    _
  $region25: #{conv4_forward.5} parent=0 // pred_fallthru
    _
  // Predicated region
  $region26: #{conv4_forward.5} parent=0 // pred_check
    _
  $region27: #{conv4_forward.5} parent=0 // pred_check_branch
    %1051 = sbr.rel (0) target = $region29
  $region28: #{conv4_forward.5} parent=0 // pred_region
    _
  $region29: #{conv4_forward.5} parent=0 // pred_fallthru
    _

// kernel: conv4_forward.6
$region0: #{conv4_forward.6}
  #allocation0 [shape = 'u32[]', space=smem, size = 0x4, offset = 0x4, fixed_abs, tag = 'smem constant byte address 0x4 - core index']
  #allocation1 [shape = 'u32[72,128]{1,0:T(1,128)}', space=vmem, size = 0x9000, scoped, tag = 'internal scratch']
  %s0 = inlined_call_operand.vmem [shape: bf16[1,86,64], index: 0, kind: input, shape index: {}]
  %s1 = inlined_call_operand.vmem [shape: f32[9,64,128], index: 1, kind: input, shape index: {}]
  %s2 = inlined_call_operand.vmem [shape: f32[1,128], index: 2, kind: input, shape index: {}]
  %s3 = inlined_call_operand.vmem [shape: f32[1,128], index: 3, kind: input, shape index: {}]
  %s4 = inlined_call_operand.vmem [shape: f32[72,1], index: 4, kind: input, shape index: {}]
  %s5 = inlined_call_operand.vmem [shape: bf16[72,128], index: 5, kind: output, shape index: {}]
  %s6 = sld [smem:[#allocation0]]
  $region30: #{conv4_forward.6} parent=0
    _
  %s8 = ssub.s32 1, %s6
  %s9 = scalar_select 0, %s8, %s6
  // Predicated region
  $region2: #{conv4_forward.6} parent=0 // pred_check
    _
  $region3: #{conv4_forward.6} parent=0 // pred_check_branch
    %11 = sbr.rel (0) target = $region5
  $region4: #{conv4_forward.6} parent=0 // pred_region
    _
  $region5: #{conv4_forward.6} parent=0 // pred_fallthru
    _
  // Predicated region
  $region6: #{conv4_forward.6} parent=0 // pred_check
    _
  $region7: #{conv4_forward.6} parent=0 // pred_check_branch
    %13 = sbr.rel (0) target = $region9
  $region8: #{conv4_forward.6} parent=0 // pred_region
    _
  $region9: #{conv4_forward.6} parent=0 // pred_fallthru
    _
  // Predicated region
  $region10: #{conv4_forward.6} parent=0 // pred_check
    _
  $region11: #{conv4_forward.6} parent=0 // pred_check_branch
    %15 = sbr.rel (0) target = $region13
  $region12: #{conv4_forward.6} parent=0 // pred_region
    _
  $region13: #{conv4_forward.6} parent=0 // pred_fallthru
    _
  // Predicated region
  $region14: #{conv4_forward.6} parent=0 // pred_check
    _
  $region15: #{conv4_forward.6} parent=0 // pred_check_branch
    %17 = sbr.rel (0) target = $region17
  $region16: #{conv4_forward.6} parent=0 // pred_region
    _
  $region17: #{conv4_forward.6} parent=0 // pred_fallthru
    _
  // Predicated region
  $region18: #{conv4_forward.6} parent=0 // pred_check
    _
  $region19: #{conv4_forward.6} parent=0 // pred_check_branch
    %19 = sbr.rel (0) target = $region21
  $region20: #{conv4_forward.6} parent=0 // pred_region
    _
  $region21: #{conv4_forward.6} parent=0 // pred_fallthru
    _
  %v20 = vld [vmem:[%s0] sm:$0xf]
  %v21 = vld [vmem:[%s0 + $0x4] sm:$0xf]
  %v22 = vld [vmem:[%s0 + $0x8] sm:$0xf]
  %v23 = vld [vmem:[%s0 + $0xc] sm:$0xf]
  %v24 = vld [vmem:[%s0 + $0x10] sm:$0xf]
  %v25 = vld [vmem:[%s0 + $0x14] sm:$0xf]
  %v26 = vld [vmem:[%s0 + $0x18] sm:$0xf]
  %v27 = vld [vmem:[%s0 + $0x1c] sm:$0xf]
  %v28 = vld [vmem:[%s0 + $0x20] sm:$0xf]
  %v29 = vld [vmem:[%s0 + $0x24] sm:$0xf]
  %v30 = vld [vmem:[%s0 + $0x28] sm:$0x7]
  %v31 = vunpack.c.l.bf16 %v20
  %v32 = vunpack.c.l.bf16 %v21
  %v33 = vunpack.c.l.bf16 %v22
  %v34 = vunpack.c.l.bf16 %v23
  %v35 = vunpack.c.l.bf16 %v24
  %v36 = vunpack.c.l.bf16 %v25
  %v37 = vunpack.c.l.bf16 %v26
  %v38 = vunpack.c.l.bf16 %v27
  %v39 = vunpack.c.l.bf16 %v28
  %v40 = vunpack.c.l.bf16 %v29
  %v41 = vunpack.c.l.bf16 %v30
  %v42 = vld [vmem:[%s1] sm:$0xff]
  %v43 = vld [vmem:[%s1 + $0x8] sm:$0xff]
  %v44 = vld [vmem:[%s1 + $0x10] sm:$0xff]
  %v45 = vld [vmem:[%s1 + $0x18] sm:$0xff]
  %v46 = vld [vmem:[%s1 + $0x20] sm:$0xff]
  %v47 = vld [vmem:[%s1 + $0x28] sm:$0xff]
  %v48 = vld [vmem:[%s1 + $0x30] sm:$0xff]
  %v49 = vld [vmem:[%s1 + $0x38] sm:$0xff]
  %s50 = scalar_lea.vmem %s1, 64
  %v51 = vld [vmem:[%s50] sm:$0xff]
  %v52 = vld [vmem:[%s50 + $0x8] sm:$0xff]
  %v53 = vld [vmem:[%s50 + $0x10] sm:$0xff]
  %v54 = vld [vmem:[%s50 + $0x18] sm:$0xff]
  %v55 = vld [vmem:[%s50 + $0x20] sm:$0xff]
  %v56 = vld [vmem:[%s50 + $0x28] sm:$0xff]
  %v57 = vld [vmem:[%s50 + $0x30] sm:$0xff]
  %v58 = vld [vmem:[%s50 + $0x38] sm:$0xff]
  %vm69 = vcmask 1046528
  %v70 = vrot.slane %v31, 1
  %v71 = vrot.slane %v32, 1
  %v72 = vsel %vm69, %v70, %v71
  %v73 = vrot.slane %v33, 1
  %v74 = vsel %vm69, %v71, %v73
  %v75 = vrot.slane %v34, 1
  %v76 = vsel %vm69, %v73, %v75
  %v77 = vrot.slane %v35, 1
  %v78 = vsel %vm69, %v75, %v77
  %v79 = vrot.slane %v36, 1
  %v80 = vsel %vm69, %v77, %v79
  %v81 = vrot.slane %v37, 1
  %v82 = vsel %vm69, %v79, %v81
  %v83 = vrot.slane %v38, 1
  %v84 = vsel %vm69, %v81, %v83
  %v85 = vrot.slane %v39, 1
  %v86 = vsel %vm69, %v83, %v85
  %v87 = vrot.slane %v40, 1
  %v88 = vsel %vm69, %v85, %v87
  %vm89 = vcmask 523264
  %v90 = vsel %vm89, %v72, 0
  %v92 = vsel %vm89, %v74, 0
  %v94 = vsel %vm89, %v76, 0
  %v96 = vsel %vm89, %v78, 0
  %v98 = vsel %vm89, %v80, 0
  %v100 = vsel %vm89, %v82, 0
  %v102 = vsel %vm89, %v84, 0
  %v104 = vsel %vm89, %v86, 0
  %v106 = vsel %vm89, %v88, 0
  %108 = vmatpush.msra.mxu0 0.0
  %109 = vmatpush.msra.mxu0 0.0
  %110 = vmatpush.msra.mxu0 0.0
  %111 = vmatpush.msra.mxu0 0.0
  %112 = vmatpush.msra.mxu0 0.0
  %113 = vmatpush.msra.mxu0 0.0
  %114 = vmatpush.msra.mxu0 0.0
  %115 = vmatpush.msra.mxu0 0.0
  %116 = vmatpush.msra.mxu0 %v58
  %117 = vmatpush.msra.mxu0 %v57
  %118 = vmatpush.msra.mxu0 %v56
  %119 = vmatpush.msra.mxu0 %v55
  %120 = vmatpush.msra.mxu0 %v54
  %121 = vmatpush.msra.mxu0 %v53
  %122 = vmatpush.msra.mxu0 %v52
  %123 = vmatpush.msra.mxu0 %v51
  %124 = vmatmul.f32.gmra.mxu0 %v90
  %v125 = vpop.f32.mrf.mxu0
  %v126 = vadd.f32 0.0, %v125
  %127 = vmatmul.f32.gmra.mxu0 %v92
  %v128 = vpop.f32.mrf.mxu0
  %v129 = vadd.f32 0.0, %v128
  %130 = vmatmul.f32.gmra.mxu0 %v94
  %v131 = vpop.f32.mrf.mxu0
  %v132 = vadd.f32 0.0, %v131
  %133 = vmatmul.f32.gmra.mxu0 %v96
  %v134 = vpop.f32.mrf.mxu0
  %v135 = vadd.f32 0.0, %v134
  %136 = vmatmul.f32.gmra.mxu0 %v98
  %v137 = vpop.f32.mrf.mxu0
  %v138 = vadd.f32 0.0, %v137
  %139 = vmatmul.f32.gmra.mxu0 %v100
  %v140 = vpop.f32.mrf.mxu0
  %v141 = vadd.f32 0.0, %v140
  %142 = vmatmul.f32.gmra.mxu0 %v102
  %v143 = vpop.f32.mrf.mxu0
  %v144 = vadd.f32 0.0, %v143
  %145 = vmatmul.f32.gmra.mxu0 %v104
  %v146 = vpop.f32.mrf.mxu0
  %v147 = vadd.f32 0.0, %v146
  %148 = vmatmul.f32.gmra.mxu0 %v106
  %v149 = vpop.f32.mrf.mxu0
  %v150 = vadd.f32 0.0, %v149
  %151 = vdwg.mxu0
  %v152 = vsel %vm89, %v31, 0
  %v154 = vsel %vm89, %v32, 0
  %v156 = vsel %vm89, %v33, 0
  %v158 = vsel %vm89, %v34, 0
  %v160 = vsel %vm89, %v35, 0
  %v162 = vsel %vm89, %v36, 0
  %v164 = vsel %vm89, %v37, 0
  %v166 = vsel %vm89, %v38, 0
  %v168 = vsel %vm89, %v39, 0
  %170 = vmatpush.msra.mxu0 0.0
  %171 = vmatpush.msra.mxu0 0.0
  %172 = vmatpush.msra.mxu0 0.0
  %173 = vmatpush.msra.mxu0 0.0
  %174 = vmatpush.msra.mxu0 0.0
  %175 = vmatpush.msra.mxu0 0.0
  %176 = vmatpush.msra.mxu0 0.0
  %177 = vmatpush.msra.mxu0 0.0
  %178 = vmatpush.msra.mxu0 %v49
  %179 = vmatpush.msra.mxu0 %v48
  %180 = vmatpush.msra.mxu0 %v47
  %181 = vmatpush.msra.mxu0 %v46
  %182 = vmatpush.msra.mxu0 %v45
  %183 = vmatpush.msra.mxu0 %v44
  %184 = vmatpush.msra.mxu0 %v43
  %185 = vmatpush.msra.mxu0 %v42
  %186 = vmatmul.f32.gmra.mxu0 %v152
  %v187 = vpop.f32.mrf.mxu0
  %v188 = vadd.f32 %v126, %v187
  %189 = vmatmul.f32.gmra.mxu0 %v154
  %v190 = vpop.f32.mrf.mxu0
  %v191 = vadd.f32 %v129, %v190
  %192 = vmatmul.f32.gmra.mxu0 %v156
  %v193 = vpop.f32.mrf.mxu0
  %v194 = vadd.f32 %v132, %v193
  %195 = vmatmul.f32.gmra.mxu0 %v158
  %v196 = vpop.f32.mrf.mxu0
  %v197 = vadd.f32 %v135, %v196
  %198 = vmatmul.f32.gmra.mxu0 %v160
  %v199 = vpop.f32.mrf.mxu0
  %v200 = vadd.f32 %v138, %v199
  %201 = vmatmul.f32.gmra.mxu0 %v162
  %v202 = vpop.f32.mrf.mxu0
  %v203 = vadd.f32 %v141, %v202
  %204 = vmatmul.f32.gmra.mxu0 %v164
  %v205 = vpop.f32.mrf.mxu0
  %v206 = vadd.f32 %v144, %v205
  %207 = vmatmul.f32.gmra.mxu0 %v166
  %v208 = vpop.f32.mrf.mxu0
  %v209 = vadd.f32 %v147, %v208
  %210 = vmatmul.f32.gmra.mxu0 %v168
  %v211 = vpop.f32.mrf.mxu0
  %v212 = vadd.f32 %v150, %v211
  %213 = vdwg.mxu0
  %s214 = scalar_lea.vmem %s1, 128
  %v215 = vld [vmem:[%s214] sm:$0xff]
  %v216 = vld [vmem:[%s214 + $0x8] sm:$0xff]
  %v217 = vld [vmem:[%s214 + $0x10] sm:$0xff]
  %v218 = vld [vmem:[%s214 + $0x18] sm:$0xff]
  %v219 = vld [vmem:[%s214 + $0x20] sm:$0xff]
  %v220 = vld [vmem:[%s214 + $0x28] sm:$0xff]
  %v221 = vld [vmem:[%s214 + $0x30] sm:$0xff]
  %v222 = vld [vmem:[%s214 + $0x38] sm:$0xff]
  %vm223 = vcmask 1045504
  %v224 = vrot.slane %v31, 2
  %v225 = vrot.slane %v32, 2
  %v226 = vsel %vm223, %v224, %v225
  %v227 = vrot.slane %v33, 2
  %v228 = vsel %vm223, %v225, %v227
  %v229 = vrot.slane %v34, 2
  %v230 = vsel %vm223, %v227, %v229
  %v231 = vrot.slane %v35, 2
  %v232 = vsel %vm223, %v229, %v231
  %v233 = vrot.slane %v36, 2
  %v234 = vsel %vm223, %v231, %v233
  %v235 = vrot.slane %v37, 2
  %v236 = vsel %vm223, %v233, %v235
  %v237 = vrot.slane %v38, 2
  %v238 = vsel %vm223, %v235, %v237
  %v239 = vrot.slane %v39, 2
  %v240 = vsel %vm223, %v237, %v239
  %v241 = vrot.slane %v40, 2
  %v242 = vsel %vm223, %v239, %v241
  %v243 = vsel %vm89, %v226, 0
  %v245 = vsel %vm89, %v228, 0
  %v247 = vsel %vm89, %v230, 0
  %v249 = vsel %vm89, %v232, 0
  %v251 = vsel %vm89, %v234, 0
  %v253 = vsel %vm89, %v236, 0
  %v255 = vsel %vm89, %v238, 0
  %v257 = vsel %vm89, %v240, 0
  %v259 = vsel %vm89, %v242, 0
  %261 = vmatpush.msra.mxu0 0.0
  %262 = vmatpush.msra.mxu0 0.0
  %263 = vmatpush.msra.mxu0 0.0
  %264 = vmatpush.msra.mxu0 0.0
  %265 = vmatpush.msra.mxu0 0.0
  %266 = vmatpush.msra.mxu0 0.0
  %267 = vmatpush.msra.mxu0 0.0
  %268 = vmatpush.msra.mxu0 0.0
  %269 = vmatpush.msra.mxu0 %v222
  %270 = vmatpush.msra.mxu0 %v221
  %271 = vmatpush.msra.mxu0 %v220
  %272 = vmatpush.msra.mxu0 %v219
  %273 = vmatpush.msra.mxu0 %v218
  %274 = vmatpush.msra.mxu0 %v217
  %275 = vmatpush.msra.mxu0 %v216
  %276 = vmatpush.msra.mxu0 %v215
  %277 = vmatmul.f32.gmra.mxu0 %v243
  %v278 = vpop.f32.mrf.mxu0
  %v279 = vadd.f32 0.0, %v278
  %280 = vmatmul.f32.gmra.mxu0 %v245
  %v281 = vpop.f32.mrf.mxu0
  %v282 = vadd.f32 0.0, %v281
  %283 = vmatmul.f32.gmra.mxu0 %v247
  %v284 = vpop.f32.mrf.mxu0
  %v285 = vadd.f32 0.0, %v284
  %286 = vmatmul.f32.gmra.mxu0 %v249
  %v287 = vpop.f32.mrf.mxu0
  %v288 = vadd.f32 0.0, %v287
  %289 = vmatmul.f32.gmra.mxu0 %v251
  %v290 = vpop.f32.mrf.mxu0
  %v291 = vadd.f32 0.0, %v290
  %292 = vmatmul.f32.gmra.mxu0 %v253
  %v293 = vpop.f32.mrf.mxu0
  %v294 = vadd.f32 0.0, %v293
  %295 = vmatmul.f32.gmra.mxu0 %v255
  %v296 = vpop.f32.mrf.mxu0
  %v297 = vadd.f32 0.0, %v296
  %298 = vmatmul.f32.gmra.mxu0 %v257
  %v299 = vpop.f32.mrf.mxu0
  %v300 = vadd.f32 0.0, %v299
  %301 = vmatmul.f32.gmra.mxu0 %v259
  %v302 = vpop.f32.mrf.mxu0
  %v303 = vadd.f32 0.0, %v302
  %304 = vdwg.mxu0
  %v305 = vadd.f32 %v188, %v279
  %v306 = vadd.f32 %v191, %v282
  %v307 = vadd.f32 %v194, %v285
  %v308 = vadd.f32 %v197, %v288
  %v309 = vadd.f32 %v200, %v291
  %v310 = vadd.f32 %v203, %v294
  %v311 = vadd.f32 %v206, %v297
  %v312 = vadd.f32 %v209, %v300
  %v313 = vadd.f32 %v212, %v303
  %s314 = scalar_lea.vmem %s1, 192
  %v315 = vld [vmem:[%s314] sm:$0xff]
  %v316 = vld [vmem:[%s314 + $0x8] sm:$0xff]
  %v317 = vld [vmem:[%s314 + $0x10] sm:$0xff]
  %v318 = vld [vmem:[%s314 + $0x18] sm:$0xff]
  %v319 = vld [vmem:[%s314 + $0x20] sm:$0xff]
  %v320 = vld [vmem:[%s314 + $0x28] sm:$0xff]
  %v321 = vld [vmem:[%s314 + $0x30] sm:$0xff]
  %v322 = vld [vmem:[%s314 + $0x38] sm:$0xff]
  %vm323 = vcmask 1041408
  %v324 = vrot.slane %v31, 6
  %v325 = vrot.slane %v32, 6
  %v326 = vsel %vm323, %v324, %v325
  %v327 = vrot.slane %v33, 6
  %v328 = vsel %vm323, %v325, %v327
  %v329 = vrot.slane %v34, 6
  %v330 = vsel %vm323, %v327, %v329
  %v331 = vrot.slane %v35, 6
  %v332 = vsel %vm323, %v329, %v331
  %v333 = vrot.slane %v36, 6
  %v334 = vsel %vm323, %v331, %v333
  %v335 = vrot.slane %v37, 6
  %v336 = vsel %vm323, %v333, %v335
  %v337 = vrot.slane %v38, 6
  %v338 = vsel %vm323, %v335, %v337
  %v339 = vrot.slane %v39, 6
  %v340 = vsel %vm323, %v337, %v339
  %v341 = vrot.slane %v40, 6
  %v342 = vsel %vm323, %v339, %v341
  %v343 = vsel %vm89, %v326, 0
  %v345 = vsel %vm89, %v328, 0
  %v347 = vsel %vm89, %v330, 0
  %v349 = vsel %vm89, %v332, 0
  %v351 = vsel %vm89, %v334, 0
  %v353 = vsel %vm89, %v336, 0
  %v355 = vsel %vm89, %v338, 0
  %v357 = vsel %vm89, %v340, 0
  %v359 = vsel %vm89, %v342, 0
  %361 = vmatpush.msra.mxu0 0.0
  %362 = vmatpush.msra.mxu0 0.0
  %363 = vmatpush.msra.mxu0 0.0
  %364 = vmatpush.msra.mxu0 0.0
  %365 = vmatpush.msra.mxu0 0.0
  %366 = vmatpush.msra.mxu0 0.0
  %367 = vmatpush.msra.mxu0 0.0
  %368 = vmatpush.msra.mxu0 0.0
  %369 = vmatpush.msra.mxu0 %v322
  %370 = vmatpush.msra.mxu0 %v321
  %371 = vmatpush.msra.mxu0 %v320
  %372 = vmatpush.msra.mxu0 %v319
  %373 = vmatpush.msra.mxu0 %v318
  %374 = vmatpush.msra.mxu0 %v317
  %375 = vmatpush.msra.mxu0 %v316
  %376 = vmatpush.msra.mxu0 %v315
  %377 = vmatmul.f32.gmra.mxu0 %v343
  %v378 = vpop.f32.mrf.mxu0
  %v379 = vadd.f32 0.0, %v378
  %380 = vmatmul.f32.gmra.mxu0 %v345
  %v381 = vpop.f32.mrf.mxu0
  %v382 = vadd.f32 0.0, %v381
  %383 = vmatmul.f32.gmra.mxu0 %v347
  %v384 = vpop.f32.mrf.mxu0
  %v385 = vadd.f32 0.0, %v384
  %386 = vmatmul.f32.gmra.mxu0 %v349
  %v387 = vpop.f32.mrf.mxu0
  %v388 = vadd.f32 0.0, %v387
  %389 = vmatmul.f32.gmra.mxu0 %v351
  %v390 = vpop.f32.mrf.mxu0
  %v391 = vadd.f32 0.0, %v390
  %392 = vmatmul.f32.gmra.mxu0 %v353
  %v393 = vpop.f32.mrf.mxu0
  %v394 = vadd.f32 0.0, %v393
  %395 = vmatmul.f32.gmra.mxu0 %v355
  %v396 = vpop.f32.mrf.mxu0
  %v397 = vadd.f32 0.0, %v396
  %398 = vmatmul.f32.gmra.mxu0 %v357
  %v399 = vpop.f32.mrf.mxu0
  %v400 = vadd.f32 0.0, %v399
  %401 = vmatmul.f32.gmra.mxu0 %v359
  %v402 = vpop.f32.mrf.mxu0
  %v403 = vadd.f32 0.0, %v402
  %404 = vdwg.mxu0
  %v405 = vadd.f32 %v305, %v379
  %v406 = vadd.f32 %v306, %v382
  %v407 = vadd.f32 %v307, %v385
  %v408 = vadd.f32 %v308, %v388
  %v409 = vadd.f32 %v309, %v391
  %v410 = vadd.f32 %v310, %v394
  %v411 = vadd.f32 %v311, %v397
  %v412 = vadd.f32 %v312, %v400
  %v413 = vadd.f32 %v313, %v403
  %s414 = scalar_lea.vmem %s1, 256
  %v415 = vld [vmem:[%s414] sm:$0xff]
  %v416 = vld [vmem:[%s414 + $0x8] sm:$0xff]
  %v417 = vld [vmem:[%s414 + $0x10] sm:$0xff]
  %v418 = vld [vmem:[%s414 + $0x18] sm:$0xff]
  %v419 = vld [vmem:[%s414 + $0x20] sm:$0xff]
  %v420 = vld [vmem:[%s414 + $0x28] sm:$0xff]
  %v421 = vld [vmem:[%s414 + $0x30] sm:$0xff]
  %v422 = vld [vmem:[%s414 + $0x38] sm:$0xff]
  %vm423 = vcmask 1040384
  %v424 = vrot.slane %v31, 7
  %v425 = vrot.slane %v32, 7
  %v426 = vsel %vm423, %v424, %v425
  %v427 = vrot.slane %v33, 7
  %v428 = vsel %vm423, %v425, %v427
  %v429 = vrot.slane %v34, 7
  %v430 = vsel %vm423, %v427, %v429
  %v431 = vrot.slane %v35, 7
  %v432 = vsel %vm423, %v429, %v431
  %v433 = vrot.slane %v36, 7
  %v434 = vsel %vm423, %v431, %v433
  %v435 = vrot.slane %v37, 7
  %v436 = vsel %vm423, %v433, %v435
  %v437 = vrot.slane %v38, 7
  %v438 = vsel %vm423, %v435, %v437
  %v439 = vrot.slane %v39, 7
  %v440 = vsel %vm423, %v437, %v439
  %v441 = vrot.slane %v40, 7
  %v442 = vsel %vm423, %v439, %v441
  %v443 = vsel %vm89, %v426, 0
  %v445 = vsel %vm89, %v428, 0
  %v447 = vsel %vm89, %v430, 0
  %v449 = vsel %vm89, %v432, 0
  %v451 = vsel %vm89, %v434, 0
  %v453 = vsel %vm89, %v436, 0
  %v455 = vsel %vm89, %v438, 0
  %v457 = vsel %vm89, %v440, 0
  %v459 = vsel %vm89, %v442, 0
  %461 = vmatpush.msra.mxu0 0.0
  %462 = vmatpush.msra.mxu0 0.0
  %463 = vmatpush.msra.mxu0 0.0
  %464 = vmatpush.msra.mxu0 0.0
  %465 = vmatpush.msra.mxu0 0.0
  %466 = vmatpush.msra.mxu0 0.0
  %467 = vmatpush.msra.mxu0 0.0
  %468 = vmatpush.msra.mxu0 0.0
  %469 = vmatpush.msra.mxu0 %v422
  %470 = vmatpush.msra.mxu0 %v421
  %471 = vmatpush.msra.mxu0 %v420
  %472 = vmatpush.msra.mxu0 %v419
  %473 = vmatpush.msra.mxu0 %v418
  %474 = vmatpush.msra.mxu0 %v417
  %475 = vmatpush.msra.mxu0 %v416
  %476 = vmatpush.msra.mxu0 %v415
  %477 = vmatmul.f32.gmra.mxu0 %v443
  %v478 = vpop.f32.mrf.mxu0
  %v479 = vadd.f32 0.0, %v478
  %480 = vmatmul.f32.gmra.mxu0 %v445
  %v481 = vpop.f32.mrf.mxu0
  %v482 = vadd.f32 0.0, %v481
  %483 = vmatmul.f32.gmra.mxu0 %v447
  %v484 = vpop.f32.mrf.mxu0
  %v485 = vadd.f32 0.0, %v484
  %486 = vmatmul.f32.gmra.mxu0 %v449
  %v487 = vpop.f32.mrf.mxu0
  %v488 = vadd.f32 0.0, %v487
  %489 = vmatmul.f32.gmra.mxu0 %v451
  %v490 = vpop.f32.mrf.mxu0
  %v491 = vadd.f32 0.0, %v490
  %492 = vmatmul.f32.gmra.mxu0 %v453
  %v493 = vpop.f32.mrf.mxu0
  %v494 = vadd.f32 0.0, %v493
  %495 = vmatmul.f32.gmra.mxu0 %v455
  %v496 = vpop.f32.mrf.mxu0
  %v497 = vadd.f32 0.0, %v496
  %498 = vmatmul.f32.gmra.mxu0 %v457
  %v499 = vpop.f32.mrf.mxu0
  %v500 = vadd.f32 0.0, %v499
  %501 = vmatmul.f32.gmra.mxu0 %v459
  %v502 = vpop.f32.mrf.mxu0
  %v503 = vadd.f32 0.0, %v502
  %504 = vdwg.mxu0
  %v505 = vadd.f32 %v405, %v479
  %v506 = vadd.f32 %v406, %v482
  %v507 = vadd.f32 %v407, %v485
  %v508 = vadd.f32 %v408, %v488
  %v509 = vadd.f32 %v409, %v491
  %v510 = vadd.f32 %v410, %v494
  %v511 = vadd.f32 %v411, %v497
  %v512 = vadd.f32 %v412, %v500
  %v513 = vadd.f32 %v413, %v503
  %s514 = scalar_lea.vmem %s1, 320
  %v515 = vld [vmem:[%s514] sm:$0xff]
  %v516 = vld [vmem:[%s514 + $0x8] sm:$0xff]
  %v517 = vld [vmem:[%s514 + $0x10] sm:$0xff]
  %v518 = vld [vmem:[%s514 + $0x18] sm:$0xff]
  %v519 = vld [vmem:[%s514 + $0x20] sm:$0xff]
  %v520 = vld [vmem:[%s514 + $0x28] sm:$0xff]
  %v521 = vld [vmem:[%s514 + $0x30] sm:$0xff]
  %v522 = vld [vmem:[%s514 + $0x38] sm:$0xff]
  %v523 = vsel %vm89, %v40, 0
  %525 = vmatpush.msra.mxu0 0.0
  %526 = vmatpush.msra.mxu0 0.0
  %527 = vmatpush.msra.mxu0 0.0
  %528 = vmatpush.msra.mxu0 0.0
  %529 = vmatpush.msra.mxu0 0.0
  %530 = vmatpush.msra.mxu0 0.0
  %531 = vmatpush.msra.mxu0 0.0
  %532 = vmatpush.msra.mxu0 0.0
  %533 = vmatpush.msra.mxu0 %v522
  %534 = vmatpush.msra.mxu0 %v521
  %535 = vmatpush.msra.mxu0 %v520
  %536 = vmatpush.msra.mxu0 %v519
  %537 = vmatpush.msra.mxu0 %v518
  %538 = vmatpush.msra.mxu0 %v517
  %539 = vmatpush.msra.mxu0 %v516
  %540 = vmatpush.msra.mxu0 %v515
  %541 = vmatmul.f32.gmra.mxu0 %v154
  %v542 = vpop.f32.mrf.mxu0
  %v543 = vadd.f32 0.0, %v542
  %544 = vmatmul.f32.gmra.mxu0 %v156
  %v545 = vpop.f32.mrf.mxu0
  %v546 = vadd.f32 0.0, %v545
  %547 = vmatmul.f32.gmra.mxu0 %v158
  %v548 = vpop.f32.mrf.mxu0
  %v549 = vadd.f32 0.0, %v548
  %550 = vmatmul.f32.gmra.mxu0 %v160
  %v551 = vpop.f32.mrf.mxu0
  %v552 = vadd.f32 0.0, %v551
  %553 = vmatmul.f32.gmra.mxu0 %v162
  %v554 = vpop.f32.mrf.mxu0
  %v555 = vadd.f32 0.0, %v554
  %556 = vmatmul.f32.gmra.mxu0 %v164
  %v557 = vpop.f32.mrf.mxu0
  %v558 = vadd.f32 0.0, %v557
  %559 = vmatmul.f32.gmra.mxu0 %v166
  %v560 = vpop.f32.mrf.mxu0
  %v561 = vadd.f32 0.0, %v560
  %562 = vmatmul.f32.gmra.mxu0 %v168
  %v563 = vpop.f32.mrf.mxu0
  %v564 = vadd.f32 0.0, %v563
  %565 = vmatmul.f32.gmra.mxu0 %v523
  %v566 = vpop.f32.mrf.mxu0
  %v567 = vadd.f32 0.0, %v566
  %568 = vdwg.mxu0
  %v569 = vadd.f32 %v505, %v543
  %v570 = vadd.f32 %v506, %v546
  %v571 = vadd.f32 %v507, %v549
  %v572 = vadd.f32 %v508, %v552
  %v573 = vadd.f32 %v509, %v555
  %v574 = vadd.f32 %v510, %v558
  %v575 = vadd.f32 %v511, %v561
  %v576 = vadd.f32 %v512, %v564
  %v577 = vadd.f32 %v513, %v567
  %s578 = scalar_lea.vmem %s1, 384
  %v579 = vld [vmem:[%s578] sm:$0xff]
  %v580 = vld [vmem:[%s578 + $0x8] sm:$0xff]
  %v581 = vld [vmem:[%s578 + $0x10] sm:$0xff]
  %v582 = vld [vmem:[%s578 + $0x18] sm:$0xff]
  %v583 = vld [vmem:[%s578 + $0x20] sm:$0xff]
  %v584 = vld [vmem:[%s578 + $0x28] sm:$0xff]
  %v585 = vld [vmem:[%s578 + $0x30] sm:$0xff]
  %v586 = vld [vmem:[%s578 + $0x38] sm:$0xff]
  %vm588 = vcmask 1043456
  %v589 = vrot.slane %v32, 4
  %v590 = vrot.slane %v33, 4
  %v591 = vsel %vm588, %v589, %v590
  %v592 = vrot.slane %v34, 4
  %v593 = vsel %vm588, %v590, %v592
  %v594 = vrot.slane %v35, 4
  %v595 = vsel %vm588, %v592, %v594
  %v596 = vrot.slane %v36, 4
  %v597 = vsel %vm588, %v594, %v596
  %v598 = vrot.slane %v37, 4
  %v599 = vsel %vm588, %v596, %v598
  %v600 = vrot.slane %v38, 4
  %v601 = vsel %vm588, %v598, %v600
  %v602 = vrot.slane %v39, 4
  %v603 = vsel %vm588, %v600, %v602
  %v604 = vrot.slane %v40, 4
  %v605 = vsel %vm588, %v602, %v604
  %v606 = vrot.slane %v41, 4
  %v607 = vsel %vm588, %v604, %v606
  %v608 = vsel %vm89, %v591, 0
  %v610 = vsel %vm89, %v593, 0
  %v612 = vsel %vm89, %v595, 0
  %v614 = vsel %vm89, %v597, 0
  %v616 = vsel %vm89, %v599, 0
  %v618 = vsel %vm89, %v601, 0
  %v620 = vsel %vm89, %v603, 0
  %v622 = vsel %vm89, %v605, 0
  %v624 = vsel %vm89, %v607, 0
  %626 = vmatpush.msra.mxu0 0.0
  %627 = vmatpush.msra.mxu0 0.0
  %628 = vmatpush.msra.mxu0 0.0
  %629 = vmatpush.msra.mxu0 0.0
  %630 = vmatpush.msra.mxu0 0.0
  %631 = vmatpush.msra.mxu0 0.0
  %632 = vmatpush.msra.mxu0 0.0
  %633 = vmatpush.msra.mxu0 0.0
  %634 = vmatpush.msra.mxu0 %v586
  %635 = vmatpush.msra.mxu0 %v585
  %636 = vmatpush.msra.mxu0 %v584
  %637 = vmatpush.msra.mxu0 %v583
  %638 = vmatpush.msra.mxu0 %v582
  %639 = vmatpush.msra.mxu0 %v581
  %640 = vmatpush.msra.mxu0 %v580
  %641 = vmatpush.msra.mxu0 %v579
  %642 = vmatmul.f32.gmra.mxu0 %v608
  %v643 = vpop.f32.mrf.mxu0
  %v644 = vadd.f32 0.0, %v643
  %645 = vmatmul.f32.gmra.mxu0 %v610
  %v646 = vpop.f32.mrf.mxu0
  %v647 = vadd.f32 0.0, %v646
  %648 = vmatmul.f32.gmra.mxu0 %v612
  %v649 = vpop.f32.mrf.mxu0
  %v650 = vadd.f32 0.0, %v649
  %651 = vmatmul.f32.gmra.mxu0 %v614
  %v652 = vpop.f32.mrf.mxu0
  %v653 = vadd.f32 0.0, %v652
  %654 = vmatmul.f32.gmra.mxu0 %v616
  %v655 = vpop.f32.mrf.mxu0
  %v656 = vadd.f32 0.0, %v655
  %657 = vmatmul.f32.gmra.mxu0 %v618
  %v658 = vpop.f32.mrf.mxu0
  %v659 = vadd.f32 0.0, %v658
  %660 = vmatmul.f32.gmra.mxu0 %v620
  %v661 = vpop.f32.mrf.mxu0
  %v662 = vadd.f32 0.0, %v661
  %663 = vmatmul.f32.gmra.mxu0 %v622
  %v664 = vpop.f32.mrf.mxu0
  %v665 = vadd.f32 0.0, %v664
  %666 = vmatmul.f32.gmra.mxu0 %v624
  %v667 = vpop.f32.mrf.mxu0
  %v668 = vadd.f32 0.0, %v667
  %669 = vdwg.mxu0
  %v670 = vadd.f32 %v569, %v644
  %v671 = vadd.f32 %v570, %v647
  %v672 = vadd.f32 %v571, %v650
  %v673 = vadd.f32 %v572, %v653
  %v674 = vadd.f32 %v573, %v656
  %v675 = vadd.f32 %v574, %v659
  %v676 = vadd.f32 %v575, %v662
  %v677 = vadd.f32 %v576, %v665
  %v678 = vadd.f32 %v577, %v668
  %s679 = scalar_lea.vmem %s1, 448
  %v680 = vld [vmem:[%s679] sm:$0xff]
  %v681 = vld [vmem:[%s679 + $0x8] sm:$0xff]
  %v682 = vld [vmem:[%s679 + $0x10] sm:$0xff]
  %v683 = vld [vmem:[%s679 + $0x18] sm:$0xff]
  %v684 = vld [vmem:[%s679 + $0x20] sm:$0xff]
  %v685 = vld [vmem:[%s679 + $0x28] sm:$0xff]
  %v686 = vld [vmem:[%s679 + $0x30] sm:$0xff]
  %v687 = vld [vmem:[%s679 + $0x38] sm:$0xff]
  %vm688 = vcmask 1042432
  %v689 = vrot.slane %v32, 5
  %v690 = vrot.slane %v33, 5
  %v691 = vsel %vm688, %v689, %v690
  %v692 = vrot.slane %v34, 5
  %v693 = vsel %vm688, %v690, %v692
  %v694 = vrot.slane %v35, 5
  %v695 = vsel %vm688, %v692, %v694
  %v696 = vrot.slane %v36, 5
  %v697 = vsel %vm688, %v694, %v696
  %v698 = vrot.slane %v37, 5
  %v699 = vsel %vm688, %v696, %v698
  %v700 = vrot.slane %v38, 5
  %v701 = vsel %vm688, %v698, %v700
  %v702 = vrot.slane %v39, 5
  %v703 = vsel %vm688, %v700, %v702
  %v704 = vrot.slane %v40, 5
  %v705 = vsel %vm688, %v702, %v704
  %v706 = vrot.slane %v41, 5
  %v707 = vsel %vm688, %v704, %v706
  %v708 = vsel %vm89, %v691, 0
  %v710 = vsel %vm89, %v693, 0
  %v712 = vsel %vm89, %v695, 0
  %v714 = vsel %vm89, %v697, 0
  %v716 = vsel %vm89, %v699, 0
  %v718 = vsel %vm89, %v701, 0
  %v720 = vsel %vm89, %v703, 0
  %v722 = vsel %vm89, %v705, 0
  %v724 = vsel %vm89, %v707, 0
  %726 = vmatpush.msra.mxu0 0.0
  %727 = vmatpush.msra.mxu0 0.0
  %728 = vmatpush.msra.mxu0 0.0
  %729 = vmatpush.msra.mxu0 0.0
  %730 = vmatpush.msra.mxu0 0.0
  %731 = vmatpush.msra.mxu0 0.0
  %732 = vmatpush.msra.mxu0 0.0
  %733 = vmatpush.msra.mxu0 0.0
  %734 = vmatpush.msra.mxu0 %v687
  %735 = vmatpush.msra.mxu0 %v686
  %736 = vmatpush.msra.mxu0 %v685
  %737 = vmatpush.msra.mxu0 %v684
  %738 = vmatpush.msra.mxu0 %v683
  %739 = vmatpush.msra.mxu0 %v682
  %740 = vmatpush.msra.mxu0 %v681
  %741 = vmatpush.msra.mxu0 %v680
  %742 = vmatmul.f32.gmra.mxu0 %v708
  %v743 = vpop.f32.mrf.mxu0
  %v744 = vadd.f32 0.0, %v743
  %745 = vmatmul.f32.gmra.mxu0 %v710
  %v746 = vpop.f32.mrf.mxu0
  %v747 = vadd.f32 0.0, %v746
  %748 = vmatmul.f32.gmra.mxu0 %v712
  %v749 = vpop.f32.mrf.mxu0
  %v750 = vadd.f32 0.0, %v749
  %751 = vmatmul.f32.gmra.mxu0 %v714
  %v752 = vpop.f32.mrf.mxu0
  %v753 = vadd.f32 0.0, %v752
  %754 = vmatmul.f32.gmra.mxu0 %v716
  %v755 = vpop.f32.mrf.mxu0
  %v756 = vadd.f32 0.0, %v755
  %757 = vmatmul.f32.gmra.mxu0 %v718
  %v758 = vpop.f32.mrf.mxu0
  %v759 = vadd.f32 0.0, %v758
  %760 = vmatmul.f32.gmra.mxu0 %v720
  %v761 = vpop.f32.mrf.mxu0
  %v762 = vadd.f32 0.0, %v761
  %763 = vmatmul.f32.gmra.mxu0 %v722
  %v764 = vpop.f32.mrf.mxu0
  %v765 = vadd.f32 0.0, %v764
  %766 = vmatmul.f32.gmra.mxu0 %v724
  %v767 = vpop.f32.mrf.mxu0
  %v768 = vadd.f32 0.0, %v767
  %769 = vdwg.mxu0
  %v770 = vadd.f32 %v670, %v744
  %v771 = vadd.f32 %v671, %v747
  %v772 = vadd.f32 %v672, %v750
  %v773 = vadd.f32 %v673, %v753
  %v774 = vadd.f32 %v674, %v756
  %v775 = vadd.f32 %v675, %v759
  %v776 = vadd.f32 %v676, %v762
  %v777 = vadd.f32 %v677, %v765
  %v778 = vadd.f32 %v678, %v768
  %s779 = scalar_lea.vmem %s1, 512
  %v780 = vld [vmem:[%s779] sm:$0xff]
  %v781 = vld [vmem:[%s779 + $0x8] sm:$0xff]
  %v782 = vld [vmem:[%s779 + $0x10] sm:$0xff]
  %v783 = vld [vmem:[%s779 + $0x18] sm:$0xff]
  %v784 = vld [vmem:[%s779 + $0x20] sm:$0xff]
  %v785 = vld [vmem:[%s779 + $0x28] sm:$0xff]
  %v786 = vld [vmem:[%s779 + $0x30] sm:$0xff]
  %v787 = vld [vmem:[%s779 + $0x38] sm:$0xff]
  %v788 = vrot.slane %v41, 6
  %v789 = vsel %vm323, %v341, %v788
  %v790 = vsel %vm89, %v789, 0
  %792 = vmatpush.msra.mxu0 0.0
  %793 = vmatpush.msra.mxu0 0.0
  %794 = vmatpush.msra.mxu0 0.0
  %795 = vmatpush.msra.mxu0 0.0
  %796 = vmatpush.msra.mxu0 0.0
  %797 = vmatpush.msra.mxu0 0.0
  %798 = vmatpush.msra.mxu0 0.0
  %799 = vmatpush.msra.mxu0 0.0
  %800 = vmatpush.msra.mxu0 %v787
  %801 = vmatpush.msra.mxu0 %v786
  %802 = vmatpush.msra.mxu0 %v785
  %803 = vmatpush.msra.mxu0 %v784
  %804 = vmatpush.msra.mxu0 %v783
  %805 = vmatpush.msra.mxu0 %v782
  %806 = vmatpush.msra.mxu0 %v781
  %807 = vmatpush.msra.mxu0 %v780
  %808 = vmatmul.f32.gmra.mxu0 %v345
  %v809 = vpop.f32.mrf.mxu0
  %v810 = vadd.f32 0.0, %v809
  %811 = vmatmul.f32.gmra.mxu0 %v347
  %v812 = vpop.f32.mrf.mxu0
  %v813 = vadd.f32 0.0, %v812
  %814 = vmatmul.f32.gmra.mxu0 %v349
  %v815 = vpop.f32.mrf.mxu0
  %v816 = vadd.f32 0.0, %v815
  %817 = vmatmul.f32.gmra.mxu0 %v351
  %v818 = vpop.f32.mrf.mxu0
  %v819 = vadd.f32 0.0, %v818
  %820 = vmatmul.f32.gmra.mxu0 %v353
  %v821 = vpop.f32.mrf.mxu0
  %v822 = vadd.f32 0.0, %v821
  %823 = vmatmul.f32.gmra.mxu0 %v355
  %v824 = vpop.f32.mrf.mxu0
  %v825 = vadd.f32 0.0, %v824
  %826 = vmatmul.f32.gmra.mxu0 %v357
  %v827 = vpop.f32.mrf.mxu0
  %v828 = vadd.f32 0.0, %v827
  %829 = vmatmul.f32.gmra.mxu0 %v359
  %v830 = vpop.f32.mrf.mxu0
  %v831 = vadd.f32 0.0, %v830
  %832 = vmatmul.f32.gmra.mxu0 %v790
  %v833 = vpop.f32.mrf.mxu0
  %v834 = vadd.f32 0.0, %v833
  %835 = vdwg.mxu0
  %v836 = vadd.f32 %v770, %v810
  %v837 = vadd.f32 %v771, %v813
  %v838 = vadd.f32 %v772, %v816
  %v839 = vadd.f32 %v773, %v819
  %v840 = vadd.f32 %v774, %v822
  %v841 = vadd.f32 %v775, %v825
  %v842 = vadd.f32 %v776, %v828
  %v843 = vadd.f32 %v777, %v831
  %v844 = vadd.f32 %v778, %v834
  %v845 = vld [vmem:[%s4] sm:$0xff]
  %v846 = vld [vmem:[%s4 + $0x8] sm:$0xff]
  %v847 = vld [vmem:[%s4 + $0x10] sm:$0xff]
  %v848 = vld [vmem:[%s4 + $0x18] sm:$0xff]
  %v849 = vld [vmem:[%s4 + $0x20] sm:$0xff]
  %v850 = vld [vmem:[%s4 + $0x28] sm:$0xff]
  %v851 = vld [vmem:[%s4 + $0x30] sm:$0xff]
  %v852 = vld [vmem:[%s4 + $0x38] sm:$0xff]
  %v853 = vld [vmem:[%s4 + $0x40] sm:$0xff]
  %855 = vset.pattern.permute.xlu0 0
  %856 = vperm.xlu0 %855, %v845
  %v857 = vpop.permute.xlu0 %856
  %860 = vset.pattern.permute.xlu0 0
  %861 = vperm.xlu0 %860, %v846
  %v862 = vpop.permute.xlu0 %861
  %865 = vset.pattern.permute.xlu0 0
  %866 = vperm.xlu0 %865, %v847
  %v867 = vpop.permute.xlu0 %866
  %870 = vset.pattern.permute.xlu0 0
  %871 = vperm.xlu0 %870, %v848
  %v872 = vpop.permute.xlu0 %871
  %875 = vset.pattern.permute.xlu0 0
  %876 = vperm.xlu0 %875, %v849
  %v877 = vpop.permute.xlu0 %876
  %880 = vset.pattern.permute.xlu0 0
  %881 = vperm.xlu0 %880, %v850
  %v882 = vpop.permute.xlu0 %881
  %885 = vset.pattern.permute.xlu0 0
  %886 = vperm.xlu0 %885, %v851
  %v887 = vpop.permute.xlu0 %886
  %890 = vset.pattern.permute.xlu0 0
  %891 = vperm.xlu0 %890, %v852
  %v892 = vpop.permute.xlu0 %891
  %895 = vset.pattern.permute.xlu0 0
  %896 = vperm.xlu0 %895, %v853
  %v897 = vpop.permute.xlu0 %896
  %v899 = vmul.f32 %v836, %v857
  %v900 = vmul.f32 %v837, %v862
  %v901 = vmul.f32 %v838, %v867
  %v902 = vmul.f32 %v839, %v872
  %v903 = vmul.f32 %v840, %v877
  %v904 = vmul.f32 %v841, %v882
  %v905 = vmul.f32 %v842, %v887
  %v906 = vmul.f32 %v843, %v892
  %v907 = vmul.f32 %v844, %v897
  %v908 = vadd.f32 %v899, %v900
  %v909 = vadd.f32 %v908, %v901
  %v910 = vadd.f32 %v909, %v902
  %v911 = vadd.f32 %v910, %v903
  %v912 = vadd.f32 %v911, %v904
  %v913 = vadd.f32 %v912, %v905
  %v914 = vadd.f32 %v913, %v906
  %v915 = vadd.f32 %v914, %v907
  %v916 = vrot.slane %v915, 4
  %v917 = vadd.f32 %v915, %v916
  %v918 = vrot.slane %v917, 2
  %v919 = vadd.f32 %v917, %v918
  %v920 = vrot.slane %v919, 1
  %v921 = vadd.f32 %v919, %v920
  %v922 = vmul.f32 %v921, 0.03125
  %v923 = vsub.f32 %v836, %v922
  %v924 = vsub.f32 %v837, %v922
  %v925 = vsub.f32 %v838, %v922
  %v926 = vsub.f32 %v839, %v922
  %v927 = vsub.f32 %v840, %v922
  %v928 = vsub.f32 %v841, %v922
  %v929 = vsub.f32 %v842, %v922
  %v930 = vsub.f32 %v843, %v922
  %v931 = vsub.f32 %v844, %v922
  %v932 = vmul.f32 %v923, %v857
  %v933 = vmul.f32 %v924, %v862
  %v934 = vmul.f32 %v925, %v867
  %v935 = vmul.f32 %v926, %v872
  %v936 = vmul.f32 %v927, %v877
  %v937 = vmul.f32 %v928, %v882
  %v938 = vmul.f32 %v929, %v887
  %v939 = vmul.f32 %v930, %v892
  %v940 = vmul.f32 %v931, %v897
  %v941 = vmul.f32 %v932, %v932
  %v942 = vmul.f32 %v933, %v933
  %v943 = vmul.f32 %v934, %v934
  %v944 = vmul.f32 %v935, %v935
  %v945 = vmul.f32 %v936, %v936
  %v946 = vmul.f32 %v937, %v937
  %v947 = vmul.f32 %v938, %v938
  %v948 = vmul.f32 %v939, %v939
  %v949 = vmul.f32 %v940, %v940
  %v950 = vadd.f32 %v941, %v942
  %v951 = vadd.f32 %v950, %v943
  %v952 = vadd.f32 %v951, %v944
  %v953 = vadd.f32 %v952, %v945
  %v954 = vadd.f32 %v953, %v946
  %v955 = vadd.f32 %v954, %v947
  %v956 = vadd.f32 %v955, %v948
  %v957 = vadd.f32 %v956, %v949
  %v958 = vrot.slane %v957, 4
  %v959 = vadd.f32 %v957, %v958
  %v960 = vrot.slane %v959, 2
  %v961 = vadd.f32 %v959, %v960
  %v962 = vrot.slane %v961, 1
  %v963 = vadd.f32 %v961, %v962
  %v964 = vmul.f32 %v963, 0.03125
  %v965 = vadd.f32 %v964, 1e-05
  %v966 = vrsqrt.pop %v965
  %v967 = vmul.f32 %v966, %v965
  %v968 = vmul.f32 %v967, %v966
  %v969 = vmul.f32 0.5, %v968
  %v970 = vsub.f32 1.5, %v969
  %v971 = vmul.f32 %v966, %v970
  %vm972 = vweird.f32 %v965
  %vm973 = vweird.f32 %v966
  %vm974 = vmor %vm972, %vm973
  %v975 = vsel %vm974, %v966, %v971
  %v976 = vld [vmem:[%s2] sm:$0x1]
  %v977 = vmul.f32 %v976, %v975
  %v978 = vld [vmem:[%s3] sm:$0x1]
  %v979 = vmul.f32 %v922, %v977
  %v980 = vsub.f32 %v978, %v979
  %v982 = vperm.slane %v977, 0
  %v984 = vmul.f32 %v836, %v982
  %v985 = vmul.f32 %v837, %v982
  %v986 = vmul.f32 %v838, %v982
  %v987 = vmul.f32 %v839, %v982
  %v988 = vmul.f32 %v840, %v982
  %v989 = vmul.f32 %v841, %v982
  %v990 = vmul.f32 %v842, %v982
  %v991 = vmul.f32 %v843, %v982
  %v992 = vmul.f32 %v844, %v982
  %v994 = vperm.slane %v980, 0
  %v996 = vadd.f32 %v984, %v994
  %v997 = vadd.f32 %v985, %v994
  %v998 = vadd.f32 %v986, %v994
  %v999 = vadd.f32 %v987, %v994
  %v1000 = vadd.f32 %v988, %v994
  %v1001 = vadd.f32 %v989, %v994
  %v1002 = vadd.f32 %v990, %v994
  %v1003 = vadd.f32 %v991, %v994
  %v1004 = vadd.f32 %v992, %v994
  %v1005 = vxor.u32 %v996, 2147483648
  %v1006 = vxor.u32 %v997, 2147483648
  %v1007 = vxor.u32 %v998, 2147483648
  %v1008 = vxor.u32 %v999, 2147483648
  %v1009 = vxor.u32 %v1000, 2147483648
  %v1010 = vxor.u32 %v1001, 2147483648
  %v1011 = vxor.u32 %v1002, 2147483648
  %v1012 = vxor.u32 %v1003, 2147483648
  %v1013 = vxor.u32 %v1004, 2147483648
  %v1014 = vmul.f32 %v1005, 1.442695
  %v1015 = vpow.pop %v1014
  %v1016 = vmul.f32 %v1006, 1.442695
  %v1017 = vpow.pop %v1016
  %v1018 = vmul.f32 %v1007, 1.442695
  %v1019 = vpow.pop %v1018
  %v1020 = vmul.f32 %v1008, 1.442695
  %v1021 = vpow.pop %v1020
  %v1022 = vmul.f32 %v1009, 1.442695
  %v1023 = vpow.pop %v1022
  %v1024 = vmul.f32 %v1010, 1.442695
  %v1025 = vpow.pop %v1024
  %v1026 = vmul.f32 %v1011, 1.442695
  %v1027 = vpow.pop %v1026
  %v1028 = vmul.f32 %v1012, 1.442695
  %v1029 = vpow.pop %v1028
  %v1030 = vmul.f32 %v1013, 1.442695
  %v1031 = vpow.pop %v1030
  %v1032 = vadd.f32 %v1015, 1.0
  %v1033 = vadd.f32 %v1017, 1.0
  %v1034 = vadd.f32 %v1019, 1.0
  %v1035 = vadd.f32 %v1021, 1.0
  %v1036 = vadd.f32 %v1023, 1.0
  %v1037 = vadd.f32 %v1025, 1.0
  %v1038 = vadd.f32 %v1027, 1.0
  %v1039 = vadd.f32 %v1029, 1.0
  %v1040 = vadd.f32 %v1031, 1.0
  %v1041 = vrcp.pop %v1032
  %v1042 = vmul.f32 %v1032, %v1041
  %v1043 = vsub.f32 1.0, %v1042
  %v1044 = vmul.f32 %v1041, %v1043
  %v1045 = vadd.f32 %v1041, %v1044
  %vm1046 = vweird.f32 %v1032
  %vm1047 = vweird.f32 %v1041
  %vm1048 = vmor %vm1046, %vm1047
  %v1049 = vsel %vm1048, %v1041, %v1045
  %v1050 = vand.u32 2147483647, %v1032
  %vm1051 = vcmp.eq.f32.partialorder %v1050, 8.507059e+37
  %v1052 = vand.u32 %v1032, 2147483648
  %v1053 = vor.u32 1.1754944e-38, %v1052
  %v1054 = vsel %vm1051, %v1053, %v1049
  %v1055 = vmul.f32 1.0, %v1054
  %v1056 = vrcp.pop %v1033
  %v1057 = vmul.f32 %v1033, %v1056
  %v1058 = vsub.f32 1.0, %v1057
  %v1059 = vmul.f32 %v1056, %v1058
  %v1060 = vadd.f32 %v1056, %v1059
  %vm1061 = vweird.f32 %v1033
  %vm1062 = vweird.f32 %v1056
  %vm1063 = vmor %vm1061, %vm1062
  %v1064 = vsel %vm1063, %v1056, %v1060
  %v1065 = vand.u32 2147483647, %v1033
  %vm1066 = vcmp.eq.f32.partialorder %v1065, 8.507059e+37
  %v1067 = vand.u32 %v1033, 2147483648
  %v1068 = vor.u32 1.1754944e-38, %v1067
  %v1069 = vsel %vm1066, %v1068, %v1064
  %v1070 = vmul.f32 1.0, %v1069
  %v1071 = vrcp.pop %v1034
  %v1072 = vmul.f32 %v1034, %v1071
  %v1073 = vsub.f32 1.0, %v1072
  %v1074 = vmul.f32 %v1071, %v1073
  %v1075 = vadd.f32 %v1071, %v1074
  %vm1076 = vweird.f32 %v1034
  %vm1077 = vweird.f32 %v1071
  %vm1078 = vmor %vm1076, %vm1077
  %v1079 = vsel %vm1078, %v1071, %v1075
  %v1080 = vand.u32 2147483647, %v1034
  %vm1081 = vcmp.eq.f32.partialorder %v1080, 8.507059e+37
  %v1082 = vand.u32 %v1034, 2147483648
  %v1083 = vor.u32 1.1754944e-38, %v1082
  %v1084 = vsel %vm1081, %v1083, %v1079
  %v1085 = vmul.f32 1.0, %v1084
  %v1086 = vrcp.pop %v1035
  %v1087 = vmul.f32 %v1035, %v1086
  %v1088 = vsub.f32 1.0, %v1087
  %v1089 = vmul.f32 %v1086, %v1088
  %v1090 = vadd.f32 %v1086, %v1089
  %vm1091 = vweird.f32 %v1035
  %vm1092 = vweird.f32 %v1086
  %vm1093 = vmor %vm1091, %vm1092
  %v1094 = vsel %vm1093, %v1086, %v1090
  %v1095 = vand.u32 2147483647, %v1035
  %vm1096 = vcmp.eq.f32.partialorder %v1095, 8.507059e+37
  %v1097 = vand.u32 %v1035, 2147483648
  %v1098 = vor.u32 1.1754944e-38, %v1097
  %v1099 = vsel %vm1096, %v1098, %v1094
  %v1100 = vmul.f32 1.0, %v1099
  %v1101 = vrcp.pop %v1036
  %v1102 = vmul.f32 %v1036, %v1101
  %v1103 = vsub.f32 1.0, %v1102
  %v1104 = vmul.f32 %v1101, %v1103
  %v1105 = vadd.f32 %v1101, %v1104
  %vm1106 = vweird.f32 %v1036
  %vm1107 = vweird.f32 %v1101
  %vm1108 = vmor %vm1106, %vm1107
  %v1109 = vsel %vm1108, %v1101, %v1105
  %v1110 = vand.u32 2147483647, %v1036
  %vm1111 = vcmp.eq.f32.partialorder %v1110, 8.507059e+37
  %v1112 = vand.u32 %v1036, 2147483648
  %v1113 = vor.u32 1.1754944e-38, %v1112
  %v1114 = vsel %vm1111, %v1113, %v1109
  %v1115 = vmul.f32 1.0, %v1114
  %v1116 = vrcp.pop %v1037
  %v1117 = vmul.f32 %v1037, %v1116
  %v1118 = vsub.f32 1.0, %v1117
  %v1119 = vmul.f32 %v1116, %v1118
  %v1120 = vadd.f32 %v1116, %v1119
  %vm1121 = vweird.f32 %v1037
  %vm1122 = vweird.f32 %v1116
  %vm1123 = vmor %vm1121, %vm1122
  %v1124 = vsel %vm1123, %v1116, %v1120
  %v1125 = vand.u32 2147483647, %v1037
  %vm1126 = vcmp.eq.f32.partialorder %v1125, 8.507059e+37
  %v1127 = vand.u32 %v1037, 2147483648
  %v1128 = vor.u32 1.1754944e-38, %v1127
  %v1129 = vsel %vm1126, %v1128, %v1124
  %v1130 = vmul.f32 1.0, %v1129
  %v1131 = vrcp.pop %v1038
  %v1132 = vmul.f32 %v1038, %v1131
  %v1133 = vsub.f32 1.0, %v1132
  %v1134 = vmul.f32 %v1131, %v1133
  %v1135 = vadd.f32 %v1131, %v1134
  %vm1136 = vweird.f32 %v1038
  %vm1137 = vweird.f32 %v1131
  %vm1138 = vmor %vm1136, %vm1137
  %v1139 = vsel %vm1138, %v1131, %v1135
  %v1140 = vand.u32 2147483647, %v1038
  %vm1141 = vcmp.eq.f32.partialorder %v1140, 8.507059e+37
  %v1142 = vand.u32 %v1038, 2147483648
  %v1143 = vor.u32 1.1754944e-38, %v1142
  %v1144 = vsel %vm1141, %v1143, %v1139
  %v1145 = vmul.f32 1.0, %v1144
  %v1146 = vrcp.pop %v1039
  %v1147 = vmul.f32 %v1039, %v1146
  %v1148 = vsub.f32 1.0, %v1147
  %v1149 = vmul.f32 %v1146, %v1148
  %v1150 = vadd.f32 %v1146, %v1149
  %vm1151 = vweird.f32 %v1039
  %vm1152 = vweird.f32 %v1146
  %vm1153 = vmor %vm1151, %vm1152
  %v1154 = vsel %vm1153, %v1146, %v1150
  %v1155 = vand.u32 2147483647, %v1039
  %vm1156 = vcmp.eq.f32.partialorder %v1155, 8.507059e+37
  %v1157 = vand.u32 %v1039, 2147483648
  %v1158 = vor.u32 1.1754944e-38, %v1157
  %v1159 = vsel %vm1156, %v1158, %v1154
  %v1160 = vmul.f32 1.0, %v1159
  %v1161 = vrcp.pop %v1040
  %v1162 = vmul.f32 %v1040, %v1161
  %v1163 = vsub.f32 1.0, %v1162
  %v1164 = vmul.f32 %v1161, %v1163
  %v1165 = vadd.f32 %v1161, %v1164
  %vm1166 = vweird.f32 %v1040
  %vm1167 = vweird.f32 %v1161
  %vm1168 = vmor %vm1166, %vm1167
  %v1169 = vsel %vm1168, %v1161, %v1165
  %v1170 = vand.u32 2147483647, %v1040
  %vm1171 = vcmp.eq.f32.partialorder %v1170, 8.507059e+37
  %v1172 = vand.u32 %v1040, 2147483648
  %v1173 = vor.u32 1.1754944e-38, %v1172
  %v1174 = vsel %vm1171, %v1173, %v1169
  %v1175 = vmul.f32 1.0, %v1174
  %v1176 = vmul.f32 %v996, %v1055
  %v1177 = vmul.f32 %v997, %v1070
  %v1178 = vmul.f32 %v998, %v1085
  %v1179 = vmul.f32 %v999, %v1100
  %v1180 = vmul.f32 %v1000, %v1115
  %v1181 = vmul.f32 %v1001, %v1130
  %v1182 = vmul.f32 %v1002, %v1145
  %v1183 = vmul.f32 %v1003, %v1160
  %v1184 = vmul.f32 %v1004, %v1175
  %v1185 = vmul.f32 %v1176, %v857
  %v1186 = vmul.f32 %v1177, %v862
  %v1187 = vmul.f32 %v1178, %v867
  %v1188 = vmul.f32 %v1179, %v872
  %v1189 = vmul.f32 %v1180, %v877
  %v1190 = vmul.f32 %v1181, %v882
  %v1191 = vmul.f32 %v1182, %v887
  %v1192 = vmul.f32 %v1183, %v892
  %v1193 = vmul.f32 %v1184, %v897
  %v1194 = vpack.c.bf16 %v1185, %v1185
  %v1195 = vpack.c.bf16 %v1186, %v1186
  %v1196 = vpack.c.bf16 %v1187, %v1187
  %v1197 = vpack.c.bf16 %v1188, %v1188
  %v1198 = vpack.c.bf16 %v1189, %v1189
  %v1199 = vpack.c.bf16 %v1190, %v1190
  %v1200 = vpack.c.bf16 %v1191, %v1191
  %v1201 = vpack.c.bf16 %v1192, %v1192
  %v1202 = vpack.c.bf16 %v1193, %v1193
  %1203 = vst [vmem:[%s5] sm:$0xf] %v1194
  %1204 = vst [vmem:[%s5 + $0x4] sm:$0xf] %v1195
  %1205 = vst [vmem:[%s5 + $0x8] sm:$0xf] %v1196
  %1206 = vst [vmem:[%s5 + $0xc] sm:$0xf] %v1197
  %1207 = vst [vmem:[%s5 + $0x10] sm:$0xf] %v1198
  %1208 = vst [vmem:[%s5 + $0x14] sm:$0xf] %v1199
  %1209 = vst [vmem:[%s5 + $0x18] sm:$0xf] %v1200
  %1210 = vst [vmem:[%s5 + $0x1c] sm:$0xf] %v1201
  %1211 = vst [vmem:[%s5 + $0x20] sm:$0xf] %v1202
  // Predicated region
  $region22: #{conv4_forward.6} parent=0 // pred_check
    _
  $region23: #{conv4_forward.6} parent=0 // pred_check_branch
    %1213 = sbr.rel (0) target = $region25
  $region24: #{conv4_forward.6} parent=0 // pred_region
    _
  $region25: #{conv4_forward.6} parent=0 // pred_fallthru
    _
  // Predicated region
  $region26: #{conv4_forward.6} parent=0 // pred_check
    _
  $region27: #{conv4_forward.6} parent=0 // pred_check_branch
    %1215 = sbr.rel (0) target = $region29
  $region28: #{conv4_forward.6} parent=0 // pred_region
    _
  $region29: #{conv4_forward.6} parent=0 // pred_fallthru
    _

// kernel: conv4_forward.4
$region0: #{conv4_forward.4}
  #allocation0 [shape = 'u32[]', space=smem, size = 0x4, offset = 0x4, fixed_abs, tag = 'smem constant byte address 0x4 - core index']
  #allocation1 [shape = 'u32[72,128]{1,0:T(1,128)}', space=vmem, size = 0x9000, scoped, tag = 'internal scratch']
  %s0 = inlined_call_operand.vmem [shape: bf16[4,172,8], index: 0, kind: input, shape index: {}]
  %s1 = inlined_call_operand.vmem [shape: f32[9,8,32], index: 1, kind: input, shape index: {}]
  %s2 = inlined_call_operand.vmem [shape: f32[1,32], index: 2, kind: input, shape index: {}]
  %s3 = inlined_call_operand.vmem [shape: f32[1,32], index: 3, kind: input, shape index: {}]
  %s4 = inlined_call_operand.vmem [shape: f32[162,1], index: 4, kind: input, shape index: {}]
  %s5 = inlined_call_operand.vmem [shape: bf16[162,32], index: 5, kind: output, shape index: {}]
  %s6 = sld [smem:[#allocation0]]
  $region30: #{conv4_forward.4} parent=0
    _
  %s8 = ssub.s32 1, %s6
  %s9 = scalar_select 0, %s8, %s6
  // Predicated region
  $region2: #{conv4_forward.4} parent=0 // pred_check
    _
  $region3: #{conv4_forward.4} parent=0 // pred_check_branch
    %11 = sbr.rel (0) target = $region5
  $region4: #{conv4_forward.4} parent=0 // pred_region
    _
  $region5: #{conv4_forward.4} parent=0 // pred_fallthru
    _
  // Predicated region
  $region6: #{conv4_forward.4} parent=0 // pred_check
    _
  $region7: #{conv4_forward.4} parent=0 // pred_check_branch
    %13 = sbr.rel (0) target = $region9
  $region8: #{conv4_forward.4} parent=0 // pred_region
    _
  $region9: #{conv4_forward.4} parent=0 // pred_fallthru
    _
  // Predicated region
  $region10: #{conv4_forward.4} parent=0 // pred_check
    _
  $region11: #{conv4_forward.4} parent=0 // pred_check_branch
    %15 = sbr.rel (0) target = $region13
  $region12: #{conv4_forward.4} parent=0 // pred_region
    _
  $region13: #{conv4_forward.4} parent=0 // pred_fallthru
    _
  // Predicated region
  $region14: #{conv4_forward.4} parent=0 // pred_check
    _
  $region15: #{conv4_forward.4} parent=0 // pred_check_branch
    %17 = sbr.rel (0) target = $region17
  $region16: #{conv4_forward.4} parent=0 // pred_region
    _
  $region17: #{conv4_forward.4} parent=0 // pred_fallthru
    _
  // Predicated region
  $region18: #{conv4_forward.4} parent=0 // pred_check
    _
  $region19: #{conv4_forward.4} parent=0 // pred_check_branch
    %19 = sbr.rel (0) target = $region21
  $region20: #{conv4_forward.4} parent=0 // pred_region
    _
  $region21: #{conv4_forward.4} parent=0 // pred_fallthru
    _
  %v20 = vld [vmem:[%s0] sm:$0xf]
  %v21 = vld [vmem:[%s0 + $0x4] sm:$0xf]
  %v22 = vld [vmem:[%s0 + $0x8] sm:$0xf]
  %v23 = vld [vmem:[%s0 + $0xc] sm:$0xf]
  %v24 = vld [vmem:[%s0 + $0x10] sm:$0xf]
  %v25 = vld [vmem:[%s0 + $0x14] sm:$0xf]
  %v26 = vld [vmem:[%s0 + $0x18] sm:$0xf]
  %v27 = vld [vmem:[%s0 + $0x1c] sm:$0xf]
  %v28 = vld [vmem:[%s0 + $0x20] sm:$0xf]
  %v29 = vld [vmem:[%s0 + $0x24] sm:$0xf]
  %v30 = vld [vmem:[%s0 + $0x28] sm:$0xf]
  %v31 = vld [vmem:[%s0 + $0x2c] sm:$0xf]
  %v32 = vld [vmem:[%s0 + $0x30] sm:$0xf]
  %v33 = vld [vmem:[%s0 + $0x34] sm:$0xf]
  %v34 = vld [vmem:[%s0 + $0x38] sm:$0xf]
  %v35 = vld [vmem:[%s0 + $0x3c] sm:$0xf]
  %v36 = vld [vmem:[%s0 + $0x40] sm:$0xf]
  %v37 = vld [vmem:[%s0 + $0x44] sm:$0xf]
  %v38 = vld [vmem:[%s0 + $0x48] sm:$0xf]
  %v39 = vld [vmem:[%s0 + $0x4c] sm:$0xf]
  %v40 = vld [vmem:[%s0 + $0x50] sm:$0xf]
  %v41 = vld [vmem:[%s0 + $0x54] sm:$0x3]
  %v42 = vunpack.c.l.bf16 %v20
  %v43 = vunpack.c.l.bf16 %v21
  %v44 = vunpack.c.l.bf16 %v22
  %v45 = vunpack.c.l.bf16 %v23
  %v46 = vunpack.c.l.bf16 %v24
  %v47 = vunpack.c.l.bf16 %v25
  %v48 = vunpack.c.l.bf16 %v26
  %v49 = vunpack.c.l.bf16 %v27
  %v50 = vunpack.c.l.bf16 %v28
  %v51 = vunpack.c.l.bf16 %v29
  %v52 = vunpack.c.l.bf16 %v30
  %v53 = vunpack.c.l.bf16 %v31
  %v54 = vunpack.c.l.bf16 %v32
  %v55 = vunpack.c.l.bf16 %v33
  %v56 = vunpack.c.l.bf16 %v34
  %v57 = vunpack.c.l.bf16 %v35
  %v58 = vunpack.c.l.bf16 %v36
  %v59 = vunpack.c.l.bf16 %v37
  %v60 = vunpack.c.l.bf16 %v38
  %v61 = vunpack.c.l.bf16 %v39
  %v62 = vunpack.c.l.bf16 %v40
  %v63 = vunpack.c.l.bf16 %v41
  %s64 = scalar_lea.vmem %s0, 88
  %v65 = vld [vmem:[%s64] sm:$0xf]
  %v66 = vld [vmem:[%s64 + $0x4] sm:$0xf]
  %v67 = vld [vmem:[%s64 + $0x8] sm:$0xf]
  %v68 = vld [vmem:[%s64 + $0xc] sm:$0xf]
  %v69 = vld [vmem:[%s64 + $0x10] sm:$0xf]
  %v70 = vld [vmem:[%s64 + $0x14] sm:$0xf]
  %v71 = vld [vmem:[%s64 + $0x18] sm:$0xf]
  %v72 = vld [vmem:[%s64 + $0x1c] sm:$0xf]
  %v73 = vld [vmem:[%s64 + $0x20] sm:$0xf]
  %v74 = vld [vmem:[%s64 + $0x24] sm:$0xf]
  %v75 = vld [vmem:[%s64 + $0x28] sm:$0xf]
  %v76 = vld [vmem:[%s64 + $0x2c] sm:$0xf]
  %v77 = vld [vmem:[%s64 + $0x30] sm:$0xf]
  %v78 = vld [vmem:[%s64 + $0x34] sm:$0xf]
  %v79 = vld [vmem:[%s64 + $0x38] sm:$0xf]
  %v80 = vld [vmem:[%s64 + $0x3c] sm:$0xf]
  %v81 = vld [vmem:[%s64 + $0x40] sm:$0xf]
  %v82 = vld [vmem:[%s64 + $0x44] sm:$0xf]
  %v83 = vld [vmem:[%s64 + $0x48] sm:$0xf]
  %v84 = vld [vmem:[%s64 + $0x4c] sm:$0xf]
  %v85 = vld [vmem:[%s64 + $0x50] sm:$0xf]
  %v86 = vld [vmem:[%s64 + $0x54] sm:$0x3]
  %v87 = vunpack.c.l.bf16 %v65
  %v88 = vunpack.c.l.bf16 %v66
  %v89 = vunpack.c.l.bf16 %v67
  %v90 = vunpack.c.l.bf16 %v68
  %v91 = vunpack.c.l.bf16 %v69
  %v92 = vunpack.c.l.bf16 %v70
  %v93 = vunpack.c.l.bf16 %v71
  %v94 = vunpack.c.l.bf16 %v72
  %v95 = vunpack.c.l.bf16 %v73
  %v96 = vunpack.c.l.bf16 %v74
  %v97 = vunpack.c.l.bf16 %v75
  %v98 = vunpack.c.l.bf16 %v76
  %v99 = vunpack.c.l.bf16 %v77
  %v100 = vunpack.c.l.bf16 %v78
  %v101 = vunpack.c.l.bf16 %v79
  %v102 = vunpack.c.l.bf16 %v80
  %v103 = vunpack.c.l.bf16 %v81
  %v104 = vunpack.c.l.bf16 %v82
  %v105 = vunpack.c.l.bf16 %v83
  %v106 = vunpack.c.l.bf16 %v84
  %v107 = vunpack.c.l.bf16 %v85
  %v108 = vunpack.c.l.bf16 %v86
  %s109 = scalar_lea.vmem %s0, 176
  %v110 = vld [vmem:[%s109] sm:$0xf]
  %v111 = vld [vmem:[%s109 + $0x4] sm:$0xf]
  %v112 = vld [vmem:[%s109 + $0x8] sm:$0xf]
  %v113 = vld [vmem:[%s109 + $0xc] sm:$0xf]
  %v114 = vld [vmem:[%s109 + $0x10] sm:$0xf]
  %v115 = vld [vmem:[%s109 + $0x14] sm:$0xf]
  %v116 = vld [vmem:[%s109 + $0x18] sm:$0xf]
  %v117 = vld [vmem:[%s109 + $0x1c] sm:$0xf]
  %v118 = vld [vmem:[%s109 + $0x20] sm:$0xf]
  %v119 = vld [vmem:[%s109 + $0x24] sm:$0xf]
  %v120 = vld [vmem:[%s109 + $0x28] sm:$0xf]
  %v121 = vld [vmem:[%s109 + $0x2c] sm:$0xf]
  %v122 = vld [vmem:[%s109 + $0x30] sm:$0xf]
  %v123 = vld [vmem:[%s109 + $0x34] sm:$0xf]
  %v124 = vld [vmem:[%s109 + $0x38] sm:$0xf]
  %v125 = vld [vmem:[%s109 + $0x3c] sm:$0xf]
  %v126 = vld [vmem:[%s109 + $0x40] sm:$0xf]
  %v127 = vld [vmem:[%s109 + $0x44] sm:$0xf]
  %v128 = vld [vmem:[%s109 + $0x48] sm:$0xf]
  %v129 = vld [vmem:[%s109 + $0x4c] sm:$0xf]
  %v130 = vld [vmem:[%s109 + $0x50] sm:$0xf]
  %v131 = vunpack.c.l.bf16 %v110
  %v132 = vunpack.c.l.bf16 %v111
  %v133 = vunpack.c.l.bf16 %v112
  %v134 = vunpack.c.l.bf16 %v113
  %v135 = vunpack.c.l.bf16 %v114
  %v136 = vunpack.c.l.bf16 %v115
  %v137 = vunpack.c.l.bf16 %v116
  %v138 = vunpack.c.l.bf16 %v117
  %v139 = vunpack.c.l.bf16 %v118
  %v140 = vunpack.c.l.bf16 %v119
  %v141 = vunpack.c.l.bf16 %v120
  %v142 = vunpack.c.l.bf16 %v121
  %v143 = vunpack.c.l.bf16 %v122
  %v144 = vunpack.c.l.bf16 %v123
  %v145 = vunpack.c.l.bf16 %v124
  %v146 = vunpack.c.l.bf16 %v125
  %v147 = vunpack.c.l.bf16 %v126
  %v148 = vunpack.c.l.bf16 %v127
  %v149 = vunpack.c.l.bf16 %v128
  %v150 = vunpack.c.l.bf16 %v129
  %v151 = vunpack.c.l.bf16 %v130
  %s152 = scalar_lea.vmem %s0, 264
  %v153 = vld [vmem:[%s152] sm:$0xf]
  %v154 = vld [vmem:[%s152 + $0x4] sm:$0xf]
  %v155 = vld [vmem:[%s152 + $0x8] sm:$0xf]
  %v156 = vld [vmem:[%s152 + $0xc] sm:$0xf]
  %v157 = vld [vmem:[%s152 + $0x10] sm:$0xf]
  %v158 = vld [vmem:[%s152 + $0x14] sm:$0xf]
  %v159 = vld [vmem:[%s152 + $0x18] sm:$0xf]
  %v160 = vld [vmem:[%s152 + $0x1c] sm:$0xf]
  %v161 = vld [vmem:[%s152 + $0x20] sm:$0xf]
  %v162 = vld [vmem:[%s152 + $0x24] sm:$0xf]
  %v163 = vld [vmem:[%s152 + $0x28] sm:$0xf]
  %v164 = vld [vmem:[%s152 + $0x2c] sm:$0xf]
  %v165 = vld [vmem:[%s152 + $0x30] sm:$0xf]
  %v166 = vld [vmem:[%s152 + $0x34] sm:$0xf]
  %v167 = vld [vmem:[%s152 + $0x38] sm:$0xf]
  %v168 = vld [vmem:[%s152 + $0x3c] sm:$0xf]
  %v169 = vld [vmem:[%s152 + $0x40] sm:$0xf]
  %v170 = vld [vmem:[%s152 + $0x44] sm:$0xf]
  %v171 = vld [vmem:[%s152 + $0x48] sm:$0xf]
  %v172 = vld [vmem:[%s152 + $0x4c] sm:$0xf]
  %v173 = vld [vmem:[%s152 + $0x50] sm:$0xf]
  %v174 = vunpack.c.l.bf16 %v153
  %v175 = vunpack.c.l.bf16 %v154
  %v176 = vunpack.c.l.bf16 %v155
  %v177 = vunpack.c.l.bf16 %v156
  %v178 = vunpack.c.l.bf16 %v157
  %v179 = vunpack.c.l.bf16 %v158
  %v180 = vunpack.c.l.bf16 %v159
  %v181 = vunpack.c.l.bf16 %v160
  %v182 = vunpack.c.l.bf16 %v161
  %v183 = vunpack.c.l.bf16 %v162
  %v184 = vunpack.c.l.bf16 %v163
  %v185 = vunpack.c.l.bf16 %v164
  %v186 = vunpack.c.l.bf16 %v165
  %v187 = vunpack.c.l.bf16 %v166
  %v188 = vunpack.c.l.bf16 %v167
  %v189 = vunpack.c.l.bf16 %v168
  %v190 = vunpack.c.l.bf16 %v169
  %v191 = vunpack.c.l.bf16 %v170
  %v192 = vunpack.c.l.bf16 %v171
  %v193 = vunpack.c.l.bf16 %v172
  %v194 = vunpack.c.l.bf16 %v173
  %v195 = vld [vmem:[%s1] sm:$0xff]
  %s196 = scalar_lea.vmem %s1, 8
  %v197 = vld [vmem:[%s196] sm:$0xff]
  %vm198 = vcmask 64512
  %v200 = vsel %vm198, %v87, 0
  %v203 = vsel %vm198, %v88, 0
  %v206 = vsel %vm198, %v89, 0
  %v209 = vsel %vm198, %v90, 0
  %v212 = vsel %vm198, %v91, 0
  %v215 = vsel %vm198, %v92, 0
  %v218 = vsel %vm198, %v93, 0
  %v221 = vsel %vm198, %v94, 0
  %v224 = vsel %vm198, %v95, 0
  %v227 = vsel %vm198, %v96, 0
  %v230 = vsel %vm198, %v97, 0
  %v233 = vsel %vm198, %v98, 0
  %v236 = vsel %vm198, %v99, 0
  %v239 = vsel %vm198, %v100, 0
  %v242 = vsel %vm198, %v101, 0
  %v245 = vsel %vm198, %v102, 0
  %v248 = vsel %vm198, %v103, 0
  %v251 = vsel %vm198, %v104, 0
  %v254 = vsel %vm198, %v105, 0
  %v257 = vsel %vm198, %v106, 0
  %v260 = vsel %vm198, %v107, 0
  %262 = vmatpush.msra.mxu0 0.0
  %263 = vmatpush.msra.mxu0 0.0
  %264 = vmatpush.msra.mxu0 0.0
  %265 = vmatpush.msra.mxu0 0.0
  %266 = vmatpush.msra.mxu0 0.0
  %267 = vmatpush.msra.mxu0 0.0
  %268 = vmatpush.msra.mxu0 0.0
  %269 = vmatpush.msra.mxu0 0.0
  %270 = vmatpush.msra.mxu0 0.0
  %271 = vmatpush.msra.mxu0 0.0
  %272 = vmatpush.msra.mxu0 0.0
  %273 = vmatpush.msra.mxu0 0.0
  %274 = vmatpush.msra.mxu0 0.0
  %275 = vmatpush.msra.mxu0 0.0
  %276 = vmatpush.msra.mxu0 0.0
  %277 = vmatpush.msra.mxu0 %v197
  %278 = vmatmul.f32.gmra.mxu0 %v200
  %v279 = vpop.f32.mrf.mxu0
  %v280 = vadd.f32 0.0, %v279
  %281 = vmatmul.f32.gmra.mxu0 %v203
  %v282 = vpop.f32.mrf.mxu0
  %v283 = vadd.f32 0.0, %v282
  %284 = vmatmul.f32.gmra.mxu0 %v206
  %v285 = vpop.f32.mrf.mxu0
  %v286 = vadd.f32 0.0, %v285
  %287 = vmatmul.f32.gmra.mxu0 %v209
  %v288 = vpop.f32.mrf.mxu0
  %v289 = vadd.f32 0.0, %v288
  %290 = vmatmul.f32.gmra.mxu0 %v212
  %v291 = vpop.f32.mrf.mxu0
  %v292 = vadd.f32 0.0, %v291
  %293 = vmatmul.f32.gmra.mxu0 %v215
  %v294 = vpop.f32.mrf.mxu0
  %v295 = vadd.f32 0.0, %v294
  %296 = vmatmul.f32.gmra.mxu0 %v218
  %v297 = vpop.f32.mrf.mxu0
  %v298 = vadd.f32 0.0, %v297
  %299 = vmatmul.f32.gmra.mxu0 %v221
  %v300 = vpop.f32.mrf.mxu0
  %v301 = vadd.f32 0.0, %v300
  %302 = vmatmul.f32.gmra.mxu0 %v224
  %v303 = vpop.f32.mrf.mxu0
  %v304 = vadd.f32 0.0, %v303
  %305 = vmatmul.f32.gmra.mxu0 %v227
  %v306 = vpop.f32.mrf.mxu0
  %v307 = vadd.f32 0.0, %v306
  %308 = vmatmul.f32.gmra.mxu0 %v230
  %v309 = vpop.f32.mrf.mxu0
  %v310 = vadd.f32 0.0, %v309
  %311 = vmatmul.f32.gmra.mxu0 %v233
  %v312 = vpop.f32.mrf.mxu0
  %v313 = vadd.f32 0.0, %v312
  %314 = vmatmul.f32.gmra.mxu0 %v236
  %v315 = vpop.f32.mrf.mxu0
  %v316 = vadd.f32 0.0, %v315
  %317 = vmatmul.f32.gmra.mxu0 %v239
  %v318 = vpop.f32.mrf.mxu0
  %v319 = vadd.f32 0.0, %v318
  %320 = vmatmul.f32.gmra.mxu0 %v242
  %v321 = vpop.f32.mrf.mxu0
  %v322 = vadd.f32 0.0, %v321
  %323 = vmatmul.f32.gmra.mxu0 %v245
  %v324 = vpop.f32.mrf.mxu0
  %v325 = vadd.f32 0.0, %v324
  %326 = vmatmul.f32.gmra.mxu0 %v248
  %v327 = vpop.f32.mrf.mxu0
  %v328 = vadd.f32 0.0, %v327
  %329 = vmatmul.f32.gmra.mxu0 %v251
  %v330 = vpop.f32.mrf.mxu0
  %v331 = vadd.f32 0.0, %v330
  %332 = vmatmul.f32.gmra.mxu0 %v254
  %v333 = vpop.f32.mrf.mxu0
  %v334 = vadd.f32 0.0, %v333
  %335 = vmatmul.f32.gmra.mxu0 %v257
  %v336 = vpop.f32.mrf.mxu0
  %v337 = vadd.f32 0.0, %v336
  %338 = vmatmul.f32.gmra.mxu0 %v260
  %v339 = vpop.f32.mrf.mxu0
  %v340 = vadd.f32 0.0, %v339
  %341 = vdwg.mxu0
  %v343 = vsel %vm198, %v42, 0
  %v346 = vsel %vm198, %v43, 0
  %v349 = vsel %vm198, %v44, 0
  %v352 = vsel %vm198, %v45, 0
  %v355 = vsel %vm198, %v46, 0
  %v358 = vsel %vm198, %v47, 0
  %v361 = vsel %vm198, %v48, 0
  %v364 = vsel %vm198, %v49, 0
  %v367 = vsel %vm198, %v50, 0
  %v370 = vsel %vm198, %v51, 0
  %v373 = vsel %vm198, %v52, 0
  %v376 = vsel %vm198, %v53, 0
  %v379 = vsel %vm198, %v54, 0
  %v382 = vsel %vm198, %v55, 0
  %v385 = vsel %vm198, %v56, 0
  %v388 = vsel %vm198, %v57, 0
  %v391 = vsel %vm198, %v58, 0
  %v394 = vsel %vm198, %v59, 0
  %v397 = vsel %vm198, %v60, 0
  %v400 = vsel %vm198, %v61, 0
  %v403 = vsel %vm198, %v62, 0
  %405 = vmatpush.msra.mxu0 0.0
  %406 = vmatpush.msra.mxu0 0.0
  %407 = vmatpush.msra.mxu0 0.0
  %408 = vmatpush.msra.mxu0 0.0
  %409 = vmatpush.msra.mxu0 0.0
  %410 = vmatpush.msra.mxu0 0.0
  %411 = vmatpush.msra.mxu0 0.0
  %412 = vmatpush.msra.mxu0 0.0
  %413 = vmatpush.msra.mxu0 0.0
  %414 = vmatpush.msra.mxu0 0.0
  %415 = vmatpush.msra.mxu0 0.0
  %416 = vmatpush.msra.mxu0 0.0
  %417 = vmatpush.msra.mxu0 0.0
  %418 = vmatpush.msra.mxu0 0.0
  %419 = vmatpush.msra.mxu0 0.0
  %420 = vmatpush.msra.mxu0 %v195
  %421 = vmatmul.f32.gmra.mxu0 %v343
  %v422 = vpop.f32.mrf.mxu0
  %v423 = vadd.f32 %v280, %v422
  %424 = vmatmul.f32.gmra.mxu0 %v346
  %v425 = vpop.f32.mrf.mxu0
  %v426 = vadd.f32 %v283, %v425
  %427 = vmatmul.f32.gmra.mxu0 %v349
  %v428 = vpop.f32.mrf.mxu0
  %v429 = vadd.f32 %v286, %v428
  %430 = vmatmul.f32.gmra.mxu0 %v352
  %v431 = vpop.f32.mrf.mxu0
  %v432 = vadd.f32 %v289, %v431
  %433 = vmatmul.f32.gmra.mxu0 %v355
  %v434 = vpop.f32.mrf.mxu0
  %v435 = vadd.f32 %v292, %v434
  %436 = vmatmul.f32.gmra.mxu0 %v358
  %v437 = vpop.f32.mrf.mxu0
  %v438 = vadd.f32 %v295, %v437
  %439 = vmatmul.f32.gmra.mxu0 %v361
  %v440 = vpop.f32.mrf.mxu0
  %v441 = vadd.f32 %v298, %v440
  %442 = vmatmul.f32.gmra.mxu0 %v364
  %v443 = vpop.f32.mrf.mxu0
  %v444 = vadd.f32 %v301, %v443
  %445 = vmatmul.f32.gmra.mxu0 %v367
  %v446 = vpop.f32.mrf.mxu0
  %v447 = vadd.f32 %v304, %v446
  %448 = vmatmul.f32.gmra.mxu0 %v370
  %v449 = vpop.f32.mrf.mxu0
  %v450 = vadd.f32 %v307, %v449
  %451 = vmatmul.f32.gmra.mxu0 %v373
  %v452 = vpop.f32.mrf.mxu0
  %v453 = vadd.f32 %v310, %v452
  %454 = vmatmul.f32.gmra.mxu0 %v376
  %v455 = vpop.f32.mrf.mxu0
  %v456 = vadd.f32 %v313, %v455
  %457 = vmatmul.f32.gmra.mxu0 %v379
  %v458 = vpop.f32.mrf.mxu0
  %v459 = vadd.f32 %v316, %v458
  %460 = vmatmul.f32.gmra.mxu0 %v382
  %v461 = vpop.f32.mrf.mxu0
  %v462 = vadd.f32 %v319, %v461
  %463 = vmatmul.f32.gmra.mxu0 %v385
  %v464 = vpop.f32.mrf.mxu0
  %v465 = vadd.f32 %v322, %v464
  %466 = vmatmul.f32.gmra.mxu0 %v388
  %v467 = vpop.f32.mrf.mxu0
  %v468 = vadd.f32 %v325, %v467
  %469 = vmatmul.f32.gmra.mxu0 %v391
  %v470 = vpop.f32.mrf.mxu0
  %v471 = vadd.f32 %v328, %v470
  %472 = vmatmul.f32.gmra.mxu0 %v394
  %v473 = vpop.f32.mrf.mxu0
  %v474 = vadd.f32 %v331, %v473
  %475 = vmatmul.f32.gmra.mxu0 %v397
  %v476 = vpop.f32.mrf.mxu0
  %v477 = vadd.f32 %v334, %v476
  %478 = vmatmul.f32.gmra.mxu0 %v400
  %v479 = vpop.f32.mrf.mxu0
  %v480 = vadd.f32 %v337, %v479
  %481 = vmatmul.f32.gmra.mxu0 %v403
  %v482 = vpop.f32.mrf.mxu0
  %v483 = vadd.f32 %v340, %v482
  %484 = vdwg.mxu0
  %s485 = scalar_lea.vmem %s1, 16
  %v486 = vld [vmem:[%s485] sm:$0xff]
  %vm487 = vcmask 1046528
  %v488 = vrot.slane %v42, 1
  %v489 = vrot.slane %v43, 1
  %v490 = vsel %vm487, %v488, %v489
  %v491 = vrot.slane %v44, 1
  %v492 = vsel %vm487, %v489, %v491
  %v493 = vrot.slane %v45, 1
  %v494 = vsel %vm487, %v491, %v493
  %v495 = vrot.slane %v46, 1
  %v496 = vsel %vm487, %v493, %v495
  %v497 = vrot.slane %v47, 1
  %v498 = vsel %vm487, %v495, %v497
  %v499 = vrot.slane %v48, 1
  %v500 = vsel %vm487, %v497, %v499
  %v501 = vrot.slane %v49, 1
  %v502 = vsel %vm487, %v499, %v501
  %v503 = vrot.slane %v50, 1
  %v504 = vsel %vm487, %v501, %v503
  %v505 = vrot.slane %v51, 1
  %v506 = vsel %vm487, %v503, %v505
  %v507 = vrot.slane %v52, 1
  %v508 = vsel %vm487, %v505, %v507
  %v509 = vrot.slane %v53, 1
  %v510 = vsel %vm487, %v507, %v509
  %v511 = vrot.slane %v54, 1
  %v512 = vsel %vm487, %v509, %v511
  %v513 = vrot.slane %v55, 1
  %v514 = vsel %vm487, %v511, %v513
  %v515 = vrot.slane %v56, 1
  %v516 = vsel %vm487, %v513, %v515
  %v517 = vrot.slane %v57, 1
  %v518 = vsel %vm487, %v515, %v517
  %v519 = vrot.slane %v58, 1
  %v520 = vsel %vm487, %v517, %v519
  %v521 = vrot.slane %v59, 1
  %v522 = vsel %vm487, %v519, %v521
  %v523 = vrot.slane %v60, 1
  %v524 = vsel %vm487, %v521, %v523
  %v525 = vrot.slane %v61, 1
  %v526 = vsel %vm487, %v523, %v525
  %v527 = vrot.slane %v62, 1
  %v528 = vsel %vm487, %v525, %v527
  %v529 = vsel %vm198, %v490, 0
  %v531 = vsel %vm198, %v492, 0
  %v533 = vsel %vm198, %v494, 0
  %v535 = vsel %vm198, %v496, 0
  %v537 = vsel %vm198, %v498, 0
  %v539 = vsel %vm198, %v500, 0
  %v541 = vsel %vm198, %v502, 0
  %v543 = vsel %vm198, %v504, 0
  %v545 = vsel %vm198, %v506, 0
  %v547 = vsel %vm198, %v508, 0
  %v549 = vsel %vm198, %v510, 0
  %v551 = vsel %vm198, %v512, 0
  %v553 = vsel %vm198, %v514, 0
  %v555 = vsel %vm198, %v516, 0
  %v557 = vsel %vm198, %v518, 0
  %v559 = vsel %vm198, %v520, 0
  %v561 = vsel %vm198, %v522, 0
  %v563 = vsel %vm198, %v524, 0
  %v565 = vsel %vm198, %v526, 0
  %v567 = vsel %vm198, %v528, 0
  %v569 = vsel %vm198, %v527, 0
  %571 = vmatpush.msra.mxu0 0.0
  %572 = vmatpush.msra.mxu0 0.0
  %573 = vmatpush.msra.mxu0 0.0
  %574 = vmatpush.msra.mxu0 0.0
  %575 = vmatpush.msra.mxu0 0.0
  %576 = vmatpush.msra.mxu0 0.0
  %577 = vmatpush.msra.mxu0 0.0
  %578 = vmatpush.msra.mxu0 0.0
  %579 = vmatpush.msra.mxu0 0.0
  %580 = vmatpush.msra.mxu0 0.0
  %581 = vmatpush.msra.mxu0 0.0
  %582 = vmatpush.msra.mxu0 0.0
  %583 = vmatpush.msra.mxu0 0.0
  %584 = vmatpush.msra.mxu0 0.0
  %585 = vmatpush.msra.mxu0 0.0
  %586 = vmatpush.msra.mxu0 %v486
  %587 = vmatmul.f32.gmra.mxu0 %v529
  %v588 = vpop.f32.mrf.mxu0
  %v589 = vadd.f32 0.0, %v588
  %590 = vmatmul.f32.gmra.mxu0 %v531
  %v591 = vpop.f32.mrf.mxu0
  %v592 = vadd.f32 0.0, %v591
  %593 = vmatmul.f32.gmra.mxu0 %v533
  %v594 = vpop.f32.mrf.mxu0
  %v595 = vadd.f32 0.0, %v594
  %596 = vmatmul.f32.gmra.mxu0 %v535
  %v597 = vpop.f32.mrf.mxu0
  %v598 = vadd.f32 0.0, %v597
  %599 = vmatmul.f32.gmra.mxu0 %v537
  %v600 = vpop.f32.mrf.mxu0
  %v601 = vadd.f32 0.0, %v600
  %602 = vmatmul.f32.gmra.mxu0 %v539
  %v603 = vpop.f32.mrf.mxu0
  %v604 = vadd.f32 0.0, %v603
  %605 = vmatmul.f32.gmra.mxu0 %v541
  %v606 = vpop.f32.mrf.mxu0
  %v607 = vadd.f32 0.0, %v606
  %608 = vmatmul.f32.gmra.mxu0 %v543
  %v609 = vpop.f32.mrf.mxu0
  %v610 = vadd.f32 0.0, %v609
  %611 = vmatmul.f32.gmra.mxu0 %v545
  %v612 = vpop.f32.mrf.mxu0
  %v613 = vadd.f32 0.0, %v612
  %614 = vmatmul.f32.gmra.mxu0 %v547
  %v615 = vpop.f32.mrf.mxu0
  %v616 = vadd.f32 0.0, %v615
  %617 = vmatmul.f32.gmra.mxu0 %v549
  %v618 = vpop.f32.mrf.mxu0
  %v619 = vadd.f32 0.0, %v618
  %620 = vmatmul.f32.gmra.mxu0 %v551
  %v621 = vpop.f32.mrf.mxu0
  %v622 = vadd.f32 0.0, %v621
  %623 = vmatmul.f32.gmra.mxu0 %v553
  %v624 = vpop.f32.mrf.mxu0
  %v625 = vadd.f32 0.0, %v624
  %626 = vmatmul.f32.gmra.mxu0 %v555
  %v627 = vpop.f32.mrf.mxu0
  %v628 = vadd.f32 0.0, %v627
  %629 = vmatmul.f32.gmra.mxu0 %v557
  %v630 = vpop.f32.mrf.mxu0
  %v631 = vadd.f32 0.0, %v630
  %632 = vmatmul.f32.gmra.mxu0 %v559
  %v633 = vpop.f32.mrf.mxu0
  %v634 = vadd.f32 0.0, %v633
  %635 = vmatmul.f32.gmra.mxu0 %v561
  %v636 = vpop.f32.mrf.mxu0
  %v637 = vadd.f32 0.0, %v636
  %638 = vmatmul.f32.gmra.mxu0 %v563
  %v639 = vpop.f32.mrf.mxu0
  %v640 = vadd.f32 0.0, %v639
  %641 = vmatmul.f32.gmra.mxu0 %v565
  %v642 = vpop.f32.mrf.mxu0
  %v643 = vadd.f32 0.0, %v642
  %644 = vmatmul.f32.gmra.mxu0 %v567
  %v645 = vpop.f32.mrf.mxu0
  %v646 = vadd.f32 0.0, %v645
  %647 = vmatmul.f32.gmra.mxu0 %v569
  %v648 = vpop.f32.mrf.mxu0
  %v649 = vadd.f32 0.0, %v648
  %650 = vdwg.mxu0
  %v651 = vadd.f32 %v423, %v589
  %v652 = vadd.f32 %v426, %v592
  %v653 = vadd.f32 %v429, %v595
  %v654 = vadd.f32 %v432, %v598
  %v655 = vadd.f32 %v435, %v601
  %v656 = vadd.f32 %v438, %v604
  %v657 = vadd.f32 %v441, %v607
  %v658 = vadd.f32 %v444, %v610
  %v659 = vadd.f32 %v447, %v613
  %v660 = vadd.f32 %v450, %v616
  %v661 = vadd.f32 %v453, %v619
  %v662 = vadd.f32 %v456, %v622
  %v663 = vadd.f32 %v459, %v625
  %v664 = vadd.f32 %v462, %v628
  %v665 = vadd.f32 %v465, %v631
  %v666 = vadd.f32 %v468, %v634
  %v667 = vadd.f32 %v471, %v637
  %v668 = vadd.f32 %v474, %v640
  %v669 = vadd.f32 %v477, %v643
  %v670 = vadd.f32 %v480, %v646
  %v671 = vadd.f32 %v483, %v649
  %s672 = scalar_lea.vmem %s1, 24
  %v673 = vld [vmem:[%s672] sm:$0xff]
  %v675 = vsel %vm198, %v131, 0
  %v678 = vsel %vm198, %v132, 0
  %v681 = vsel %vm198, %v133, 0
  %v684 = vsel %vm198, %v134, 0
  %v687 = vsel %vm198, %v135, 0
  %v690 = vsel %vm198, %v136, 0
  %v693 = vsel %vm198, %v137, 0
  %v696 = vsel %vm198, %v138, 0
  %v699 = vsel %vm198, %v139, 0
  %v702 = vsel %vm198, %v140, 0
  %v705 = vsel %vm198, %v141, 0
  %v708 = vsel %vm198, %v142, 0
  %v711 = vsel %vm198, %v143, 0
  %v714 = vsel %vm198, %v144, 0
  %v717 = vsel %vm198, %v145, 0
  %v720 = vsel %vm198, %v146, 0
  %v723 = vsel %vm198, %v147, 0
  %v726 = vsel %vm198, %v148, 0
  %v729 = vsel %vm198, %v149, 0
  %v732 = vsel %vm198, %v150, 0
  %v735 = vsel %vm198, %v151, 0
  %737 = vmatpush.msra.mxu0 0.0
  %738 = vmatpush.msra.mxu0 0.0
  %739 = vmatpush.msra.mxu0 0.0
  %740 = vmatpush.msra.mxu0 0.0
  %741 = vmatpush.msra.mxu0 0.0
  %742 = vmatpush.msra.mxu0 0.0
  %743 = vmatpush.msra.mxu0 0.0
  %744 = vmatpush.msra.mxu0 0.0
  %745 = vmatpush.msra.mxu0 0.0
  %746 = vmatpush.msra.mxu0 0.0
  %747 = vmatpush.msra.mxu0 0.0
  %748 = vmatpush.msra.mxu0 0.0
  %749 = vmatpush.msra.mxu0 0.0
  %750 = vmatpush.msra.mxu0 0.0
  %751 = vmatpush.msra.mxu0 0.0
  %752 = vmatpush.msra.mxu0 %v673
  %753 = vmatmul.f32.gmra.mxu0 %v675
  %v754 = vpop.f32.mrf.mxu0
  %v755 = vadd.f32 0.0, %v754
  %756 = vmatmul.f32.gmra.mxu0 %v678
  %v757 = vpop.f32.mrf.mxu0
  %v758 = vadd.f32 0.0, %v757
  %759 = vmatmul.f32.gmra.mxu0 %v681
  %v760 = vpop.f32.mrf.mxu0
  %v761 = vadd.f32 0.0, %v760
  %762 = vmatmul.f32.gmra.mxu0 %v684
  %v763 = vpop.f32.mrf.mxu0
  %v764 = vadd.f32 0.0, %v763
  %765 = vmatmul.f32.gmra.mxu0 %v687
  %v766 = vpop.f32.mrf.mxu0
  %v767 = vadd.f32 0.0, %v766
  %768 = vmatmul.f32.gmra.mxu0 %v690
  %v769 = vpop.f32.mrf.mxu0
  %v770 = vadd.f32 0.0, %v769
  %771 = vmatmul.f32.gmra.mxu0 %v693
  %v772 = vpop.f32.mrf.mxu0
  %v773 = vadd.f32 0.0, %v772
  %774 = vmatmul.f32.gmra.mxu0 %v696
  %v775 = vpop.f32.mrf.mxu0
  %v776 = vadd.f32 0.0, %v775
  %777 = vmatmul.f32.gmra.mxu0 %v699
  %v778 = vpop.f32.mrf.mxu0
  %v779 = vadd.f32 0.0, %v778
  %780 = vmatmul.f32.gmra.mxu0 %v702
  %v781 = vpop.f32.mrf.mxu0
  %v782 = vadd.f32 0.0, %v781
  %783 = vmatmul.f32.gmra.mxu0 %v705
  %v784 = vpop.f32.mrf.mxu0
  %v785 = vadd.f32 0.0, %v784
  %786 = vmatmul.f32.gmra.mxu0 %v708
  %v787 = vpop.f32.mrf.mxu0
  %v788 = vadd.f32 0.0, %v787
  %789 = vmatmul.f32.gmra.mxu0 %v711
  %v790 = vpop.f32.mrf.mxu0
  %v791 = vadd.f32 0.0, %v790
  %792 = vmatmul.f32.gmra.mxu0 %v714
  %v793 = vpop.f32.mrf.mxu0
  %v794 = vadd.f32 0.0, %v793
  %795 = vmatmul.f32.gmra.mxu0 %v717
  %v796 = vpop.f32.mrf.mxu0
  %v797 = vadd.f32 0.0, %v796
  %798 = vmatmul.f32.gmra.mxu0 %v720
  %v799 = vpop.f32.mrf.mxu0
  %v800 = vadd.f32 0.0, %v799
  %801 = vmatmul.f32.gmra.mxu0 %v723
  %v802 = vpop.f32.mrf.mxu0
  %v803 = vadd.f32 0.0, %v802
  %804 = vmatmul.f32.gmra.mxu0 %v726
  %v805 = vpop.f32.mrf.mxu0
  %v806 = vadd.f32 0.0, %v805
  %807 = vmatmul.f32.gmra.mxu0 %v729
  %v808 = vpop.f32.mrf.mxu0
  %v809 = vadd.f32 0.0, %v808
  %810 = vmatmul.f32.gmra.mxu0 %v732
  %v811 = vpop.f32.mrf.mxu0
  %v812 = vadd.f32 0.0, %v811
  %813 = vmatmul.f32.gmra.mxu0 %v735
  %v814 = vpop.f32.mrf.mxu0
  %v815 = vadd.f32 0.0, %v814
  %816 = vdwg.mxu0
  %v817 = vadd.f32 %v651, %v755
  %v818 = vadd.f32 %v652, %v758
  %v819 = vadd.f32 %v653, %v761
  %v820 = vadd.f32 %v654, %v764
  %v821 = vadd.f32 %v655, %v767
  %v822 = vadd.f32 %v656, %v770
  %v823 = vadd.f32 %v657, %v773
  %v824 = vadd.f32 %v658, %v776
  %v825 = vadd.f32 %v659, %v779
  %v826 = vadd.f32 %v660, %v782
  %v827 = vadd.f32 %v661, %v785
  %v828 = vadd.f32 %v662, %v788
  %v829 = vadd.f32 %v663, %v791
  %v830 = vadd.f32 %v664, %v794
  %v831 = vadd.f32 %v665, %v797
  %v832 = vadd.f32 %v666, %v800
  %v833 = vadd.f32 %v667, %v803
  %v834 = vadd.f32 %v668, %v806
  %v835 = vadd.f32 %v669, %v809
  %v836 = vadd.f32 %v670, %v812
  %v837 = vadd.f32 %v671, %v815
  %s838 = scalar_lea.vmem %s1, 32
  %v839 = vld [vmem:[%s838] sm:$0xff]
  %v841 = vsel %vm198, %v174, 0
  %v844 = vsel %vm198, %v175, 0
  %v847 = vsel %vm198, %v176, 0
  %v850 = vsel %vm198, %v177, 0
  %v853 = vsel %vm198, %v178, 0
  %v856 = vsel %vm198, %v179, 0
  %v859 = vsel %vm198, %v180, 0
  %v862 = vsel %vm198, %v181, 0
  %v865 = vsel %vm198, %v182, 0
  %v868 = vsel %vm198, %v183, 0
  %v871 = vsel %vm198, %v184, 0
  %v874 = vsel %vm198, %v185, 0
  %v877 = vsel %vm198, %v186, 0
  %v880 = vsel %vm198, %v187, 0
  %v883 = vsel %vm198, %v188, 0
  %v886 = vsel %vm198, %v189, 0
  %v889 = vsel %vm198, %v190, 0
  %v892 = vsel %vm198, %v191, 0
  %v895 = vsel %vm198, %v192, 0
  %v898 = vsel %vm198, %v193, 0
  %v901 = vsel %vm198, %v194, 0
  %903 = vmatpush.msra.mxu0 0.0
  %904 = vmatpush.msra.mxu0 0.0
  %905 = vmatpush.msra.mxu0 0.0
  %906 = vmatpush.msra.mxu0 0.0
  %907 = vmatpush.msra.mxu0 0.0
  %908 = vmatpush.msra.mxu0 0.0
  %909 = vmatpush.msra.mxu0 0.0
  %910 = vmatpush.msra.mxu0 0.0
  %911 = vmatpush.msra.mxu0 0.0
  %912 = vmatpush.msra.mxu0 0.0
  %913 = vmatpush.msra.mxu0 0.0
  %914 = vmatpush.msra.mxu0 0.0
  %915 = vmatpush.msra.mxu0 0.0
  %916 = vmatpush.msra.mxu0 0.0
  %917 = vmatpush.msra.mxu0 0.0
  %918 = vmatpush.msra.mxu0 %v839
  %919 = vmatmul.f32.gmra.mxu0 %v841
  %v920 = vpop.f32.mrf.mxu0
  %v921 = vadd.f32 0.0, %v920
  %922 = vmatmul.f32.gmra.mxu0 %v844
  %v923 = vpop.f32.mrf.mxu0
  %v924 = vadd.f32 0.0, %v923
  %925 = vmatmul.f32.gmra.mxu0 %v847
  %v926 = vpop.f32.mrf.mxu0
  %v927 = vadd.f32 0.0, %v926
  %928 = vmatmul.f32.gmra.mxu0 %v850
  %v929 = vpop.f32.mrf.mxu0
  %v930 = vadd.f32 0.0, %v929
  %931 = vmatmul.f32.gmra.mxu0 %v853
  %v932 = vpop.f32.mrf.mxu0
  %v933 = vadd.f32 0.0, %v932
  %934 = vmatmul.f32.gmra.mxu0 %v856
  %v935 = vpop.f32.mrf.mxu0
  %v936 = vadd.f32 0.0, %v935
  %937 = vmatmul.f32.gmra.mxu0 %v859
  %v938 = vpop.f32.mrf.mxu0
  %v939 = vadd.f32 0.0, %v938
  %940 = vmatmul.f32.gmra.mxu0 %v862
  %v941 = vpop.f32.mrf.mxu0
  %v942 = vadd.f32 0.0, %v941
  %943 = vmatmul.f32.gmra.mxu0 %v865
  %v944 = vpop.f32.mrf.mxu0
  %v945 = vadd.f32 0.0, %v944
  %946 = vmatmul.f32.gmra.mxu0 %v868
  %v947 = vpop.f32.mrf.mxu0
  %v948 = vadd.f32 0.0, %v947
  %949 = vmatmul.f32.gmra.mxu0 %v871
  %v950 = vpop.f32.mrf.mxu0
  %v951 = vadd.f32 0.0, %v950
  %952 = vmatmul.f32.gmra.mxu0 %v874
  %v953 = vpop.f32.mrf.mxu0
  %v954 = vadd.f32 0.0, %v953
  %955 = vmatmul.f32.gmra.mxu0 %v877
  %v956 = vpop.f32.mrf.mxu0
  %v957 = vadd.f32 0.0, %v956
  %958 = vmatmul.f32.gmra.mxu0 %v880
  %v959 = vpop.f32.mrf.mxu0
  %v960 = vadd.f32 0.0, %v959
  %961 = vmatmul.f32.gmra.mxu0 %v883
  %v962 = vpop.f32.mrf.mxu0
  %v963 = vadd.f32 0.0, %v962
  %964 = vmatmul.f32.gmra.mxu0 %v886
  %v965 = vpop.f32.mrf.mxu0
  %v966 = vadd.f32 0.0, %v965
  %967 = vmatmul.f32.gmra.mxu0 %v889
  %v968 = vpop.f32.mrf.mxu0
  %v969 = vadd.f32 0.0, %v968
  %970 = vmatmul.f32.gmra.mxu0 %v892
  %v971 = vpop.f32.mrf.mxu0
  %v972 = vadd.f32 0.0, %v971
  %973 = vmatmul.f32.gmra.mxu0 %v895
  %v974 = vpop.f32.mrf.mxu0
  %v975 = vadd.f32 0.0, %v974
  %976 = vmatmul.f32.gmra.mxu0 %v898
  %v977 = vpop.f32.mrf.mxu0
  %v978 = vadd.f32 0.0, %v977
  %979 = vmatmul.f32.gmra.mxu0 %v901
  %v980 = vpop.f32.mrf.mxu0
  %v981 = vadd.f32 0.0, %v980
  %982 = vdwg.mxu0
  %v983 = vadd.f32 %v817, %v921
  %v984 = vadd.f32 %v818, %v924
  %v985 = vadd.f32 %v819, %v927
  %v986 = vadd.f32 %v820, %v930
  %v987 = vadd.f32 %v821, %v933
  %v988 = vadd.f32 %v822, %v936
  %v989 = vadd.f32 %v823, %v939
  %v990 = vadd.f32 %v824, %v942
  %v991 = vadd.f32 %v825, %v945
  %v992 = vadd.f32 %v826, %v948
  %v993 = vadd.f32 %v827, %v951
  %v994 = vadd.f32 %v828, %v954
  %v995 = vadd.f32 %v829, %v957
  %v996 = vadd.f32 %v830, %v960
  %v997 = vadd.f32 %v831, %v963
  %v998 = vadd.f32 %v832, %v966
  %v999 = vadd.f32 %v833, %v969
  %v1000 = vadd.f32 %v834, %v972
  %v1001 = vadd.f32 %v835, %v975
  %v1002 = vadd.f32 %v836, %v978
  %v1003 = vadd.f32 %v837, %v981
  %s1004 = scalar_lea.vmem %s1, 40
  %v1005 = vld [vmem:[%s1004] sm:$0xff]
  %v1006 = vrot.slane %v131, 1
  %v1007 = vrot.slane %v132, 1
  %v1008 = vsel %vm487, %v1006, %v1007
  %v1009 = vrot.slane %v133, 1
  %v1010 = vsel %vm487, %v1007, %v1009
  %v1011 = vrot.slane %v134, 1
  %v1012 = vsel %vm487, %v1009, %v1011
  %v1013 = vrot.slane %v135, 1
  %v1014 = vsel %vm487, %v1011, %v1013
  %v1015 = vrot.slane %v136, 1
  %v1016 = vsel %vm487, %v1013, %v1015
  %v1017 = vrot.slane %v137, 1
  %v1018 = vsel %vm487, %v1015, %v1017
  %v1019 = vrot.slane %v138, 1
  %v1020 = vsel %vm487, %v1017, %v1019
  %v1021 = vrot.slane %v139, 1
  %v1022 = vsel %vm487, %v1019, %v1021
  %v1023 = vrot.slane %v140, 1
  %v1024 = vsel %vm487, %v1021, %v1023
  %v1025 = vrot.slane %v141, 1
  %v1026 = vsel %vm487, %v1023, %v1025
  %v1027 = vrot.slane %v142, 1
  %v1028 = vsel %vm487, %v1025, %v1027
  %v1029 = vrot.slane %v143, 1
  %v1030 = vsel %vm487, %v1027, %v1029
  %v1031 = vrot.slane %v144, 1
  %v1032 = vsel %vm487, %v1029, %v1031
  %v1033 = vrot.slane %v145, 1
  %v1034 = vsel %vm487, %v1031, %v1033
  %v1035 = vrot.slane %v146, 1
  %v1036 = vsel %vm487, %v1033, %v1035
  %v1037 = vrot.slane %v147, 1
  %v1038 = vsel %vm487, %v1035, %v1037
  %v1039 = vrot.slane %v148, 1
  %v1040 = vsel %vm487, %v1037, %v1039
  %v1041 = vrot.slane %v149, 1
  %v1042 = vsel %vm487, %v1039, %v1041
  %v1043 = vrot.slane %v150, 1
  %v1044 = vsel %vm487, %v1041, %v1043
  %v1045 = vrot.slane %v151, 1
  %v1046 = vsel %vm487, %v1043, %v1045
  %v1047 = vsel %vm198, %v1008, 0
  %v1049 = vsel %vm198, %v1010, 0
  %v1051 = vsel %vm198, %v1012, 0
  %v1053 = vsel %vm198, %v1014, 0
  %v1055 = vsel %vm198, %v1016, 0
  %v1057 = vsel %vm198, %v1018, 0
  %v1059 = vsel %vm198, %v1020, 0
  %v1061 = vsel %vm198, %v1022, 0
  %v1063 = vsel %vm198, %v1024, 0
  %v1065 = vsel %vm198, %v1026, 0
  %v1067 = vsel %vm198, %v1028, 0
  %v1069 = vsel %vm198, %v1030, 0
  %v1071 = vsel %vm198, %v1032, 0
  %v1073 = vsel %vm198, %v1034, 0
  %v1075 = vsel %vm198, %v1036, 0
  %v1077 = vsel %vm198, %v1038, 0
  %v1079 = vsel %vm198, %v1040, 0
  %v1081 = vsel %vm198, %v1042, 0
  %v1083 = vsel %vm198, %v1044, 0
  %v1085 = vsel %vm198, %v1046, 0
  %v1087 = vsel %vm198, %v1045, 0
  %1089 = vmatpush.msra.mxu0 0.0
  %1090 = vmatpush.msra.mxu0 0.0
  %1091 = vmatpush.msra.mxu0 0.0
  %1092 = vmatpush.msra.mxu0 0.0
  %1093 = vmatpush.msra.mxu0 0.0
  %1094 = vmatpush.msra.mxu0 0.0
  %1095 = vmatpush.msra.mxu0 0.0
  %1096 = vmatpush.msra.mxu0 0.0
  %1097 = vmatpush.msra.mxu0 0.0
  %1098 = vmatpush.msra.mxu0 0.0
  %1099 = vmatpush.msra.mxu0 0.0
  %1100 = vmatpush.msra.mxu0 0.0
  %1101 = vmatpush.msra.mxu0 0.0
  %1102 = vmatpush.msra.mxu0 0.0
  %1103 = vmatpush.msra.mxu0 0.0
  %1104 = vmatpush.msra.mxu0 %v1005
  %1105 = vmatmul.f32.gmra.mxu0 %v1047
  %v1106 = vpop.f32.mrf.mxu0
  %v1107 = vadd.f32 0.0, %v1106
  %1108 = vmatmul.f32.gmra.mxu0 %v1049
  %v1109 = vpop.f32.mrf.mxu0
  %v1110 = vadd.f32 0.0, %v1109
  %1111 = vmatmul.f32.gmra.mxu0 %v1051
  %v1112 = vpop.f32.mrf.mxu0
  %v1113 = vadd.f32 0.0, %v1112
  %1114 = vmatmul.f32.gmra.mxu0 %v1053
  %v1115 = vpop.f32.mrf.mxu0
  %v1116 = vadd.f32 0.0, %v1115
  %1117 = vmatmul.f32.gmra.mxu0 %v1055
  %v1118 = vpop.f32.mrf.mxu0
  %v1119 = vadd.f32 0.0, %v1118
  %1120 = vmatmul.f32.gmra.mxu0 %v1057
  %v1121 = vpop.f32.mrf.mxu0
  %v1122 = vadd.f32 0.0, %v1121
  %1123 = vmatmul.f32.gmra.mxu0 %v1059
  %v1124 = vpop.f32.mrf.mxu0
  %v1125 = vadd.f32 0.0, %v1124
  %1126 = vmatmul.f32.gmra.mxu0 %v1061
  %v1127 = vpop.f32.mrf.mxu0
  %v1128 = vadd.f32 0.0, %v1127
  %1129 = vmatmul.f32.gmra.mxu0 %v1063
  %v1130 = vpop.f32.mrf.mxu0
  %v1131 = vadd.f32 0.0, %v1130
  %1132 = vmatmul.f32.gmra.mxu0 %v1065
  %v1133 = vpop.f32.mrf.mxu0
  %v1134 = vadd.f32 0.0, %v1133
  %1135 = vmatmul.f32.gmra.mxu0 %v1067
  %v1136 = vpop.f32.mrf.mxu0
  %v1137 = vadd.f32 0.0, %v1136
  %1138 = vmatmul.f32.gmra.mxu0 %v1069
  %v1139 = vpop.f32.mrf.mxu0
  %v1140 = vadd.f32 0.0, %v1139
  %1141 = vmatmul.f32.gmra.mxu0 %v1071
  %v1142 = vpop.f32.mrf.mxu0
  %v1143 = vadd.f32 0.0, %v1142
  %1144 = vmatmul.f32.gmra.mxu0 %v1073
  %v1145 = vpop.f32.mrf.mxu0
  %v1146 = vadd.f32 0.0, %v1145
  %1147 = vmatmul.f32.gmra.mxu0 %v1075
  %v1148 = vpop.f32.mrf.mxu0
  %v1149 = vadd.f32 0.0, %v1148
  %1150 = vmatmul.f32.gmra.mxu0 %v1077
  %v1151 = vpop.f32.mrf.mxu0
  %v1152 = vadd.f32 0.0, %v1151
  %1153 = vmatmul.f32.gmra.mxu0 %v1079
  %v1154 = vpop.f32.mrf.mxu0
  %v1155 = vadd.f32 0.0, %v1154
  %1156 = vmatmul.f32.gmra.mxu0 %v1081
  %v1157 = vpop.f32.mrf.mxu0
  %v1158 = vadd.f32 0.0, %v1157
  %1159 = vmatmul.f32.gmra.mxu0 %v1083
  %v1160 = vpop.f32.mrf.mxu0
  %v1161 = vadd.f32 0.0, %v1160
  %1162 = vmatmul.f32.gmra.mxu0 %v1085
  %v1163 = vpop.f32.mrf.mxu0
  %v1164 = vadd.f32 0.0, %v1163
  %1165 = vmatmul.f32.gmra.mxu0 %v1087
  %v1166 = vpop.f32.mrf.mxu0
  %v1167 = vadd.f32 0.0, %v1166
  %1168 = vdwg.mxu0
  %v1169 = vadd.f32 %v983, %v1107
  %v1170 = vadd.f32 %v984, %v1110
  %v1171 = vadd.f32 %v985, %v1113
  %v1172 = vadd.f32 %v986, %v1116
  %v1173 = vadd.f32 %v987, %v1119
  %v1174 = vadd.f32 %v988, %v1122
  %v1175 = vadd.f32 %v989, %v1125
  %v1176 = vadd.f32 %v990, %v1128
  %v1177 = vadd.f32 %v991, %v1131
  %v1178 = vadd.f32 %v992, %v1134
  %v1179 = vadd.f32 %v993, %v1137
  %v1180 = vadd.f32 %v994, %v1140
  %v1181 = vadd.f32 %v995, %v1143
  %v1182 = vadd.f32 %v996, %v1146
  %v1183 = vadd.f32 %v997, %v1149
  %v1184 = vadd.f32 %v998, %v1152
  %v1185 = vadd.f32 %v999, %v1155
  %v1186 = vadd.f32 %v1000, %v1158
  %v1187 = vadd.f32 %v1001, %v1161
  %v1188 = vadd.f32 %v1002, %v1164
  %v1189 = vadd.f32 %v1003, %v1167
  %s1190 = scalar_lea.vmem %s1, 48
  %v1191 = vld [vmem:[%s1190] sm:$0xff]
  %v1193 = vrot.slane %v63, 1
  %v1194 = vsel %vm487, %v527, %v1193
  %v1195 = vsel %vm198, %v1194, 0
  %v1197 = vsel %vm198, %v1193, 0
  %1199 = vmatpush.msra.mxu0 0.0
  %1200 = vmatpush.msra.mxu0 0.0
  %1201 = vmatpush.msra.mxu0 0.0
  %1202 = vmatpush.msra.mxu0 0.0
  %1203 = vmatpush.msra.mxu0 0.0
  %1204 = vmatpush.msra.mxu0 0.0
  %1205 = vmatpush.msra.mxu0 0.0
  %1206 = vmatpush.msra.mxu0 0.0
  %1207 = vmatpush.msra.mxu0 0.0
  %1208 = vmatpush.msra.mxu0 0.0
  %1209 = vmatpush.msra.mxu0 0.0
  %1210 = vmatpush.msra.mxu0 0.0
  %1211 = vmatpush.msra.mxu0 0.0
  %1212 = vmatpush.msra.mxu0 0.0
  %1213 = vmatpush.msra.mxu0 0.0
  %1214 = vmatpush.msra.mxu0 %v1191
  %1215 = vmatmul.f32.gmra.mxu0 %v531
  %v1216 = vpop.f32.mrf.mxu0
  %v1217 = vadd.f32 0.0, %v1216
  %1218 = vmatmul.f32.gmra.mxu0 %v533
  %v1219 = vpop.f32.mrf.mxu0
  %v1220 = vadd.f32 0.0, %v1219
  %1221 = vmatmul.f32.gmra.mxu0 %v535
  %v1222 = vpop.f32.mrf.mxu0
  %v1223 = vadd.f32 0.0, %v1222
  %1224 = vmatmul.f32.gmra.mxu0 %v537
  %v1225 = vpop.f32.mrf.mxu0
  %v1226 = vadd.f32 0.0, %v1225
  %1227 = vmatmul.f32.gmra.mxu0 %v539
  %v1228 = vpop.f32.mrf.mxu0
  %v1229 = vadd.f32 0.0, %v1228
  %1230 = vmatmul.f32.gmra.mxu0 %v541
  %v1231 = vpop.f32.mrf.mxu0
  %v1232 = vadd.f32 0.0, %v1231
  %1233 = vmatmul.f32.gmra.mxu0 %v543
  %v1234 = vpop.f32.mrf.mxu0
  %v1235 = vadd.f32 0.0, %v1234
  %1236 = vmatmul.f32.gmra.mxu0 %v545
  %v1237 = vpop.f32.mrf.mxu0
  %v1238 = vadd.f32 0.0, %v1237
  %1239 = vmatmul.f32.gmra.mxu0 %v547
  %v1240 = vpop.f32.mrf.mxu0
  %v1241 = vadd.f32 0.0, %v1240
  %1242 = vmatmul.f32.gmra.mxu0 %v549
  %v1243 = vpop.f32.mrf.mxu0
  %v1244 = vadd.f32 0.0, %v1243
  %1245 = vmatmul.f32.gmra.mxu0 %v551
  %v1246 = vpop.f32.mrf.mxu0
  %v1247 = vadd.f32 0.0, %v1246
  %1248 = vmatmul.f32.gmra.mxu0 %v553
  %v1249 = vpop.f32.mrf.mxu0
  %v1250 = vadd.f32 0.0, %v1249
  %1251 = vmatmul.f32.gmra.mxu0 %v555
  %v1252 = vpop.f32.mrf.mxu0
  %v1253 = vadd.f32 0.0, %v1252
  %1254 = vmatmul.f32.gmra.mxu0 %v557
  %v1255 = vpop.f32.mrf.mxu0
  %v1256 = vadd.f32 0.0, %v1255
  %1257 = vmatmul.f32.gmra.mxu0 %v559
  %v1258 = vpop.f32.mrf.mxu0
  %v1259 = vadd.f32 0.0, %v1258
  %1260 = vmatmul.f32.gmra.mxu0 %v561
  %v1261 = vpop.f32.mrf.mxu0
  %v1262 = vadd.f32 0.0, %v1261
  %1263 = vmatmul.f32.gmra.mxu0 %v563
  %v1264 = vpop.f32.mrf.mxu0
  %v1265 = vadd.f32 0.0, %v1264
  %1266 = vmatmul.f32.gmra.mxu0 %v565
  %v1267 = vpop.f32.mrf.mxu0
  %v1268 = vadd.f32 0.0, %v1267
  %1269 = vmatmul.f32.gmra.mxu0 %v567
  %v1270 = vpop.f32.mrf.mxu0
  %v1271 = vadd.f32 0.0, %v1270
  %1272 = vmatmul.f32.gmra.mxu0 %v1195
  %v1273 = vpop.f32.mrf.mxu0
  %v1274 = vadd.f32 0.0, %v1273
  %1275 = vmatmul.f32.gmra.mxu0 %v1197
  %v1276 = vpop.f32.mrf.mxu0
  %v1277 = vadd.f32 0.0, %v1276
  %1278 = vdwg.mxu0
  %v1279 = vadd.f32 %v1169, %v1217
  %v1280 = vadd.f32 %v1170, %v1220
  %v1281 = vadd.f32 %v1171, %v1223
  %v1282 = vadd.f32 %v1172, %v1226
  %v1283 = vadd.f32 %v1173, %v1229
  %v1284 = vadd.f32 %v1174, %v1232
  %v1285 = vadd.f32 %v1175, %v1235
  %v1286 = vadd.f32 %v1176, %v1238
  %v1287 = vadd.f32 %v1177, %v1241
  %v1288 = vadd.f32 %v1178, %v1244
  %v1289 = vadd.f32 %v1179, %v1247
  %v1290 = vadd.f32 %v1180, %v1250
  %v1291 = vadd.f32 %v1181, %v1253
  %v1292 = vadd.f32 %v1182, %v1256
  %v1293 = vadd.f32 %v1183, %v1259
  %v1294 = vadd.f32 %v1184, %v1262
  %v1295 = vadd.f32 %v1185, %v1265
  %v1296 = vadd.f32 %v1186, %v1268
  %v1297 = vadd.f32 %v1187, %v1271
  %v1298 = vadd.f32 %v1188, %v1274
  %v1299 = vadd.f32 %v1189, %v1277
  %s1300 = scalar_lea.vmem %s1, 56
  %v1301 = vld [vmem:[%s1300] sm:$0xff]
  %v1303 = vrot.slane %v88, 1
  %v1304 = vrot.slane %v89, 1
  %v1305 = vsel %vm487, %v1303, %v1304
  %v1306 = vrot.slane %v90, 1
  %v1307 = vsel %vm487, %v1304, %v1306
  %v1308 = vrot.slane %v91, 1
  %v1309 = vsel %vm487, %v1306, %v1308
  %v1310 = vrot.slane %v92, 1
  %v1311 = vsel %vm487, %v1308, %v1310
  %v1312 = vrot.slane %v93, 1
  %v1313 = vsel %vm487, %v1310, %v1312
  %v1314 = vrot.slane %v94, 1
  %v1315 = vsel %vm487, %v1312, %v1314
  %v1316 = vrot.slane %v95, 1
  %v1317 = vsel %vm487, %v1314, %v1316
  %v1318 = vrot.slane %v96, 1
  %v1319 = vsel %vm487, %v1316, %v1318
  %v1320 = vrot.slane %v97, 1
  %v1321 = vsel %vm487, %v1318, %v1320
  %v1322 = vrot.slane %v98, 1
  %v1323 = vsel %vm487, %v1320, %v1322
  %v1324 = vrot.slane %v99, 1
  %v1325 = vsel %vm487, %v1322, %v1324
  %v1326 = vrot.slane %v100, 1
  %v1327 = vsel %vm487, %v1324, %v1326
  %v1328 = vrot.slane %v101, 1
  %v1329 = vsel %vm487, %v1326, %v1328
  %v1330 = vrot.slane %v102, 1
  %v1331 = vsel %vm487, %v1328, %v1330
  %v1332 = vrot.slane %v103, 1
  %v1333 = vsel %vm487, %v1330, %v1332
  %v1334 = vrot.slane %v104, 1
  %v1335 = vsel %vm487, %v1332, %v1334
  %v1336 = vrot.slane %v105, 1
  %v1337 = vsel %vm487, %v1334, %v1336
  %v1338 = vrot.slane %v106, 1
  %v1339 = vsel %vm487, %v1336, %v1338
  %v1340 = vrot.slane %v107, 1
  %v1341 = vsel %vm487, %v1338, %v1340
  %v1342 = vrot.slane %v108, 1
  %v1343 = vsel %vm487, %v1340, %v1342
  %v1344 = vsel %vm198, %v1305, 0
  %v1346 = vsel %vm198, %v1307, 0
  %v1348 = vsel %vm198, %v1309, 0
  %v1350 = vsel %vm198, %v1311, 0
  %v1352 = vsel %vm198, %v1313, 0
  %v1354 = vsel %vm198, %v1315, 0
  %v1356 = vsel %vm198, %v1317, 0
  %v1358 = vsel %vm198, %v1319, 0
  %v1360 = vsel %vm198, %v1321, 0
  %v1362 = vsel %vm198, %v1323, 0
  %v1364 = vsel %vm198, %v1325, 0
  %v1366 = vsel %vm198, %v1327, 0
  %v1368 = vsel %vm198, %v1329, 0
  %v1370 = vsel %vm198, %v1331, 0
  %v1372 = vsel %vm198, %v1333, 0
  %v1374 = vsel %vm198, %v1335, 0
  %v1376 = vsel %vm198, %v1337, 0
  %v1378 = vsel %vm198, %v1339, 0
  %v1380 = vsel %vm198, %v1341, 0
  %v1382 = vsel %vm198, %v1343, 0
  %v1384 = vsel %vm198, %v1342, 0
  %1386 = vmatpush.msra.mxu0 0.0
  %1387 = vmatpush.msra.mxu0 0.0
  %1388 = vmatpush.msra.mxu0 0.0
  %1389 = vmatpush.msra.mxu0 0.0
  %1390 = vmatpush.msra.mxu0 0.0
  %1391 = vmatpush.msra.mxu0 0.0
  %1392 = vmatpush.msra.mxu0 0.0
  %1393 = vmatpush.msra.mxu0 0.0
  %1394 = vmatpush.msra.mxu0 0.0
  %1395 = vmatpush.msra.mxu0 0.0
  %1396 = vmatpush.msra.mxu0 0.0
  %1397 = vmatpush.msra.mxu0 0.0
  %1398 = vmatpush.msra.mxu0 0.0
  %1399 = vmatpush.msra.mxu0 0.0
  %1400 = vmatpush.msra.mxu0 0.0
  %1401 = vmatpush.msra.mxu0 %v1301
  %1402 = vmatmul.f32.gmra.mxu0 %v1344
  %v1403 = vpop.f32.mrf.mxu0
  %v1404 = vadd.f32 0.0, %v1403
  %1405 = vmatmul.f32.gmra.mxu0 %v1346
  %v1406 = vpop.f32.mrf.mxu0
  %v1407 = vadd.f32 0.0, %v1406
  %1408 = vmatmul.f32.gmra.mxu0 %v1348
  %v1409 = vpop.f32.mrf.mxu0
  %v1410 = vadd.f32 0.0, %v1409
  %1411 = vmatmul.f32.gmra.mxu0 %v1350
  %v1412 = vpop.f32.mrf.mxu0
  %v1413 = vadd.f32 0.0, %v1412
  %1414 = vmatmul.f32.gmra.mxu0 %v1352
  %v1415 = vpop.f32.mrf.mxu0
  %v1416 = vadd.f32 0.0, %v1415
  %1417 = vmatmul.f32.gmra.mxu0 %v1354
  %v1418 = vpop.f32.mrf.mxu0
  %v1419 = vadd.f32 0.0, %v1418
  %1420 = vmatmul.f32.gmra.mxu0 %v1356
  %v1421 = vpop.f32.mrf.mxu0
  %v1422 = vadd.f32 0.0, %v1421
  %1423 = vmatmul.f32.gmra.mxu0 %v1358
  %v1424 = vpop.f32.mrf.mxu0
  %v1425 = vadd.f32 0.0, %v1424
  %1426 = vmatmul.f32.gmra.mxu0 %v1360
  %v1427 = vpop.f32.mrf.mxu0
  %v1428 = vadd.f32 0.0, %v1427
  %1429 = vmatmul.f32.gmra.mxu0 %v1362
  %v1430 = vpop.f32.mrf.mxu0
  %v1431 = vadd.f32 0.0, %v1430
  %1432 = vmatmul.f32.gmra.mxu0 %v1364
  %v1433 = vpop.f32.mrf.mxu0
  %v1434 = vadd.f32 0.0, %v1433
  %1435 = vmatmul.f32.gmra.mxu0 %v1366
  %v1436 = vpop.f32.mrf.mxu0
  %v1437 = vadd.f32 0.0, %v1436
  %1438 = vmatmul.f32.gmra.mxu0 %v1368
  %v1439 = vpop.f32.mrf.mxu0
  %v1440 = vadd.f32 0.0, %v1439
  %1441 = vmatmul.f32.gmra.mxu0 %v1370
  %v1442 = vpop.f32.mrf.mxu0
  %v1443 = vadd.f32 0.0, %v1442
  %1444 = vmatmul.f32.gmra.mxu0 %v1372
  %v1445 = vpop.f32.mrf.mxu0
  %v1446 = vadd.f32 0.0, %v1445
  %1447 = vmatmul.f32.gmra.mxu0 %v1374
  %v1448 = vpop.f32.mrf.mxu0
  %v1449 = vadd.f32 0.0, %v1448
  %1450 = vmatmul.f32.gmra.mxu0 %v1376
  %v1451 = vpop.f32.mrf.mxu0
  %v1452 = vadd.f32 0.0, %v1451
  %1453 = vmatmul.f32.gmra.mxu0 %v1378
  %v1454 = vpop.f32.mrf.mxu0
  %v1455 = vadd.f32 0.0, %v1454
  %1456 = vmatmul.f32.gmra.mxu0 %v1380
  %v1457 = vpop.f32.mrf.mxu0
  %v1458 = vadd.f32 0.0, %v1457
  %1459 = vmatmul.f32.gmra.mxu0 %v1382
  %v1460 = vpop.f32.mrf.mxu0
  %v1461 = vadd.f32 0.0, %v1460
  %1462 = vmatmul.f32.gmra.mxu0 %v1384
  %v1463 = vpop.f32.mrf.mxu0
  %v1464 = vadd.f32 0.0, %v1463
  %1465 = vdwg.mxu0
  %v1466 = vadd.f32 %v1279, %v1404
  %v1467 = vadd.f32 %v1280, %v1407
  %v1468 = vadd.f32 %v1281, %v1410
  %v1469 = vadd.f32 %v1282, %v1413
  %v1470 = vadd.f32 %v1283, %v1416
  %v1471 = vadd.f32 %v1284, %v1419
  %v1472 = vadd.f32 %v1285, %v1422
  %v1473 = vadd.f32 %v1286, %v1425
  %v1474 = vadd.f32 %v1287, %v1428
  %v1475 = vadd.f32 %v1288, %v1431
  %v1476 = vadd.f32 %v1289, %v1434
  %v1477 = vadd.f32 %v1290, %v1437
  %v1478 = vadd.f32 %v1291, %v1440
  %v1479 = vadd.f32 %v1292, %v1443
  %v1480 = vadd.f32 %v1293, %v1446
  %v1481 = vadd.f32 %v1294, %v1449
  %v1482 = vadd.f32 %v1295, %v1452
  %v1483 = vadd.f32 %v1296, %v1455
  %v1484 = vadd.f32 %v1297, %v1458
  %v1485 = vadd.f32 %v1298, %v1461
  %v1486 = vadd.f32 %v1299, %v1464
  %s1487 = scalar_lea.vmem %s1, 64
  %v1488 = vld [vmem:[%s1487] sm:$0xff]
  %vm1489 = vcmask 1045504
  %v1490 = vrot.slane %v43, 2
  %v1491 = vrot.slane %v44, 2
  %v1492 = vsel %vm1489, %v1490, %v1491
  %v1493 = vrot.slane %v45, 2
  %v1494 = vsel %vm1489, %v1491, %v1493
  %v1495 = vrot.slane %v46, 2
  %v1496 = vsel %vm1489, %v1493, %v1495
  %v1497 = vrot.slane %v47, 2
  %v1498 = vsel %vm1489, %v1495, %v1497
  %v1499 = vrot.slane %v48, 2
  %v1500 = vsel %vm1489, %v1497, %v1499
  %v1501 = vrot.slane %v49, 2
  %v1502 = vsel %vm1489, %v1499, %v1501
  %v1503 = vrot.slane %v50, 2
  %v1504 = vsel %vm1489, %v1501, %v1503
  %v1505 = vrot.slane %v51, 2
  %v1506 = vsel %vm1489, %v1503, %v1505
  %v1507 = vrot.slane %v52, 2
  %v1508 = vsel %vm1489, %v1505, %v1507
  %v1509 = vrot.slane %v53, 2
  %v1510 = vsel %vm1489, %v1507, %v1509
  %v1511 = vrot.slane %v54, 2
  %v1512 = vsel %vm1489, %v1509, %v1511
  %v1513 = vrot.slane %v55, 2
  %v1514 = vsel %vm1489, %v1511, %v1513
  %v1515 = vrot.slane %v56, 2
  %v1516 = vsel %vm1489, %v1513, %v1515
  %v1517 = vrot.slane %v57, 2
  %v1518 = vsel %vm1489, %v1515, %v1517
  %v1519 = vrot.slane %v58, 2
  %v1520 = vsel %vm1489, %v1517, %v1519
  %v1521 = vrot.slane %v59, 2
  %v1522 = vsel %vm1489, %v1519, %v1521
  %v1523 = vrot.slane %v60, 2
  %v1524 = vsel %vm1489, %v1521, %v1523
  %v1525 = vrot.slane %v61, 2
  %v1526 = vsel %vm1489, %v1523, %v1525
  %v1527 = vrot.slane %v62, 2
  %v1528 = vsel %vm1489, %v1525, %v1527
  %v1529 = vrot.slane %v63, 2
  %v1530 = vsel %vm1489, %v1527, %v1529
  %v1531 = vsel %vm198, %v1492, 0
  %v1533 = vsel %vm198, %v1494, 0
  %v1535 = vsel %vm198, %v1496, 0
  %v1537 = vsel %vm198, %v1498, 0
  %v1539 = vsel %vm198, %v1500, 0
  %v1541 = vsel %vm198, %v1502, 0
  %v1543 = vsel %vm198, %v1504, 0
  %v1545 = vsel %vm198, %v1506, 0
  %v1547 = vsel %vm198, %v1508, 0
  %v1549 = vsel %vm198, %v1510, 0
  %v1551 = vsel %vm198, %v1512, 0
  %v1553 = vsel %vm198, %v1514, 0
  %v1555 = vsel %vm198, %v1516, 0
  %v1557 = vsel %vm198, %v1518, 0
  %v1559 = vsel %vm198, %v1520, 0
  %v1561 = vsel %vm198, %v1522, 0
  %v1563 = vsel %vm198, %v1524, 0
  %v1565 = vsel %vm198, %v1526, 0
  %v1567 = vsel %vm198, %v1528, 0
  %v1569 = vsel %vm198, %v1530, 0
  %v1571 = vsel %vm198, %v1529, 0
  %1573 = vmatpush.msra.mxu0 0.0
  %1574 = vmatpush.msra.mxu0 0.0
  %1575 = vmatpush.msra.mxu0 0.0
  %1576 = vmatpush.msra.mxu0 0.0
  %1577 = vmatpush.msra.mxu0 0.0
  %1578 = vmatpush.msra.mxu0 0.0
  %1579 = vmatpush.msra.mxu0 0.0
  %1580 = vmatpush.msra.mxu0 0.0
  %1581 = vmatpush.msra.mxu0 0.0
  %1582 = vmatpush.msra.mxu0 0.0
  %1583 = vmatpush.msra.mxu0 0.0
  %1584 = vmatpush.msra.mxu0 0.0
  %1585 = vmatpush.msra.mxu0 0.0
  %1586 = vmatpush.msra.mxu0 0.0
  %1587 = vmatpush.msra.mxu0 0.0
  %1588 = vmatpush.msra.mxu0 %v1488
  %1589 = vmatmul.f32.gmra.mxu0 %v1531
  %v1590 = vpop.f32.mrf.mxu0
  %v1591 = vadd.f32 0.0, %v1590
  %1592 = vmatmul.f32.gmra.mxu0 %v1533
  %v1593 = vpop.f32.mrf.mxu0
  %v1594 = vadd.f32 0.0, %v1593
  %1595 = vmatmul.f32.gmra.mxu0 %v1535
  %v1596 = vpop.f32.mrf.mxu0
  %v1597 = vadd.f32 0.0, %v1596
  %1598 = vmatmul.f32.gmra.mxu0 %v1537
  %v1599 = vpop.f32.mrf.mxu0
  %v1600 = vadd.f32 0.0, %v1599
  %1601 = vmatmul.f32.gmra.mxu0 %v1539
  %v1602 = vpop.f32.mrf.mxu0
  %v1603 = vadd.f32 0.0, %v1602
  %1604 = vmatmul.f32.gmra.mxu0 %v1541
  %v1605 = vpop.f32.mrf.mxu0
  %v1606 = vadd.f32 0.0, %v1605
  %1607 = vmatmul.f32.gmra.mxu0 %v1543
  %v1608 = vpop.f32.mrf.mxu0
  %v1609 = vadd.f32 0.0, %v1608
  %1610 = vmatmul.f32.gmra.mxu0 %v1545
  %v1611 = vpop.f32.mrf.mxu0
  %v1612 = vadd.f32 0.0, %v1611
  %1613 = vmatmul.f32.gmra.mxu0 %v1547
  %v1614 = vpop.f32.mrf.mxu0
  %v1615 = vadd.f32 0.0, %v1614
  %1616 = vmatmul.f32.gmra.mxu0 %v1549
  %v1617 = vpop.f32.mrf.mxu0
  %v1618 = vadd.f32 0.0, %v1617
  %1619 = vmatmul.f32.gmra.mxu0 %v1551
  %v1620 = vpop.f32.mrf.mxu0
  %v1621 = vadd.f32 0.0, %v1620
  %1622 = vmatmul.f32.gmra.mxu0 %v1553
  %v1623 = vpop.f32.mrf.mxu0
  %v1624 = vadd.f32 0.0, %v1623
  %1625 = vmatmul.f32.gmra.mxu0 %v1555
  %v1626 = vpop.f32.mrf.mxu0
  %v1627 = vadd.f32 0.0, %v1626
  %1628 = vmatmul.f32.gmra.mxu0 %v1557
  %v1629 = vpop.f32.mrf.mxu0
  %v1630 = vadd.f32 0.0, %v1629
  %1631 = vmatmul.f32.gmra.mxu0 %v1559
  %v1632 = vpop.f32.mrf.mxu0
  %v1633 = vadd.f32 0.0, %v1632
  %1634 = vmatmul.f32.gmra.mxu0 %v1561
  %v1635 = vpop.f32.mrf.mxu0
  %v1636 = vadd.f32 0.0, %v1635
  %1637 = vmatmul.f32.gmra.mxu0 %v1563
  %v1638 = vpop.f32.mrf.mxu0
  %v1639 = vadd.f32 0.0, %v1638
  %1640 = vmatmul.f32.gmra.mxu0 %v1565
  %v1641 = vpop.f32.mrf.mxu0
  %v1642 = vadd.f32 0.0, %v1641
  %1643 = vmatmul.f32.gmra.mxu0 %v1567
  %v1644 = vpop.f32.mrf.mxu0
  %v1645 = vadd.f32 0.0, %v1644
  %1646 = vmatmul.f32.gmra.mxu0 %v1569
  %v1647 = vpop.f32.mrf.mxu0
  %v1648 = vadd.f32 0.0, %v1647
  %1649 = vmatmul.f32.gmra.mxu0 %v1571
  %v1650 = vpop.f32.mrf.mxu0
  %v1651 = vadd.f32 0.0, %v1650
  %1652 = vdwg.mxu0
  %v1653 = vadd.f32 %v1466, %v1591
  %v1654 = vadd.f32 %v1467, %v1594
  %v1655 = vadd.f32 %v1468, %v1597
  %v1656 = vadd.f32 %v1469, %v1600
  %v1657 = vadd.f32 %v1470, %v1603
  %v1658 = vadd.f32 %v1471, %v1606
  %v1659 = vadd.f32 %v1472, %v1609
  %v1660 = vadd.f32 %v1473, %v1612
  %v1661 = vadd.f32 %v1474, %v1615
  %v1662 = vadd.f32 %v1475, %v1618
  %v1663 = vadd.f32 %v1476, %v1621
  %v1664 = vadd.f32 %v1477, %v1624
  %v1665 = vadd.f32 %v1478, %v1627
  %v1666 = vadd.f32 %v1479, %v1630
  %v1667 = vadd.f32 %v1480, %v1633
  %v1668 = vadd.f32 %v1481, %v1636
  %v1669 = vadd.f32 %v1482, %v1639
  %v1670 = vadd.f32 %v1483, %v1642
  %v1671 = vadd.f32 %v1484, %v1645
  %v1672 = vadd.f32 %v1485, %v1648
  %v1673 = vadd.f32 %v1486, %v1651
  %v1674 = vld [vmem:[%s4] sm:$0xff]
  %v1675 = vld [vmem:[%s4 + $0x8] sm:$0xff]
  %v1676 = vld [vmem:[%s4 + $0x10] sm:$0xff]
  %v1677 = vld [vmem:[%s4 + $0x18] sm:$0xff]
  %v1678 = vld [vmem:[%s4 + $0x20] sm:$0xff]
  %v1679 = vld [vmem:[%s4 + $0x28] sm:$0xff]
  %v1680 = vld [vmem:[%s4 + $0x30] sm:$0xff]
  %v1681 = vld [vmem:[%s4 + $0x38] sm:$0xff]
  %v1682 = vld [vmem:[%s4 + $0x40] sm:$0xff]
  %v1683 = vld [vmem:[%s4 + $0x48] sm:$0xff]
  %v1684 = vld [vmem:[%s4 + $0x50] sm:$0xff]
  %v1685 = vld [vmem:[%s4 + $0x58] sm:$0xff]
  %v1686 = vld [vmem:[%s4 + $0x60] sm:$0xff]
  %v1687 = vld [vmem:[%s4 + $0x68] sm:$0xff]
  %v1688 = vld [vmem:[%s4 + $0x70] sm:$0xff]
  %v1689 = vld [vmem:[%s4 + $0x78] sm:$0xff]
  %v1690 = vld [vmem:[%s4 + $0x80] sm:$0xff]
  %v1691 = vld [vmem:[%s4 + $0x88] sm:$0xff]
  %v1692 = vld [vmem:[%s4 + $0x90] sm:$0xff]
  %v1693 = vld [vmem:[%s4 + $0x98] sm:$0xff]
  %v1694 = vld [vmem:[%s4 + $0xa0] sm:$0x3]
  %1696 = vset.pattern.permute.xlu0 0
  %1697 = vperm.xlu0 %1696, %v1674
  %v1698 = vpop.permute.xlu0 %1697
  %1701 = vset.pattern.permute.xlu0 0
  %1702 = vperm.xlu0 %1701, %v1675
  %v1703 = vpop.permute.xlu0 %1702
  %1706 = vset.pattern.permute.xlu0 0
  %1707 = vperm.xlu0 %1706, %v1676
  %v1708 = vpop.permute.xlu0 %1707
  %1711 = vset.pattern.permute.xlu0 0
  %1712 = vperm.xlu0 %1711, %v1677
  %v1713 = vpop.permute.xlu0 %1712
  %1716 = vset.pattern.permute.xlu0 0
  %1717 = vperm.xlu0 %1716, %v1678
  %v1718 = vpop.permute.xlu0 %1717
  %1721 = vset.pattern.permute.xlu0 0
  %1722 = vperm.xlu0 %1721, %v1679
  %v1723 = vpop.permute.xlu0 %1722
  %1726 = vset.pattern.permute.xlu0 0
  %1727 = vperm.xlu0 %1726, %v1680
  %v1728 = vpop.permute.xlu0 %1727
  %1731 = vset.pattern.permute.xlu0 0
  %1732 = vperm.xlu0 %1731, %v1681
  %v1733 = vpop.permute.xlu0 %1732
  %1736 = vset.pattern.permute.xlu0 0
  %1737 = vperm.xlu0 %1736, %v1682
  %v1738 = vpop.permute.xlu0 %1737
  %1741 = vset.pattern.permute.xlu0 0
  %1742 = vperm.xlu0 %1741, %v1683
  %v1743 = vpop.permute.xlu0 %1742
  %1746 = vset.pattern.permute.xlu0 0
  %1747 = vperm.xlu0 %1746, %v1684
  %v1748 = vpop.permute.xlu0 %1747
  %1751 = vset.pattern.permute.xlu0 0
  %1752 = vperm.xlu0 %1751, %v1685
  %v1753 = vpop.permute.xlu0 %1752
  %1756 = vset.pattern.permute.xlu0 0
  %1757 = vperm.xlu0 %1756, %v1686
  %v1758 = vpop.permute.xlu0 %1757
  %1761 = vset.pattern.permute.xlu0 0
  %1762 = vperm.xlu0 %1761, %v1687
  %v1763 = vpop.permute.xlu0 %1762
  %1766 = vset.pattern.permute.xlu0 0
  %1767 = vperm.xlu0 %1766, %v1688
  %v1768 = vpop.permute.xlu0 %1767
  %1771 = vset.pattern.permute.xlu0 0
  %1772 = vperm.xlu0 %1771, %v1689
  %v1773 = vpop.permute.xlu0 %1772
  %1776 = vset.pattern.permute.xlu0 0
  %1777 = vperm.xlu0 %1776, %v1690
  %v1778 = vpop.permute.xlu0 %1777
  %1781 = vset.pattern.permute.xlu0 0
  %1782 = vperm.xlu0 %1781, %v1691
  %v1783 = vpop.permute.xlu0 %1782
  %1786 = vset.pattern.permute.xlu0 0
  %1787 = vperm.xlu0 %1786, %v1692
  %v1788 = vpop.permute.xlu0 %1787
  %1791 = vset.pattern.permute.xlu0 0
  %1792 = vperm.xlu0 %1791, %v1693
  %v1793 = vpop.permute.xlu0 %1792
  %1796 = vset.pattern.permute.xlu0 0
  %1797 = vperm.xlu0 %1796, %v1694
  %v1798 = vpop.permute.xlu0 %1797
  %v1800 = vmul.f32 %v1653, %v1698
  %v1801 = vmul.f32 %v1654, %v1703
  %v1802 = vmul.f32 %v1655, %v1708
  %v1803 = vmul.f32 %v1656, %v1713
  %v1804 = vmul.f32 %v1657, %v1718
  %v1805 = vmul.f32 %v1658, %v1723
  %v1806 = vmul.f32 %v1659, %v1728
  %v1807 = vmul.f32 %v1660, %v1733
  %v1808 = vmul.f32 %v1661, %v1738
  %v1809 = vmul.f32 %v1662, %v1743
  %v1810 = vmul.f32 %v1663, %v1748
  %v1811 = vmul.f32 %v1664, %v1753
  %v1812 = vmul.f32 %v1665, %v1758
  %v1813 = vmul.f32 %v1666, %v1763
  %v1814 = vmul.f32 %v1667, %v1768
  %v1815 = vmul.f32 %v1668, %v1773
  %v1816 = vmul.f32 %v1669, %v1778
  %v1817 = vmul.f32 %v1670, %v1783
  %v1818 = vmul.f32 %v1671, %v1788
  %v1819 = vmul.f32 %v1672, %v1793
  %v1820 = vmul.f32 %v1673, %v1798
  %vm1821 = vcmask 261120
  %v1822 = vsel %vm1821, %v1800, 0.0
  %v1823 = vsel %vm1821, %v1801, 0.0
  %v1824 = vadd.f32 %v1822, %v1823
  %v1825 = vsel %vm1821, %v1802, 0.0
  %v1826 = vadd.f32 %v1824, %v1825
  %v1827 = vsel %vm1821, %v1803, 0.0
  %v1828 = vadd.f32 %v1826, %v1827
  %v1829 = vsel %vm1821, %v1804, 0.0
  %v1830 = vadd.f32 %v1828, %v1829
  %v1831 = vsel %vm1821, %v1805, 0.0
  %v1832 = vadd.f32 %v1830, %v1831
  %v1833 = vsel %vm1821, %v1806, 0.0
  %v1834 = vadd.f32 %v1832, %v1833
  %v1835 = vsel %vm1821, %v1807, 0.0
  %v1836 = vadd.f32 %v1834, %v1835
  %v1837 = vsel %vm1821, %v1808, 0.0
  %v1838 = vadd.f32 %v1836, %v1837
  %v1839 = vsel %vm1821, %v1809, 0.0
  %v1840 = vadd.f32 %v1838, %v1839
  %v1841 = vsel %vm1821, %v1810, 0.0
  %v1842 = vadd.f32 %v1840, %v1841
  %v1843 = vsel %vm1821, %v1811, 0.0
  %v1844 = vadd.f32 %v1842, %v1843
  %v1845 = vsel %vm1821, %v1812, 0.0
  %v1846 = vadd.f32 %v1844, %v1845
  %v1847 = vsel %vm1821, %v1813, 0.0
  %v1848 = vadd.f32 %v1846, %v1847
  %v1849 = vsel %vm1821, %v1814, 0.0
  %v1850 = vadd.f32 %v1848, %v1849
  %v1851 = vsel %vm1821, %v1815, 0.0
  %v1852 = vadd.f32 %v1850, %v1851
  %v1853 = vsel %vm1821, %v1816, 0.0
  %v1854 = vadd.f32 %v1852, %v1853
  %v1855 = vsel %vm1821, %v1817, 0.0
  %v1856 = vadd.f32 %v1854, %v1855
  %v1857 = vsel %vm1821, %v1818, 0.0
  %v1858 = vadd.f32 %v1856, %v1857
  %v1859 = vsel %vm1821, %v1819, 0.0
  %v1860 = vadd.f32 %v1858, %v1859
  %vm1861 = vcmask 254976
  %v1862 = vsel %vm1861, %v1820, 0.0
  %v1863 = vadd.f32 %v1860, %v1862
  %v1864 = vrot.slane %v1863, 4
  %v1865 = vadd.f32 %v1863, %v1864
  %v1866 = vrot.slane %v1865, 2
  %v1867 = vadd.f32 %v1865, %v1866
  %v1868 = vrot.slane %v1867, 1
  %v1869 = vadd.f32 %v1867, %v1868
  %v1870 = vmul.f32 %v1869, 0.0078125
  %v1871 = vsub.f32 %v1653, %v1870
  %v1872 = vsub.f32 %v1654, %v1870
  %v1873 = vsub.f32 %v1655, %v1870
  %v1874 = vsub.f32 %v1656, %v1870
  %v1875 = vsub.f32 %v1657, %v1870
  %v1876 = vsub.f32 %v1658, %v1870
  %v1877 = vsub.f32 %v1659, %v1870
  %v1878 = vsub.f32 %v1660, %v1870
  %v1879 = vsub.f32 %v1661, %v1870
  %v1880 = vsub.f32 %v1662, %v1870
  %v1881 = vsub.f32 %v1663, %v1870
  %v1882 = vsub.f32 %v1664, %v1870
  %v1883 = vsub.f32 %v1665, %v1870
  %v1884 = vsub.f32 %v1666, %v1870
  %v1885 = vsub.f32 %v1667, %v1870
  %v1886 = vsub.f32 %v1668, %v1870
  %v1887 = vsub.f32 %v1669, %v1870
  %v1888 = vsub.f32 %v1670, %v1870
  %v1889 = vsub.f32 %v1671, %v1870
  %v1890 = vsub.f32 %v1672, %v1870
  %v1891 = vsub.f32 %v1673, %v1870
  %v1892 = vmul.f32 %v1871, %v1698
  %v1893 = vmul.f32 %v1872, %v1703
  %v1894 = vmul.f32 %v1873, %v1708
  %v1895 = vmul.f32 %v1874, %v1713
  %v1896 = vmul.f32 %v1875, %v1718
  %v1897 = vmul.f32 %v1876, %v1723
  %v1898 = vmul.f32 %v1877, %v1728
  %v1899 = vmul.f32 %v1878, %v1733
  %v1900 = vmul.f32 %v1879, %v1738
  %v1901 = vmul.f32 %v1880, %v1743
  %v1902 = vmul.f32 %v1881, %v1748
  %v1903 = vmul.f32 %v1882, %v1753
  %v1904 = vmul.f32 %v1883, %v1758
  %v1905 = vmul.f32 %v1884, %v1763
  %v1906 = vmul.f32 %v1885, %v1768
  %v1907 = vmul.f32 %v1886, %v1773
  %v1908 = vmul.f32 %v1887, %v1778
  %v1909 = vmul.f32 %v1888, %v1783
  %v1910 = vmul.f32 %v1889, %v1788
  %v1911 = vmul.f32 %v1890, %v1793
  %v1912 = vmul.f32 %v1891, %v1798
  %v1913 = vmul.f32 %v1892, %v1892
  %v1914 = vmul.f32 %v1893, %v1893
  %v1915 = vmul.f32 %v1894, %v1894
  %v1916 = vmul.f32 %v1895, %v1895
  %v1917 = vmul.f32 %v1896, %v1896
  %v1918 = vmul.f32 %v1897, %v1897
  %v1919 = vmul.f32 %v1898, %v1898
  %v1920 = vmul.f32 %v1899, %v1899
  %v1921 = vmul.f32 %v1900, %v1900
  %v1922 = vmul.f32 %v1901, %v1901
  %v1923 = vmul.f32 %v1902, %v1902
  %v1924 = vmul.f32 %v1903, %v1903
  %v1925 = vmul.f32 %v1904, %v1904
  %v1926 = vmul.f32 %v1905, %v1905
  %v1927 = vmul.f32 %v1906, %v1906
  %v1928 = vmul.f32 %v1907, %v1907
  %v1929 = vmul.f32 %v1908, %v1908
  %v1930 = vmul.f32 %v1909, %v1909
  %v1931 = vmul.f32 %v1910, %v1910
  %v1932 = vmul.f32 %v1911, %v1911
  %v1933 = vmul.f32 %v1912, %v1912
  %v1934 = vsel %vm1821, %v1913, 0.0
  %v1935 = vsel %vm1821, %v1914, 0.0
  %v1936 = vadd.f32 %v1934, %v1935
  %v1937 = vsel %vm1821, %v1915, 0.0
  %v1938 = vadd.f32 %v1936, %v1937
  %v1939 = vsel %vm1821, %v1916, 0.0
  %v1940 = vadd.f32 %v1938, %v1939
  %v1941 = vsel %vm1821, %v1917, 0.0
  %v1942 = vadd.f32 %v1940, %v1941
  %v1943 = vsel %vm1821, %v1918, 0.0
  %v1944 = vadd.f32 %v1942, %v1943
  %v1945 = vsel %vm1821, %v1919, 0.0
  %v1946 = vadd.f32 %v1944, %v1945
  %v1947 = vsel %vm1821, %v1920, 0.0
  %v1948 = vadd.f32 %v1946, %v1947
  %v1949 = vsel %vm1821, %v1921, 0.0
  %v1950 = vadd.f32 %v1948, %v1949
  %v1951 = vsel %vm1821, %v1922, 0.0
  %v1952 = vadd.f32 %v1950, %v1951
  %v1953 = vsel %vm1821, %v1923, 0.0
  %v1954 = vadd.f32 %v1952, %v1953
  %v1955 = vsel %vm1821, %v1924, 0.0
  %v1956 = vadd.f32 %v1954, %v1955
  %v1957 = vsel %vm1821, %v1925, 0.0
  %v1958 = vadd.f32 %v1956, %v1957
  %v1959 = vsel %vm1821, %v1926, 0.0
  %v1960 = vadd.f32 %v1958, %v1959
  %v1961 = vsel %vm1821, %v1927, 0.0
  %v1962 = vadd.f32 %v1960, %v1961
  %v1963 = vsel %vm1821, %v1928, 0.0
  %v1964 = vadd.f32 %v1962, %v1963
  %v1965 = vsel %vm1821, %v1929, 0.0
  %v1966 = vadd.f32 %v1964, %v1965
  %v1967 = vsel %vm1821, %v1930, 0.0
  %v1968 = vadd.f32 %v1966, %v1967
  %v1969 = vsel %vm1821, %v1931, 0.0
  %v1970 = vadd.f32 %v1968, %v1969
  %v1971 = vsel %vm1821, %v1932, 0.0
  %v1972 = vadd.f32 %v1970, %v1971
  %v1973 = vsel %vm1861, %v1933, 0.0
  %v1974 = vadd.f32 %v1972, %v1973
  %v1975 = vrot.slane %v1974, 4
  %v1976 = vadd.f32 %v1974, %v1975
  %v1977 = vrot.slane %v1976, 2
  %v1978 = vadd.f32 %v1976, %v1977
  %v1979 = vrot.slane %v1978, 1
  %v1980 = vadd.f32 %v1978, %v1979
  %v1981 = vmul.f32 %v1980, 0.0078125
  %v1982 = vadd.f32 %v1981, 1e-05
  %v1983 = vrsqrt.pop %v1982
  %v1984 = vmul.f32 %v1983, %v1982
  %v1985 = vmul.f32 %v1984, %v1983
  %v1986 = vmul.f32 0.5, %v1985
  %v1987 = vsub.f32 1.5, %v1986
  %v1988 = vmul.f32 %v1983, %v1987
  %vm1989 = vweird.f32 %v1982
  %vm1990 = vweird.f32 %v1983
  %vm1991 = vmor %vm1989, %vm1990
  %v1992 = vsel %vm1991, %v1983, %v1988
  %v1993 = vld [vmem:[%s2] sm:$0x1]
  %v1994 = vmul.f32 %v1993, %v1992
  %v1995 = vld [vmem:[%s3] sm:$0x1]
  %v1996 = vmul.f32 %v1870, %v1994
  %v1997 = vsub.f32 %v1995, %v1996
  %v1999 = vperm.slane %v1994, 0
  %v2001 = vmul.f32 %v1653, %v1999
  %v2002 = vmul.f32 %v1654, %v1999
  %v2003 = vmul.f32 %v1655, %v1999
  %v2004 = vmul.f32 %v1656, %v1999
  %v2005 = vmul.f32 %v1657, %v1999
  %v2006 = vmul.f32 %v1658, %v1999
  %v2007 = vmul.f32 %v1659, %v1999
  %v2008 = vmul.f32 %v1660, %v1999
  %v2009 = vmul.f32 %v1661, %v1999
  %v2010 = vmul.f32 %v1662, %v1999
  %v2011 = vmul.f32 %v1663, %v1999
  %v2012 = vmul.f32 %v1664, %v1999
  %v2013 = vmul.f32 %v1665, %v1999
  %v2014 = vmul.f32 %v1666, %v1999
  %v2015 = vmul.f32 %v1667, %v1999
  %v2016 = vmul.f32 %v1668, %v1999
  %v2017 = vmul.f32 %v1669, %v1999
  %v2018 = vmul.f32 %v1670, %v1999
  %v2019 = vmul.f32 %v1671, %v1999
  %v2020 = vmul.f32 %v1672, %v1999
  %v2021 = vmul.f32 %v1673, %v1999
  %v2023 = vperm.slane %v1997, 0
  %v2025 = vadd.f32 %v2001, %v2023
  %v2026 = vadd.f32 %v2002, %v2023
  %v2027 = vadd.f32 %v2003, %v2023
  %v2028 = vadd.f32 %v2004, %v2023
  %v2029 = vadd.f32 %v2005, %v2023
  %v2030 = vadd.f32 %v2006, %v2023
  %v2031 = vadd.f32 %v2007, %v2023
  %v2032 = vadd.f32 %v2008, %v2023
  %v2033 = vadd.f32 %v2009, %v2023
  %v2034 = vadd.f32 %v2010, %v2023
  %v2035 = vadd.f32 %v2011, %v2023
  %v2036 = vadd.f32 %v2012, %v2023
  %v2037 = vadd.f32 %v2013, %v2023
  %v2038 = vadd.f32 %v2014, %v2023
  %v2039 = vadd.f32 %v2015, %v2023
  %v2040 = vadd.f32 %v2016, %v2023
  %v2041 = vadd.f32 %v2017, %v2023
  %v2042 = vadd.f32 %v2018, %v2023
  %v2043 = vadd.f32 %v2019, %v2023
  %v2044 = vadd.f32 %v2020, %v2023
  %v2045 = vadd.f32 %v2021, %v2023
  %v2046 = vxor.u32 %v2025, 2147483648
  %v2047 = vxor.u32 %v2026, 2147483648
  %v2048 = vxor.u32 %v2027, 2147483648
  %v2049 = vxor.u32 %v2028, 2147483648
  %v2050 = vxor.u32 %v2029, 2147483648
  %v2051 = vxor.u32 %v2030, 2147483648
  %v2052 = vxor.u32 %v2031, 2147483648
  %v2053 = vxor.u32 %v2032, 2147483648
  %v2054 = vxor.u32 %v2033, 2147483648
  %v2055 = vxor.u32 %v2034, 2147483648
  %v2056 = vxor.u32 %v2035, 2147483648
  %v2057 = vxor.u32 %v2036, 2147483648
  %v2058 = vxor.u32 %v2037, 2147483648
  %v2059 = vxor.u32 %v2038, 2147483648
  %v2060 = vxor.u32 %v2039, 2147483648
  %v2061 = vxor.u32 %v2040, 2147483648
  %v2062 = vxor.u32 %v2041, 2147483648
  %v2063 = vxor.u32 %v2042, 2147483648
  %v2064 = vxor.u32 %v2043, 2147483648
  %v2065 = vxor.u32 %v2044, 2147483648
  %v2066 = vxor.u32 %v2045, 2147483648
  %v2067 = vmul.f32 %v2046, 1.442695
  %v2068 = vpow.pop %v2067
  %v2069 = vmul.f32 %v2047, 1.442695
  %v2070 = vpow.pop %v2069
  %v2071 = vmul.f32 %v2048, 1.442695
  %v2072 = vpow.pop %v2071
  %v2073 = vmul.f32 %v2049, 1.442695
  %v2074 = vpow.pop %v2073
  %v2075 = vmul.f32 %v2050, 1.442695
  %v2076 = vpow.pop %v2075
  %v2077 = vmul.f32 %v2051, 1.442695
  %v2078 = vpow.pop %v2077
  %v2079 = vmul.f32 %v2052, 1.442695
  %v2080 = vpow.pop %v2079
  %v2081 = vmul.f32 %v2053, 1.442695
  %v2082 = vpow.pop %v2081
  %v2083 = vmul.f32 %v2054, 1.442695
  %v2084 = vpow.pop %v2083
  %v2085 = vmul.f32 %v2055, 1.442695
  %v2086 = vpow.pop %v2085
  %v2087 = vmul.f32 %v2056, 1.442695
  %v2088 = vpow.pop %v2087
  %v2089 = vmul.f32 %v2057, 1.442695
  %v2090 = vpow.pop %v2089
  %v2091 = vmul.f32 %v2058, 1.442695
  %v2092 = vpow.pop %v2091
  %v2093 = vmul.f32 %v2059, 1.442695
  %v2094 = vpow.pop %v2093
  %v2095 = vmul.f32 %v2060, 1.442695
  %v2096 = vpow.pop %v2095
  %v2097 = vmul.f32 %v2061, 1.442695
  %v2098 = vpow.pop %v2097
  %v2099 = vmul.f32 %v2062, 1.442695
  %v2100 = vpow.pop %v2099
  %v2101 = vmul.f32 %v2063, 1.442695
  %v2102 = vpow.pop %v2101
  %v2103 = vmul.f32 %v2064, 1.442695
  %v2104 = vpow.pop %v2103
  %v2105 = vmul.f32 %v2065, 1.442695
  %v2106 = vpow.pop %v2105
  %v2107 = vmul.f32 %v2066, 1.442695
  %v2108 = vpow.pop %v2107
  %v2109 = vadd.f32 %v2068, 1.0
  %v2110 = vadd.f32 %v2070, 1.0
  %v2111 = vadd.f32 %v2072, 1.0
  %v2112 = vadd.f32 %v2074, 1.0
  %v2113 = vadd.f32 %v2076, 1.0
  %v2114 = vadd.f32 %v2078, 1.0
  %v2115 = vadd.f32 %v2080, 1.0
  %v2116 = vadd.f32 %v2082, 1.0
  %v2117 = vadd.f32 %v2084, 1.0
  %v2118 = vadd.f32 %v2086, 1.0
  %v2119 = vadd.f32 %v2088, 1.0
  %v2120 = vadd.f32 %v2090, 1.0
  %v2121 = vadd.f32 %v2092, 1.0
  %v2122 = vadd.f32 %v2094, 1.0
  %v2123 = vadd.f32 %v2096, 1.0
  %v2124 = vadd.f32 %v2098, 1.0
  %v2125 = vadd.f32 %v2100, 1.0
  %v2126 = vadd.f32 %v2102, 1.0
  %v2127 = vadd.f32 %v2104, 1.0
  %v2128 = vadd.f32 %v2106, 1.0
  %v2129 = vadd.f32 %v2108, 1.0
  %v2130 = vrcp.pop %v2109
  %v2131 = vmul.f32 %v2109, %v2130
  %v2132 = vsub.f32 1.0, %v2131
  %v2133 = vmul.f32 %v2130, %v2132
  %v2134 = vadd.f32 %v2130, %v2133
  %vm2135 = vweird.f32 %v2109
  %vm2136 = vweird.f32 %v2130
  %vm2137 = vmor %vm2135, %vm2136
  %v2138 = vsel %vm2137, %v2130, %v2134
  %v2139 = vand.u32 2147483647, %v2109
  %vm2140 = vcmp.eq.f32.partialorder %v2139, 8.507059e+37
  %v2141 = vand.u32 %v2109, 2147483648
  %v2142 = vor.u32 1.1754944e-38, %v2141
  %v2143 = vsel %vm2140, %v2142, %v2138
  %v2144 = vmul.f32 1.0, %v2143
  %v2145 = vrcp.pop %v2110
  %v2146 = vmul.f32 %v2110, %v2145
  %v2147 = vsub.f32 1.0, %v2146
  %v2148 = vmul.f32 %v2145, %v2147
  %v2149 = vadd.f32 %v2145, %v2148
  %vm2150 = vweird.f32 %v2110
  %vm2151 = vweird.f32 %v2145
  %vm2152 = vmor %vm2150, %vm2151
  %v2153 = vsel %vm2152, %v2145, %v2149
  %v2154 = vand.u32 2147483647, %v2110
  %vm2155 = vcmp.eq.f32.partialorder %v2154, 8.507059e+37
  %v2156 = vand.u32 %v2110, 2147483648
  %v2157 = vor.u32 1.1754944e-38, %v2156
  %v2158 = vsel %vm2155, %v2157, %v2153
  %v2159 = vmul.f32 1.0, %v2158
  %v2160 = vrcp.pop %v2111
  %v2161 = vmul.f32 %v2111, %v2160
  %v2162 = vsub.f32 1.0, %v2161
  %v2163 = vmul.f32 %v2160, %v2162
  %v2164 = vadd.f32 %v2160, %v2163
  %vm2165 = vweird.f32 %v2111
  %vm2166 = vweird.f32 %v2160
  %vm2167 = vmor %vm2165, %vm2166
  %v2168 = vsel %vm2167, %v2160, %v2164
  %v2169 = vand.u32 2147483647, %v2111
  %vm2170 = vcmp.eq.f32.partialorder %v2169, 8.507059e+37
  %v2171 = vand.u32 %v2111, 2147483648
  %v2172 = vor.u32 1.1754944e-38, %v2171
  %v2173 = vsel %vm2170, %v2172, %v2168
  %v2174 = vmul.f32 1.0, %v2173
  %v2175 = vrcp.pop %v2112
  %v2176 = vmul.f32 %v2112, %v2175
  %v2177 = vsub.f32 1.0, %v2176
  %v2178 = vmul.f32 %v2175, %v2177
  %v2179 = vadd.f32 %v2175, %v2178
  %vm2180 = vweird.f32 %v2112
  %vm2181 = vweird.f32 %v2175
  %vm2182 = vmor %vm2180, %vm2181
  %v2183 = vsel %vm2182, %v2175, %v2179
  %v2184 = vand.u32 2147483647, %v2112
  %vm2185 = vcmp.eq.f32.partialorder %v2184, 8.507059e+37
  %v2186 = vand.u32 %v2112, 2147483648
  %v2187 = vor.u32 1.1754944e-38, %v2186
  %v2188 = vsel %vm2185, %v2187, %v2183
  %v2189 = vmul.f32 1.0, %v2188
  %v2190 = vrcp.pop %v2113
  %v2191 = vmul.f32 %v2113, %v2190
  %v2192 = vsub.f32 1.0, %v2191
  %v2193 = vmul.f32 %v2190, %v2192
  %v2194 = vadd.f32 %v2190, %v2193
  %vm2195 = vweird.f32 %v2113
  %vm2196 = vweird.f32 %v2190
  %vm2197 = vmor %vm2195, %vm2196
  %v2198 = vsel %vm2197, %v2190, %v2194
  %v2199 = vand.u32 2147483647, %v2113
  %vm2200 = vcmp.eq.f32.partialorder %v2199, 8.507059e+37
  %v2201 = vand.u32 %v2113, 2147483648
  %v2202 = vor.u32 1.1754944e-38, %v2201
  %v2203 = vsel %vm2200, %v2202, %v2198
  %v2204 = vmul.f32 1.0, %v2203
  %v2205 = vrcp.pop %v2114
  %v2206 = vmul.f32 %v2114, %v2205
  %v2207 = vsub.f32 1.0, %v2206
  %v2208 = vmul.f32 %v2205, %v2207
  %v2209 = vadd.f32 %v2205, %v2208
  %vm2210 = vweird.f32 %v2114
  %vm2211 = vweird.f32 %v2205
  %vm2212 = vmor %vm2210, %vm2211
  %v2213 = vsel %vm2212, %v2205, %v2209
  %v2214 = vand.u32 2147483647, %v2114
  %vm2215 = vcmp.eq.f32.partialorder %v2214, 8.507059e+37
  %v2216 = vand.u32 %v2114, 2147483648
  %v2217 = vor.u32 1.1754944e-38, %v2216
  %v2218 = vsel %vm2215, %v2217, %v2213
  %v2219 = vmul.f32 1.0, %v2218
  %v2220 = vrcp.pop %v2115
  %v2221 = vmul.f32 %v2115, %v2220
  %v2222 = vsub.f32 1.0, %v2221
  %v2223 = vmul.f32 %v2220, %v2222
  %v2224 = vadd.f32 %v2220, %v2223
  %vm2225 = vweird.f32 %v2115
  %vm2226 = vweird.f32 %v2220
  %vm2227 = vmor %vm2225, %vm2226
  %v2228 = vsel %vm2227, %v2220, %v2224
  %v2229 = vand.u32 2147483647, %v2115
  %vm2230 = vcmp.eq.f32.partialorder %v2229, 8.507059e+37
  %v2231 = vand.u32 %v2115, 2147483648
  %v2232 = vor.u32 1.1754944e-38, %v2231
  %v2233 = vsel %vm2230, %v2232, %v2228
  %v2234 = vmul.f32 1.0, %v2233
  %v2235 = vrcp.pop %v2116
  %v2236 = vmul.f32 %v2116, %v2235
  %v2237 = vsub.f32 1.0, %v2236
  %v2238 = vmul.f32 %v2235, %v2237
  %v2239 = vadd.f32 %v2235, %v2238
  %vm2240 = vweird.f32 %v2116
  %vm2241 = vweird.f32 %v2235
  %vm2242 = vmor %vm2240, %vm2241
  %v2243 = vsel %vm2242, %v2235, %v2239
  %v2244 = vand.u32 2147483647, %v2116
  %vm2245 = vcmp.eq.f32.partialorder %v2244, 8.507059e+37
  %v2246 = vand.u32 %v2116, 2147483648
  %v2247 = vor.u32 1.1754944e-38, %v2246
  %v2248 = vsel %vm2245, %v2247, %v2243
  %v2249 = vmul.f32 1.0, %v2248
  %v2250 = vrcp.pop %v2117
  %v2251 = vmul.f32 %v2117, %v2250
  %v2252 = vsub.f32 1.0, %v2251
  %v2253 = vmul.f32 %v2250, %v2252
  %v2254 = vadd.f32 %v2250, %v2253
  %vm2255 = vweird.f32 %v2117
  %vm2256 = vweird.f32 %v2250
  %vm2257 = vmor %vm2255, %vm2256
  %v2258 = vsel %vm2257, %v2250, %v2254
  %v2259 = vand.u32 2147483647, %v2117
  %vm2260 = vcmp.eq.f32.partialorder %v2259, 8.507059e+37
  %v2261 = vand.u32 %v2117, 2147483648
  %v2262 = vor.u32 1.1754944e-38, %v2261
  %v2263 = vsel %vm2260, %v2262, %v2258
  %v2264 = vmul.f32 1.0, %v2263
  %v2265 = vrcp.pop %v2118
  %v2266 = vmul.f32 %v2118, %v2265
  %v2267 = vsub.f32 1.0, %v2266
  %v2268 = vmul.f32 %v2265, %v2267
  %v2269 = vadd.f32 %v2265, %v2268
  %vm2270 = vweird.f32 %v2118
  %vm2271 = vweird.f32 %v2265
  %vm2272 = vmor %vm2270, %vm2271
  %v2273 = vsel %vm2272, %v2265, %v2269
  %v2274 = vand.u32 2147483647, %v2118
  %vm2275 = vcmp.eq.f32.partialorder %v2274, 8.507059e+37
  %v2276 = vand.u32 %v2118, 2147483648
  %v2277 = vor.u32 1.1754944e-38, %v2276
  %v2278 = vsel %vm2275, %v2277, %v2273
  %v2279 = vmul.f32 1.0, %v2278
  %v2280 = vrcp.pop %v2119
  %v2281 = vmul.f32 %v2119, %v2280
  %v2282 = vsub.f32 1.0, %v2281
  %v2283 = vmul.f32 %v2280, %v2282
  %v2284 = vadd.f32 %v2280, %v2283
  %vm2285 = vweird.f32 %v2119
  %vm2286 = vweird.f32 %v2280
  %vm2287 = vmor %vm2285, %vm2286
  %v2288 = vsel %vm2287, %v2280, %v2284
  %v2289 = vand.u32 2147483647, %v2119
  %vm2290 = vcmp.eq.f32.partialorder %v2289, 8.507059e+37
  %v2291 = vand.u32 %v2119, 2147483648
  %v2292 = vor.u32 1.1754944e-38, %v2291
  %v2293 = vsel %vm2290, %v2292, %v2288
  %v2294 = vmul.f32 1.0, %v2293
  %v2295 = vrcp.pop %v2120
  %v2296 = vmul.f32 %v2120, %v2295
  %v2297 = vsub.f32 1.0, %v2296
  %v2298 = vmul.f32 %v2295, %v2297
  %v2299 = vadd.f32 %v2295, %v2298
  %vm2300 = vweird.f32 %v2120
  %vm2301 = vweird.f32 %v2295
  %vm2302 = vmor %vm2300, %vm2301
  %v2303 = vsel %vm2302, %v2295, %v2299
  %v2304 = vand.u32 2147483647, %v2120
  %vm2305 = vcmp.eq.f32.partialorder %v2304, 8.507059e+37
  %v2306 = vand.u32 %v2120, 2147483648
  %v2307 = vor.u32 1.1754944e-38, %v2306
  %v2308 = vsel %vm2305, %v2307, %v2303
  %v2309 = vmul.f32 1.0, %v2308
  %v2310 = vrcp.pop %v2121
  %v2311 = vmul.f32 %v2121, %v2310
  %v2312 = vsub.f32 1.0, %v2311
  %v2313 = vmul.f32 %v2310, %v2312
  %v2314 = vadd.f32 %v2310, %v2313
  %vm2315 = vweird.f32 %v2121
  %vm2316 = vweird.f32 %v2310
  %vm2317 = vmor %vm2315, %vm2316
  %v2318 = vsel %vm2317, %v2310, %v2314
  %v2319 = vand.u32 2147483647, %v2121
  %vm2320 = vcmp.eq.f32.partialorder %v2319, 8.507059e+37
  %v2321 = vand.u32 %v2121, 2147483648
  %v2322 = vor.u32 1.1754944e-38, %v2321
  %v2323 = vsel %vm2320, %v2322, %v2318
  %v2324 = vmul.f32 1.0, %v2323
  %v2325 = vrcp.pop %v2122
  %v2326 = vmul.f32 %v2122, %v2325
  %v2327 = vsub.f32 1.0, %v2326
  %v2328 = vmul.f32 %v2325, %v2327
  %v2329 = vadd.f32 %v2325, %v2328
  %vm2330 = vweird.f32 %v2122
  %vm2331 = vweird.f32 %v2325
  %vm2332 = vmor %vm2330, %vm2331
  %v2333 = vsel %vm2332, %v2325, %v2329
  %v2334 = vand.u32 2147483647, %v2122
  %vm2335 = vcmp.eq.f32.partialorder %v2334, 8.507059e+37
  %v2336 = vand.u32 %v2122, 2147483648
  %v2337 = vor.u32 1.1754944e-38, %v2336
  %v2338 = vsel %vm2335, %v2337, %v2333
  %v2339 = vmul.f32 1.0, %v2338
  %v2340 = vrcp.pop %v2123
  %v2341 = vmul.f32 %v2123, %v2340
  %v2342 = vsub.f32 1.0, %v2341
  %v2343 = vmul.f32 %v2340, %v2342
  %v2344 = vadd.f32 %v2340, %v2343
  %vm2345 = vweird.f32 %v2123
  %vm2346 = vweird.f32 %v2340
  %vm2347 = vmor %vm2345, %vm2346
  %v2348 = vsel %vm2347, %v2340, %v2344
  %v2349 = vand.u32 2147483647, %v2123
  %vm2350 = vcmp.eq.f32.partialorder %v2349, 8.507059e+37
  %v2351 = vand.u32 %v2123, 2147483648
  %v2352 = vor.u32 1.1754944e-38, %v2351
  %v2353 = vsel %vm2350, %v2352, %v2348
  %v2354 = vmul.f32 1.0, %v2353
  %v2355 = vrcp.pop %v2124
  %v2356 = vmul.f32 %v2124, %v2355
  %v2357 = vsub.f32 1.0, %v2356
  %v2358 = vmul.f32 %v2355, %v2357
  %v2359 = vadd.f32 %v2355, %v2358
  %vm2360 = vweird.f32 %v2124
  %vm2361 = vweird.f32 %v2355
  %vm2362 = vmor %vm2360, %vm2361
  %v2363 = vsel %vm2362, %v2355, %v2359
  %v2364 = vand.u32 2147483647, %v2124
  %vm2365 = vcmp.eq.f32.partialorder %v2364, 8.507059e+37
  %v2366 = vand.u32 %v2124, 2147483648
  %v2367 = vor.u32 1.1754944e-38, %v2366
  %v2368 = vsel %vm2365, %v2367, %v2363
  %v2369 = vmul.f32 1.0, %v2368
  %v2370 = vrcp.pop %v2125
  %v2371 = vmul.f32 %v2125, %v2370
  %v2372 = vsub.f32 1.0, %v2371
  %v2373 = vmul.f32 %v2370, %v2372
  %v2374 = vadd.f32 %v2370, %v2373
  %vm2375 = vweird.f32 %v2125
  %vm2376 = vweird.f32 %v2370
  %vm2377 = vmor %vm2375, %vm2376
  %v2378 = vsel %vm2377, %v2370, %v2374
  %v2379 = vand.u32 2147483647, %v2125
  %vm2380 = vcmp.eq.f32.partialorder %v2379, 8.507059e+37
  %v2381 = vand.u32 %v2125, 2147483648
  %v2382 = vor.u32 1.1754944e-38, %v2381
  %v2383 = vsel %vm2380, %v2382, %v2378
  %v2384 = vmul.f32 1.0, %v2383
  %v2385 = vrcp.pop %v2126
  %v2386 = vmul.f32 %v2126, %v2385
  %v2387 = vsub.f32 1.0, %v2386
  %v2388 = vmul.f32 %v2385, %v2387
  %v2389 = vadd.f32 %v2385, %v2388
  %vm2390 = vweird.f32 %v2126
  %vm2391 = vweird.f32 %v2385
  %vm2392 = vmor %vm2390, %vm2391
  %v2393 = vsel %vm2392, %v2385, %v2389
  %v2394 = vand.u32 2147483647, %v2126
  %vm2395 = vcmp.eq.f32.partialorder %v2394, 8.507059e+37
  %v2396 = vand.u32 %v2126, 2147483648
  %v2397 = vor.u32 1.1754944e-38, %v2396
  %v2398 = vsel %vm2395, %v2397, %v2393
  %v2399 = vmul.f32 1.0, %v2398
  %v2400 = vrcp.pop %v2127
  %v2401 = vmul.f32 %v2127, %v2400
  %v2402 = vsub.f32 1.0, %v2401
  %v2403 = vmul.f32 %v2400, %v2402
  %v2404 = vadd.f32 %v2400, %v2403
  %vm2405 = vweird.f32 %v2127
  %vm2406 = vweird.f32 %v2400
  %vm2407 = vmor %vm2405, %vm2406
  %v2408 = vsel %vm2407, %v2400, %v2404
  %v2409 = vand.u32 2147483647, %v2127
  %vm2410 = vcmp.eq.f32.partialorder %v2409, 8.507059e+37
  %v2411 = vand.u32 %v2127, 2147483648
  %v2412 = vor.u32 1.1754944e-38, %v2411
  %v2413 = vsel %vm2410, %v2412, %v2408
  %v2414 = vmul.f32 1.0, %v2413
  %v2415 = vrcp.pop %v2128
  %v2416 = vmul.f32 %v2128, %v2415
  %v2417 = vsub.f32 1.0, %v2416
  %v2418 = vmul.f32 %v2415, %v2417
  %v2419 = vadd.f32 %v2415, %v2418
  %vm2420 = vweird.f32 %v2128
  %vm2421 = vweird.f32 %v2415
  %vm2422 = vmor %vm2420, %vm2421
  %v2423 = vsel %vm2422, %v2415, %v2419
  %v2424 = vand.u32 2147483647, %v2128
  %vm2425 = vcmp.eq.f32.partialorder %v2424, 8.507059e+37
  %v2426 = vand.u32 %v2128, 2147483648
  %v2427 = vor.u32 1.1754944e-38, %v2426
  %v2428 = vsel %vm2425, %v2427, %v2423
  %v2429 = vmul.f32 1.0, %v2428
  %v2430 = vrcp.pop %v2129
  %v2431 = vmul.f32 %v2129, %v2430
  %v2432 = vsub.f32 1.0, %v2431
  %v2433 = vmul.f32 %v2430, %v2432
  %v2434 = vadd.f32 %v2430, %v2433
  %vm2435 = vweird.f32 %v2129
  %vm2436 = vweird.f32 %v2430
  %vm2437 = vmor %vm2435, %vm2436
  %v2438 = vsel %vm2437, %v2430, %v2434
  %v2439 = vand.u32 2147483647, %v2129
  %vm2440 = vcmp.eq.f32.partialorder %v2439, 8.507059e+37
  %v2441 = vand.u32 %v2129, 2147483648
  %v2442 = vor.u32 1.1754944e-38, %v2441
  %v2443 = vsel %vm2440, %v2442, %v2438
  %v2444 = vmul.f32 1.0, %v2443
  %v2445 = vmul.f32 %v2025, %v2144
  %v2446 = vmul.f32 %v2026, %v2159
  %v2447 = vmul.f32 %v2027, %v2174
  %v2448 = vmul.f32 %v2028, %v2189
  %v2449 = vmul.f32 %v2029, %v2204
  %v2450 = vmul.f32 %v2030, %v2219
  %v2451 = vmul.f32 %v2031, %v2234
  %v2452 = vmul.f32 %v2032, %v2249
  %v2453 = vmul.f32 %v2033, %v2264
  %v2454 = vmul.f32 %v2034, %v2279
  %v2455 = vmul.f32 %v2035, %v2294
  %v2456 = vmul.f32 %v2036, %v2309
  %v2457 = vmul.f32 %v2037, %v2324
  %v2458 = vmul.f32 %v2038, %v2339
  %v2459 = vmul.f32 %v2039, %v2354
  %v2460 = vmul.f32 %v2040, %v2369
  %v2461 = vmul.f32 %v2041, %v2384
  %v2462 = vmul.f32 %v2042, %v2399
  %v2463 = vmul.f32 %v2043, %v2414
  %v2464 = vmul.f32 %v2044, %v2429
  %v2465 = vmul.f32 %v2045, %v2444
  %v2466 = vmul.f32 %v2445, %v1698
  %v2467 = vmul.f32 %v2446, %v1703
  %v2468 = vmul.f32 %v2447, %v1708
  %v2469 = vmul.f32 %v2448, %v1713
  %v2470 = vmul.f32 %v2449, %v1718
  %v2471 = vmul.f32 %v2450, %v1723
  %v2472 = vmul.f32 %v2451, %v1728
  %v2473 = vmul.f32 %v2452, %v1733
  %v2474 = vmul.f32 %v2453, %v1738
  %v2475 = vmul.f32 %v2454, %v1743
  %v2476 = vmul.f32 %v2455, %v1748
  %v2477 = vmul.f32 %v2456, %v1753
  %v2478 = vmul.f32 %v2457, %v1758
  %v2479 = vmul.f32 %v2458, %v1763
  %v2480 = vmul.f32 %v2459, %v1768
  %v2481 = vmul.f32 %v2460, %v1773
  %v2482 = vmul.f32 %v2461, %v1778
  %v2483 = vmul.f32 %v2462, %v1783
  %v2484 = vmul.f32 %v2463, %v1788
  %v2485 = vmul.f32 %v2464, %v1793
  %v2486 = vmul.f32 %v2465, %v1798
  %v2487 = vpack.c.bf16 %v2466, %v2466
  %v2488 = vpack.c.bf16 %v2467, %v2467
  %v2489 = vpack.c.bf16 %v2468, %v2468
  %v2490 = vpack.c.bf16 %v2469, %v2469
  %v2491 = vpack.c.bf16 %v2470, %v2470
  %v2492 = vpack.c.bf16 %v2471, %v2471
  %v2493 = vpack.c.bf16 %v2472, %v2472
  %v2494 = vpack.c.bf16 %v2473, %v2473
  %v2495 = vpack.c.bf16 %v2474, %v2474
  %v2496 = vpack.c.bf16 %v2475, %v2475
  %v2497 = vpack.c.bf16 %v2476, %v2476
  %v2498 = vpack.c.bf16 %v2477, %v2477
  %v2499 = vpack.c.bf16 %v2478, %v2478
  %v2500 = vpack.c.bf16 %v2479, %v2479
  %v2501 = vpack.c.bf16 %v2480, %v2480
  %v2502 = vpack.c.bf16 %v2481, %v2481
  %v2503 = vpack.c.bf16 %v2482, %v2482
  %v2504 = vpack.c.bf16 %v2483, %v2483
  %v2505 = vpack.c.bf16 %v2484, %v2484
  %v2506 = vpack.c.bf16 %v2485, %v2485
  %v2507 = vpack.c.bf16 %v2486, %v2486
  %vm2508 = vcmask 257024
  %2509 = vst.msk [vmem:[%s5] sm:$0xf] %vm2508, %v2487
  %2510 = vst.msk [vmem:[%s5 + $0x4] sm:$0xf] %vm2508, %v2488
  %2511 = vst.msk [vmem:[%s5 + $0x8] sm:$0xf] %vm2508, %v2489
  %2512 = vst.msk [vmem:[%s5 + $0xc] sm:$0xf] %vm2508, %v2490
  %2513 = vst.msk [vmem:[%s5 + $0x10] sm:$0xf] %vm2508, %v2491
  %2514 = vst.msk [vmem:[%s5 + $0x14] sm:$0xf] %vm2508, %v2492
  %2515 = vst.msk [vmem:[%s5 + $0x18] sm:$0xf] %vm2508, %v2493
  %2516 = vst.msk [vmem:[%s5 + $0x1c] sm:$0xf] %vm2508, %v2494
  %2517 = vst.msk [vmem:[%s5 + $0x20] sm:$0xf] %vm2508, %v2495
  %2518 = vst.msk [vmem:[%s5 + $0x24] sm:$0xf] %vm2508, %v2496
  %2519 = vst.msk [vmem:[%s5 + $0x28] sm:$0xf] %vm2508, %v2497
  %2520 = vst.msk [vmem:[%s5 + $0x2c] sm:$0xf] %vm2508, %v2498
  %2521 = vst.msk [vmem:[%s5 + $0x30] sm:$0xf] %vm2508, %v2499
  %2522 = vst.msk [vmem:[%s5 + $0x34] sm:$0xf] %vm2508, %v2500
  %2523 = vst.msk [vmem:[%s5 + $0x38] sm:$0xf] %vm2508, %v2501
  %2524 = vst.msk [vmem:[%s5 + $0x3c] sm:$0xf] %vm2508, %v2502
  %2525 = vst.msk [vmem:[%s5 + $0x40] sm:$0xf] %vm2508, %v2503
  %2526 = vst.msk [vmem:[%s5 + $0x44] sm:$0xf] %vm2508, %v2504
  %2527 = vst.msk [vmem:[%s5 + $0x48] sm:$0xf] %vm2508, %v2505
  %2528 = vst.msk [vmem:[%s5 + $0x4c] sm:$0xf] %vm2508, %v2506
  %vm2529 = vcmask 253952
  %2530 = vst.msk [vmem:[%s5 + $0x50] sm:$0x1] %vm2529, %v2507
  // Predicated region
  $region22: #{conv4_forward.4} parent=0 // pred_check
    _
  $region23: #{conv4_forward.4} parent=0 // pred_check_branch
    %2532 = sbr.rel (0) target = $region25
  $region24: #{conv4_forward.4} parent=0 // pred_region
    _
  $region25: #{conv4_forward.4} parent=0 // pred_fallthru
    _
  // Predicated region
  $region26: #{conv4_forward.4} parent=0 // pred_check
    _
  $region27: #{conv4_forward.4} parent=0 // pred_check_branch
    %2534 = sbr.rel (0) target = $region29
  $region28: #{conv4_forward.4} parent=0 // pred_region
    _
  $region29: #{conv4_forward.4} parent=0 // pred_fallthru
    _

// kernel: conv4_forward.7
$region0: #{conv4_forward.7}
  #allocation0 [shape = 'u32[]', space=smem, size = 0x4, offset = 0x4, fixed_abs, tag = 'smem constant byte address 0x4 - core index']
  #allocation1 [shape = 'u32[72,128]{1,0:T(1,128)}', space=vmem, size = 0x9000, scoped, tag = 'internal scratch']
  %s0 = inlined_call_operand.vmem [shape: bf16[1,86,128], index: 0, kind: input, shape index: {}]
  %s1 = inlined_call_operand.vmem [shape: f32[9,128,256], index: 1, kind: input, shape index: {}]
  %s2 = inlined_call_operand.vmem [shape: f32[1,256], index: 2, kind: input, shape index: {}]
  %s3 = inlined_call_operand.vmem [shape: f32[1,256], index: 3, kind: input, shape index: {}]
  %s4 = inlined_call_operand.vmem [shape: f32[72,1], index: 4, kind: input, shape index: {}]
  %s5 = inlined_call_operand.vmem [shape: f32[2,72], index: 5, kind: input, shape index: {}]
  %s6 = inlined_call_operand.vmem [shape: f32[256,10], index: 6, kind: input, shape index: {}]
  %s7 = inlined_call_operand.vmem [shape: f32[1,10], index: 7, kind: input, shape index: {}]
  %s8 = inlined_call_operand.vmem [shape: f32[72,256], index: 8, kind: output, shape index: {0}]
  %s9 = inlined_call_operand.hbm [shape: f32[2,10], index: 9, kind: output, shape index: {1}]
  %10 = xla_tuple %s8, %s9
  %s11 = sld [smem:[#allocation0]]
  $region50: #{conv4_forward.7} parent=0
    _
  %s13 = ssub.s32 1, %s11
  %s14 = scalar_select 0, %s13, %s11
  $region1: #{conv4_forward.7} parent=0
    #allocation2 [shape = 'u8[1024]{0}', space=vmem, size = 0x400, scoped, tag = 'output window, operand 1, single buffered']
    #allocation3 [shape = 's32[1]{0}', space=sflag, size = 0x4, scoped, tag = 'scoped memory for conv4_forward.7']
    %15 = vsyncpa [#allocation3], 0
    // Predicated region
    $region2: #{conv4_forward.7} parent=1 // pred_check
      _
    $region3: #{conv4_forward.7} parent=1 // pred_check_branch
      %17 = sbr.rel (0) target = $region5
    $region4: #{conv4_forward.7} parent=1 // pred_region
      _
    $region5: #{conv4_forward.7} parent=1 // pred_fallthru
      _
    // Predicated region
    $region6: #{conv4_forward.7} parent=1 // pred_check
      _
    $region7: #{conv4_forward.7} parent=1 // pred_check_branch
      %19 = sbr.rel (0) target = $region9
    $region8: #{conv4_forward.7} parent=1 // pred_region
      _
    $region9: #{conv4_forward.7} parent=1 // pred_fallthru
      _
    // Predicated region
    $region10: #{conv4_forward.7} parent=1 // pred_check
      _
    $region11: #{conv4_forward.7} parent=1 // pred_check_branch
      %21 = sbr.rel (0) target = $region13
    $region12: #{conv4_forward.7} parent=1 // pred_region
      _
    $region13: #{conv4_forward.7} parent=1 // pred_fallthru
      _
    // Predicated region
    $region14: #{conv4_forward.7} parent=1 // pred_check
      _
    $region15: #{conv4_forward.7} parent=1 // pred_check_branch
      %23 = sbr.rel (0) target = $region17
    $region16: #{conv4_forward.7} parent=1 // pred_region
      _
    $region17: #{conv4_forward.7} parent=1 // pred_fallthru
      _
    // Predicated region
    $region18: #{conv4_forward.7} parent=1 // pred_check
      _
    $region19: #{conv4_forward.7} parent=1 // pred_check_branch
      %25 = sbr.rel (0) target = $region21
    $region20: #{conv4_forward.7} parent=1 // pred_region
      _
    $region21: #{conv4_forward.7} parent=1 // pred_fallthru
      _
    // Predicated region
    $region22: #{conv4_forward.7} parent=1 // pred_check
      _
    $region23: #{conv4_forward.7} parent=1 // pred_check_branch
      %27 = sbr.rel (0) target = $region25
    $region24: #{conv4_forward.7} parent=1 // pred_region
      _
    $region25: #{conv4_forward.7} parent=1 // pred_fallthru
      _
    // Predicated region
    $region26: #{conv4_forward.7} parent=1 // pred_check
      _
    $region27: #{conv4_forward.7} parent=1 // pred_check_branch
      %29 = sbr.rel (0) target = $region29
    $region28: #{conv4_forward.7} parent=1 // pred_region
      _
    $region29: #{conv4_forward.7} parent=1 // pred_fallthru
      _
    // Predicated region
    $region30: #{conv4_forward.7} parent=1 // pred_check
      _
    $region31: #{conv4_forward.7} parent=1 // pred_check_branch
      %31 = sbr.rel (0) target = $region33
    $region32: #{conv4_forward.7} parent=1 // pred_region
      _
    $region33: #{conv4_forward.7} parent=1 // pred_fallthru
      _
    %v32 = vld [vmem:[%s0] sm:$0xf]
    %v33 = vld [vmem:[%s0 + $0x4] sm:$0xf]
    %v34 = vld [vmem:[%s0 + $0x8] sm:$0xf]
    %v35 = vld [vmem:[%s0 + $0xc] sm:$0xf]
    %v36 = vld [vmem:[%s0 + $0x10] sm:$0xf]
    %v37 = vld [vmem:[%s0 + $0x14] sm:$0xf]
    %v38 = vld [vmem:[%s0 + $0x18] sm:$0xf]
    %v39 = vld [vmem:[%s0 + $0x1c] sm:$0xf]
    %v40 = vld [vmem:[%s0 + $0x20] sm:$0xf]
    %v41 = vld [vmem:[%s0 + $0x24] sm:$0xf]
    %v42 = vld [vmem:[%s0 + $0x28] sm:$0x7]
    %v43 = vunpack.c.l.bf16 %v32
    %v44 = vunpack.c.l.bf16 %v33
    %v45 = vunpack.c.l.bf16 %v34
    %v46 = vunpack.c.l.bf16 %v35
    %v47 = vunpack.c.l.bf16 %v36
    %v48 = vunpack.c.l.bf16 %v37
    %v49 = vunpack.c.l.bf16 %v38
    %v50 = vunpack.c.l.bf16 %v39
    %v51 = vunpack.c.l.bf16 %v40
    %v52 = vunpack.c.l.bf16 %v41
    %v53 = vunpack.c.l.bf16 %v42
    %v54 = vld [vmem:[%s1] sm:$0xff]
    %v55 = vld [vmem:[%s1 + $0x8] sm:$0xff]
    %v56 = vld [vmem:[%s1 + $0x10] sm:$0xff]
    %v57 = vld [vmem:[%s1 + $0x18] sm:$0xff]
    %v58 = vld [vmem:[%s1 + $0x20] sm:$0xff]
    %v59 = vld [vmem:[%s1 + $0x28] sm:$0xff]
    %v60 = vld [vmem:[%s1 + $0x30] sm:$0xff]
    %v61 = vld [vmem:[%s1 + $0x38] sm:$0xff]
    %v62 = vld [vmem:[%s1 + $0x40] sm:$0xff]
    %v63 = vld [vmem:[%s1 + $0x48] sm:$0xff]
    %v64 = vld [vmem:[%s1 + $0x50] sm:$0xff]
    %v65 = vld [vmem:[%s1 + $0x58] sm:$0xff]
    %v66 = vld [vmem:[%s1 + $0x60] sm:$0xff]
    %v67 = vld [vmem:[%s1 + $0x68] sm:$0xff]
    %v68 = vld [vmem:[%s1 + $0x70] sm:$0xff]
    %v69 = vld [vmem:[%s1 + $0x78] sm:$0xff]
    %v70 = vld [vmem:[%s1 + $0x80] sm:$0xff]
    %v71 = vld [vmem:[%s1 + $0x88] sm:$0xff]
    %v72 = vld [vmem:[%s1 + $0x90] sm:$0xff]
    %v73 = vld [vmem:[%s1 + $0x98] sm:$0xff]
    %v74 = vld [vmem:[%s1 + $0xa0] sm:$0xff]
    %v75 = vld [vmem:[%s1 + $0xa8] sm:$0xff]
    %v76 = vld [vmem:[%s1 + $0xb0] sm:$0xff]
    %v77 = vld [vmem:[%s1 + $0xb8] sm:$0xff]
    %v78 = vld [vmem:[%s1 + $0xc0] sm:$0xff]
    %v79 = vld [vmem:[%s1 + $0xc8] sm:$0xff]
    %v80 = vld [vmem:[%s1 + $0xd0] sm:$0xff]
    %v81 = vld [vmem:[%s1 + $0xd8] sm:$0xff]
    %v82 = vld [vmem:[%s1 + $0xe0] sm:$0xff]
    %v83 = vld [vmem:[%s1 + $0xe8] sm:$0xff]
    %v84 = vld [vmem:[%s1 + $0xf0] sm:$0xff]
    %v85 = vld [vmem:[%s1 + $0xf8] sm:$0xff]
    %s86 = scalar_lea.vmem %s1, 256
    %v87 = vld [vmem:[%s86] sm:$0xff]
    %v88 = vld [vmem:[%s86 + $0x8] sm:$0xff]
    %v89 = vld [vmem:[%s86 + $0x10] sm:$0xff]
    %v90 = vld [vmem:[%s86 + $0x18] sm:$0xff]
    %v91 = vld [vmem:[%s86 + $0x20] sm:$0xff]
    %v92 = vld [vmem:[%s86 + $0x28] sm:$0xff]
    %v93 = vld [vmem:[%s86 + $0x30] sm:$0xff]
    %v94 = vld [vmem:[%s86 + $0x38] sm:$0xff]
    %v95 = vld [vmem:[%s86 + $0x40] sm:$0xff]
    %v96 = vld [vmem:[%s86 + $0x48] sm:$0xff]
    %v97 = vld [vmem:[%s86 + $0x50] sm:$0xff]
    %v98 = vld [vmem:[%s86 + $0x58] sm:$0xff]
    %v99 = vld [vmem:[%s86 + $0x60] sm:$0xff]
    %v100 = vld [vmem:[%s86 + $0x68] sm:$0xff]
    %v101 = vld [vmem:[%s86 + $0x70] sm:$0xff]
    %v102 = vld [vmem:[%s86 + $0x78] sm:$0xff]
    %v103 = vld [vmem:[%s86 + $0x80] sm:$0xff]
    %v104 = vld [vmem:[%s86 + $0x88] sm:$0xff]
    %v105 = vld [vmem:[%s86 + $0x90] sm:$0xff]
    %v106 = vld [vmem:[%s86 + $0x98] sm:$0xff]
    %v107 = vld [vmem:[%s86 + $0xa0] sm:$0xff]
    %v108 = vld [vmem:[%s86 + $0xa8] sm:$0xff]
    %v109 = vld [vmem:[%s86 + $0xb0] sm:$0xff]
    %v110 = vld [vmem:[%s86 + $0xb8] sm:$0xff]
    %v111 = vld [vmem:[%s86 + $0xc0] sm:$0xff]
    %v112 = vld [vmem:[%s86 + $0xc8] sm:$0xff]
    %v113 = vld [vmem:[%s86 + $0xd0] sm:$0xff]
    %v114 = vld [vmem:[%s86 + $0xd8] sm:$0xff]
    %v115 = vld [vmem:[%s86 + $0xe0] sm:$0xff]
    %v116 = vld [vmem:[%s86 + $0xe8] sm:$0xff]
    %v117 = vld [vmem:[%s86 + $0xf0] sm:$0xff]
    %v118 = vld [vmem:[%s86 + $0xf8] sm:$0xff]
    %vm129 = vcmask 1046528
    %v130 = vrot.slane %v43, 1
    %v131 = vrot.slane %v44, 1
    %v132 = vsel %vm129, %v130, %v131
    %v133 = vrot.slane %v45, 1
    %v134 = vsel %vm129, %v131, %v133
    %v135 = vrot.slane %v46, 1
    %v136 = vsel %vm129, %v133, %v135
    %v137 = vrot.slane %v47, 1
    %v138 = vsel %vm129, %v135, %v137
    %v139 = vrot.slane %v48, 1
    %v140 = vsel %vm129, %v137, %v139
    %v141 = vrot.slane %v49, 1
    %v142 = vsel %vm129, %v139, %v141
    %v143 = vrot.slane %v50, 1
    %v144 = vsel %vm129, %v141, %v143
    %v145 = vrot.slane %v51, 1
    %v146 = vsel %vm129, %v143, %v145
    %v147 = vrot.slane %v52, 1
    %v148 = vsel %vm129, %v145, %v147
    %158 = vmatpush.msra.mxu0 %v117
    %159 = vmatpush.msra.mxu0 %v115
    %160 = vmatpush.msra.mxu0 %v113
    %161 = vmatpush.msra.mxu0 %v111
    %162 = vmatpush.msra.mxu0 %v109
    %163 = vmatpush.msra.mxu0 %v107
    %164 = vmatpush.msra.mxu0 %v105
    %165 = vmatpush.msra.mxu0 %v103
    %166 = vmatpush.msra.mxu0 %v101
    %167 = vmatpush.msra.mxu0 %v99
    %168 = vmatpush.msra.mxu0 %v97
    %169 = vmatpush.msra.mxu0 %v95
    %170 = vmatpush.msra.mxu0 %v93
    %171 = vmatpush.msra.mxu0 %v91
    %172 = vmatpush.msra.mxu0 %v89
    %173 = vmatpush.msra.mxu0 %v87
    %174 = vmatmul.f32.gmra.mxu0 %v132
    %v175 = vpop.f32.mrf.mxu0
    %v176 = vadd.f32 0.0, %v175
    %177 = vmatmul.f32.gmra.mxu0 %v134
    %v178 = vpop.f32.mrf.mxu0
    %v179 = vadd.f32 0.0, %v178
    %180 = vmatmul.f32.gmra.mxu0 %v136
    %v181 = vpop.f32.mrf.mxu0
    %v182 = vadd.f32 0.0, %v181
    %183 = vmatmul.f32.gmra.mxu0 %v138
    %v184 = vpop.f32.mrf.mxu0
    %v185 = vadd.f32 0.0, %v184
    %186 = vmatmul.f32.gmra.mxu0 %v140
    %v187 = vpop.f32.mrf.mxu0
    %v188 = vadd.f32 0.0, %v187
    %189 = vmatmul.f32.gmra.mxu0 %v142
    %v190 = vpop.f32.mrf.mxu0
    %v191 = vadd.f32 0.0, %v190
    %192 = vmatmul.f32.gmra.mxu0 %v144
    %v193 = vpop.f32.mrf.mxu0
    %v194 = vadd.f32 0.0, %v193
    %195 = vmatmul.f32.gmra.mxu0 %v146
    %v196 = vpop.f32.mrf.mxu0
    %v197 = vadd.f32 0.0, %v196
    %198 = vmatmul.f32.gmra.mxu0 %v148
    %v199 = vpop.f32.mrf.mxu0
    %v200 = vadd.f32 0.0, %v199
    %201 = vdwg.mxu0
    %202 = vmatpush.msra.mxu0 %v118
    %203 = vmatpush.msra.mxu0 %v116
    %204 = vmatpush.msra.mxu0 %v114
    %205 = vmatpush.msra.mxu0 %v112
    %206 = vmatpush.msra.mxu0 %v110
    %207 = vmatpush.msra.mxu0 %v108
    %208 = vmatpush.msra.mxu0 %v106
    %209 = vmatpush.msra.mxu0 %v104
    %210 = vmatpush.msra.mxu0 %v102
    %211 = vmatpush.msra.mxu0 %v100
    %212 = vmatpush.msra.mxu0 %v98
    %213 = vmatpush.msra.mxu0 %v96
    %214 = vmatpush.msra.mxu0 %v94
    %215 = vmatpush.msra.mxu0 %v92
    %216 = vmatpush.msra.mxu0 %v90
    %217 = vmatpush.msra.mxu0 %v88
    %218 = vmatmul.f32.gmra.mxu0 %v132
    %v219 = vpop.f32.mrf.mxu0
    %v220 = vadd.f32 0.0, %v219
    %221 = vmatmul.f32.gmra.mxu0 %v134
    %v222 = vpop.f32.mrf.mxu0
    %v223 = vadd.f32 0.0, %v222
    %224 = vmatmul.f32.gmra.mxu0 %v136
    %v225 = vpop.f32.mrf.mxu0
    %v226 = vadd.f32 0.0, %v225
    %227 = vmatmul.f32.gmra.mxu0 %v138
    %v228 = vpop.f32.mrf.mxu0
    %v229 = vadd.f32 0.0, %v228
    %230 = vmatmul.f32.gmra.mxu0 %v140
    %v231 = vpop.f32.mrf.mxu0
    %v232 = vadd.f32 0.0, %v231
    %233 = vmatmul.f32.gmra.mxu0 %v142
    %v234 = vpop.f32.mrf.mxu0
    %v235 = vadd.f32 0.0, %v234
    %236 = vmatmul.f32.gmra.mxu0 %v144
    %v237 = vpop.f32.mrf.mxu0
    %v238 = vadd.f32 0.0, %v237
    %239 = vmatmul.f32.gmra.mxu0 %v146
    %v240 = vpop.f32.mrf.mxu0
    %v241 = vadd.f32 0.0, %v240
    %242 = vmatmul.f32.gmra.mxu0 %v148
    %v243 = vpop.f32.mrf.mxu0
    %v244 = vadd.f32 0.0, %v243
    %245 = vdwg.mxu0
    %246 = vmatpush.msra.mxu0 %v84
    %247 = vmatpush.msra.mxu0 %v82
    %248 = vmatpush.msra.mxu0 %v80
    %249 = vmatpush.msra.mxu0 %v78
    %250 = vmatpush.msra.mxu0 %v76
    %251 = vmatpush.msra.mxu0 %v74
    %252 = vmatpush.msra.mxu0 %v72
    %253 = vmatpush.msra.mxu0 %v70
    %254 = vmatpush.msra.mxu0 %v68
    %255 = vmatpush.msra.mxu0 %v66
    %256 = vmatpush.msra.mxu0 %v64
    %257 = vmatpush.msra.mxu0 %v62
    %258 = vmatpush.msra.mxu0 %v60
    %259 = vmatpush.msra.mxu0 %v58
    %260 = vmatpush.msra.mxu0 %v56
    %261 = vmatpush.msra.mxu0 %v54
    %262 = vmatmul.f32.gmra.mxu0 %v43
    %v263 = vpop.f32.mrf.mxu0
    %v264 = vadd.f32 %v176, %v263
    %265 = vmatmul.f32.gmra.mxu0 %v44
    %v266 = vpop.f32.mrf.mxu0
    %v267 = vadd.f32 %v179, %v266
    %268 = vmatmul.f32.gmra.mxu0 %v45
    %v269 = vpop.f32.mrf.mxu0
    %v270 = vadd.f32 %v182, %v269
    %271 = vmatmul.f32.gmra.mxu0 %v46
    %v272 = vpop.f32.mrf.mxu0
    %v273 = vadd.f32 %v185, %v272
    %274 = vmatmul.f32.gmra.mxu0 %v47
    %v275 = vpop.f32.mrf.mxu0
    %v276 = vadd.f32 %v188, %v275
    %277 = vmatmul.f32.gmra.mxu0 %v48
    %v278 = vpop.f32.mrf.mxu0
    %v279 = vadd.f32 %v191, %v278
    %280 = vmatmul.f32.gmra.mxu0 %v49
    %v281 = vpop.f32.mrf.mxu0
    %v282 = vadd.f32 %v194, %v281
    %283 = vmatmul.f32.gmra.mxu0 %v50
    %v284 = vpop.f32.mrf.mxu0
    %v285 = vadd.f32 %v197, %v284
    %286 = vmatmul.f32.gmra.mxu0 %v51
    %v287 = vpop.f32.mrf.mxu0
    %v288 = vadd.f32 %v200, %v287
    %289 = vdwg.mxu0
    %290 = vmatpush.msra.mxu0 %v85
    %291 = vmatpush.msra.mxu0 %v83
    %292 = vmatpush.msra.mxu0 %v81
    %293 = vmatpush.msra.mxu0 %v79
    %294 = vmatpush.msra.mxu0 %v77
    %295 = vmatpush.msra.mxu0 %v75
    %296 = vmatpush.msra.mxu0 %v73
    %297 = vmatpush.msra.mxu0 %v71
    %298 = vmatpush.msra.mxu0 %v69
    %299 = vmatpush.msra.mxu0 %v67
    %300 = vmatpush.msra.mxu0 %v65
    %301 = vmatpush.msra.mxu0 %v63
    %302 = vmatpush.msra.mxu0 %v61
    %303 = vmatpush.msra.mxu0 %v59
    %304 = vmatpush.msra.mxu0 %v57
    %305 = vmatpush.msra.mxu0 %v55
    %306 = vmatmul.f32.gmra.mxu0 %v43
    %v307 = vpop.f32.mrf.mxu0
    %v308 = vadd.f32 %v220, %v307
    %309 = vmatmul.f32.gmra.mxu0 %v44
    %v310 = vpop.f32.mrf.mxu0
    %v311 = vadd.f32 %v223, %v310
    %312 = vmatmul.f32.gmra.mxu0 %v45
    %v313 = vpop.f32.mrf.mxu0
    %v314 = vadd.f32 %v226, %v313
    %315 = vmatmul.f32.gmra.mxu0 %v46
    %v316 = vpop.f32.mrf.mxu0
    %v317 = vadd.f32 %v229, %v316
    %318 = vmatmul.f32.gmra.mxu0 %v47
    %v319 = vpop.f32.mrf.mxu0
    %v320 = vadd.f32 %v232, %v319
    %321 = vmatmul.f32.gmra.mxu0 %v48
    %v322 = vpop.f32.mrf.mxu0
    %v323 = vadd.f32 %v235, %v322
    %324 = vmatmul.f32.gmra.mxu0 %v49
    %v325 = vpop.f32.mrf.mxu0
    %v326 = vadd.f32 %v238, %v325
    %327 = vmatmul.f32.gmra.mxu0 %v50
    %v328 = vpop.f32.mrf.mxu0
    %v329 = vadd.f32 %v241, %v328
    %330 = vmatmul.f32.gmra.mxu0 %v51
    %v331 = vpop.f32.mrf.mxu0
    %v332 = vadd.f32 %v244, %v331
    %333 = vdwg.mxu0
    %s334 = scalar_lea.vmem %s1, 512
    %v335 = vld [vmem:[%s334] sm:$0xff]
    %v336 = vld [vmem:[%s334 + $0x8] sm:$0xff]
    %v337 = vld [vmem:[%s334 + $0x10] sm:$0xff]
    %v338 = vld [vmem:[%s334 + $0x18] sm:$0xff]
    %v339 = vld [vmem:[%s334 + $0x20] sm:$0xff]
    %v340 = vld [vmem:[%s334 + $0x28] sm:$0xff]
    %v341 = vld [vmem:[%s334 + $0x30] sm:$0xff]
    %v342 = vld [vmem:[%s334 + $0x38] sm:$0xff]
    %v343 = vld [vmem:[%s334 + $0x40] sm:$0xff]
    %v344 = vld [vmem:[%s334 + $0x48] sm:$0xff]
    %v345 = vld [vmem:[%s334 + $0x50] sm:$0xff]
    %v346 = vld [vmem:[%s334 + $0x58] sm:$0xff]
    %v347 = vld [vmem:[%s334 + $0x60] sm:$0xff]
    %v348 = vld [vmem:[%s334 + $0x68] sm:$0xff]
    %v349 = vld [vmem:[%s334 + $0x70] sm:$0xff]
    %v350 = vld [vmem:[%s334 + $0x78] sm:$0xff]
    %v351 = vld [vmem:[%s334 + $0x80] sm:$0xff]
    %v352 = vld [vmem:[%s334 + $0x88] sm:$0xff]
    %v353 = vld [vmem:[%s334 + $0x90] sm:$0xff]
    %v354 = vld [vmem:[%s334 + $0x98] sm:$0xff]
    %v355 = vld [vmem:[%s334 + $0xa0] sm:$0xff]
    %v356 = vld [vmem:[%s334 + $0xa8] sm:$0xff]
    %v357 = vld [vmem:[%s334 + $0xb0] sm:$0xff]
    %v358 = vld [vmem:[%s334 + $0xb8] sm:$0xff]
    %v359 = vld [vmem:[%s334 + $0xc0] sm:$0xff]
    %v360 = vld [vmem:[%s334 + $0xc8] sm:$0xff]
    %v361 = vld [vmem:[%s334 + $0xd0] sm:$0xff]
    %v362 = vld [vmem:[%s334 + $0xd8] sm:$0xff]
    %v363 = vld [vmem:[%s334 + $0xe0] sm:$0xff]
    %v364 = vld [vmem:[%s334 + $0xe8] sm:$0xff]
    %v365 = vld [vmem:[%s334 + $0xf0] sm:$0xff]
    %v366 = vld [vmem:[%s334 + $0xf8] sm:$0xff]
    %vm367 = vcmask 1045504
    %v368 = vrot.slane %v43, 2
    %v369 = vrot.slane %v44, 2
    %v370 = vsel %vm367, %v368, %v369
    %v371 = vrot.slane %v45, 2
    %v372 = vsel %vm367, %v369, %v371
    %v373 = vrot.slane %v46, 2
    %v374 = vsel %vm367, %v371, %v373
    %v375 = vrot.slane %v47, 2
    %v376 = vsel %vm367, %v373, %v375
    %v377 = vrot.slane %v48, 2
    %v378 = vsel %vm367, %v375, %v377
    %v379 = vrot.slane %v49, 2
    %v380 = vsel %vm367, %v377, %v379
    %v381 = vrot.slane %v50, 2
    %v382 = vsel %vm367, %v379, %v381
    %v383 = vrot.slane %v51, 2
    %v384 = vsel %vm367, %v381, %v383
    %v385 = vrot.slane %v52, 2
    %v386 = vsel %vm367, %v383, %v385
    %396 = vmatpush.msra.mxu0 %v365
    %397 = vmatpush.msra.mxu0 %v363
    %398 = vmatpush.msra.mxu0 %v361
    %399 = vmatpush.msra.mxu0 %v359
    %400 = vmatpush.msra.mxu0 %v357
    %401 = vmatpush.msra.mxu0 %v355
    %402 = vmatpush.msra.mxu0 %v353
    %403 = vmatpush.msra.mxu0 %v351
    %404 = vmatpush.msra.mxu0 %v349
    %405 = vmatpush.msra.mxu0 %v347
    %406 = vmatpush.msra.mxu0 %v345
    %407 = vmatpush.msra.mxu0 %v343
    %408 = vmatpush.msra.mxu0 %v341
    %409 = vmatpush.msra.mxu0 %v339
    %410 = vmatpush.msra.mxu0 %v337
    %411 = vmatpush.msra.mxu0 %v335
    %412 = vmatmul.f32.gmra.mxu0 %v370
    %v413 = vpop.f32.mrf.mxu0
    %v414 = vadd.f32 0.0, %v413
    %415 = vmatmul.f32.gmra.mxu0 %v372
    %v416 = vpop.f32.mrf.mxu0
    %v417 = vadd.f32 0.0, %v416
    %418 = vmatmul.f32.gmra.mxu0 %v374
    %v419 = vpop.f32.mrf.mxu0
    %v420 = vadd.f32 0.0, %v419
    %421 = vmatmul.f32.gmra.mxu0 %v376
    %v422 = vpop.f32.mrf.mxu0
    %v423 = vadd.f32 0.0, %v422
    %424 = vmatmul.f32.gmra.mxu0 %v378
    %v425 = vpop.f32.mrf.mxu0
    %v426 = vadd.f32 0.0, %v425
    %427 = vmatmul.f32.gmra.mxu0 %v380
    %v428 = vpop.f32.mrf.mxu0
    %v429 = vadd.f32 0.0, %v428
    %430 = vmatmul.f32.gmra.mxu0 %v382
    %v431 = vpop.f32.mrf.mxu0
    %v432 = vadd.f32 0.0, %v431
    %433 = vmatmul.f32.gmra.mxu0 %v384
    %v434 = vpop.f32.mrf.mxu0
    %v435 = vadd.f32 0.0, %v434
    %436 = vmatmul.f32.gmra.mxu0 %v386
    %v437 = vpop.f32.mrf.mxu0
    %v438 = vadd.f32 0.0, %v437
    %439 = vdwg.mxu0
    %440 = vmatpush.msra.mxu0 %v366
    %441 = vmatpush.msra.mxu0 %v364
    %442 = vmatpush.msra.mxu0 %v362
    %443 = vmatpush.msra.mxu0 %v360
    %444 = vmatpush.msra.mxu0 %v358
    %445 = vmatpush.msra.mxu0 %v356
    %446 = vmatpush.msra.mxu0 %v354
    %447 = vmatpush.msra.mxu0 %v352
    %448 = vmatpush.msra.mxu0 %v350
    %449 = vmatpush.msra.mxu0 %v348
    %450 = vmatpush.msra.mxu0 %v346
    %451 = vmatpush.msra.mxu0 %v344
    %452 = vmatpush.msra.mxu0 %v342
    %453 = vmatpush.msra.mxu0 %v340
    %454 = vmatpush.msra.mxu0 %v338
    %455 = vmatpush.msra.mxu0 %v336
    %456 = vmatmul.f32.gmra.mxu0 %v370
    %v457 = vpop.f32.mrf.mxu0
    %v458 = vadd.f32 0.0, %v457
    %459 = vmatmul.f32.gmra.mxu0 %v372
    %v460 = vpop.f32.mrf.mxu0
    %v461 = vadd.f32 0.0, %v460
    %462 = vmatmul.f32.gmra.mxu0 %v374
    %v463 = vpop.f32.mrf.mxu0
    %v464 = vadd.f32 0.0, %v463
    %465 = vmatmul.f32.gmra.mxu0 %v376
    %v466 = vpop.f32.mrf.mxu0
    %v467 = vadd.f32 0.0, %v466
    %468 = vmatmul.f32.gmra.mxu0 %v378
    %v469 = vpop.f32.mrf.mxu0
    %v470 = vadd.f32 0.0, %v469
    %471 = vmatmul.f32.gmra.mxu0 %v380
    %v472 = vpop.f32.mrf.mxu0
    %v473 = vadd.f32 0.0, %v472
    %474 = vmatmul.f32.gmra.mxu0 %v382
    %v475 = vpop.f32.mrf.mxu0
    %v476 = vadd.f32 0.0, %v475
    %477 = vmatmul.f32.gmra.mxu0 %v384
    %v478 = vpop.f32.mrf.mxu0
    %v479 = vadd.f32 0.0, %v478
    %480 = vmatmul.f32.gmra.mxu0 %v386
    %v481 = vpop.f32.mrf.mxu0
    %v482 = vadd.f32 0.0, %v481
    %483 = vdwg.mxu0
    %v484 = vadd.f32 %v264, %v414
    %v485 = vadd.f32 %v308, %v458
    %v486 = vadd.f32 %v267, %v417
    %v487 = vadd.f32 %v311, %v461
    %v488 = vadd.f32 %v270, %v420
    %v489 = vadd.f32 %v314, %v464
    %v490 = vadd.f32 %v273, %v423
    %v491 = vadd.f32 %v317, %v467
    %v492 = vadd.f32 %v276, %v426
    %v493 = vadd.f32 %v320, %v470
    %v494 = vadd.f32 %v279, %v429
    %v495 = vadd.f32 %v323, %v473
    %v496 = vadd.f32 %v282, %v432
    %v497 = vadd.f32 %v326, %v476
    %v498 = vadd.f32 %v285, %v435
    %v499 = vadd.f32 %v329, %v479
    %v500 = vadd.f32 %v288, %v438
    %v501 = vadd.f32 %v332, %v482
    %s502 = scalar_lea.vmem %s1, 768
    %v503 = vld [vmem:[%s502] sm:$0xff]
    %v504 = vld [vmem:[%s502 + $0x8] sm:$0xff]
    %v505 = vld [vmem:[%s502 + $0x10] sm:$0xff]
    %v506 = vld [vmem:[%s502 + $0x18] sm:$0xff]
    %v507 = vld [vmem:[%s502 + $0x20] sm:$0xff]
    %v508 = vld [vmem:[%s502 + $0x28] sm:$0xff]
    %v509 = vld [vmem:[%s502 + $0x30] sm:$0xff]
    %v510 = vld [vmem:[%s502 + $0x38] sm:$0xff]
    %v511 = vld [vmem:[%s502 + $0x40] sm:$0xff]
    %v512 = vld [vmem:[%s502 + $0x48] sm:$0xff]
    %v513 = vld [vmem:[%s502 + $0x50] sm:$0xff]
    %v514 = vld [vmem:[%s502 + $0x58] sm:$0xff]
    %v515 = vld [vmem:[%s502 + $0x60] sm:$0xff]
    %v516 = vld [vmem:[%s502 + $0x68] sm:$0xff]
    %v517 = vld [vmem:[%s502 + $0x70] sm:$0xff]
    %v518 = vld [vmem:[%s502 + $0x78] sm:$0xff]
    %v519 = vld [vmem:[%s502 + $0x80] sm:$0xff]
    %v520 = vld [vmem:[%s502 + $0x88] sm:$0xff]
    %v521 = vld [vmem:[%s502 + $0x90] sm:$0xff]
    %v522 = vld [vmem:[%s502 + $0x98] sm:$0xff]
    %v523 = vld [vmem:[%s502 + $0xa0] sm:$0xff]
    %v524 = vld [vmem:[%s502 + $0xa8] sm:$0xff]
    %v525 = vld [vmem:[%s502 + $0xb0] sm:$0xff]
    %v526 = vld [vmem:[%s502 + $0xb8] sm:$0xff]
    %v527 = vld [vmem:[%s502 + $0xc0] sm:$0xff]
    %v528 = vld [vmem:[%s502 + $0xc8] sm:$0xff]
    %v529 = vld [vmem:[%s502 + $0xd0] sm:$0xff]
    %v530 = vld [vmem:[%s502 + $0xd8] sm:$0xff]
    %v531 = vld [vmem:[%s502 + $0xe0] sm:$0xff]
    %v532 = vld [vmem:[%s502 + $0xe8] sm:$0xff]
    %v533 = vld [vmem:[%s502 + $0xf0] sm:$0xff]
    %v534 = vld [vmem:[%s502 + $0xf8] sm:$0xff]
    %vm535 = vcmask 1041408
    %v536 = vrot.slane %v43, 6
    %v537 = vrot.slane %v44, 6
    %v538 = vsel %vm535, %v536, %v537
    %v539 = vrot.slane %v45, 6
    %v540 = vsel %vm535, %v537, %v539
    %v541 = vrot.slane %v46, 6
    %v542 = vsel %vm535, %v539, %v541
    %v543 = vrot.slane %v47, 6
    %v544 = vsel %vm535, %v541, %v543
    %v545 = vrot.slane %v48, 6
    %v546 = vsel %vm535, %v543, %v545
    %v547 = vrot.slane %v49, 6
    %v548 = vsel %vm535, %v545, %v547
    %v549 = vrot.slane %v50, 6
    %v550 = vsel %vm535, %v547, %v549
    %v551 = vrot.slane %v51, 6
    %v552 = vsel %vm535, %v549, %v551
    %v553 = vrot.slane %v52, 6
    %v554 = vsel %vm535, %v551, %v553
    %564 = vmatpush.msra.mxu0 %v533
    %565 = vmatpush.msra.mxu0 %v531
    %566 = vmatpush.msra.mxu0 %v529
    %567 = vmatpush.msra.mxu0 %v527
    %568 = vmatpush.msra.mxu0 %v525
    %569 = vmatpush.msra.mxu0 %v523
    %570 = vmatpush.msra.mxu0 %v521
    %571 = vmatpush.msra.mxu0 %v519
    %572 = vmatpush.msra.mxu0 %v517
    %573 = vmatpush.msra.mxu0 %v515
    %574 = vmatpush.msra.mxu0 %v513
    %575 = vmatpush.msra.mxu0 %v511
    %576 = vmatpush.msra.mxu0 %v509
    %577 = vmatpush.msra.mxu0 %v507
    %578 = vmatpush.msra.mxu0 %v505
    %579 = vmatpush.msra.mxu0 %v503
    %580 = vmatmul.f32.gmra.mxu0 %v538
    %v581 = vpop.f32.mrf.mxu0
    %v582 = vadd.f32 0.0, %v581
    %583 = vmatmul.f32.gmra.mxu0 %v540
    %v584 = vpop.f32.mrf.mxu0
    %v585 = vadd.f32 0.0, %v584
    %586 = vmatmul.f32.gmra.mxu0 %v542
    %v587 = vpop.f32.mrf.mxu0
    %v588 = vadd.f32 0.0, %v587
    %589 = vmatmul.f32.gmra.mxu0 %v544
    %v590 = vpop.f32.mrf.mxu0
    %v591 = vadd.f32 0.0, %v590
    %592 = vmatmul.f32.gmra.mxu0 %v546
    %v593 = vpop.f32.mrf.mxu0
    %v594 = vadd.f32 0.0, %v593
    %595 = vmatmul.f32.gmra.mxu0 %v548
    %v596 = vpop.f32.mrf.mxu0
    %v597 = vadd.f32 0.0, %v596
    %598 = vmatmul.f32.gmra.mxu0 %v550
    %v599 = vpop.f32.mrf.mxu0
    %v600 = vadd.f32 0.0, %v599
    %601 = vmatmul.f32.gmra.mxu0 %v552
    %v602 = vpop.f32.mrf.mxu0
    %v603 = vadd.f32 0.0, %v602
    %604 = vmatmul.f32.gmra.mxu0 %v554
    %v605 = vpop.f32.mrf.mxu0
    %v606 = vadd.f32 0.0, %v605
    %607 = vdwg.mxu0
    %608 = vmatpush.msra.mxu0 %v534
    %609 = vmatpush.msra.mxu0 %v532
    %610 = vmatpush.msra.mxu0 %v530
    %611 = vmatpush.msra.mxu0 %v528
    %612 = vmatpush.msra.mxu0 %v526
    %613 = vmatpush.msra.mxu0 %v524
    %614 = vmatpush.msra.mxu0 %v522
    %615 = vmatpush.msra.mxu0 %v520
    %616 = vmatpush.msra.mxu0 %v518
    %617 = vmatpush.msra.mxu0 %v516
    %618 = vmatpush.msra.mxu0 %v514
    %619 = vmatpush.msra.mxu0 %v512
    %620 = vmatpush.msra.mxu0 %v510
    %621 = vmatpush.msra.mxu0 %v508
    %622 = vmatpush.msra.mxu0 %v506
    %623 = vmatpush.msra.mxu0 %v504
    %624 = vmatmul.f32.gmra.mxu0 %v538
    %v625 = vpop.f32.mrf.mxu0
    %v626 = vadd.f32 0.0, %v625
    %627 = vmatmul.f32.gmra.mxu0 %v540
    %v628 = vpop.f32.mrf.mxu0
    %v629 = vadd.f32 0.0, %v628
    %630 = vmatmul.f32.gmra.mxu0 %v542
    %v631 = vpop.f32.mrf.mxu0
    %v632 = vadd.f32 0.0, %v631
    %633 = vmatmul.f32.gmra.mxu0 %v544
    %v634 = vpop.f32.mrf.mxu0
    %v635 = vadd.f32 0.0, %v634
    %636 = vmatmul.f32.gmra.mxu0 %v546
    %v637 = vpop.f32.mrf.mxu0
    %v638 = vadd.f32 0.0, %v637
    %639 = vmatmul.f32.gmra.mxu0 %v548
    %v640 = vpop.f32.mrf.mxu0
    %v641 = vadd.f32 0.0, %v640
    %642 = vmatmul.f32.gmra.mxu0 %v550
    %v643 = vpop.f32.mrf.mxu0
    %v644 = vadd.f32 0.0, %v643
    %645 = vmatmul.f32.gmra.mxu0 %v552
    %v646 = vpop.f32.mrf.mxu0
    %v647 = vadd.f32 0.0, %v646
    %648 = vmatmul.f32.gmra.mxu0 %v554
    %v649 = vpop.f32.mrf.mxu0
    %v650 = vadd.f32 0.0, %v649
    %651 = vdwg.mxu0
    %v652 = vadd.f32 %v484, %v582
    %v653 = vadd.f32 %v485, %v626
    %v654 = vadd.f32 %v486, %v585
    %v655 = vadd.f32 %v487, %v629
    %v656 = vadd.f32 %v488, %v588
    %v657 = vadd.f32 %v489, %v632
    %v658 = vadd.f32 %v490, %v591
    %v659 = vadd.f32 %v491, %v635
    %v660 = vadd.f32 %v492, %v594
    %v661 = vadd.f32 %v493, %v638
    %v662 = vadd.f32 %v494, %v597
    %v663 = vadd.f32 %v495, %v641
    %v664 = vadd.f32 %v496, %v600
    %v665 = vadd.f32 %v497, %v644
    %v666 = vadd.f32 %v498, %v603
    %v667 = vadd.f32 %v499, %v647
    %v668 = vadd.f32 %v500, %v606
    %v669 = vadd.f32 %v501, %v650
    %s670 = scalar_lea.vmem %s1, 1024
    %v671 = vld [vmem:[%s670] sm:$0xff]
    %v672 = vld [vmem:[%s670 + $0x8] sm:$0xff]
    %v673 = vld [vmem:[%s670 + $0x10] sm:$0xff]
    %v674 = vld [vmem:[%s670 + $0x18] sm:$0xff]
    %v675 = vld [vmem:[%s670 + $0x20] sm:$0xff]
    %v676 = vld [vmem:[%s670 + $0x28] sm:$0xff]
    %v677 = vld [vmem:[%s670 + $0x30] sm:$0xff]
    %v678 = vld [vmem:[%s670 + $0x38] sm:$0xff]
    %v679 = vld [vmem:[%s670 + $0x40] sm:$0xff]
    %v680 = vld [vmem:[%s670 + $0x48] sm:$0xff]
    %v681 = vld [vmem:[%s670 + $0x50] sm:$0xff]
    %v682 = vld [vmem:[%s670 + $0x58] sm:$0xff]
    %v683 = vld [vmem:[%s670 + $0x60] sm:$0xff]
    %v684 = vld [vmem:[%s670 + $0x68] sm:$0xff]
    %v685 = vld [vmem:[%s670 + $0x70] sm:$0xff]
    %v686 = vld [vmem:[%s670 + $0x78] sm:$0xff]
    %v687 = vld [vmem:[%s670 + $0x80] sm:$0xff]
    %v688 = vld [vmem:[%s670 + $0x88] sm:$0xff]
    %v689 = vld [vmem:[%s670 + $0x90] sm:$0xff]
    %v690 = vld [vmem:[%s670 + $0x98] sm:$0xff]
    %v691 = vld [vmem:[%s670 + $0xa0] sm:$0xff]
    %v692 = vld [vmem:[%s670 + $0xa8] sm:$0xff]
    %v693 = vld [vmem:[%s670 + $0xb0] sm:$0xff]
    %v694 = vld [vmem:[%s670 + $0xb8] sm:$0xff]
    %v695 = vld [vmem:[%s670 + $0xc0] sm:$0xff]
    %v696 = vld [vmem:[%s670 + $0xc8] sm:$0xff]
    %v697 = vld [vmem:[%s670 + $0xd0] sm:$0xff]
    %v698 = vld [vmem:[%s670 + $0xd8] sm:$0xff]
    %v699 = vld [vmem:[%s670 + $0xe0] sm:$0xff]
    %v700 = vld [vmem:[%s670 + $0xe8] sm:$0xff]
    %v701 = vld [vmem:[%s670 + $0xf0] sm:$0xff]
    %v702 = vld [vmem:[%s670 + $0xf8] sm:$0xff]
    %vm703 = vcmask 1040384
    %v704 = vrot.slane %v43, 7
    %v705 = vrot.slane %v44, 7
    %v706 = vsel %vm703, %v704, %v705
    %v707 = vrot.slane %v45, 7
    %v708 = vsel %vm703, %v705, %v707
    %v709 = vrot.slane %v46, 7
    %v710 = vsel %vm703, %v707, %v709
    %v711 = vrot.slane %v47, 7
    %v712 = vsel %vm703, %v709, %v711
    %v713 = vrot.slane %v48, 7
    %v714 = vsel %vm703, %v711, %v713
    %v715 = vrot.slane %v49, 7
    %v716 = vsel %vm703, %v713, %v715
    %v717 = vrot.slane %v50, 7
    %v718 = vsel %vm703, %v715, %v717
    %v719 = vrot.slane %v51, 7
    %v720 = vsel %vm703, %v717, %v719
    %v721 = vrot.slane %v52, 7
    %v722 = vsel %vm703, %v719, %v721
    %732 = vmatpush.msra.mxu0 %v701
    %733 = vmatpush.msra.mxu0 %v699
    %734 = vmatpush.msra.mxu0 %v697
    %735 = vmatpush.msra.mxu0 %v695
    %736 = vmatpush.msra.mxu0 %v693
    %737 = vmatpush.msra.mxu0 %v691
    %738 = vmatpush.msra.mxu0 %v689
    %739 = vmatpush.msra.mxu0 %v687
    %740 = vmatpush.msra.mxu0 %v685
    %741 = vmatpush.msra.mxu0 %v683
    %742 = vmatpush.msra.mxu0 %v681
    %743 = vmatpush.msra.mxu0 %v679
    %744 = vmatpush.msra.mxu0 %v677
    %745 = vmatpush.msra.mxu0 %v675
    %746 = vmatpush.msra.mxu0 %v673
    %747 = vmatpush.msra.mxu0 %v671
    %748 = vmatmul.f32.gmra.mxu0 %v706
    %v749 = vpop.f32.mrf.mxu0
    %v750 = vadd.f32 0.0, %v749
    %751 = vmatmul.f32.gmra.mxu0 %v708
    %v752 = vpop.f32.mrf.mxu0
    %v753 = vadd.f32 0.0, %v752
    %754 = vmatmul.f32.gmra.mxu0 %v710
    %v755 = vpop.f32.mrf.mxu0
    %v756 = vadd.f32 0.0, %v755
    %757 = vmatmul.f32.gmra.mxu0 %v712
    %v758 = vpop.f32.mrf.mxu0
    %v759 = vadd.f32 0.0, %v758
    %760 = vmatmul.f32.gmra.mxu0 %v714
    %v761 = vpop.f32.mrf.mxu0
    %v762 = vadd.f32 0.0, %v761
    %763 = vmatmul.f32.gmra.mxu0 %v716
    %v764 = vpop.f32.mrf.mxu0
    %v765 = vadd.f32 0.0, %v764
    %766 = vmatmul.f32.gmra.mxu0 %v718
    %v767 = vpop.f32.mrf.mxu0
    %v768 = vadd.f32 0.0, %v767
    %769 = vmatmul.f32.gmra.mxu0 %v720
    %v770 = vpop.f32.mrf.mxu0
    %v771 = vadd.f32 0.0, %v770
    %772 = vmatmul.f32.gmra.mxu0 %v722
    %v773 = vpop.f32.mrf.mxu0
    %v774 = vadd.f32 0.0, %v773
    %775 = vdwg.mxu0
    %776 = vmatpush.msra.mxu0 %v702
    %777 = vmatpush.msra.mxu0 %v700
    %778 = vmatpush.msra.mxu0 %v698
    %779 = vmatpush.msra.mxu0 %v696
    %780 = vmatpush.msra.mxu0 %v694
    %781 = vmatpush.msra.mxu0 %v692
    %782 = vmatpush.msra.mxu0 %v690
    %783 = vmatpush.msra.mxu0 %v688
    %784 = vmatpush.msra.mxu0 %v686
    %785 = vmatpush.msra.mxu0 %v684
    %786 = vmatpush.msra.mxu0 %v682
    %787 = vmatpush.msra.mxu0 %v680
    %788 = vmatpush.msra.mxu0 %v678
    %789 = vmatpush.msra.mxu0 %v676
    %790 = vmatpush.msra.mxu0 %v674
    %791 = vmatpush.msra.mxu0 %v672
    %792 = vmatmul.f32.gmra.mxu0 %v706
    %v793 = vpop.f32.mrf.mxu0
    %v794 = vadd.f32 0.0, %v793
    %795 = vmatmul.f32.gmra.mxu0 %v708
    %v796 = vpop.f32.mrf.mxu0
    %v797 = vadd.f32 0.0, %v796
    %798 = vmatmul.f32.gmra.mxu0 %v710
    %v799 = vpop.f32.mrf.mxu0
    %v800 = vadd.f32 0.0, %v799
    %801 = vmatmul.f32.gmra.mxu0 %v712
    %v802 = vpop.f32.mrf.mxu0
    %v803 = vadd.f32 0.0, %v802
    %804 = vmatmul.f32.gmra.mxu0 %v714
    %v805 = vpop.f32.mrf.mxu0
    %v806 = vadd.f32 0.0, %v805
    %807 = vmatmul.f32.gmra.mxu0 %v716
    %v808 = vpop.f32.mrf.mxu0
    %v809 = vadd.f32 0.0, %v808
    %810 = vmatmul.f32.gmra.mxu0 %v718
    %v811 = vpop.f32.mrf.mxu0
    %v812 = vadd.f32 0.0, %v811
    %813 = vmatmul.f32.gmra.mxu0 %v720
    %v814 = vpop.f32.mrf.mxu0
    %v815 = vadd.f32 0.0, %v814
    %816 = vmatmul.f32.gmra.mxu0 %v722
    %v817 = vpop.f32.mrf.mxu0
    %v818 = vadd.f32 0.0, %v817
    %819 = vdwg.mxu0
    %v820 = vadd.f32 %v652, %v750
    %v821 = vadd.f32 %v653, %v794
    %v822 = vadd.f32 %v654, %v753
    %v823 = vadd.f32 %v655, %v797
    %v824 = vadd.f32 %v656, %v756
    %v825 = vadd.f32 %v657, %v800
    %v826 = vadd.f32 %v658, %v759
    %v827 = vadd.f32 %v659, %v803
    %v828 = vadd.f32 %v660, %v762
    %v829 = vadd.f32 %v661, %v806
    %v830 = vadd.f32 %v662, %v765
    %v831 = vadd.f32 %v663, %v809
    %v832 = vadd.f32 %v664, %v768
    %v833 = vadd.f32 %v665, %v812
    %v834 = vadd.f32 %v666, %v771
    %v835 = vadd.f32 %v667, %v815
    %v836 = vadd.f32 %v668, %v774
    %v837 = vadd.f32 %v669, %v818
    %s838 = scalar_lea.vmem %s1, 1280
    %v839 = vld [vmem:[%s838] sm:$0xff]
    %v840 = vld [vmem:[%s838 + $0x8] sm:$0xff]
    %v841 = vld [vmem:[%s838 + $0x10] sm:$0xff]
    %v842 = vld [vmem:[%s838 + $0x18] sm:$0xff]
    %v843 = vld [vmem:[%s838 + $0x20] sm:$0xff]
    %v844 = vld [vmem:[%s838 + $0x28] sm:$0xff]
    %v845 = vld [vmem:[%s838 + $0x30] sm:$0xff]
    %v846 = vld [vmem:[%s838 + $0x38] sm:$0xff]
    %v847 = vld [vmem:[%s838 + $0x40] sm:$0xff]
    %v848 = vld [vmem:[%s838 + $0x48] sm:$0xff]
    %v849 = vld [vmem:[%s838 + $0x50] sm:$0xff]
    %v850 = vld [vmem:[%s838 + $0x58] sm:$0xff]
    %v851 = vld [vmem:[%s838 + $0x60] sm:$0xff]
    %v852 = vld [vmem:[%s838 + $0x68] sm:$0xff]
    %v853 = vld [vmem:[%s838 + $0x70] sm:$0xff]
    %v854 = vld [vmem:[%s838 + $0x78] sm:$0xff]
    %v855 = vld [vmem:[%s838 + $0x80] sm:$0xff]
    %v856 = vld [vmem:[%s838 + $0x88] sm:$0xff]
    %v857 = vld [vmem:[%s838 + $0x90] sm:$0xff]
    %v858 = vld [vmem:[%s838 + $0x98] sm:$0xff]
    %v859 = vld [vmem:[%s838 + $0xa0] sm:$0xff]
    %v860 = vld [vmem:[%s838 + $0xa8] sm:$0xff]
    %v861 = vld [vmem:[%s838 + $0xb0] sm:$0xff]
    %v862 = vld [vmem:[%s838 + $0xb8] sm:$0xff]
    %v863 = vld [vmem:[%s838 + $0xc0] sm:$0xff]
    %v864 = vld [vmem:[%s838 + $0xc8] sm:$0xff]
    %v865 = vld [vmem:[%s838 + $0xd0] sm:$0xff]
    %v866 = vld [vmem:[%s838 + $0xd8] sm:$0xff]
    %v867 = vld [vmem:[%s838 + $0xe0] sm:$0xff]
    %v868 = vld [vmem:[%s838 + $0xe8] sm:$0xff]
    %v869 = vld [vmem:[%s838 + $0xf0] sm:$0xff]
    %v870 = vld [vmem:[%s838 + $0xf8] sm:$0xff]
    %871 = vmatpush.msra.mxu0 %v869
    %872 = vmatpush.msra.mxu0 %v867
    %873 = vmatpush.msra.mxu0 %v865
    %874 = vmatpush.msra.mxu0 %v863
    %875 = vmatpush.msra.mxu0 %v861
    %876 = vmatpush.msra.mxu0 %v859
    %877 = vmatpush.msra.mxu0 %v857
    %878 = vmatpush.msra.mxu0 %v855
    %879 = vmatpush.msra.mxu0 %v853
    %880 = vmatpush.msra.mxu0 %v851
    %881 = vmatpush.msra.mxu0 %v849
    %882 = vmatpush.msra.mxu0 %v847
    %883 = vmatpush.msra.mxu0 %v845
    %884 = vmatpush.msra.mxu0 %v843
    %885 = vmatpush.msra.mxu0 %v841
    %886 = vmatpush.msra.mxu0 %v839
    %887 = vmatmul.f32.gmra.mxu0 %v44
    %v888 = vpop.f32.mrf.mxu0
    %v889 = vadd.f32 0.0, %v888
    %890 = vmatmul.f32.gmra.mxu0 %v45
    %v891 = vpop.f32.mrf.mxu0
    %v892 = vadd.f32 0.0, %v891
    %893 = vmatmul.f32.gmra.mxu0 %v46
    %v894 = vpop.f32.mrf.mxu0
    %v895 = vadd.f32 0.0, %v894
    %896 = vmatmul.f32.gmra.mxu0 %v47
    %v897 = vpop.f32.mrf.mxu0
    %v898 = vadd.f32 0.0, %v897
    %899 = vmatmul.f32.gmra.mxu0 %v48
    %v900 = vpop.f32.mrf.mxu0
    %v901 = vadd.f32 0.0, %v900
    %902 = vmatmul.f32.gmra.mxu0 %v49
    %v903 = vpop.f32.mrf.mxu0
    %v904 = vadd.f32 0.0, %v903
    %905 = vmatmul.f32.gmra.mxu0 %v50
    %v906 = vpop.f32.mrf.mxu0
    %v907 = vadd.f32 0.0, %v906
    %908 = vmatmul.f32.gmra.mxu0 %v51
    %v909 = vpop.f32.mrf.mxu0
    %v910 = vadd.f32 0.0, %v909
    %911 = vmatmul.f32.gmra.mxu0 %v52
    %v912 = vpop.f32.mrf.mxu0
    %v913 = vadd.f32 0.0, %v912
    %914 = vdwg.mxu0
    %915 = vmatpush.msra.mxu0 %v870
    %916 = vmatpush.msra.mxu0 %v868
    %917 = vmatpush.msra.mxu0 %v866
    %918 = vmatpush.msra.mxu0 %v864
    %919 = vmatpush.msra.mxu0 %v862
    %920 = vmatpush.msra.mxu0 %v860
    %921 = vmatpush.msra.mxu0 %v858
    %922 = vmatpush.msra.mxu0 %v856
    %923 = vmatpush.msra.mxu0 %v854
    %924 = vmatpush.msra.mxu0 %v852
    %925 = vmatpush.msra.mxu0 %v850
    %926 = vmatpush.msra.mxu0 %v848
    %927 = vmatpush.msra.mxu0 %v846
    %928 = vmatpush.msra.mxu0 %v844
    %929 = vmatpush.msra.mxu0 %v842
    %930 = vmatpush.msra.mxu0 %v840
    %931 = vmatmul.f32.gmra.mxu0 %v44
    %v932 = vpop.f32.mrf.mxu0
    %v933 = vadd.f32 0.0, %v932
    %934 = vmatmul.f32.gmra.mxu0 %v45
    %v935 = vpop.f32.mrf.mxu0
    %v936 = vadd.f32 0.0, %v935
    %937 = vmatmul.f32.gmra.mxu0 %v46
    %v938 = vpop.f32.mrf.mxu0
    %v939 = vadd.f32 0.0, %v938
    %940 = vmatmul.f32.gmra.mxu0 %v47
    %v941 = vpop.f32.mrf.mxu0
    %v942 = vadd.f32 0.0, %v941
    %943 = vmatmul.f32.gmra.mxu0 %v48
    %v944 = vpop.f32.mrf.mxu0
    %v945 = vadd.f32 0.0, %v944
    %946 = vmatmul.f32.gmra.mxu0 %v49
    %v947 = vpop.f32.mrf.mxu0
    %v948 = vadd.f32 0.0, %v947
    %949 = vmatmul.f32.gmra.mxu0 %v50
    %v950 = vpop.f32.mrf.mxu0
    %v951 = vadd.f32 0.0, %v950
    %952 = vmatmul.f32.gmra.mxu0 %v51
    %v953 = vpop.f32.mrf.mxu0
    %v954 = vadd.f32 0.0, %v953
    %955 = vmatmul.f32.gmra.mxu0 %v52
    %v956 = vpop.f32.mrf.mxu0
    %v957 = vadd.f32 0.0, %v956
    %958 = vdwg.mxu0
    %v959 = vadd.f32 %v820, %v889
    %v960 = vadd.f32 %v821, %v933
    %v961 = vadd.f32 %v822, %v892
    %v962 = vadd.f32 %v823, %v936
    %v963 = vadd.f32 %v824, %v895
    %v964 = vadd.f32 %v825, %v939
    %v965 = vadd.f32 %v826, %v898
    %v966 = vadd.f32 %v827, %v942
    %v967 = vadd.f32 %v828, %v901
    %v968 = vadd.f32 %v829, %v945
    %v969 = vadd.f32 %v830, %v904
    %v970 = vadd.f32 %v831, %v948
    %v971 = vadd.f32 %v832, %v907
    %v972 = vadd.f32 %v833, %v951
    %v973 = vadd.f32 %v834, %v910
    %v974 = vadd.f32 %v835, %v954
    %v975 = vadd.f32 %v836, %v913
    %v976 = vadd.f32 %v837, %v957
    %s977 = scalar_lea.vmem %s1, 1536
    %v978 = vld [vmem:[%s977] sm:$0xff]
    %v979 = vld [vmem:[%s977 + $0x8] sm:$0xff]
    %v980 = vld [vmem:[%s977 + $0x10] sm:$0xff]
    %v981 = vld [vmem:[%s977 + $0x18] sm:$0xff]
    %v982 = vld [vmem:[%s977 + $0x20] sm:$0xff]
    %v983 = vld [vmem:[%s977 + $0x28] sm:$0xff]
    %v984 = vld [vmem:[%s977 + $0x30] sm:$0xff]
    %v985 = vld [vmem:[%s977 + $0x38] sm:$0xff]
    %v986 = vld [vmem:[%s977 + $0x40] sm:$0xff]
    %v987 = vld [vmem:[%s977 + $0x48] sm:$0xff]
    %v988 = vld [vmem:[%s977 + $0x50] sm:$0xff]
    %v989 = vld [vmem:[%s977 + $0x58] sm:$0xff]
    %v990 = vld [vmem:[%s977 + $0x60] sm:$0xff]
    %v991 = vld [vmem:[%s977 + $0x68] sm:$0xff]
    %v992 = vld [vmem:[%s977 + $0x70] sm:$0xff]
    %v993 = vld [vmem:[%s977 + $0x78] sm:$0xff]
    %v994 = vld [vmem:[%s977 + $0x80] sm:$0xff]
    %v995 = vld [vmem:[%s977 + $0x88] sm:$0xff]
    %v996 = vld [vmem:[%s977 + $0x90] sm:$0xff]
    %v997 = vld [vmem:[%s977 + $0x98] sm:$0xff]
    %v998 = vld [vmem:[%s977 + $0xa0] sm:$0xff]
    %v999 = vld [vmem:[%s977 + $0xa8] sm:$0xff]
    %v1000 = vld [vmem:[%s977 + $0xb0] sm:$0xff]
    %v1001 = vld [vmem:[%s977 + $0xb8] sm:$0xff]
    %v1002 = vld [vmem:[%s977 + $0xc0] sm:$0xff]
    %v1003 = vld [vmem:[%s977 + $0xc8] sm:$0xff]
    %v1004 = vld [vmem:[%s977 + $0xd0] sm:$0xff]
    %v1005 = vld [vmem:[%s977 + $0xd8] sm:$0xff]
    %v1006 = vld [vmem:[%s977 + $0xe0] sm:$0xff]
    %v1007 = vld [vmem:[%s977 + $0xe8] sm:$0xff]
    %v1008 = vld [vmem:[%s977 + $0xf0] sm:$0xff]
    %v1009 = vld [vmem:[%s977 + $0xf8] sm:$0xff]
    %vm1011 = vcmask 1043456
    %v1012 = vrot.slane %v44, 4
    %v1013 = vrot.slane %v45, 4
    %v1014 = vsel %vm1011, %v1012, %v1013
    %v1015 = vrot.slane %v46, 4
    %v1016 = vsel %vm1011, %v1013, %v1015
    %v1017 = vrot.slane %v47, 4
    %v1018 = vsel %vm1011, %v1015, %v1017
    %v1019 = vrot.slane %v48, 4
    %v1020 = vsel %vm1011, %v1017, %v1019
    %v1021 = vrot.slane %v49, 4
    %v1022 = vsel %vm1011, %v1019, %v1021
    %v1023 = vrot.slane %v50, 4
    %v1024 = vsel %vm1011, %v1021, %v1023
    %v1025 = vrot.slane %v51, 4
    %v1026 = vsel %vm1011, %v1023, %v1025
    %v1027 = vrot.slane %v52, 4
    %v1028 = vsel %vm1011, %v1025, %v1027
    %v1029 = vrot.slane %v53, 4
    %v1030 = vsel %vm1011, %v1027, %v1029
    %1040 = vmatpush.msra.mxu0 %v1008
    %1041 = vmatpush.msra.mxu0 %v1006
    %1042 = vmatpush.msra.mxu0 %v1004
    %1043 = vmatpush.msra.mxu0 %v1002
    %1044 = vmatpush.msra.mxu0 %v1000
    %1045 = vmatpush.msra.mxu0 %v998
    %1046 = vmatpush.msra.mxu0 %v996
    %1047 = vmatpush.msra.mxu0 %v994
    %1048 = vmatpush.msra.mxu0 %v992
    %1049 = vmatpush.msra.mxu0 %v990
    %1050 = vmatpush.msra.mxu0 %v988
    %1051 = vmatpush.msra.mxu0 %v986
    %1052 = vmatpush.msra.mxu0 %v984
    %1053 = vmatpush.msra.mxu0 %v982
    %1054 = vmatpush.msra.mxu0 %v980
    %1055 = vmatpush.msra.mxu0 %v978
    %1056 = vmatmul.f32.gmra.mxu0 %v1014
    %v1057 = vpop.f32.mrf.mxu0
    %v1058 = vadd.f32 0.0, %v1057
    %1059 = vmatmul.f32.gmra.mxu0 %v1016
    %v1060 = vpop.f32.mrf.mxu0
    %v1061 = vadd.f32 0.0, %v1060
    %1062 = vmatmul.f32.gmra.mxu0 %v1018
    %v1063 = vpop.f32.mrf.mxu0
    %v1064 = vadd.f32 0.0, %v1063
    %1065 = vmatmul.f32.gmra.mxu0 %v1020
    %v1066 = vpop.f32.mrf.mxu0
    %v1067 = vadd.f32 0.0, %v1066
    %1068 = vmatmul.f32.gmra.mxu0 %v1022
    %v1069 = vpop.f32.mrf.mxu0
    %v1070 = vadd.f32 0.0, %v1069
    %1071 = vmatmul.f32.gmra.mxu0 %v1024
    %v1072 = vpop.f32.mrf.mxu0
    %v1073 = vadd.f32 0.0, %v1072
    %1074 = vmatmul.f32.gmra.mxu0 %v1026
    %v1075 = vpop.f32.mrf.mxu0
    %v1076 = vadd.f32 0.0, %v1075
    %1077 = vmatmul.f32.gmra.mxu0 %v1028
    %v1078 = vpop.f32.mrf.mxu0
    %v1079 = vadd.f32 0.0, %v1078
    %1080 = vmatmul.f32.gmra.mxu0 %v1030
    %v1081 = vpop.f32.mrf.mxu0
    %v1082 = vadd.f32 0.0, %v1081
    %1083 = vdwg.mxu0
    %1084 = vmatpush.msra.mxu0 %v1009
    %1085 = vmatpush.msra.mxu0 %v1007
    %1086 = vmatpush.msra.mxu0 %v1005
    %1087 = vmatpush.msra.mxu0 %v1003
    %1088 = vmatpush.msra.mxu0 %v1001
    %1089 = vmatpush.msra.mxu0 %v999
    %1090 = vmatpush.msra.mxu0 %v997
    %1091 = vmatpush.msra.mxu0 %v995
    %1092 = vmatpush.msra.mxu0 %v993
    %1093 = vmatpush.msra.mxu0 %v991
    %1094 = vmatpush.msra.mxu0 %v989
    %1095 = vmatpush.msra.mxu0 %v987
    %1096 = vmatpush.msra.mxu0 %v985
    %1097 = vmatpush.msra.mxu0 %v983
    %1098 = vmatpush.msra.mxu0 %v981
    %1099 = vmatpush.msra.mxu0 %v979
    %1100 = vmatmul.f32.gmra.mxu0 %v1014
    %v1101 = vpop.f32.mrf.mxu0
    %v1102 = vadd.f32 0.0, %v1101
    %1103 = vmatmul.f32.gmra.mxu0 %v1016
    %v1104 = vpop.f32.mrf.mxu0
    %v1105 = vadd.f32 0.0, %v1104
    %1106 = vmatmul.f32.gmra.mxu0 %v1018
    %v1107 = vpop.f32.mrf.mxu0
    %v1108 = vadd.f32 0.0, %v1107
    %1109 = vmatmul.f32.gmra.mxu0 %v1020
    %v1110 = vpop.f32.mrf.mxu0
    %v1111 = vadd.f32 0.0, %v1110
    %1112 = vmatmul.f32.gmra.mxu0 %v1022
    %v1113 = vpop.f32.mrf.mxu0
    %v1114 = vadd.f32 0.0, %v1113
    %1115 = vmatmul.f32.gmra.mxu0 %v1024
    %v1116 = vpop.f32.mrf.mxu0
    %v1117 = vadd.f32 0.0, %v1116
    %1118 = vmatmul.f32.gmra.mxu0 %v1026
    %v1119 = vpop.f32.mrf.mxu0
    %v1120 = vadd.f32 0.0, %v1119
    %1121 = vmatmul.f32.gmra.mxu0 %v1028
    %v1122 = vpop.f32.mrf.mxu0
    %v1123 = vadd.f32 0.0, %v1122
    %1124 = vmatmul.f32.gmra.mxu0 %v1030
    %v1125 = vpop.f32.mrf.mxu0
    %v1126 = vadd.f32 0.0, %v1125
    %1127 = vdwg.mxu0
    %v1128 = vadd.f32 %v959, %v1058
    %v1129 = vadd.f32 %v960, %v1102
    %v1130 = vadd.f32 %v961, %v1061
    %v1131 = vadd.f32 %v962, %v1105
    %v1132 = vadd.f32 %v963, %v1064
    %v1133 = vadd.f32 %v964, %v1108
    %v1134 = vadd.f32 %v965, %v1067
    %v1135 = vadd.f32 %v966, %v1111
    %v1136 = vadd.f32 %v967, %v1070
    %v1137 = vadd.f32 %v968, %v1114
    %v1138 = vadd.f32 %v969, %v1073
    %v1139 = vadd.f32 %v970, %v1117
    %v1140 = vadd.f32 %v971, %v1076
    %v1141 = vadd.f32 %v972, %v1120
    %v1142 = vadd.f32 %v973, %v1079
    %v1143 = vadd.f32 %v974, %v1123
    %v1144 = vadd.f32 %v975, %v1082
    %v1145 = vadd.f32 %v976, %v1126
    %s1146 = scalar_lea.vmem %s1, 1792
    %v1147 = vld [vmem:[%s1146] sm:$0xff]
    %v1148 = vld [vmem:[%s1146 + $0x8] sm:$0xff]
    %v1149 = vld [vmem:[%s1146 + $0x10] sm:$0xff]
    %v1150 = vld [vmem:[%s1146 + $0x18] sm:$0xff]
    %v1151 = vld [vmem:[%s1146 + $0x20] sm:$0xff]
    %v1152 = vld [vmem:[%s1146 + $0x28] sm:$0xff]
    %v1153 = vld [vmem:[%s1146 + $0x30] sm:$0xff]
    %v1154 = vld [vmem:[%s1146 + $0x38] sm:$0xff]
    %v1155 = vld [vmem:[%s1146 + $0x40] sm:$0xff]
    %v1156 = vld [vmem:[%s1146 + $0x48] sm:$0xff]
    %v1157 = vld [vmem:[%s1146 + $0x50] sm:$0xff]
    %v1158 = vld [vmem:[%s1146 + $0x58] sm:$0xff]
    %v1159 = vld [vmem:[%s1146 + $0x60] sm:$0xff]
    %v1160 = vld [vmem:[%s1146 + $0x68] sm:$0xff]
    %v1161 = vld [vmem:[%s1146 + $0x70] sm:$0xff]
    %v1162 = vld [vmem:[%s1146 + $0x78] sm:$0xff]
    %v1163 = vld [vmem:[%s1146 + $0x80] sm:$0xff]
    %v1164 = vld [vmem:[%s1146 + $0x88] sm:$0xff]
    %v1165 = vld [vmem:[%s1146 + $0x90] sm:$0xff]
    %v1166 = vld [vmem:[%s1146 + $0x98] sm:$0xff]
    %v1167 = vld [vmem:[%s1146 + $0xa0] sm:$0xff]
    %v1168 = vld [vmem:[%s1146 + $0xa8] sm:$0xff]
    %v1169 = vld [vmem:[%s1146 + $0xb0] sm:$0xff]
    %v1170 = vld [vmem:[%s1146 + $0xb8] sm:$0xff]
    %v1171 = vld [vmem:[%s1146 + $0xc0] sm:$0xff]
    %v1172 = vld [vmem:[%s1146 + $0xc8] sm:$0xff]
    %v1173 = vld [vmem:[%s1146 + $0xd0] sm:$0xff]
    %v1174 = vld [vmem:[%s1146 + $0xd8] sm:$0xff]
    %v1175 = vld [vmem:[%s1146 + $0xe0] sm:$0xff]
    %v1176 = vld [vmem:[%s1146 + $0xe8] sm:$0xff]
    %v1177 = vld [vmem:[%s1146 + $0xf0] sm:$0xff]
    %v1178 = vld [vmem:[%s1146 + $0xf8] sm:$0xff]
    %vm1179 = vcmask 1042432
    %v1180 = vrot.slane %v44, 5
    %v1181 = vrot.slane %v45, 5
    %v1182 = vsel %vm1179, %v1180, %v1181
    %v1183 = vrot.slane %v46, 5
    %v1184 = vsel %vm1179, %v1181, %v1183
    %v1185 = vrot.slane %v47, 5
    %v1186 = vsel %vm1179, %v1183, %v1185
    %v1187 = vrot.slane %v48, 5
    %v1188 = vsel %vm1179, %v1185, %v1187
    %v1189 = vrot.slane %v49, 5
    %v1190 = vsel %vm1179, %v1187, %v1189
    %v1191 = vrot.slane %v50, 5
    %v1192 = vsel %vm1179, %v1189, %v1191
    %v1193 = vrot.slane %v51, 5
    %v1194 = vsel %vm1179, %v1191, %v1193
    %v1195 = vrot.slane %v52, 5
    %v1196 = vsel %vm1179, %v1193, %v1195
    %v1197 = vrot.slane %v53, 5
    %v1198 = vsel %vm1179, %v1195, %v1197
    %1208 = vmatpush.msra.mxu0 %v1177
    %1209 = vmatpush.msra.mxu0 %v1175
    %1210 = vmatpush.msra.mxu0 %v1173
    %1211 = vmatpush.msra.mxu0 %v1171
    %1212 = vmatpush.msra.mxu0 %v1169
    %1213 = vmatpush.msra.mxu0 %v1167
    %1214 = vmatpush.msra.mxu0 %v1165
    %1215 = vmatpush.msra.mxu0 %v1163
    %1216 = vmatpush.msra.mxu0 %v1161
    %1217 = vmatpush.msra.mxu0 %v1159
    %1218 = vmatpush.msra.mxu0 %v1157
    %1219 = vmatpush.msra.mxu0 %v1155
    %1220 = vmatpush.msra.mxu0 %v1153
    %1221 = vmatpush.msra.mxu0 %v1151
    %1222 = vmatpush.msra.mxu0 %v1149
    %1223 = vmatpush.msra.mxu0 %v1147
    %1224 = vmatmul.f32.gmra.mxu0 %v1182
    %v1225 = vpop.f32.mrf.mxu0
    %v1226 = vadd.f32 0.0, %v1225
    %1227 = vmatmul.f32.gmra.mxu0 %v1184
    %v1228 = vpop.f32.mrf.mxu0
    %v1229 = vadd.f32 0.0, %v1228
    %1230 = vmatmul.f32.gmra.mxu0 %v1186
    %v1231 = vpop.f32.mrf.mxu0
    %v1232 = vadd.f32 0.0, %v1231
    %1233 = vmatmul.f32.gmra.mxu0 %v1188
    %v1234 = vpop.f32.mrf.mxu0
    %v1235 = vadd.f32 0.0, %v1234
    %1236 = vmatmul.f32.gmra.mxu0 %v1190
    %v1237 = vpop.f32.mrf.mxu0
    %v1238 = vadd.f32 0.0, %v1237
    %1239 = vmatmul.f32.gmra.mxu0 %v1192
    %v1240 = vpop.f32.mrf.mxu0
    %v1241 = vadd.f32 0.0, %v1240
    %1242 = vmatmul.f32.gmra.mxu0 %v1194
    %v1243 = vpop.f32.mrf.mxu0
    %v1244 = vadd.f32 0.0, %v1243
    %1245 = vmatmul.f32.gmra.mxu0 %v1196
    %v1246 = vpop.f32.mrf.mxu0
    %v1247 = vadd.f32 0.0, %v1246
    %1248 = vmatmul.f32.gmra.mxu0 %v1198
    %v1249 = vpop.f32.mrf.mxu0
    %v1250 = vadd.f32 0.0, %v1249
    %1251 = vdwg.mxu0
    %1252 = vmatpush.msra.mxu0 %v1178
    %1253 = vmatpush.msra.mxu0 %v1176
    %1254 = vmatpush.msra.mxu0 %v1174
    %1255 = vmatpush.msra.mxu0 %v1172
    %1256 = vmatpush.msra.mxu0 %v1170
    %1257 = vmatpush.msra.mxu0 %v1168
    %1258 = vmatpush.msra.mxu0 %v1166
    %1259 = vmatpush.msra.mxu0 %v1164
    %1260 = vmatpush.msra.mxu0 %v1162
    %1261 = vmatpush.msra.mxu0 %v1160
    %1262 = vmatpush.msra.mxu0 %v1158
    %1263 = vmatpush.msra.mxu0 %v1156
    %1264 = vmatpush.msra.mxu0 %v1154
    %1265 = vmatpush.msra.mxu0 %v1152
    %1266 = vmatpush.msra.mxu0 %v1150
    %1267 = vmatpush.msra.mxu0 %v1148
    %1268 = vmatmul.f32.gmra.mxu0 %v1182
    %v1269 = vpop.f32.mrf.mxu0
    %v1270 = vadd.f32 0.0, %v1269
    %1271 = vmatmul.f32.gmra.mxu0 %v1184
    %v1272 = vpop.f32.mrf.mxu0
    %v1273 = vadd.f32 0.0, %v1272
    %1274 = vmatmul.f32.gmra.mxu0 %v1186
    %v1275 = vpop.f32.mrf.mxu0
    %v1276 = vadd.f32 0.0, %v1275
    %1277 = vmatmul.f32.gmra.mxu0 %v1188
    %v1278 = vpop.f32.mrf.mxu0
    %v1279 = vadd.f32 0.0, %v1278
    %1280 = vmatmul.f32.gmra.mxu0 %v1190
    %v1281 = vpop.f32.mrf.mxu0
    %v1282 = vadd.f32 0.0, %v1281
    %1283 = vmatmul.f32.gmra.mxu0 %v1192
    %v1284 = vpop.f32.mrf.mxu0
    %v1285 = vadd.f32 0.0, %v1284
    %1286 = vmatmul.f32.gmra.mxu0 %v1194
    %v1287 = vpop.f32.mrf.mxu0
    %v1288 = vadd.f32 0.0, %v1287
    %1289 = vmatmul.f32.gmra.mxu0 %v1196
    %v1290 = vpop.f32.mrf.mxu0
    %v1291 = vadd.f32 0.0, %v1290
    %1292 = vmatmul.f32.gmra.mxu0 %v1198
    %v1293 = vpop.f32.mrf.mxu0
    %v1294 = vadd.f32 0.0, %v1293
    %1295 = vdwg.mxu0
    %v1296 = vadd.f32 %v1128, %v1226
    %v1297 = vadd.f32 %v1129, %v1270
    %v1298 = vadd.f32 %v1130, %v1229
    %v1299 = vadd.f32 %v1131, %v1273
    %v1300 = vadd.f32 %v1132, %v1232
    %v1301 = vadd.f32 %v1133, %v1276
    %v1302 = vadd.f32 %v1134, %v1235
    %v1303 = vadd.f32 %v1135, %v1279
    %v1304 = vadd.f32 %v1136, %v1238
    %v1305 = vadd.f32 %v1137, %v1282
    %v1306 = vadd.f32 %v1138, %v1241
    %v1307 = vadd.f32 %v1139, %v1285
    %v1308 = vadd.f32 %v1140, %v1244
    %v1309 = vadd.f32 %v1141, %v1288
    %v1310 = vadd.f32 %v1142, %v1247
    %v1311 = vadd.f32 %v1143, %v1291
    %v1312 = vadd.f32 %v1144, %v1250
    %v1313 = vadd.f32 %v1145, %v1294
    %s1314 = scalar_lea.vmem %s1, 2048
    %v1315 = vld [vmem:[%s1314] sm:$0xff]
    %v1316 = vld [vmem:[%s1314 + $0x8] sm:$0xff]
    %v1317 = vld [vmem:[%s1314 + $0x10] sm:$0xff]
    %v1318 = vld [vmem:[%s1314 + $0x18] sm:$0xff]
    %v1319 = vld [vmem:[%s1314 + $0x20] sm:$0xff]
    %v1320 = vld [vmem:[%s1314 + $0x28] sm:$0xff]
    %v1321 = vld [vmem:[%s1314 + $0x30] sm:$0xff]
    %v1322 = vld [vmem:[%s1314 + $0x38] sm:$0xff]
    %v1323 = vld [vmem:[%s1314 + $0x40] sm:$0xff]
    %v1324 = vld [vmem:[%s1314 + $0x48] sm:$0xff]
    %v1325 = vld [vmem:[%s1314 + $0x50] sm:$0xff]
    %v1326 = vld [vmem:[%s1314 + $0x58] sm:$0xff]
    %v1327 = vld [vmem:[%s1314 + $0x60] sm:$0xff]
    %v1328 = vld [vmem:[%s1314 + $0x68] sm:$0xff]
    %v1329 = vld [vmem:[%s1314 + $0x70] sm:$0xff]
    %v1330 = vld [vmem:[%s1314 + $0x78] sm:$0xff]
    %v1331 = vld [vmem:[%s1314 + $0x80] sm:$0xff]
    %v1332 = vld [vmem:[%s1314 + $0x88] sm:$0xff]
    %v1333 = vld [vmem:[%s1314 + $0x90] sm:$0xff]
    %v1334 = vld [vmem:[%s1314 + $0x98] sm:$0xff]
    %v1335 = vld [vmem:[%s1314 + $0xa0] sm:$0xff]
    %v1336 = vld [vmem:[%s1314 + $0xa8] sm:$0xff]
    %v1337 = vld [vmem:[%s1314 + $0xb0] sm:$0xff]
    %v1338 = vld [vmem:[%s1314 + $0xb8] sm:$0xff]
    %v1339 = vld [vmem:[%s1314 + $0xc0] sm:$0xff]
    %v1340 = vld [vmem:[%s1314 + $0xc8] sm:$0xff]
    %v1341 = vld [vmem:[%s1314 + $0xd0] sm:$0xff]
    %v1342 = vld [vmem:[%s1314 + $0xd8] sm:$0xff]
    %v1343 = vld [vmem:[%s1314 + $0xe0] sm:$0xff]
    %v1344 = vld [vmem:[%s1314 + $0xe8] sm:$0xff]
    %v1345 = vld [vmem:[%s1314 + $0xf0] sm:$0xff]
    %v1346 = vld [vmem:[%s1314 + $0xf8] sm:$0xff]
    %v1347 = vrot.slane %v53, 6
    %v1348 = vsel %vm535, %v553, %v1347
    %1350 = vmatpush.msra.mxu0 %v1345
    %1351 = vmatpush.msra.mxu0 %v1343
    %1352 = vmatpush.msra.mxu0 %v1341
    %1353 = vmatpush.msra.mxu0 %v1339
    %1354 = vmatpush.msra.mxu0 %v1337
    %1355 = vmatpush.msra.mxu0 %v1335
    %1356 = vmatpush.msra.mxu0 %v1333
    %1357 = vmatpush.msra.mxu0 %v1331
    %1358 = vmatpush.msra.mxu0 %v1329
    %1359 = vmatpush.msra.mxu0 %v1327
    %1360 = vmatpush.msra.mxu0 %v1325
    %1361 = vmatpush.msra.mxu0 %v1323
    %1362 = vmatpush.msra.mxu0 %v1321
    %1363 = vmatpush.msra.mxu0 %v1319
    %1364 = vmatpush.msra.mxu0 %v1317
    %1365 = vmatpush.msra.mxu0 %v1315
    %1366 = vmatmul.f32.gmra.mxu0 %v540
    %v1367 = vpop.f32.mrf.mxu0
    %v1368 = vadd.f32 0.0, %v1367
    %1369 = vmatmul.f32.gmra.mxu0 %v542
    %v1370 = vpop.f32.mrf.mxu0
    %v1371 = vadd.f32 0.0, %v1370
    %1372 = vmatmul.f32.gmra.mxu0 %v544
    %v1373 = vpop.f32.mrf.mxu0
    %v1374 = vadd.f32 0.0, %v1373
    %1375 = vmatmul.f32.gmra.mxu0 %v546
    %v1376 = vpop.f32.mrf.mxu0
    %v1377 = vadd.f32 0.0, %v1376
    %1378 = vmatmul.f32.gmra.mxu0 %v548
    %v1379 = vpop.f32.mrf.mxu0
    %v1380 = vadd.f32 0.0, %v1379
    %1381 = vmatmul.f32.gmra.mxu0 %v550
    %v1382 = vpop.f32.mrf.mxu0
    %v1383 = vadd.f32 0.0, %v1382
    %1384 = vmatmul.f32.gmra.mxu0 %v552
    %v1385 = vpop.f32.mrf.mxu0
    %v1386 = vadd.f32 0.0, %v1385
    %1387 = vmatmul.f32.gmra.mxu0 %v554
    %v1388 = vpop.f32.mrf.mxu0
    %v1389 = vadd.f32 0.0, %v1388
    %1390 = vmatmul.f32.gmra.mxu0 %v1348
    %v1391 = vpop.f32.mrf.mxu0
    %v1392 = vadd.f32 0.0, %v1391
    %1393 = vdwg.mxu0
    %1394 = vmatpush.msra.mxu0 %v1346
    %1395 = vmatpush.msra.mxu0 %v1344
    %1396 = vmatpush.msra.mxu0 %v1342
    %1397 = vmatpush.msra.mxu0 %v1340
    %1398 = vmatpush.msra.mxu0 %v1338
    %1399 = vmatpush.msra.mxu0 %v1336
    %1400 = vmatpush.msra.mxu0 %v1334
    %1401 = vmatpush.msra.mxu0 %v1332
    %1402 = vmatpush.msra.mxu0 %v1330
    %1403 = vmatpush.msra.mxu0 %v1328
    %1404 = vmatpush.msra.mxu0 %v1326
    %1405 = vmatpush.msra.mxu0 %v1324
    %1406 = vmatpush.msra.mxu0 %v1322
    %1407 = vmatpush.msra.mxu0 %v1320
    %1408 = vmatpush.msra.mxu0 %v1318
    %1409 = vmatpush.msra.mxu0 %v1316
    %1410 = vmatmul.f32.gmra.mxu0 %v540
    %v1411 = vpop.f32.mrf.mxu0
    %v1412 = vadd.f32 0.0, %v1411
    %1413 = vmatmul.f32.gmra.mxu0 %v542
    %v1414 = vpop.f32.mrf.mxu0
    %v1415 = vadd.f32 0.0, %v1414
    %1416 = vmatmul.f32.gmra.mxu0 %v544
    %v1417 = vpop.f32.mrf.mxu0
    %v1418 = vadd.f32 0.0, %v1417
    %1419 = vmatmul.f32.gmra.mxu0 %v546
    %v1420 = vpop.f32.mrf.mxu0
    %v1421 = vadd.f32 0.0, %v1420
    %1422 = vmatmul.f32.gmra.mxu0 %v548
    %v1423 = vpop.f32.mrf.mxu0
    %v1424 = vadd.f32 0.0, %v1423
    %1425 = vmatmul.f32.gmra.mxu0 %v550
    %v1426 = vpop.f32.mrf.mxu0
    %v1427 = vadd.f32 0.0, %v1426
    %1428 = vmatmul.f32.gmra.mxu0 %v552
    %v1429 = vpop.f32.mrf.mxu0
    %v1430 = vadd.f32 0.0, %v1429
    %1431 = vmatmul.f32.gmra.mxu0 %v554
    %v1432 = vpop.f32.mrf.mxu0
    %v1433 = vadd.f32 0.0, %v1432
    %1434 = vmatmul.f32.gmra.mxu0 %v1348
    %v1435 = vpop.f32.mrf.mxu0
    %v1436 = vadd.f32 0.0, %v1435
    %1437 = vdwg.mxu0
    %v1438 = vadd.f32 %v1296, %v1368
    %v1439 = vadd.f32 %v1297, %v1412
    %v1440 = vadd.f32 %v1298, %v1371
    %v1441 = vadd.f32 %v1299, %v1415
    %v1442 = vadd.f32 %v1300, %v1374
    %v1443 = vadd.f32 %v1301, %v1418
    %v1444 = vadd.f32 %v1302, %v1377
    %v1445 = vadd.f32 %v1303, %v1421
    %v1446 = vadd.f32 %v1304, %v1380
    %v1447 = vadd.f32 %v1305, %v1424
    %v1448 = vadd.f32 %v1306, %v1383
    %v1449 = vadd.f32 %v1307, %v1427
    %v1450 = vadd.f32 %v1308, %v1386
    %v1451 = vadd.f32 %v1309, %v1430
    %v1452 = vadd.f32 %v1310, %v1389
    %v1453 = vadd.f32 %v1311, %v1433
    %v1454 = vadd.f32 %v1312, %v1392
    %v1455 = vadd.f32 %v1313, %v1436
    %v1456 = vld [vmem:[%s4] sm:$0xff]
    %v1457 = vld [vmem:[%s4 + $0x8] sm:$0xff]
    %v1458 = vld [vmem:[%s4 + $0x10] sm:$0xff]
    %v1459 = vld [vmem:[%s4 + $0x18] sm:$0xff]
    %v1460 = vld [vmem:[%s4 + $0x20] sm:$0xff]
    %v1461 = vld [vmem:[%s4 + $0x28] sm:$0xff]
    %v1462 = vld [vmem:[%s4 + $0x30] sm:$0xff]
    %v1463 = vld [vmem:[%s4 + $0x38] sm:$0xff]
    %v1464 = vld [vmem:[%s4 + $0x40] sm:$0xff]
    %1466 = vset.pattern.permute.xlu0 0
    %1467 = vperm.xlu0 %1466, %v1456
    %v1468 = vpop.permute.xlu0 %1467
    %1471 = vset.pattern.permute.xlu0 0
    %1472 = vperm.xlu0 %1471, %v1457
    %v1473 = vpop.permute.xlu0 %1472
    %1476 = vset.pattern.permute.xlu0 0
    %1477 = vperm.xlu0 %1476, %v1458
    %v1478 = vpop.permute.xlu0 %1477
    %1481 = vset.pattern.permute.xlu0 0
    %1482 = vperm.xlu0 %1481, %v1459
    %v1483 = vpop.permute.xlu0 %1482
    %1486 = vset.pattern.permute.xlu0 0
    %1487 = vperm.xlu0 %1486, %v1460
    %v1488 = vpop.permute.xlu0 %1487
    %1491 = vset.pattern.permute.xlu0 0
    %1492 = vperm.xlu0 %1491, %v1461
    %v1493 = vpop.permute.xlu0 %1492
    %1496 = vset.pattern.permute.xlu0 0
    %1497 = vperm.xlu0 %1496, %v1462
    %v1498 = vpop.permute.xlu0 %1497
    %1501 = vset.pattern.permute.xlu0 0
    %1502 = vperm.xlu0 %1501, %v1463
    %v1503 = vpop.permute.xlu0 %1502
    %1506 = vset.pattern.permute.xlu0 0
    %1507 = vperm.xlu0 %1506, %v1464
    %v1508 = vpop.permute.xlu0 %1507
    %v1510 = vmul.f32 %v1438, %v1468
    %v1511 = vmul.f32 %v1439, %v1468
    %v1512 = vmul.f32 %v1440, %v1473
    %v1513 = vmul.f32 %v1441, %v1473
    %v1514 = vmul.f32 %v1442, %v1478
    %v1515 = vmul.f32 %v1443, %v1478
    %v1516 = vmul.f32 %v1444, %v1483
    %v1517 = vmul.f32 %v1445, %v1483
    %v1518 = vmul.f32 %v1446, %v1488
    %v1519 = vmul.f32 %v1447, %v1488
    %v1520 = vmul.f32 %v1448, %v1493
    %v1521 = vmul.f32 %v1449, %v1493
    %v1522 = vmul.f32 %v1450, %v1498
    %v1523 = vmul.f32 %v1451, %v1498
    %v1524 = vmul.f32 %v1452, %v1503
    %v1525 = vmul.f32 %v1453, %v1503
    %v1526 = vmul.f32 %v1454, %v1508
    %v1527 = vmul.f32 %v1455, %v1508
    %v1528 = vadd.f32 %v1510, %v1512
    %v1529 = vadd.f32 %v1528, %v1514
    %v1530 = vadd.f32 %v1529, %v1516
    %v1531 = vadd.f32 %v1530, %v1518
    %v1532 = vadd.f32 %v1531, %v1520
    %v1533 = vadd.f32 %v1532, %v1522
    %v1534 = vadd.f32 %v1533, %v1524
    %v1535 = vadd.f32 %v1534, %v1526
    %v1536 = vrot.slane %v1535, 4
    %v1537 = vadd.f32 %v1535, %v1536
    %v1538 = vrot.slane %v1537, 2
    %v1539 = vadd.f32 %v1537, %v1538
    %v1540 = vrot.slane %v1539, 1
    %v1541 = vadd.f32 %v1539, %v1540
    %v1542 = vadd.f32 %v1511, %v1513
    %v1543 = vadd.f32 %v1542, %v1515
    %v1544 = vadd.f32 %v1543, %v1517
    %v1545 = vadd.f32 %v1544, %v1519
    %v1546 = vadd.f32 %v1545, %v1521
    %v1547 = vadd.f32 %v1546, %v1523
    %v1548 = vadd.f32 %v1547, %v1525
    %v1549 = vadd.f32 %v1548, %v1527
    %v1550 = vrot.slane %v1549, 4
    %v1551 = vadd.f32 %v1549, %v1550
    %v1552 = vrot.slane %v1551, 2
    %v1553 = vadd.f32 %v1551, %v1552
    %v1554 = vrot.slane %v1553, 1
    %v1555 = vadd.f32 %v1553, %v1554
    %v1556 = vmul.f32 %v1541, 0.03125
    %v1557 = vmul.f32 %v1555, 0.03125
    %v1558 = vsub.f32 %v1438, %v1556
    %v1559 = vsub.f32 %v1439, %v1557
    %v1560 = vsub.f32 %v1440, %v1556
    %v1561 = vsub.f32 %v1441, %v1557
    %v1562 = vsub.f32 %v1442, %v1556
    %v1563 = vsub.f32 %v1443, %v1557
    %v1564 = vsub.f32 %v1444, %v1556
    %v1565 = vsub.f32 %v1445, %v1557
    %v1566 = vsub.f32 %v1446, %v1556
    %v1567 = vsub.f32 %v1447, %v1557
    %v1568 = vsub.f32 %v1448, %v1556
    %v1569 = vsub.f32 %v1449, %v1557
    %v1570 = vsub.f32 %v1450, %v1556
    %v1571 = vsub.f32 %v1451, %v1557
    %v1572 = vsub.f32 %v1452, %v1556
    %v1573 = vsub.f32 %v1453, %v1557
    %v1574 = vsub.f32 %v1454, %v1556
    %v1575 = vsub.f32 %v1455, %v1557
    %v1576 = vmul.f32 %v1558, %v1468
    %v1577 = vmul.f32 %v1559, %v1468
    %v1578 = vmul.f32 %v1560, %v1473
    %v1579 = vmul.f32 %v1561, %v1473
    %v1580 = vmul.f32 %v1562, %v1478
    %v1581 = vmul.f32 %v1563, %v1478
    %v1582 = vmul.f32 %v1564, %v1483
    %v1583 = vmul.f32 %v1565, %v1483
    %v1584 = vmul.f32 %v1566, %v1488
    %v1585 = vmul.f32 %v1567, %v1488
    %v1586 = vmul.f32 %v1568, %v1493
    %v1587 = vmul.f32 %v1569, %v1493
    %v1588 = vmul.f32 %v1570, %v1498
    %v1589 = vmul.f32 %v1571, %v1498
    %v1590 = vmul.f32 %v1572, %v1503
    %v1591 = vmul.f32 %v1573, %v1503
    %v1592 = vmul.f32 %v1574, %v1508
    %v1593 = vmul.f32 %v1575, %v1508
    %v1594 = vmul.f32 %v1576, %v1576
    %v1595 = vmul.f32 %v1577, %v1577
    %v1596 = vmul.f32 %v1578, %v1578
    %v1597 = vmul.f32 %v1579, %v1579
    %v1598 = vmul.f32 %v1580, %v1580
    %v1599 = vmul.f32 %v1581, %v1581
    %v1600 = vmul.f32 %v1582, %v1582
    %v1601 = vmul.f32 %v1583, %v1583
    %v1602 = vmul.f32 %v1584, %v1584
    %v1603 = vmul.f32 %v1585, %v1585
    %v1604 = vmul.f32 %v1586, %v1586
    %v1605 = vmul.f32 %v1587, %v1587
    %v1606 = vmul.f32 %v1588, %v1588
    %v1607 = vmul.f32 %v1589, %v1589
    %v1608 = vmul.f32 %v1590, %v1590
    %v1609 = vmul.f32 %v1591, %v1591
    %v1610 = vmul.f32 %v1592, %v1592
    %v1611 = vmul.f32 %v1593, %v1593
    %v1612 = vadd.f32 %v1594, %v1596
    %v1613 = vadd.f32 %v1612, %v1598
    %v1614 = vadd.f32 %v1613, %v1600
    %v1615 = vadd.f32 %v1614, %v1602
    %v1616 = vadd.f32 %v1615, %v1604
    %v1617 = vadd.f32 %v1616, %v1606
    %v1618 = vadd.f32 %v1617, %v1608
    %v1619 = vadd.f32 %v1618, %v1610
    %v1620 = vrot.slane %v1619, 4
    %v1621 = vadd.f32 %v1619, %v1620
    %v1622 = vrot.slane %v1621, 2
    %v1623 = vadd.f32 %v1621, %v1622
    %v1624 = vrot.slane %v1623, 1
    %v1625 = vadd.f32 %v1623, %v1624
    %v1626 = vadd.f32 %v1595, %v1597
    %v1627 = vadd.f32 %v1626, %v1599
    %v1628 = vadd.f32 %v1627, %v1601
    %v1629 = vadd.f32 %v1628, %v1603
    %v1630 = vadd.f32 %v1629, %v1605
    %v1631 = vadd.f32 %v1630, %v1607
    %v1632 = vadd.f32 %v1631, %v1609
    %v1633 = vadd.f32 %v1632, %v1611
    %v1634 = vrot.slane %v1633, 4
    %v1635 = vadd.f32 %v1633, %v1634
    %v1636 = vrot.slane %v1635, 2
    %v1637 = vadd.f32 %v1635, %v1636
    %v1638 = vrot.slane %v1637, 1
    %v1639 = vadd.f32 %v1637, %v1638
    %v1640 = vmul.f32 %v1625, 0.03125
    %v1641 = vmul.f32 %v1639, 0.03125
    %v1642 = vadd.f32 %v1640, 1e-05
    %v1643 = vadd.f32 %v1641, 1e-05
    %v1644 = vrsqrt.pop %v1642
    %v1645 = vmul.f32 %v1644, %v1642
    %v1646 = vmul.f32 %v1645, %v1644
    %v1647 = vmul.f32 0.5, %v1646
    %v1648 = vsub.f32 1.5, %v1647
    %v1649 = vmul.f32 %v1644, %v1648
    %vm1650 = vweird.f32 %v1642
    %vm1651 = vweird.f32 %v1644
    %vm1652 = vmor %vm1650, %vm1651
    %v1653 = vsel %vm1652, %v1644, %v1649
    %v1654 = vrsqrt.pop %v1643
    %v1655 = vmul.f32 %v1654, %v1643
    %v1656 = vmul.f32 %v1655, %v1654
    %v1657 = vmul.f32 0.5, %v1656
    %v1658 = vsub.f32 1.5, %v1657
    %v1659 = vmul.f32 %v1654, %v1658
    %vm1660 = vweird.f32 %v1643
    %vm1661 = vweird.f32 %v1654
    %vm1662 = vmor %vm1660, %vm1661
    %v1663 = vsel %vm1662, %v1654, %v1659
    %v1664 = vld [vmem:[%s2] sm:$0x3]
    %v1667 = vrot.slane %v1663, 7
    %v1668 = vsel %vm703, %v1653, %v1667
    %v1670 = vmul.f32 %v1664, %v1668
    %v1671 = vld [vmem:[%s3] sm:$0x3]
    %v1673 = vperm.slane %v1670, 0
    %v1674 = vperm.slane %v1670, 1
    %v1677 = vmul.f32 %v1556, %v1673
    %v1678 = vmul.f32 %v1557, %v1674
    %v1681 = vrot.slane %v1678, 7
    %v1682 = vsel %vm703, %v1677, %v1681
    %v1684 = vsub.f32 %v1671, %v1682
    %v1685 = vmul.f32 %v1438, %v1673
    %v1686 = vmul.f32 %v1439, %v1674
    %v1687 = vmul.f32 %v1440, %v1673
    %v1688 = vmul.f32 %v1441, %v1674
    %v1689 = vmul.f32 %v1442, %v1673
    %v1690 = vmul.f32 %v1443, %v1674
    %v1691 = vmul.f32 %v1444, %v1673
    %v1692 = vmul.f32 %v1445, %v1674
    %v1693 = vmul.f32 %v1446, %v1673
    %v1694 = vmul.f32 %v1447, %v1674
    %v1695 = vmul.f32 %v1448, %v1673
    %v1696 = vmul.f32 %v1449, %v1674
    %v1697 = vmul.f32 %v1450, %v1673
    %v1698 = vmul.f32 %v1451, %v1674
    %v1699 = vmul.f32 %v1452, %v1673
    %v1700 = vmul.f32 %v1453, %v1674
    %v1701 = vmul.f32 %v1454, %v1673
    %v1702 = vmul.f32 %v1455, %v1674
    %v1704 = vperm.slane %v1684, 0
    %v1705 = vperm.slane %v1684, 1
    %v1708 = vadd.f32 %v1685, %v1704
    %v1709 = vadd.f32 %v1686, %v1705
    %v1710 = vadd.f32 %v1687, %v1704
    %v1711 = vadd.f32 %v1688, %v1705
    %v1712 = vadd.f32 %v1689, %v1704
    %v1713 = vadd.f32 %v1690, %v1705
    %v1714 = vadd.f32 %v1691, %v1704
    %v1715 = vadd.f32 %v1692, %v1705
    %v1716 = vadd.f32 %v1693, %v1704
    %v1717 = vadd.f32 %v1694, %v1705
    %v1718 = vadd.f32 %v1695, %v1704
    %v1719 = vadd.f32 %v1696, %v1705
    %v1720 = vadd.f32 %v1697, %v1704
    %v1721 = vadd.f32 %v1698, %v1705
    %v1722 = vadd.f32 %v1699, %v1704
    %v1723 = vadd.f32 %v1700, %v1705
    %v1724 = vadd.f32 %v1701, %v1704
    %v1725 = vadd.f32 %v1702, %v1705
    %v1726 = vxor.u32 %v1708, 2147483648
    %v1727 = vxor.u32 %v1709, 2147483648
    %v1728 = vxor.u32 %v1710, 2147483648
    %v1729 = vxor.u32 %v1711, 2147483648
    %v1730 = vxor.u32 %v1712, 2147483648
    %v1731 = vxor.u32 %v1713, 2147483648
    %v1732 = vxor.u32 %v1714, 2147483648
    %v1733 = vxor.u32 %v1715, 2147483648
    %v1734 = vxor.u32 %v1716, 2147483648
    %v1735 = vxor.u32 %v1717, 2147483648
    %v1736 = vxor.u32 %v1718, 2147483648
    %v1737 = vxor.u32 %v1719, 2147483648
    %v1738 = vxor.u32 %v1720, 2147483648
    %v1739 = vxor.u32 %v1721, 2147483648
    %v1740 = vxor.u32 %v1722, 2147483648
    %v1741 = vxor.u32 %v1723, 2147483648
    %v1742 = vxor.u32 %v1724, 2147483648
    %v1743 = vxor.u32 %v1725, 2147483648
    %v1744 = vmul.f32 %v1726, 1.442695
    %v1745 = vpow.pop %v1744
    %v1746 = vmul.f32 %v1727, 1.442695
    %v1747 = vpow.pop %v1746
    %v1748 = vmul.f32 %v1728, 1.442695
    %v1749 = vpow.pop %v1748
    %v1750 = vmul.f32 %v1729, 1.442695
    %v1751 = vpow.pop %v1750
    %v1752 = vmul.f32 %v1730, 1.442695
    %v1753 = vpow.pop %v1752
    %v1754 = vmul.f32 %v1731, 1.442695
    %v1755 = vpow.pop %v1754
    %v1756 = vmul.f32 %v1732, 1.442695
    %v1757 = vpow.pop %v1756
    %v1758 = vmul.f32 %v1733, 1.442695
    %v1759 = vpow.pop %v1758
    %v1760 = vmul.f32 %v1734, 1.442695
    %v1761 = vpow.pop %v1760
    %v1762 = vmul.f32 %v1735, 1.442695
    %v1763 = vpow.pop %v1762
    %v1764 = vmul.f32 %v1736, 1.442695
    %v1765 = vpow.pop %v1764
    %v1766 = vmul.f32 %v1737, 1.442695
    %v1767 = vpow.pop %v1766
    %v1768 = vmul.f32 %v1738, 1.442695
    %v1769 = vpow.pop %v1768
    %v1770 = vmul.f32 %v1739, 1.442695
    %v1771 = vpow.pop %v1770
    %v1772 = vmul.f32 %v1740, 1.442695
    %v1773 = vpow.pop %v1772
    %v1774 = vmul.f32 %v1741, 1.442695
    %v1775 = vpow.pop %v1774
    %v1776 = vmul.f32 %v1742, 1.442695
    %v1777 = vpow.pop %v1776
    %v1778 = vmul.f32 %v1743, 1.442695
    %v1779 = vpow.pop %v1778
    %v1780 = vadd.f32 %v1745, 1.0
    %v1781 = vadd.f32 %v1747, 1.0
    %v1782 = vadd.f32 %v1749, 1.0
    %v1783 = vadd.f32 %v1751, 1.0
    %v1784 = vadd.f32 %v1753, 1.0
    %v1785 = vadd.f32 %v1755, 1.0
    %v1786 = vadd.f32 %v1757, 1.0
    %v1787 = vadd.f32 %v1759, 1.0
    %v1788 = vadd.f32 %v1761, 1.0
    %v1789 = vadd.f32 %v1763, 1.0
    %v1790 = vadd.f32 %v1765, 1.0
    %v1791 = vadd.f32 %v1767, 1.0
    %v1792 = vadd.f32 %v1769, 1.0
    %v1793 = vadd.f32 %v1771, 1.0
    %v1794 = vadd.f32 %v1773, 1.0
    %v1795 = vadd.f32 %v1775, 1.0
    %v1796 = vadd.f32 %v1777, 1.0
    %v1797 = vadd.f32 %v1779, 1.0
    %v1798 = vrcp.pop %v1780
    %v1799 = vmul.f32 %v1780, %v1798
    %v1800 = vsub.f32 1.0, %v1799
    %v1801 = vmul.f32 %v1798, %v1800
    %v1802 = vadd.f32 %v1798, %v1801
    %vm1803 = vweird.f32 %v1780
    %vm1804 = vweird.f32 %v1798
    %vm1805 = vmor %vm1803, %vm1804
    %v1806 = vsel %vm1805, %v1798, %v1802
    %v1807 = vand.u32 2147483647, %v1780
    %vm1808 = vcmp.eq.f32.partialorder %v1807, 8.507059e+37
    %v1809 = vand.u32 %v1780, 2147483648
    %v1810 = vor.u32 1.1754944e-38, %v1809
    %v1811 = vsel %vm1808, %v1810, %v1806
    %v1812 = vmul.f32 1.0, %v1811
    %v1813 = vrcp.pop %v1781
    %v1814 = vmul.f32 %v1781, %v1813
    %v1815 = vsub.f32 1.0, %v1814
    %v1816 = vmul.f32 %v1813, %v1815
    %v1817 = vadd.f32 %v1813, %v1816
    %vm1818 = vweird.f32 %v1781
    %vm1819 = vweird.f32 %v1813
    %vm1820 = vmor %vm1818, %vm1819
    %v1821 = vsel %vm1820, %v1813, %v1817
    %v1822 = vand.u32 2147483647, %v1781
    %vm1823 = vcmp.eq.f32.partialorder %v1822, 8.507059e+37
    %v1824 = vand.u32 %v1781, 2147483648
    %v1825 = vor.u32 1.1754944e-38, %v1824
    %v1826 = vsel %vm1823, %v1825, %v1821
    %v1827 = vmul.f32 1.0, %v1826
    %v1828 = vrcp.pop %v1782
    %v1829 = vmul.f32 %v1782, %v1828
    %v1830 = vsub.f32 1.0, %v1829
    %v1831 = vmul.f32 %v1828, %v1830
    %v1832 = vadd.f32 %v1828, %v1831
    %vm1833 = vweird.f32 %v1782
    %vm1834 = vweird.f32 %v1828
    %vm1835 = vmor %vm1833, %vm1834
    %v1836 = vsel %vm1835, %v1828, %v1832
    %v1837 = vand.u32 2147483647, %v1782
    %vm1838 = vcmp.eq.f32.partialorder %v1837, 8.507059e+37
    %v1839 = vand.u32 %v1782, 2147483648
    %v1840 = vor.u32 1.1754944e-38, %v1839
    %v1841 = vsel %vm1838, %v1840, %v1836
    %v1842 = vmul.f32 1.0, %v1841
    %v1843 = vrcp.pop %v1783
    %v1844 = vmul.f32 %v1783, %v1843
    %v1845 = vsub.f32 1.0, %v1844
    %v1846 = vmul.f32 %v1843, %v1845
    %v1847 = vadd.f32 %v1843, %v1846
    %vm1848 = vweird.f32 %v1783
    %vm1849 = vweird.f32 %v1843
    %vm1850 = vmor %vm1848, %vm1849
    %v1851 = vsel %vm1850, %v1843, %v1847
    %v1852 = vand.u32 2147483647, %v1783
    %vm1853 = vcmp.eq.f32.partialorder %v1852, 8.507059e+37
    %v1854 = vand.u32 %v1783, 2147483648
    %v1855 = vor.u32 1.1754944e-38, %v1854
    %v1856 = vsel %vm1853, %v1855, %v1851
    %v1857 = vmul.f32 1.0, %v1856
    %v1858 = vrcp.pop %v1784
    %v1859 = vmul.f32 %v1784, %v1858
    %v1860 = vsub.f32 1.0, %v1859
    %v1861 = vmul.f32 %v1858, %v1860
    %v1862 = vadd.f32 %v1858, %v1861
    %vm1863 = vweird.f32 %v1784
    %vm1864 = vweird.f32 %v1858
    %vm1865 = vmor %vm1863, %vm1864
    %v1866 = vsel %vm1865, %v1858, %v1862
    %v1867 = vand.u32 2147483647, %v1784
    %vm1868 = vcmp.eq.f32.partialorder %v1867, 8.507059e+37
    %v1869 = vand.u32 %v1784, 2147483648
    %v1870 = vor.u32 1.1754944e-38, %v1869
    %v1871 = vsel %vm1868, %v1870, %v1866
    %v1872 = vmul.f32 1.0, %v1871
    %v1873 = vrcp.pop %v1785
    %v1874 = vmul.f32 %v1785, %v1873
    %v1875 = vsub.f32 1.0, %v1874
    %v1876 = vmul.f32 %v1873, %v1875
    %v1877 = vadd.f32 %v1873, %v1876
    %vm1878 = vweird.f32 %v1785
    %vm1879 = vweird.f32 %v1873
    %vm1880 = vmor %vm1878, %vm1879
    %v1881 = vsel %vm1880, %v1873, %v1877
    %v1882 = vand.u32 2147483647, %v1785
    %vm1883 = vcmp.eq.f32.partialorder %v1882, 8.507059e+37
    %v1884 = vand.u32 %v1785, 2147483648
    %v1885 = vor.u32 1.1754944e-38, %v1884
    %v1886 = vsel %vm1883, %v1885, %v1881
    %v1887 = vmul.f32 1.0, %v1886
    %v1888 = vrcp.pop %v1786
    %v1889 = vmul.f32 %v1786, %v1888
    %v1890 = vsub.f32 1.0, %v1889
    %v1891 = vmul.f32 %v1888, %v1890
    %v1892 = vadd.f32 %v1888, %v1891
    %vm1893 = vweird.f32 %v1786
    %vm1894 = vweird.f32 %v1888
    %vm1895 = vmor %vm1893, %vm1894
    %v1896 = vsel %vm1895, %v1888, %v1892
    %v1897 = vand.u32 2147483647, %v1786
    %vm1898 = vcmp.eq.f32.partialorder %v1897, 8.507059e+37
    %v1899 = vand.u32 %v1786, 2147483648
    %v1900 = vor.u32 1.1754944e-38, %v1899
    %v1901 = vsel %vm1898, %v1900, %v1896
    %v1902 = vmul.f32 1.0, %v1901
    %v1903 = vrcp.pop %v1787
    %v1904 = vmul.f32 %v1787, %v1903
    %v1905 = vsub.f32 1.0, %v1904
    %v1906 = vmul.f32 %v1903, %v1905
    %v1907 = vadd.f32 %v1903, %v1906
    %vm1908 = vweird.f32 %v1787
    %vm1909 = vweird.f32 %v1903
    %vm1910 = vmor %vm1908, %vm1909
    %v1911 = vsel %vm1910, %v1903, %v1907
    %v1912 = vand.u32 2147483647, %v1787
    %vm1913 = vcmp.eq.f32.partialorder %v1912, 8.507059e+37
    %v1914 = vand.u32 %v1787, 2147483648
    %v1915 = vor.u32 1.1754944e-38, %v1914
    %v1916 = vsel %vm1913, %v1915, %v1911
    %v1917 = vmul.f32 1.0, %v1916
    %v1918 = vrcp.pop %v1788
    %v1919 = vmul.f32 %v1788, %v1918
    %v1920 = vsub.f32 1.0, %v1919
    %v1921 = vmul.f32 %v1918, %v1920
    %v1922 = vadd.f32 %v1918, %v1921
    %vm1923 = vweird.f32 %v1788
    %vm1924 = vweird.f32 %v1918
    %vm1925 = vmor %vm1923, %vm1924
    %v1926 = vsel %vm1925, %v1918, %v1922
    %v1927 = vand.u32 2147483647, %v1788
    %vm1928 = vcmp.eq.f32.partialorder %v1927, 8.507059e+37
    %v1929 = vand.u32 %v1788, 2147483648
    %v1930 = vor.u32 1.1754944e-38, %v1929
    %v1931 = vsel %vm1928, %v1930, %v1926
    %v1932 = vmul.f32 1.0, %v1931
    %v1933 = vrcp.pop %v1789
    %v1934 = vmul.f32 %v1789, %v1933
    %v1935 = vsub.f32 1.0, %v1934
    %v1936 = vmul.f32 %v1933, %v1935
    %v1937 = vadd.f32 %v1933, %v1936
    %vm1938 = vweird.f32 %v1789
    %vm1939 = vweird.f32 %v1933
    %vm1940 = vmor %vm1938, %vm1939
    %v1941 = vsel %vm1940, %v1933, %v1937
    %v1942 = vand.u32 2147483647, %v1789
    %vm1943 = vcmp.eq.f32.partialorder %v1942, 8.507059e+37
    %v1944 = vand.u32 %v1789, 2147483648
    %v1945 = vor.u32 1.1754944e-38, %v1944
    %v1946 = vsel %vm1943, %v1945, %v1941
    %v1947 = vmul.f32 1.0, %v1946
    %v1948 = vrcp.pop %v1790
    %v1949 = vmul.f32 %v1790, %v1948
    %v1950 = vsub.f32 1.0, %v1949
    %v1951 = vmul.f32 %v1948, %v1950
    %v1952 = vadd.f32 %v1948, %v1951
    %vm1953 = vweird.f32 %v1790
    %vm1954 = vweird.f32 %v1948
    %vm1955 = vmor %vm1953, %vm1954
    %v1956 = vsel %vm1955, %v1948, %v1952
    %v1957 = vand.u32 2147483647, %v1790
    %vm1958 = vcmp.eq.f32.partialorder %v1957, 8.507059e+37
    %v1959 = vand.u32 %v1790, 2147483648
    %v1960 = vor.u32 1.1754944e-38, %v1959
    %v1961 = vsel %vm1958, %v1960, %v1956
    %v1962 = vmul.f32 1.0, %v1961
    %v1963 = vrcp.pop %v1791
    %v1964 = vmul.f32 %v1791, %v1963
    %v1965 = vsub.f32 1.0, %v1964
    %v1966 = vmul.f32 %v1963, %v1965
    %v1967 = vadd.f32 %v1963, %v1966
    %vm1968 = vweird.f32 %v1791
    %vm1969 = vweird.f32 %v1963
    %vm1970 = vmor %vm1968, %vm1969
    %v1971 = vsel %vm1970, %v1963, %v1967
    %v1972 = vand.u32 2147483647, %v1791
    %vm1973 = vcmp.eq.f32.partialorder %v1972, 8.507059e+37
    %v1974 = vand.u32 %v1791, 2147483648
    %v1975 = vor.u32 1.1754944e-38, %v1974
    %v1976 = vsel %vm1973, %v1975, %v1971
    %v1977 = vmul.f32 1.0, %v1976
    %v1978 = vrcp.pop %v1792
    %v1979 = vmul.f32 %v1792, %v1978
    %v1980 = vsub.f32 1.0, %v1979
    %v1981 = vmul.f32 %v1978, %v1980
    %v1982 = vadd.f32 %v1978, %v1981
    %vm1983 = vweird.f32 %v1792
    %vm1984 = vweird.f32 %v1978
    %vm1985 = vmor %vm1983, %vm1984
    %v1986 = vsel %vm1985, %v1978, %v1982
    %v1987 = vand.u32 2147483647, %v1792
    %vm1988 = vcmp.eq.f32.partialorder %v1987, 8.507059e+37
    %v1989 = vand.u32 %v1792, 2147483648
    %v1990 = vor.u32 1.1754944e-38, %v1989
    %v1991 = vsel %vm1988, %v1990, %v1986
    %v1992 = vmul.f32 1.0, %v1991
    %v1993 = vrcp.pop %v1793
    %v1994 = vmul.f32 %v1793, %v1993
    %v1995 = vsub.f32 1.0, %v1994
    %v1996 = vmul.f32 %v1993, %v1995
    %v1997 = vadd.f32 %v1993, %v1996
    %vm1998 = vweird.f32 %v1793
    %vm1999 = vweird.f32 %v1993
    %vm2000 = vmor %vm1998, %vm1999
    %v2001 = vsel %vm2000, %v1993, %v1997
    %v2002 = vand.u32 2147483647, %v1793
    %vm2003 = vcmp.eq.f32.partialorder %v2002, 8.507059e+37
    %v2004 = vand.u32 %v1793, 2147483648
    %v2005 = vor.u32 1.1754944e-38, %v2004
    %v2006 = vsel %vm2003, %v2005, %v2001
    %v2007 = vmul.f32 1.0, %v2006
    %v2008 = vrcp.pop %v1794
    %v2009 = vmul.f32 %v1794, %v2008
    %v2010 = vsub.f32 1.0, %v2009
    %v2011 = vmul.f32 %v2008, %v2010
    %v2012 = vadd.f32 %v2008, %v2011
    %vm2013 = vweird.f32 %v1794
    %vm2014 = vweird.f32 %v2008
    %vm2015 = vmor %vm2013, %vm2014
    %v2016 = vsel %vm2015, %v2008, %v2012
    %v2017 = vand.u32 2147483647, %v1794
    %vm2018 = vcmp.eq.f32.partialorder %v2017, 8.507059e+37
    %v2019 = vand.u32 %v1794, 2147483648
    %v2020 = vor.u32 1.1754944e-38, %v2019
    %v2021 = vsel %vm2018, %v2020, %v2016
    %v2022 = vmul.f32 1.0, %v2021
    %v2023 = vrcp.pop %v1795
    %v2024 = vmul.f32 %v1795, %v2023
    %v2025 = vsub.f32 1.0, %v2024
    %v2026 = vmul.f32 %v2023, %v2025
    %v2027 = vadd.f32 %v2023, %v2026
    %vm2028 = vweird.f32 %v1795
    %vm2029 = vweird.f32 %v2023
    %vm2030 = vmor %vm2028, %vm2029
    %v2031 = vsel %vm2030, %v2023, %v2027
    %v2032 = vand.u32 2147483647, %v1795
    %vm2033 = vcmp.eq.f32.partialorder %v2032, 8.507059e+37
    %v2034 = vand.u32 %v1795, 2147483648
    %v2035 = vor.u32 1.1754944e-38, %v2034
    %v2036 = vsel %vm2033, %v2035, %v2031
    %v2037 = vmul.f32 1.0, %v2036
    %v2038 = vrcp.pop %v1796
    %v2039 = vmul.f32 %v1796, %v2038
    %v2040 = vsub.f32 1.0, %v2039
    %v2041 = vmul.f32 %v2038, %v2040
    %v2042 = vadd.f32 %v2038, %v2041
    %vm2043 = vweird.f32 %v1796
    %vm2044 = vweird.f32 %v2038
    %vm2045 = vmor %vm2043, %vm2044
    %v2046 = vsel %vm2045, %v2038, %v2042
    %v2047 = vand.u32 2147483647, %v1796
    %vm2048 = vcmp.eq.f32.partialorder %v2047, 8.507059e+37
    %v2049 = vand.u32 %v1796, 2147483648
    %v2050 = vor.u32 1.1754944e-38, %v2049
    %v2051 = vsel %vm2048, %v2050, %v2046
    %v2052 = vmul.f32 1.0, %v2051
    %v2053 = vrcp.pop %v1797
    %v2054 = vmul.f32 %v1797, %v2053
    %v2055 = vsub.f32 1.0, %v2054
    %v2056 = vmul.f32 %v2053, %v2055
    %v2057 = vadd.f32 %v2053, %v2056
    %vm2058 = vweird.f32 %v1797
    %vm2059 = vweird.f32 %v2053
    %vm2060 = vmor %vm2058, %vm2059
    %v2061 = vsel %vm2060, %v2053, %v2057
    %v2062 = vand.u32 2147483647, %v1797
    %vm2063 = vcmp.eq.f32.partialorder %v2062, 8.507059e+37
    %v2064 = vand.u32 %v1797, 2147483648
    %v2065 = vor.u32 1.1754944e-38, %v2064
    %v2066 = vsel %vm2063, %v2065, %v2061
    %v2067 = vmul.f32 1.0, %v2066
    %v2068 = vmul.f32 %v1708, %v1812
    %v2069 = vmul.f32 %v1709, %v1827
    %v2070 = vmul.f32 %v1710, %v1842
    %v2071 = vmul.f32 %v1711, %v1857
    %v2072 = vmul.f32 %v1712, %v1872
    %v2073 = vmul.f32 %v1713, %v1887
    %v2074 = vmul.f32 %v1714, %v1902
    %v2075 = vmul.f32 %v1715, %v1917
    %v2076 = vmul.f32 %v1716, %v1932
    %v2077 = vmul.f32 %v1717, %v1947
    %v2078 = vmul.f32 %v1718, %v1962
    %v2079 = vmul.f32 %v1719, %v1977
    %v2080 = vmul.f32 %v1720, %v1992
    %v2081 = vmul.f32 %v1721, %v2007
    %v2082 = vmul.f32 %v1722, %v2022
    %v2083 = vmul.f32 %v1723, %v2037
    %v2084 = vmul.f32 %v1724, %v2052
    %v2085 = vmul.f32 %v1725, %v2067
    %v2086 = vmul.f32 %v2068, %v1468
    %v2087 = vmul.f32 %v2069, %v1468
    %v2088 = vmul.f32 %v2070, %v1473
    %v2089 = vmul.f32 %v2071, %v1473
    %v2090 = vmul.f32 %v2072, %v1478
    %v2091 = vmul.f32 %v2073, %v1478
    %v2092 = vmul.f32 %v2074, %v1483
    %v2093 = vmul.f32 %v2075, %v1483
    %v2094 = vmul.f32 %v2076, %v1488
    %v2095 = vmul.f32 %v2077, %v1488
    %v2096 = vmul.f32 %v2078, %v1493
    %v2097 = vmul.f32 %v2079, %v1493
    %v2098 = vmul.f32 %v2080, %v1498
    %v2099 = vmul.f32 %v2081, %v1498
    %v2100 = vmul.f32 %v2082, %v1503
    %v2101 = vmul.f32 %v2083, %v1503
    %v2102 = vmul.f32 %v2084, %v1508
    %v2103 = vmul.f32 %v2085, %v1508
    %2104 = vst [vmem:[%s8] sm:$0xff] %v2086
    %2105 = vst [vmem:[%s8 + $0x8] sm:$0xff] %v2087
    %2106 = vst [vmem:[%s8 + $0x10] sm:$0xff] %v2088
    %2107 = vst [vmem:[%s8 + $0x18] sm:$0xff] %v2089
    %2108 = vst [vmem:[%s8 + $0x20] sm:$0xff] %v2090
    %2109 = vst [vmem:[%s8 + $0x28] sm:$0xff] %v2091
    %2110 = vst [vmem:[%s8 + $0x30] sm:$0xff] %v2092
    %2111 = vst [vmem:[%s8 + $0x38] sm:$0xff] %v2093
    %2112 = vst [vmem:[%s8 + $0x40] sm:$0xff] %v2094
    %2113 = vst [vmem:[%s8 + $0x48] sm:$0xff] %v2095
    %2114 = vst [vmem:[%s8 + $0x50] sm:$0xff] %v2096
    %2115 = vst [vmem:[%s8 + $0x58] sm:$0xff] %v2097
    %2116 = vst [vmem:[%s8 + $0x60] sm:$0xff] %v2098
    %2117 = vst [vmem:[%s8 + $0x68] sm:$0xff] %v2099
    %2118 = vst [vmem:[%s8 + $0x70] sm:$0xff] %v2100
    %2119 = vst [vmem:[%s8 + $0x78] sm:$0xff] %v2101
    %2120 = vst [vmem:[%s8 + $0x80] sm:$0xff] %v2102
    %2121 = vst [vmem:[%s8 + $0x88] sm:$0xff] %v2103
    %v2122 = vld [vmem:[%s5] sm:$0x3]
    %vm2123 = vcmask 588800
    %v2125 = vsel %vm2123, %v2122, 0
    %2127 = vmatpush.msra.mxu0 0.0
    %2128 = vmatpush.msra.mxu0 0.0
    %2129 = vmatpush.msra.mxu0 0.0
    %2130 = vmatpush.msra.mxu0 0.0
    %2131 = vmatpush.msra.mxu0 0.0
    %2132 = vmatpush.msra.mxu0 0.0
    %2133 = vmatpush.msra.mxu0 0.0
    %2134 = vmatpush.msra.mxu0 %v2102
    %2135 = vmatpush.msra.mxu0 %v2100
    %2136 = vmatpush.msra.mxu0 %v2098
    %2137 = vmatpush.msra.mxu0 %v2096
    %2138 = vmatpush.msra.mxu0 %v2094
    %2139 = vmatpush.msra.mxu0 %v2092
    %2140 = vmatpush.msra.mxu0 %v2090
    %2141 = vmatpush.msra.mxu0 %v2088
    %2142 = vmatpush.msra.mxu0 %v2086
    %2143 = vmatmul.f32.gmra.mxu0 %v2125
    %v2144 = vpop.f32.mrf.mxu0
    %v2145 = vadd.f32 0.0, %v2144
    %2146 = vdwg.mxu0
    %2147 = vmatpush.msra.mxu0 0.0
    %2148 = vmatpush.msra.mxu0 0.0
    %2149 = vmatpush.msra.mxu0 0.0
    %2150 = vmatpush.msra.mxu0 0.0
    %2151 = vmatpush.msra.mxu0 0.0
    %2152 = vmatpush.msra.mxu0 0.0
    %2153 = vmatpush.msra.mxu0 0.0
    %2154 = vmatpush.msra.mxu0 %v2103
    %2155 = vmatpush.msra.mxu0 %v2101
    %2156 = vmatpush.msra.mxu0 %v2099
    %2157 = vmatpush.msra.mxu0 %v2097
    %2158 = vmatpush.msra.mxu0 %v2095
    %2159 = vmatpush.msra.mxu0 %v2093
    %2160 = vmatpush.msra.mxu0 %v2091
    %2161 = vmatpush.msra.mxu0 %v2089
    %2162 = vmatpush.msra.mxu0 %v2087
    %2163 = vmatmul.f32.gmra.mxu0 %v2125
    %v2164 = vpop.f32.mrf.mxu0
    %v2165 = vadd.f32 0.0, %v2164
    %2166 = vdwg.mxu0
    %v2167 = vld [vmem:[%s6] sm:$0xff]
    %v2168 = vld [vmem:[%s6 + $0x8] sm:$0xff]
    %v2169 = vld [vmem:[%s6 + $0x10] sm:$0xff]
    %v2170 = vld [vmem:[%s6 + $0x18] sm:$0xff]
    %v2171 = vld [vmem:[%s6 + $0x20] sm:$0xff]
    %v2172 = vld [vmem:[%s6 + $0x28] sm:$0xff]
    %v2173 = vld [vmem:[%s6 + $0x30] sm:$0xff]
    %v2174 = vld [vmem:[%s6 + $0x38] sm:$0xff]
    %v2175 = vld [vmem:[%s6 + $0x40] sm:$0xff]
    %v2176 = vld [vmem:[%s6 + $0x48] sm:$0xff]
    %v2177 = vld [vmem:[%s6 + $0x50] sm:$0xff]
    %v2178 = vld [vmem:[%s6 + $0x58] sm:$0xff]
    %v2179 = vld [vmem:[%s6 + $0x60] sm:$0xff]
    %v2180 = vld [vmem:[%s6 + $0x68] sm:$0xff]
    %v2181 = vld [vmem:[%s6 + $0x70] sm:$0xff]
    %v2182 = vld [vmem:[%s6 + $0x78] sm:$0xff]
    %v2183 = vld [vmem:[%s6 + $0x80] sm:$0xff]
    %v2184 = vld [vmem:[%s6 + $0x88] sm:$0xff]
    %v2185 = vld [vmem:[%s6 + $0x90] sm:$0xff]
    %v2186 = vld [vmem:[%s6 + $0x98] sm:$0xff]
    %v2187 = vld [vmem:[%s6 + $0xa0] sm:$0xff]
    %v2188 = vld [vmem:[%s6 + $0xa8] sm:$0xff]
    %v2189 = vld [vmem:[%s6 + $0xb0] sm:$0xff]
    %v2190 = vld [vmem:[%s6 + $0xb8] sm:$0xff]
    %v2191 = vld [vmem:[%s6 + $0xc0] sm:$0xff]
    %v2192 = vld [vmem:[%s6 + $0xc8] sm:$0xff]
    %v2193 = vld [vmem:[%s6 + $0xd0] sm:$0xff]
    %v2194 = vld [vmem:[%s6 + $0xd8] sm:$0xff]
    %v2195 = vld [vmem:[%s6 + $0xe0] sm:$0xff]
    %v2196 = vld [vmem:[%s6 + $0xe8] sm:$0xff]
    %v2197 = vld [vmem:[%s6 + $0xf0] sm:$0xff]
    %v2198 = vld [vmem:[%s6 + $0xf8] sm:$0xff]
    %v2199 = vld [vmem:[%s7] sm:$0x1]
    %v2201 = vperm.slane %v2199, 0
    %2203 = vmatpush.msra.mxu0 %v2182
    %2204 = vmatpush.msra.mxu0 %v2181
    %2205 = vmatpush.msra.mxu0 %v2180
    %2206 = vmatpush.msra.mxu0 %v2179
    %2207 = vmatpush.msra.mxu0 %v2178
    %2208 = vmatpush.msra.mxu0 %v2177
    %2209 = vmatpush.msra.mxu0 %v2176
    %2210 = vmatpush.msra.mxu0 %v2175
    %2211 = vmatpush.msra.mxu0 %v2174
    %2212 = vmatpush.msra.mxu0 %v2173
    %2213 = vmatpush.msra.mxu0 %v2172
    %2214 = vmatpush.msra.mxu0 %v2171
    %2215 = vmatpush.msra.mxu0 %v2170
    %2216 = vmatpush.msra.mxu0 %v2169
    %2217 = vmatpush.msra.mxu0 %v2168
    %2218 = vmatpush.msra.mxu0 %v2167
    %2219 = vmatmul.f32.gmra.mxu0 %v2145
    %v2220 = vpop.f32.mrf.mxu0
    %v2221 = vadd.f32 %v2201, %v2220
    %2222 = vdwg.mxu0
    %2223 = vmatpush.msra.mxu0 %v2198
    %2224 = vmatpush.msra.mxu0 %v2197
    %2225 = vmatpush.msra.mxu0 %v2196
    %2226 = vmatpush.msra.mxu0 %v2195
    %2227 = vmatpush.msra.mxu0 %v2194
    %2228 = vmatpush.msra.mxu0 %v2193
    %2229 = vmatpush.msra.mxu0 %v2192
    %2230 = vmatpush.msra.mxu0 %v2191
    %2231 = vmatpush.msra.mxu0 %v2190
    %2232 = vmatpush.msra.mxu0 %v2189
    %2233 = vmatpush.msra.mxu0 %v2188
    %2234 = vmatpush.msra.mxu0 %v2187
    %2235 = vmatpush.msra.mxu0 %v2186
    %2236 = vmatpush.msra.mxu0 %v2185
    %2237 = vmatpush.msra.mxu0 %v2184
    %2238 = vmatpush.msra.mxu0 %v2183
    %2239 = vmatmul.f32.gmra.mxu0 %v2165
    %v2240 = vpop.f32.mrf.mxu0
    %v2241 = vadd.f32 %v2221, %v2240
    %2242 = vdwg.mxu0
    %vm2243 = vcmask 74752
    %2244 = vst.msk [vmem:[#allocation2] sm:$0x3] %vm2243, %v2241
    // Predicated region
    $region34: #{conv4_forward.7} parent=1 // pred_check
      _
    $region35: #{conv4_forward.7} parent=1 // pred_check_branch
      %2246 = sbr.rel (0) target = $region37
    $region36: #{conv4_forward.7} parent=1 // pred_region
      _
    $region37: #{conv4_forward.7} parent=1 // pred_fallthru
      _
    // Predicated region
    $region38: #{conv4_forward.7} parent=1 // pred_check
      _
    $region39: #{conv4_forward.7} parent=1 // pred_check_branch
      %2248 = sbr.rel (0) target = $region41
    $region40: #{conv4_forward.7} parent=1 // pred_region
      %2250 = vsyncadd [#allocation3], 0
      %s2252 = sshll.u32 [#allocation2], 4
      %s2253 = int_to_ptr.vmem [resolvable:$true] %s2252
      %s2254 = sshll.u32 %s9, 4
      %s2255 = int_to_ptr.hbm [resolvable:$true] %s2254
      %2257 = dma.vmem_to_hbm [thread:$0]  %s2253, 32, %s2255, [#allocation3]
    $region41: #{conv4_forward.7} parent=1 // pred_fallthru
      _
    // Predicated region
    $region42: #{conv4_forward.7} parent=1 // pred_check
      _
    $region43: #{conv4_forward.7} parent=1 // pred_check_branch
      %2259 = sbr.rel (0) target = $region45
    $region44: #{conv4_forward.7} parent=1 // pred_region
      _
    $region45: #{conv4_forward.7} parent=1 // pred_fallthru
      _
    // Predicated region
    $region46: #{conv4_forward.7} parent=1 // pred_check
      _
    $region47: #{conv4_forward.7} parent=1 // pred_check_branch
      %2261 = sbr.rel (0) target = $region49
    $region48: #{conv4_forward.7} parent=1 // pred_region
      %2263 = dma.done [#allocation3], 32
    $region49: #{conv4_forward.7} parent=1 // pred_fallthru
      _
    %2264 = vsyncpa [#allocation3], 1

</llo_original>
